<compile_context>
chip_gen: v7x
topology: tpu7x:2x2x1
jax: 0.10.0
libtpu: 0.0.40
codegen_flags: <defaults>
</compile_context>

<pallas_src>
import functools

import jax
import jax.numpy as jnp
from jax.experimental import pallas as pl
from jax.experimental.pallas import tpu as pltpu

NEG_SLOPE = 0.2      # GATv2Conv default negative_slope
BN_EPS = 1e-5        # BatchNorm1d default eps
NEG_INF = -1e30

_COMPILER_PARAMS = pltpu.CompilerParams(
    dimension_semantics=("parallel",),
    # explicit scoped-VMEM budget; raise toward ~100 MiB on v5e/v6e (128 MiB
    # physical), keep <=48 MiB on v7x (64 MiB physical).
    vmem_limit_bytes=32 * 1024 * 1024,
)


# ---------------------------------------------------------------------------
# small helpers
# ---------------------------------------------------------------------------
def _pick_block(n, prefs):
    for p in prefs:
        if p <= n and n % p == 0:
            return p
    return n


def _resident(shape):
    zeros = (0,) * len(shape)
    return pl.BlockSpec(shape, lambda i: zeros)


def _row_panel(tm, cols):
    return pl.BlockSpec((tm, cols), lambda i: (i, 0))


def _eye3(g):
    """[1, G, G] identity built in-register from 2-D broadcasted iotas."""
    r = jax.lax.broadcasted_iota(jnp.int32, (1, g, g), 1)
    c = jax.lax.broadcasted_iota(jnp.int32, (1, g, g), 2)
    return (r == c).astype(jnp.float32)


def _col_to_row(col, eye):
    """[Bg, G, 1] -> [Bg, 1, G] via identity-mask multiply + sublane reduce."""
    return jnp.sum(col * eye, axis=1, keepdims=True)


def _row_to_col(row, eye):
    """[Bg, 1, G] -> [Bg, G, 1] via identity-mask multiply + lane reduce."""
    return jnp.sum(row * eye, axis=2, keepdims=True)


def build_gene_graph_mask(edge_index, num_graphs, num_genes):
    """Block-diagonal [src, tgt] connectivity as int8 (4x less HBM than f32).

    Built once outside the jitted forward.  Data contract (asserted): every
    edge stays inside one gene graph and every node has a self loop (so the
    masked softmax max per target is always finite).
    """
    src, dst = edge_index[0], edge_index[1]
    assert bool(jnp.all(src // num_genes == dst // num_genes)), "cross-graph edge"
    mask = jnp.zeros((num_graphs, num_genes, num_genes), jnp.int8)
    mask = mask.at[src // num_genes, src % num_genes, dst % num_genes].set(1)
    assert bool(jnp.all(jnp.diagonal(mask, axis1=1, axis2=2) == 1)), "missing self loop"
    return mask


# ---------------------------------------------------------------------------
# inner_GNN kernels: one grid step == a block of Bg gene graphs, both paths
# ---------------------------------------------------------------------------
def _gatv2_attention(zl_col, zr_row, mask, att, bias_out):
    """Batched GATv2 attention in source-major ("transposed") orientation.

    zl_col [Bg,G,1] = lin_l(x) per source, zr_row [Bg,1,G] = lin_r(x) per
    target, mask[b,src,tgt] > 0 iff edge src->tgt (self loops included).
    Returns (out [Bg,1,G], alpha [Bg,G,G]) with alpha[b,src,tgt].
    """
    s = zl_col + zr_row                                # s[b,src,tgt]
    s = jnp.where(s >= 0.0, s, NEG_SLOPE * s)          # leaky relu
    e = jnp.where(mask > 0.0, att * s, NEG_INF)
    m = jnp.max(e, axis=1, keepdims=True)              # finite: self loops
    p = jnp.exp(e - m)                                 # masked entries -> 0
    denom = jnp.sum(p, axis=1, keepdims=True)
    r = pl.reciprocal(denom, approx=True)              # EUP, off the VALU
    r = r * (2.0 - denom * r)                          # one Newton step
    alpha = p * r
    out = jnp.sum(alpha * zl_col, axis=1, keepdims=True) + bias_out
    return out, alpha


def _gat_layer1_kernel(par_ref, w_ref, x_ref, xa_ref, mt_ref,
                       h1_ref, h1a_ref, a1_ref):
    """GATv2(F -> 1) on a block of Bg gene graphs for BOTH feature paths.

    par_ref SMEM (4,)      : [bl1, br1, att1, bo1]
    w_ref   VMEM (2,1,F)   : lane-resident [wl1; wr1]
    x_ref   VMEM (Bg,G,F)  : node features (genes on sublanes)
    xa_ref  VMEM (Bg,G,F)  : augmented node features
    mt_ref  VMEM (Bg,G,G)  : int8 edge mask [src, tgt] (shared by both paths)
    h1_ref/h1a_ref (Bg,1,G): pre-BN aggregated outputs
    a1_ref  VMEM (Bg,G,G)  : attention (graph_feat path only; x_a alpha is dead)
    """
    bl, br, att, bo = par_ref[0], par_ref[1], par_ref[2], par_ref[3]
    gd = x_ref.shape[1]
    w = w_ref[...]                       # [2,1,F]
    wl = w[0:1]                          # [1,1,F]
    wr = w[1:2]
    mask = mt_ref[...].astype(jnp.float32)
    eye = _eye3(gd)

    def one_path(xb):
        zl_col = jnp.sum(xb * wl, axis=2, keepdims=True) + bl      # [Bg,G,1]
        zr_col = jnp.sum(xb * wr, axis=2, keepdims=True) + br      # [Bg,G,1]
        zr_row = _col_to_row(zr_col, eye)                          # [Bg,1,G]
        return _gatv2_attention(zl_col, zr_row, mask, att, bo)

    out, alpha = one_path(x_ref[...])
    out_a, _ = one_path(xa_ref[...])
    h1_ref[...] = out
    h1a_ref[...] = out_a
    a1_ref[...] = alpha


def _gat_layer2_kernel(par_ref, h1_ref, h1a_ref, mt_ref, h2_ref, h2a_ref):
    """BatchNorm1 (folded scale/shift per path) + ReLU + GATv2(1 -> 1).

    par_ref SMEM (10,): [sc1, sh1, sc1_a, sh1_a, wl2, bl2, wr2, br2, att2, bo2]
    """
    wl2, bl2, wr2, br2, att2, bo2 = (par_ref[4], par_ref[5], par_ref[6],
                                     par_ref[7], par_ref[8], par_ref[9])
    gd = mt_ref.shape[1]
    mask = mt_ref[...].astype(jnp.float32)
    eye = _eye3(gd)

    def one_path(h_row, scale, shift):
        h_row = jnp.maximum(scale * h_row + shift, 0.0)            # BN1 + ReLU
        zr_row = wr2 * h_row + br2                                 # [Bg,1,G]
        zl_col = wl2 * _row_to_col(h_row, eye) + bl2               # [Bg,G,1]
        out, _ = _gatv2_attention(zl_col, zr_row, mask, att2, bo2)
        return out

    h2_ref[...] = one_path(h1_ref[...], par_ref[0], par_ref[1])
    h2a_ref[...] = one_path(h1a_ref[...], par_ref[2], par_ref[3])


def inner_gnn_forward_pair(x, x_a, edge_index, gene_mask, gnn_flat,
                           num_graphs, num_genes, bg=None):
    """inner_GNN forward for graph_feat and graph_feat_a, sharing the mask.

    Returns (z [num_graphs, G], z_a [num_graphs, G], alpha_edges [E, 1]).
    """
    _, f_in = x.shape
    gd = num_genes
    bg = bg or _pick_block(num_graphs, (32, 16, 8))
    assert num_graphs % bg == 0
    nblk = num_graphs // bg

    xg = x.reshape(num_graphs, gd, f_in)
    xag = x_a.reshape(num_graphs, gd, f_in)
    w_tile = jnp.stack([gnn_flat[:f_in], gnn_flat[f_in:2 * f_in]]).reshape(2, 1, f_in)
    b = 2 * f_in
    par1 = gnn_flat[b:b + 4]                              # bl1, br1, att1, bo1

    smem = pl.BlockSpec(memory_space=pltpu.MemorySpace.SMEM)
    blk_x = pl.BlockSpec((bg, gd, f_in), lambda i: (i, 0, 0))
    blk_gg = pl.BlockSpec((bg, gd, gd), lambda i: (i, 0, 0))
    blk_h = pl.BlockSpec((bg, 1, gd), lambda i: (i, 0, 0))

    h1, h1a, alpha = pl.pallas_call(
        _gat_layer1_kernel,
        grid=(nblk,),
        in_specs=[smem, _resident((2, 1, f_in)), blk_x, blk_x, blk_gg],
        out_specs=(blk_h, blk_h, blk_gg),
        out_shape=(jax.ShapeDtypeStruct((num_graphs, 1, gd), jnp.float32),
                   jax.ShapeDtypeStruct((num_graphs, 1, gd), jnp.float32),
                   jax.ShapeDtypeStruct((num_graphs, gd, gd), jnp.float32)),
        compiler_params=_COMPILER_PARAMS,
    )(par1, w_tile, xg, xag, gene_mask)

    # BatchNorm1: global batch statistics per path, folded into scale/shift.
    def fold(h_pre, gamma, beta):
        mean = jnp.mean(h_pre)
        var = jnp.mean((h_pre - mean) ** 2)
        scale = gamma * jax.lax.rsqrt(var + BN_EPS)
        return scale, beta - mean * scale

    sc1, sh1 = fold(h1, gnn_flat[b + 4], gnn_flat[b + 5])
    sc1a, sh1a = fold(h1a, gnn_flat[b + 4], gnn_flat[b + 5])
    par2 = jnp.concatenate([jnp.stack([sc1, sh1, sc1a, sh1a]),
                            gnn_flat[b + 6:b + 12]])

    h2, h2a = pl.pallas_call(
        _gat_layer2_kernel,
        grid=(nblk,),
        in_specs=[smem, blk_h, blk_h, blk_gg],
        out_specs=(blk_h, blk_h),
        out_shape=(jax.ShapeDtypeStruct((num_graphs, 1, gd), jnp.float32),
                   jax.ShapeDtypeStruct((num_graphs, 1, gd), jnp.float32)),
        compiler_params=_COMPILER_PARAMS,
    )(par2, h1, h1a, gene_mask)

    # BatchNorm2 + ReLU epilogue: global batch stats + elementwise, kept in JAX.
    # TODO(synk): BatchNorm running_mean/running_var buffer updates (a training
    # side effect) are not tracked; only the forward output is reproduced.
    def bn_relu(h_pre, gamma, beta):
        mean = jnp.mean(h_pre)
        var = jnp.mean((h_pre - mean) ** 2)
        return jnp.maximum(
            gamma * (h_pre - mean) * jax.lax.rsqrt(var + BN_EPS) + beta, 0.0)

    z = bn_relu(h2, gnn_flat[b + 12], gnn_flat[b + 13]).reshape(num_graphs, gd)
    z_a = bn_relu(h2a, gnn_flat[b + 12], gnn_flat[b + 13]).reshape(num_graphs, gd)

    # return_attention_weights=True edge-list format (same order as edge_index)
    src, dst = edge_index[0], edge_index[1]
    alpha_edges = alpha[src // gd, src % gd, dst % gd].reshape(-1, 1)
    return z, z_a, alpha_edges


# ---------------------------------------------------------------------------
# Encoder head: three row-panel-gridded kernels (project / propagate / finalize)
# ---------------------------------------------------------------------------
def _project_kernel(z_ref, za_ref, w1_ref, zw_ref):
    """[z @ W1 | z_a @ W1] for one row panel of spots."""
    # TODO(synk): F.dropout with the module default p=0.0 is the identity here.
    w1 = w1_ref[...]
    zw_ref[...] = jnp.concatenate(
        [jnp.dot(z_ref[...], w1, preferred_element_type=jnp.float32),
         jnp.dot(za_ref[...], w1, preferred_element_type=jnp.float32)], axis=1)


def _propagate_kernel(adj_ref, zw_ref, w2_ref, z1_ref, zw2_ref):
    """z1cat = adj @ [zW1 | z_aW1]  and  hiden_emb @ W2, one row panel at a time."""
    nh = w2_ref.shape[0]
    z1cat = jnp.dot(adj_ref[...], zw_ref[...], preferred_element_type=jnp.float32)
    z1_ref[...] = z1cat
    zw2_ref[...] = jnp.dot(z1cat[:, :nh], w2_ref[...],
                           preferred_element_type=jnp.float32)


def _finalize_kernel(adj_ref, gn_ref, z1full_ref, z1p_ref, zw2_ref,
                     wdt_ref, bd_ref, h_ref, logits_ref):
    """h = adj @ (hiden_emb @ W2), AvgReadout+sigmoid and Bilinear disc per panel."""
    nh = wdt_ref.shape[0]
    bd = bd_ref[0]
    adj = adj_ref[...]                                   # [TM, S]
    gn = gn_ref[...]                                     # [TM, S]

    h_ref[...] = jnp.dot(adj, zw2_ref[...], preferred_element_type=jnp.float32)

    # AvgReadout for both paths with a single gn GEMM (doubled MXU N dim)
    emb_full = jnp.maximum(z1full_ref[...], 0.0)                         # [S, 2*nh]
    vsum = jnp.dot(gn, emb_full, preferred_element_type=jnp.float32)     # [TM, 2*nh]
    row_sum = jnp.sum(gn, axis=1, keepdims=True)                         # [TM, 1]
    inv_rs = pl.reciprocal(row_sum, approx=True)
    inv_rs = inv_rs * (2.0 - row_sum * inv_rs)
    ge = vsum * inv_rs

    def norm_sigmoid(g2):                                # F.normalize(p=2) + sigmoid
        ss = jnp.sum(g2 * g2, axis=1, keepdims=True)
        g2 = g2 * jax.lax.rsqrt(jnp.maximum(ss, 1e-24))
        d = 1.0 + jnp.exp(-g2)
        r = pl.reciprocal(d, approx=True)
        return r * (2.0 - d * r)

    c = norm_sigmoid(ge[:, :nh])
    c_a = norm_sigmoid(ge[:, nh:])

    embp = jnp.maximum(z1p_ref[...], 0.0)                # this panel's emb rows
    emb = embp[:, :nh]
    emb_a = embp[:, nh:]
    t = jnp.dot(c, wdt_ref[...], preferred_element_type=jnp.float32)     # hoisted
    t_a = jnp.dot(c_a, wdt_ref[...], preferred_element_type=jnp.float32)
    logits_ref[...] = jnp.concatenate(                   # one lane-dense slab store
        [jnp.sum(emb * t, axis=1, keepdims=True) + bd,
         jnp.sum(emb_a * t, axis=1, keepdims=True) + bd,
         jnp.sum(emb_a * t_a, axis=1, keepdims=True) + bd,
         jnp.sum(emb * t_a, axis=1, keepdims=True) + bd], axis=1)


def encoder_head(z, z_a, adj, graph_neigh, w1, w2, wd, bd, tm=None):
    spots, in_f = z.shape
    out_f = w1.shape[1]
    tm = tm or _pick_block(spots, (256, 128, 64, 32, 16, 8))
    assert spots % tm == 0
    nblk = spots // tm
    smem = pl.BlockSpec(memory_space=pltpu.MemorySpace.SMEM)

    zw = pl.pallas_call(
        _project_kernel,
        grid=(nblk,),
        in_specs=[_row_panel(tm, in_f), _row_panel(tm, in_f),
                  _resident((in_f, out_f))],
        out_specs=_row_panel(tm, 2 * out_f),
        out_shape=jax.ShapeDtypeStruct((spots, 2 * out_f), jnp.float32),
        compiler_params=_COMPILER_PARAMS,
    )(z, z_a, w1)

    z1cat, zw2 = pl.pallas_call(
        _propagate_kernel,
        grid=(nblk,),
        in_specs=[_row_panel(tm, spots), _resident((spots, 2 * out_f)),
                  _resident((out_f, in_f))],
        out_specs=(_row_panel(tm, 2 * out_f), _row_panel(tm, in_f)),
        out_shape=(jax.ShapeDtypeStruct((spots, 2 * out_f), jnp.float32),
                   jax.ShapeDtypeStruct((spots, in_f), jnp.float32)),
        compiler_params=_COMPILER_PARAMS,
    )(adj, zw, w2)

    h, logits = pl.pallas_call(
        _finalize_kernel,
        grid=(nblk,),
        in_specs=[_row_panel(tm, spots), _row_panel(tm, spots),
                  _resident((spots, 2 * out_f)), _row_panel(tm, 2 * out_f),
                  _resident((spots, in_f)), _resident((out_f, out_f)), smem],
        out_specs=(_row_panel(tm, in_f), _row_panel(tm, 4)),
        out_shape=(jax.ShapeDtypeStruct((spots, in_f), jnp.float32),
                   jax.ShapeDtypeStruct((spots, 4), jnp.float32)),
        compiler_params=_COMPILER_PARAMS,
    )(adj, graph_neigh, z1cat, z1cat, zw2, wd.T, jnp.reshape(bd, (1,)))

    hiden_emb = z1cat[:, :out_f]
    return hiden_emb, h, logits[:, 0:2], logits[:, 2:4]


def encoder_forward(feat, feat_a, adj, graph_x, graph_x_a, edge_index, gene_mask,
                    graph_neigh, gnn_flat, w1, w2, wd, bd, *,
                    num_graphs, num_genes, bg=None, tm=None):
    """Encoder.forward.  feat / feat_a are unused (as in the PyTorch forward)."""
    del feat, feat_a
    z, z_a, alpha_edges = inner_gnn_forward_pair(
        graph_x, graph_x_a, edge_index, gene_mask, gnn_flat,
        num_graphs, num_genes, bg=bg)
    inner = z
    hiden_emb, h, ret, ret_a = encoder_head(
        z, z_a, adj, graph_neigh, w1, w2, wd, bd, tm=tm)
    return hiden_emb, h, ret, ret_a, inner, (edge_index, alpha_edges), 0


# ---------------------------------------------------------------------------
# Pure-JAX reference (dense N x N formulation) for verification
# ---------------------------------------------------------------------------
def _ref_inner(x, edge_index, flat, num_graphs):
    n, f_in = x.shape
    a_dense = jnp.zeros((n, n), jnp.float32).at[edge_index[1], edge_index[0]].set(1.0)
    base = 2 * f_in
    wl1, wr1 = flat[:f_in], flat[f_in:2 * f_in]
    (bl1, br1, att1, bo1, g1, be1, _, bl2, _, br2,
     att2, bo2, g2, be2) = [flat[base + i] for i in range(14)]
    wl2, wr2 = flat[base + 6:base + 7], flat[base + 8:base + 9]

    def gat(h, wl, bl, wr, br, att, bo):
        zl = jnp.sum(h * wl[None, :], axis=1, keepdims=True) + bl
        zr = jnp.sum(h * wr[None, :], axis=1, keepdims=True) + br
        s = zr + zl.T
        s = jnp.where(s >= 0.0, s, NEG_SLOPE * s)
        e = jnp.where(a_dense > 0.0, att * s, NEG_INF)
        e = e - jnp.max(e, axis=1, keepdims=True)
        p = jnp.exp(e) * (a_dense > 0.0)
        alpha = p / jnp.sum(p, axis=1, keepdims=True)
        return jnp.dot(alpha, zl, precision="highest") + bo, alpha

    def bn_relu(h, gamma, beta):
        m = jnp.mean(h)
        v = jnp.mean((h - m) ** 2)
        return jnp.maximum(gamma * (h - m) * jax.lax.rsqrt(v + BN_EPS) + beta, 0.0)

    h1, a1 = gat(x, wl1, bl1, wr1, br1, att1, bo1)
    h1 = bn_relu(h1, g1, be1)
    h2, _ = gat(h1, wl2, bl2, wr2, br2, att2, bo2)
    h2 = bn_relu(h2, g2, be2)
    alpha_edges = a1[edge_index[1], edge_index[0]].reshape(-1, 1)
    return h2.reshape(num_graphs, -1), alpha_edges


def _ref_encoder(adj, graph_x, graph_x_a, edge_index, graph_neigh,
                 flat, w1, w2, wd, bd, num_graphs):
    dot = functools.partial(jnp.dot, precision="highest")
    z, alpha_edges = _ref_inner(graph_x, edge_index, flat, num_graphs)
    z_a, _ = _ref_inner(graph_x_a, edge_index, flat, num_graphs)
    z1 = dot(adj, dot(z, w1))
    h = dot(adj, dot(z1, w2))
    emb = jnp.maximum(z1, 0.0)
    emb_a = jnp.maximum(dot(adj, dot(z_a, w1)), 0.0)

    def read(e):
        ge = dot(graph_neigh, e) / jnp.sum(graph_neigh, axis=1, keepdims=True)
        norm = jnp.sqrt(jnp.sum(ge * ge, axis=1, keepdims=True))
        return jax.nn.sigmoid(ge / jnp.maximum(norm, 1e-12))

    c, c_a = read(emb), read(emb_a)

    def bil(x1, x2):
        return jnp.sum(x1 * dot(x2, wd.T), axis=1, keepdims=True) + bd

    ret = jnp.concatenate([bil(emb, c), bil(emb_a, c)], axis=1)
    ret_a = jnp.concatenate([bil(emb_a, c_a), bil(emb, c_a)], axis=1)
    return z1, h, ret, ret_a, z, alpha_edges


if __name__ == "__main__":
    key = jax.random.PRNGKey(0)
    num_spots = 64           # Encoder batch of spots == inner_GNN num_graphs
    in_features = 16         # == num_genes (gene-graph nodes per spot)
    out_features = 8
    f_node = 1               # inner_GNN num_node_features
    n_nodes = num_spots * in_features

    ks = jax.random.split(key, 13)
    graph_x = jax.random.normal(ks[0], (n_nodes, f_node), jnp.float32)
    graph_x_a = jax.random.normal(ks[1], (n_nodes, f_node), jnp.float32)
    feat = jax.random.normal(ks[2], (num_spots, in_features), jnp.float32)
    feat_a = jax.random.normal(ks[3], (num_spots, in_features), jnp.float32)

    # gene-graph edges: bidirectional ring inside each graph, plus self loops
    src, dst = [], []
    for gidx in range(num_spots):
        b0 = gidx * in_features
        for i in range(in_features):
            j = (i + 1) % in_features
            src += [b0 + i, b0 + j]
            dst += [b0 + j, b0 + i]
    for i in range(n_nodes):
        src.append(i)
        dst.append(i)
    edge_index = jnp.array([src, dst], dtype=jnp.int32)

    # int8 connectivity mask, built ONCE outside the jitted forward
    gene_mask = build_gene_graph_mask(edge_index, num_spots, in_features)

    # spot graph: binary neighbourhood (graph_neigh) and row-normalized adj
    neigh = jnp.eye(num_spots, dtype=jnp.float32)
    ridx = jnp.arange(num_spots)
    neigh = neigh.at[ridx, (ridx + 1) % num_spots].set(1.0)
    neigh = neigh.at[ridx, (ridx - 1) % num_spots].set(1.0)
    adj = neigh / jnp.sum(neigh, axis=1, keepdims=True)
    graph_neigh = neigh

    def glorot(k, fan_in, fan_out, shape):
        lim = (6.0 / (fan_in + fan_out)) ** 0.5
        return jax.random.uniform(k, shape, jnp.float32, -lim, lim)

    # inner_GNN parameters packed into ONE flat f32 vector:
    # [wl1(F), wr1(F), bl1, br1, att1, bo1, g1, be1,
    #  wl2, bl2, wr2, br2, att2, bo2, g2, be2]
    zero1 = jnp.zeros((1,), jnp.float32)
    one1 = jnp.ones((1,), jnp.float32)
    gnn_flat = jnp.concatenate([
        glorot(ks[4], f_node, 1, (f_node,)),          # wl1
        glorot(ks[5], f_node, 1, (f_node,)),          # wr1
        zero1, zero1,                                 # bl1, br1
        glorot(ks[6], 1, 1, (1,)), zero1,             # att1, bo1
        one1, zero1,                                  # bn1 gamma, beta
        glorot(ks[7], 1, 1, (1,)), zero1,             # wl2, bl2
        glorot(ks[8], 1, 1, (1,)), zero1,             # wr2, br2
        glorot(ks[9], 1, 1, (1,)), zero1,             # att2, bo2
        one1, zero1,                                  # bn2 gamma, beta
    ])

    w1 = glorot(ks[10], in_features, out_features, (in_features, out_features))
    w2 = glorot(ks[11], out_features, in_features, (out_features, in_features))
    wd = glorot(ks[12], out_features, out_features, (out_features, out_features))
    bd = jnp.zeros((), jnp.float32)

    fwd = jax.jit(functools.partial(
        encoder_forward, num_graphs=num_spots, num_genes=in_features,
        bg=16, tm=16))
    hiden_emb, h, ret, ret_a, inner, a1, a2 = fwd(
        feat, feat_a, adj, graph_x, graph_x_a, edge_index, gene_mask,
        graph_neigh, gnn_flat, w1, w2, wd, bd)
    jax.block_until_ready((hiden_emb, h, ret, ret_a, inner, a1[1]))

    # sanity check vs pure-JAX dense reference
    r_hid, r_h, r_ret, r_reta, r_inner, r_alpha = _ref_encoder(
        adj, graph_x, graph_x_a, edge_index, graph_neigh,
        gnn_flat, w1, w2, wd, bd, num_spots)

    tol = dict(atol=2e-3, rtol=2e-3)
    assert hiden_emb.shape == (num_spots, out_features)
    assert h.shape == (num_spots, in_features)
    assert ret.shape == (num_spots, 2) and ret_a.shape == (num_spots, 2)
    assert inner.shape == (num_spots, in_features)
    assert a1[1].shape == (edge_index.shape[1], 1)
    assert int(a2) == 0
    assert jnp.allclose(inner, r_inner, **tol), "inner GNN output mismatch"
    assert jnp.allclose(a1[1], r_alpha, **tol), "attention weights mismatch"
    assert jnp.allclose(hiden_emb, r_hid, **tol), "hiden_emb mismatch"
    assert jnp.allclose(h, r_h, **tol), "h mismatch"
    assert jnp.allclose(ret, r_ret, **tol), "ret mismatch"
    assert jnp.allclose(ret_a, r_reta, **tol), "ret_a mismatch"

    print("KERNEL_OK")
</pallas_src>

<mosaic_0001>
module attributes {stable_mosaic.version = 11 : i64} {
  func.func private @main(%arg0: i32) attributes {dimension_semantics = [#tpu.dimension_semantics<core_parallel>], iteration_bounds = array<i64: 2>, tpu.core_type = #tpu.core_type<sc_scalar_subcore>, window_params = []} {
    return
  }
}

module attributes {stable_mosaic.version = 11 : i64} {
  func.func private @main(%arg0: i32) attributes {dimension_semantics = [#tpu.dimension_semantics<core_parallel>], iteration_bounds = array<i64: 2>, tpu.core_type = #tpu.core_type<sc_scalar_subcore>, window_params = []} {
    return
  }
}

module attributes {stable_mosaic.version = 11 : i64} {
  func.func @_gat_layer1_kernel(%arg0: i32, %arg1: memref<4xf32, #tpu.memory_space<smem>>, %arg2: memref<2x1x1xf32, #tpu.memory_space<vmem>>, %arg3: memref<16x16x1xf32, #tpu.memory_space<vmem>>, %arg4: memref<16x16x1xf32, #tpu.memory_space<vmem>>, %arg5: memref<16x16x16xi8, #tpu.memory_space<vmem>>, %arg6: memref<16x1x16xf32, #tpu.memory_space<vmem>>, %arg7: memref<16x1x16xf32, #tpu.memory_space<vmem>>, %arg8: memref<16x16x16xf32, #tpu.memory_space<vmem>>) attributes {dimension_semantics = [#tpu.dimension_semantics<parallel>], iteration_bounds = array<i64: 4>, scalar_prefetch = 0 : i64, scratch_operands = 0 : i64, tpu.core_type = #tpu.core_type<tc>, window_params = [{transform_indices = @transform_0, window_bounds = array<i64: 4>}, {pipeline_mode = #tpu.pipeline_mode<synchronous>, transform_indices = @transform_1, window_bounds = array<i64: 2, 1, 1>}, {transform_indices = @transform_2, window_bounds = array<i64: 16, 16, 1>}, {transform_indices = @transform_3, window_bounds = array<i64: 16, 16, 1>}, {transform_indices = @transform_4, window_bounds = array<i64: 16, 16, 16>}, {transform_indices = @transform_5, window_bounds = array<i64: 16, 1, 16>}, {transform_indices = @transform_6, window_bounds = array<i64: 16, 1, 16>}, {transform_indices = @transform_7, window_bounds = array<i64: 16, 16, 16>}]} {
    %c0 = arith.constant 0 : index
    %0 = memref.load %arg1[%c0] : memref<4xf32, #tpu.memory_space<smem>>
    %c1 = arith.constant 1 : index
    %1 = memref.load %arg1[%c1] : memref<4xf32, #tpu.memory_space<smem>>
    %c2 = arith.constant 2 : index
    %2 = memref.load %arg1[%c2] : memref<4xf32, #tpu.memory_space<smem>>
    %c3 = arith.constant 3 : index
    %3 = memref.load %arg1[%c3] : memref<4xf32, #tpu.memory_space<smem>>
    %c0_0 = arith.constant 0 : index
    %c0_1 = arith.constant 0 : index
    %c0_2 = arith.constant 0 : index
    %4 = vector.load %arg2[%c0_0, %c0_1, %c0_2] : memref<2x1x1xf32, #tpu.memory_space<vmem>>, vector<2x1x1xf32>
    %5 = vector.extract_strided_slice %4 {offsets = [0, 0, 0], sizes = [1, 1, 1], strides = [1, 1, 1]} : vector<2x1x1xf32> to vector<1x1x1xf32>
    %6 = vector.extract_strided_slice %4 {offsets = [1, 0, 0], sizes = [1, 1, 1], strides = [1, 1, 1]} : vector<2x1x1xf32> to vector<1x1x1xf32>
    %c0_3 = arith.constant 0 : index
    %c0_4 = arith.constant 0 : index
    %c0_5 = arith.constant 0 : index
    %7 = vector.load %arg5[%c0_3, %c0_4, %c0_5] : memref<16x16x16xi8, #tpu.memory_space<vmem>>, vector<16x16x16xi8>
    %8 = arith.sitofp %7 : vector<16x16x16xi8> to vector<16x16x16xf32>
    %9 = tpu.iota {dimensions = array<i32: 1>} : vector<1x16x16xi32>
    %10 = tpu.iota {dimensions = array<i32: 2>} : vector<1x16x16xi32>
    %11 = arith.cmpi eq, %9, %10 : vector<1x16x16xi32>
    %12 = arith.extui %11 : vector<1x16x16xi1> to vector<1x16x16xi32>
    %13 = arith.sitofp %12 : vector<1x16x16xi32> to vector<1x16x16xf32>
    %c0_6 = arith.constant 0 : index
    %c0_7 = arith.constant 0 : index
    %c0_8 = arith.constant 0 : index
    %14 = vector.load %arg3[%c0_6, %c0_7, %c0_8] : memref<16x16x1xf32, #tpu.memory_space<vmem>>, vector<16x16x1xf32>
    %15 = vector.broadcast %5 : vector<1x1x1xf32> to vector<16x16x1xf32>
    %16 = arith.mulf %14, %15 : vector<16x16x1xf32>
    %cst = arith.constant dense<0.000000e+00> : vector<16x16xf32>
    %17 = vector.multi_reduction <add>, %16, %cst [2] : vector<16x16x1xf32> to vector<16x16xf32>
    %18 = vector.shape_cast %17 : vector<16x16xf32> to vector<16x16x1xf32>
    %19 = vector.broadcast %0 : f32 to vector<16x16x1xf32>
    %20 = arith.addf %18, %19 : vector<16x16x1xf32>
    %21 = vector.broadcast %6 : vector<1x1x1xf32> to vector<16x16x1xf32>
    %22 = arith.mulf %14, %21 : vector<16x16x1xf32>
    %cst_9 = arith.constant dense<0.000000e+00> : vector<16x16xf32>
    %23 = vector.multi_reduction <add>, %22, %cst_9 [2] : vector<16x16x1xf32> to vector<16x16xf32>
    %24 = vector.shape_cast %23 : vector<16x16xf32> to vector<16x16x1xf32>
    %25 = vector.broadcast %1 : f32 to vector<16x16x1xf32>
    %26 = arith.addf %24, %25 : vector<16x16x1xf32>
    %27 = vector.broadcast %26 : vector<16x16x1xf32> to vector<16x16x16xf32>
    %28 = vector.broadcast %13 : vector<1x16x16xf32> to vector<16x16x16xf32>
    %29 = arith.mulf %27, %28 : vector<16x16x16xf32>
    %cst_10 = arith.constant dense<0.000000e+00> : vector<16x16xf32>
    %30 = vector.multi_reduction <add>, %29, %cst_10 [1] : vector<16x16x16xf32> to vector<16x16xf32>
    %31 = vector.shape_cast %30 : vector<16x16xf32> to vector<16x1x16xf32>
    %32 = vector.broadcast %20 : vector<16x16x1xf32> to vector<16x16x16xf32>
    %33 = vector.broadcast %31 : vector<16x1x16xf32> to vector<16x16x16xf32>
    %34 = arith.addf %32, %33 : vector<16x16x16xf32>
    %cst_11 = arith.constant 0.000000e+00 : f32
    %35 = vector.broadcast %cst_11 : f32 to vector<16x16x16xf32>
    %36 = arith.cmpf oge, %34, %35 : vector<16x16x16xf32>
    %cst_12 = arith.constant 2.000000e-01 : f32
    %37 = vector.broadcast %cst_12 : f32 to vector<16x16x16xf32>
    %38 = arith.mulf %37, %34 : vector<16x16x16xf32>
    %39 = arith.select %36, %34, %38 : vector<16x16x16xi1>, vector<16x16x16xf32>
    %cst_13 = arith.constant 0.000000e+00 : f32
    %40 = vector.broadcast %cst_13 : f32 to vector<16x16x16xf32>
    %41 = arith.cmpf ogt, %8, %40 : vector<16x16x16xf32>
    %42 = vector.broadcast %2 : f32 to vector<16x16x16xf32>
    %43 = arith.mulf %42, %39 : vector<16x16x16xf32>
    %cst_14 = arith.constant -1.000000e+30 : f32
    %44 = vector.broadcast %cst_14 : f32 to vector<16x16x16xf32>
    %45 = arith.select %41, %43, %44 : vector<16x16x16xi1>, vector<16x16x16xf32>
    %cst_15 = arith.constant dense<0xFF800000> : vector<16x16xf32>
    %46 = vector.multi_reduction <maximumf>, %45, %cst_15 [1] : vector<16x16x16xf32> to vector<16x16xf32>
    %47 = vector.shape_cast %46 : vector<16x16xf32> to vector<16x1x16xf32>
    %48 = vector.broadcast %47 : vector<16x1x16xf32> to vector<16x16x16xf32>
    %49 = arith.subf %45, %48 : vector<16x16x16xf32>
    %50 = math.exp %49 : vector<16x16x16xf32>
    %cst_16 = arith.constant dense<0.000000e+00> : vector<16x16xf32>
    %51 = vector.multi_reduction <add>, %50, %cst_16 [1] : vector<16x16x16xf32> to vector<16x16xf32>
    %52 = vector.shape_cast %51 : vector<16x16xf32> to vector<16x1x16xf32>
    %53 = tpu.reciprocal %52 {approx = true} : vector<16x1x16xf32> -> vector<16x1x16xf32>
    %54 = arith.mulf %52, %53 : vector<16x1x16xf32>
    %cst_17 = arith.constant 2.000000e+00 : f32
    %55 = vector.broadcast %cst_17 : f32 to vector<16x1x16xf32>
    %56 = arith.subf %55, %54 : vector<16x1x16xf32>
    %57 = arith.mulf %53, %56 : vector<16x1x16xf32>
    %58 = vector.broadcast %57 : vector<16x1x16xf32> to vector<16x16x16xf32>
    %59 = arith.mulf %50, %58 : vector<16x16x16xf32>
    %60 = vector.broadcast %20 : vector<16x16x1xf32> to vector<16x16x16xf32>
    %61 = arith.mulf %59, %60 : vector<16x16x16xf32>
    %cst_18 = arith.constant dense<0.000000e+00> : vector<16x16xf32>
    %62 = vector.multi_reduction <add>, %61, %cst_18 [1] : vector<16x16x16xf32> to vector<16x16xf32>
    %63 = vector.shape_cast %62 : vector<16x16xf32> to vector<16x1x16xf32>
    %64 = vector.broadcast %3 : f32 to vector<16x1x16xf32>
    %65 = arith.addf %63, %64 : vector<16x1x16xf32>
    %c0_19 = arith.constant 0 : index
    %c0_20 = arith.constant 0 : index
    %c0_21 = arith.constant 0 : index
    %66 = vector.load %arg4[%c0_19, %c0_20, %c0_21] : memref<16x16x1xf32, #tpu.memory_space<vmem>>, vector<16x16x1xf32>
    %67 = vector.broadcast %5 : vector<1x1x1xf32> to vector<16x16x1xf32>
    %68 = arith.mulf %66, %67 : vector<16x16x1xf32>
    %cst_22 = arith.constant dense<0.000000e+00> : vector<16x16xf32>
    %69 = vector.multi_reduction <add>, %68, %cst_22 [2] : vector<16x16x1xf32> to vector<16x16xf32>
    %70 = vector.shape_cast %69 : vector<16x16xf32> to vector<16x16x1xf32>
    %71 = vector.broadcast %0 : f32 to vector<16x16x1xf32>
    %72 = arith.addf %70, %71 : vector<16x16x1xf32>
    %73 = vector.broadcast %6 : vector<1x1x1xf32> to vector<16x16x1xf32>
    %74 = arith.mulf %66, %73 : vector<16x16x1xf32>
    %cst_23 = arith.constant dense<0.000000e+00> : vector<16x16xf32>
    %75 = vector.multi_reduction <add>, %74, %cst_23 [2] : vector<16x16x1xf32> to vector<16x16xf32>
    %76 = vector.shape_cast %75 : vector<16x16xf32> to vector<16x16x1xf32>
    %77 = vector.broadcast %1 : f32 to vector<16x16x1xf32>
    %78 = arith.addf %76, %77 : vector<16x16x1xf32>
    %79 = vector.broadcast %78 : vector<16x16x1xf32> to vector<16x16x16xf32>
    %80 = vector.broadcast %13 : vector<1x16x16xf32> to vector<16x16x16xf32>
    %81 = arith.mulf %79, %80 : vector<16x16x16xf32>
    %cst_24 = arith.constant dense<0.000000e+00> : vector<16x16xf32>
    %82 = vector.multi_reduction <add>, %81, %cst_24 [1] : vector<16x16x16xf32> to vector<16x16xf32>
    %83 = vector.shape_cast %82 : vector<16x16xf32> to vector<16x1x16xf32>
    %84 = vector.broadcast %72 : vector<16x16x1xf32> to vector<16x16x16xf32>
    %85 = vector.broadcast %83 : vector<16x1x16xf32> to vector<16x16x16xf32>
    %86 = arith.addf %84, %85 : vector<16x16x16xf32>
    %cst_25 = arith.constant 0.000000e+00 : f32
    %87 = vector.broadcast %cst_25 : f32 to vector<16x16x16xf32>
    %88 = arith.cmpf oge, %86, %87 : vector<16x16x16xf32>
    %cst_26 = arith.constant 2.000000e-01 : f32
    %89 = vector.broadcast %cst_26 : f32 to vector<16x16x16xf32>
    %90 = arith.mulf %89, %86 : vector<16x16x16xf32>
    %91 = arith.select %88, %86, %90 : vector<16x16x16xi1>, vector<16x16x16xf32>
    %cst_27 = arith.constant 0.000000e+00 : f32
    %92 = vector.broadcast %cst_27 : f32 to vector<16x16x16xf32>
    %93 = arith.cmpf ogt, %8, %92 : vector<16x16x16xf32>
    %94 = vector.broadcast %2 : f32 to vector<16x16x16xf32>
    %95 = arith.mulf %94, %91 : vector<16x16x16xf32>
    %cst_28 = arith.constant -1.000000e+30 : f32
    %96 = vector.broadcast %cst_28 : f32 to vector<16x16x16xf32>
    %97 = arith.select %93, %95, %96 : vector<16x16x16xi1>, vector<16x16x16xf32>
    %cst_29 = arith.constant dense<0xFF800000> : vector<16x16xf32>
    %98 = vector.multi_reduction <maximumf>, %97, %cst_29 [1] : vector<16x16x16xf32> to vector<16x16xf32>
    %99 = vector.shape_cast %98 : vector<16x16xf32> to vector<16x1x16xf32>
    %100 = vector.broadcast %99 : vector<16x1x16xf32> to vector<16x16x16xf32>
    %101 = arith.subf %97, %100 : vector<16x16x16xf32>
    %102 = math.exp %101 : vector<16x16x16xf32>
    %cst_30 = arith.constant dense<0.000000e+00> : vector<16x16xf32>
    %103 = vector.multi_reduction <add>, %102, %cst_30 [1] : vector<16x16x16xf32> to vector<16x16xf32>
    %104 = vector.shape_cast %103 : vector<16x16xf32> to vector<16x1x16xf32>
    %105 = tpu.reciprocal %104 {approx = true} : vector<16x1x16xf32> -> vector<16x1x16xf32>
    %106 = arith.mulf %104, %105 : vector<16x1x16xf32>
    %cst_31 = arith.constant 2.000000e+00 : f32
    %107 = vector.broadcast %cst_31 : f32 to vector<16x1x16xf32>
    %108 = arith.subf %107, %106 : vector<16x1x16xf32>
    %109 = arith.mulf %105, %108 : vector<16x1x16xf32>
    %110 = vector.broadcast %109 : vector<16x1x16xf32> to vector<16x16x16xf32>
    %111 = arith.mulf %102, %110 : vector<16x16x16xf32>
    %112 = vector.broadcast %72 : vector<16x16x1xf32> to vector<16x16x16xf32>
    %113 = arith.mulf %111, %112 : vector<16x16x16xf32>
    %cst_32 = arith.constant dense<0.000000e+00> : vector<16x16xf32>
    %114 = vector.multi_reduction <add>, %113, %cst_32 [1] : vector<16x16x16xf32> to vector<16x16xf32>
    %115 = vector.shape_cast %114 : vector<16x16xf32> to vector<16x1x16xf32>
    %116 = vector.broadcast %3 : f32 to vector<16x1x16xf32>
    %117 = arith.addf %115, %116 : vector<16x1x16xf32>
    %c0_33 = arith.constant 0 : index
    %c0_34 = arith.constant 0 : index
    %c0_35 = arith.constant 0 : index
    %118 = vector.load %arg6[%c0_33, %c0_34, %c0_35] : memref<16x1x16xf32, #tpu.memory_space<vmem>>, vector<16x1x16xf32>
    tpu.vector_store %arg6[%c0_33, %c0_34, %c0_35], %65 {strides = array<i32>} : memref<16x1x16xf32, #tpu.memory_space<vmem>>, vector<16x1x16xf32>,
    %c0_36 = arith.constant 0 : index
    %c0_37 = arith.constant 0 : index
    %c0_38 = arith.constant 0 : index
    %119 = vector.load %arg7[%c0_36, %c0_37, %c0_38] : memref<16x1x16xf32, #tpu.memory_space<vmem>>, vector<16x1x16xf32>
    tpu.vector_store %arg7[%c0_36, %c0_37, %c0_38], %117 {strides = array<i32>} : memref<16x1x16xf32, #tpu.memory_space<vmem>>, vector<16x1x16xf32>,
    %c0_39 = arith.constant 0 : index
    %c0_40 = arith.constant 0 : index
    %c0_41 = arith.constant 0 : index
    %120 = vector.load %arg8[%c0_39, %c0_40, %c0_41] : memref<16x16x16xf32, #tpu.memory_space<vmem>>, vector<16x16x16xf32>
    tpu.vector_store %arg8[%c0_39, %c0_40, %c0_41], %59 {strides = array<i32>} : memref<16x16x16xf32, #tpu.memory_space<vmem>>, vector<16x16x16xf32>,
    return
  }
  func.func @transform_0(%arg0: i32) -> i32 {
    %c0_i32 = arith.constant 0 : i32
    %c0_i32_0 = arith.constant 0 : i32
    return %c0_i32 : i32
  }
  func.func @transform_1(%arg0: i32) -> (i32, i32, i32) {
    %c0_i32 = arith.constant 0 : i32
    %c0_i32_0 = arith.constant 0 : i32
    %c0_i32_1 = arith.constant 0 : i32
    %c0_i32_2 = arith.constant 0 : i32
    return %c0_i32, %c0_i32_0, %c0_i32_1 : i32, i32, i32
  }
  func.func @transform_2(%arg0: i32) -> (i32, i32, i32) {
    %c0_i32 = arith.constant 0 : i32
    %c0_i32_0 = arith.constant 0 : i32
    %c0_i32_1 = arith.constant 0 : i32
    return %arg0, %c0_i32, %c0_i32_0 : i32, i32, i32
  }
  func.func @transform_3(%arg0: i32) -> (i32, i32, i32) {
    %c0_i32 = arith.constant 0 : i32
    %c0_i32_0 = arith.constant 0 : i32
    %c0_i32_1 = arith.constant 0 : i32
    return %arg0, %c0_i32, %c0_i32_0 : i32, i32, i32
  }
  func.func @transform_4(%arg0: i32) -> (i32, i32, i32) {
    %c0_i32 = arith.constant 0 : i32
    %c0_i32_0 = arith.constant 0 : i32
    %c0_i32_1 = arith.constant 0 : i32
    return %arg0, %c0_i32, %c0_i32_0 : i32, i32, i32
  }
  func.func @transform_5(%arg0: i32) -> (i32, i32, i32) {
    %c0_i32 = arith.constant 0 : i32
    %c0_i32_0 = arith.constant 0 : i32
    %c0_i32_1 = arith.constant 0 : i32
    return %arg0, %c0_i32, %c0_i32_0 : i32, i32, i32
  }
  func.func @transform_6(%arg0: i32) -> (i32, i32, i32) {
    %c0_i32 = arith.constant 0 : i32
    %c0_i32_0 = arith.constant 0 : i32
    %c0_i32_1 = arith.constant 0 : i32
    return %arg0, %c0_i32, %c0_i32_0 : i32, i32, i32
  }
  func.func @transform_7(%arg0: i32) -> (i32, i32, i32) {
    %c0_i32 = arith.constant 0 : i32
    %c0_i32_0 = arith.constant 0 : i32
    %c0_i32_1 = arith.constant 0 : i32
    return %arg0, %c0_i32, %c0_i32_0 : i32, i32, i32
  }
}

module attributes {stable_mosaic.version = 11 : i64} {
  func.func @_gat_layer2_kernel(%arg0: i32, %arg1: memref<10xf32, #tpu.memory_space<smem>>, %arg2: memref<16x1x16xf32, #tpu.memory_space<vmem>>, %arg3: memref<16x1x16xf32, #tpu.memory_space<vmem>>, %arg4: memref<16x16x16xi8, #tpu.memory_space<vmem>>, %arg5: memref<16x1x16xf32, #tpu.memory_space<vmem>>, %arg6: memref<16x1x16xf32, #tpu.memory_space<vmem>>) attributes {dimension_semantics = [#tpu.dimension_semantics<parallel>], iteration_bounds = array<i64: 4>, scalar_prefetch = 0 : i64, scratch_operands = 0 : i64, tpu.core_type = #tpu.core_type<tc>, window_params = [{transform_indices = @transform_0, window_bounds = array<i64: 10>}, {transform_indices = @transform_1, window_bounds = array<i64: 16, 1, 16>}, {transform_indices = @transform_2, window_bounds = array<i64: 16, 1, 16>}, {transform_indices = @transform_3, window_bounds = array<i64: 16, 16, 16>}, {transform_indices = @transform_4, window_bounds = array<i64: 16, 1, 16>}, {transform_indices = @transform_5, window_bounds = array<i64: 16, 1, 16>}]} {
    %c4 = arith.constant 4 : index
    %0 = memref.load %arg1[%c4] : memref<10xf32, #tpu.memory_space<smem>>
    %c5 = arith.constant 5 : index
    %1 = memref.load %arg1[%c5] : memref<10xf32, #tpu.memory_space<smem>>
    %c6 = arith.constant 6 : index
    %2 = memref.load %arg1[%c6] : memref<10xf32, #tpu.memory_space<smem>>
    %c7 = arith.constant 7 : index
    %3 = memref.load %arg1[%c7] : memref<10xf32, #tpu.memory_space<smem>>
    %c8 = arith.constant 8 : index
    %4 = memref.load %arg1[%c8] : memref<10xf32, #tpu.memory_space<smem>>
    %c9 = arith.constant 9 : index
    %5 = memref.load %arg1[%c9] : memref<10xf32, #tpu.memory_space<smem>>
    %c0 = arith.constant 0 : index
    %c0_0 = arith.constant 0 : index
    %c0_1 = arith.constant 0 : index
    %6 = vector.load %arg4[%c0, %c0_0, %c0_1] : memref<16x16x16xi8, #tpu.memory_space<vmem>>, vector<16x16x16xi8>
    %7 = arith.sitofp %6 : vector<16x16x16xi8> to vector<16x16x16xf32>
    %8 = tpu.iota {dimensions = array<i32: 1>} : vector<1x16x16xi32>
    %9 = tpu.iota {dimensions = array<i32: 2>} : vector<1x16x16xi32>
    %10 = arith.cmpi eq, %8, %9 : vector<1x16x16xi32>
    %11 = arith.extui %10 : vector<1x16x16xi1> to vector<1x16x16xi32>
    %12 = arith.sitofp %11 : vector<1x16x16xi32> to vector<1x16x16xf32>
    %c0_2 = arith.constant 0 : index
    %c0_3 = arith.constant 0 : index
    %c0_4 = arith.constant 0 : index
    %13 = vector.load %arg2[%c0_2, %c0_3, %c0_4] : memref<16x1x16xf32, #tpu.memory_space<vmem>>, vector<16x1x16xf32>
    %c0_5 = arith.constant 0 : index
    %14 = memref.load %arg1[%c0_5] : memref<10xf32, #tpu.memory_space<smem>>
    %c1 = arith.constant 1 : index
    %15 = memref.load %arg1[%c1] : memref<10xf32, #tpu.memory_space<smem>>
    %16 = vector.broadcast %14 : f32 to vector<16x1x16xf32>
    %17 = arith.mulf %16, %13 : vector<16x1x16xf32>
    %18 = vector.broadcast %15 : f32 to vector<16x1x16xf32>
    %19 = arith.addf %17, %18 : vector<16x1x16xf32>
    %cst = arith.constant 0.000000e+00 : f32
    %20 = vector.broadcast %cst : f32 to vector<16x1x16xf32>
    %21 = arith.maximumf %19, %20 : vector<16x1x16xf32>
    %22 = vector.broadcast %2 : f32 to vector<16x1x16xf32>
    %23 = arith.mulf %22, %21 : vector<16x1x16xf32>
    %24 = vector.broadcast %3 : f32 to vector<16x1x16xf32>
    %25 = arith.addf %23, %24 : vector<16x1x16xf32>
    %26 = vector.broadcast %21 : vector<16x1x16xf32> to vector<16x16x16xf32>
    %27 = vector.broadcast %12 : vector<1x16x16xf32> to vector<16x16x16xf32>
    %28 = arith.mulf %26, %27 : vector<16x16x16xf32>
    %cst_6 = arith.constant dense<0.000000e+00> : vector<16x16xf32>
    %29 = vector.multi_reduction <add>, %28, %cst_6 [2] : vector<16x16x16xf32> to vector<16x16xf32>
    %30 = vector.shape_cast %29 : vector<16x16xf32> to vector<16x16x1xf32>
    %31 = vector.broadcast %0 : f32 to vector<16x16x1xf32>
    %32 = arith.mulf %31, %30 : vector<16x16x1xf32>
    %33 = vector.broadcast %1 : f32 to vector<16x16x1xf32>
    %34 = arith.addf %32, %33 : vector<16x16x1xf32>
    %35 = vector.broadcast %34 : vector<16x16x1xf32> to vector<16x16x16xf32>
    %36 = vector.broadcast %25 : vector<16x1x16xf32> to vector<16x16x16xf32>
    %37 = arith.addf %35, %36 : vector<16x16x16xf32>
    %cst_7 = arith.constant 0.000000e+00 : f32
    %38 = vector.broadcast %cst_7 : f32 to vector<16x16x16xf32>
    %39 = arith.cmpf oge, %37, %38 : vector<16x16x16xf32>
    %cst_8 = arith.constant 2.000000e-01 : f32
    %40 = vector.broadcast %cst_8 : f32 to vector<16x16x16xf32>
    %41 = arith.mulf %40, %37 : vector<16x16x16xf32>
    %42 = arith.select %39, %37, %41 : vector<16x16x16xi1>, vector<16x16x16xf32>
    %cst_9 = arith.constant 0.000000e+00 : f32
    %43 = vector.broadcast %cst_9 : f32 to vector<16x16x16xf32>
    %44 = arith.cmpf ogt, %7, %43 : vector<16x16x16xf32>
    %45 = vector.broadcast %4 : f32 to vector<16x16x16xf32>
    %46 = arith.mulf %45, %42 : vector<16x16x16xf32>
    %cst_10 = arith.constant -1.000000e+30 : f32
    %47 = vector.broadcast %cst_10 : f32 to vector<16x16x16xf32>
    %48 = arith.select %44, %46, %47 : vector<16x16x16xi1>, vector<16x16x16xf32>
    %cst_11 = arith.constant dense<0xFF800000> : vector<16x16xf32>
    %49 = vector.multi_reduction <maximumf>, %48, %cst_11 [1] : vector<16x16x16xf32> to vector<16x16xf32>
    %50 = vector.shape_cast %49 : vector<16x16xf32> to vector<16x1x16xf32>
    %51 = vector.broadcast %50 : vector<16x1x16xf32> to vector<16x16x16xf32>
    %52 = arith.subf %48, %51 : vector<16x16x16xf32>
    %53 = math.exp %52 : vector<16x16x16xf32>
    %cst_12 = arith.constant dense<0.000000e+00> : vector<16x16xf32>
    %54 = vector.multi_reduction <add>, %53, %cst_12 [1] : vector<16x16x16xf32> to vector<16x16xf32>
    %55 = vector.shape_cast %54 : vector<16x16xf32> to vector<16x1x16xf32>
    %56 = tpu.reciprocal %55 {approx = true} : vector<16x1x16xf32> -> vector<16x1x16xf32>
    %57 = arith.mulf %55, %56 : vector<16x1x16xf32>
    %cst_13 = arith.constant 2.000000e+00 : f32
    %58 = vector.broadcast %cst_13 : f32 to vector<16x1x16xf32>
    %59 = arith.subf %58, %57 : vector<16x1x16xf32>
    %60 = arith.mulf %56, %59 : vector<16x1x16xf32>
    %61 = vector.broadcast %60 : vector<16x1x16xf32> to vector<16x16x16xf32>
    %62 = arith.mulf %53, %61 : vector<16x16x16xf32>
    %63 = vector.broadcast %34 : vector<16x16x1xf32> to vector<16x16x16xf32>
    %64 = arith.mulf %62, %63 : vector<16x16x16xf32>
    %cst_14 = arith.constant dense<0.000000e+00> : vector<16x16xf32>
    %65 = vector.multi_reduction <add>, %64, %cst_14 [1] : vector<16x16x16xf32> to vector<16x16xf32>
    %66 = vector.shape_cast %65 : vector<16x16xf32> to vector<16x1x16xf32>
    %67 = vector.broadcast %5 : f32 to vector<16x1x16xf32>
    %68 = arith.addf %66, %67 : vector<16x1x16xf32>
    %c0_15 = arith.constant 0 : index
    %c0_16 = arith.constant 0 : index
    %c0_17 = arith.constant 0 : index
    %69 = vector.load %arg5[%c0_15, %c0_16, %c0_17] : memref<16x1x16xf32, #tpu.memory_space<vmem>>, vector<16x1x16xf32>
    tpu.vector_store %arg5[%c0_15, %c0_16, %c0_17], %68 {strides = array<i32>} : memref<16x1x16xf32, #tpu.memory_space<vmem>>, vector<16x1x16xf32>,
    %c0_18 = arith.constant 0 : index
    %c0_19 = arith.constant 0 : index
    %c0_20 = arith.constant 0 : index
    %70 = vector.load %arg3[%c0_18, %c0_19, %c0_20] : memref<16x1x16xf32, #tpu.memory_space<vmem>>, vector<16x1x16xf32>
    %c2 = arith.constant 2 : index
    %71 = memref.load %arg1[%c2] : memref<10xf32, #tpu.memory_space<smem>>
    %c3 = arith.constant 3 : index
    %72 = memref.load %arg1[%c3] : memref<10xf32, #tpu.memory_space<smem>>
    %73 = vector.broadcast %71 : f32 to vector<16x1x16xf32>
    %74 = arith.mulf %73, %70 : vector<16x1x16xf32>
    %75 = vector.broadcast %72 : f32 to vector<16x1x16xf32>
    %76 = arith.addf %74, %75 : vector<16x1x16xf32>
    %cst_21 = arith.constant 0.000000e+00 : f32
    %77 = vector.broadcast %cst_21 : f32 to vector<16x1x16xf32>
    %78 = arith.maximumf %76, %77 : vector<16x1x16xf32>
    %79 = vector.broadcast %2 : f32 to vector<16x1x16xf32>
    %80 = arith.mulf %79, %78 : vector<16x1x16xf32>
    %81 = vector.broadcast %3 : f32 to vector<16x1x16xf32>
    %82 = arith.addf %80, %81 : vector<16x1x16xf32>
    %83 = vector.broadcast %78 : vector<16x1x16xf32> to vector<16x16x16xf32>
    %84 = vector.broadcast %12 : vector<1x16x16xf32> to vector<16x16x16xf32>
    %85 = arith.mulf %83, %84 : vector<16x16x16xf32>
    %cst_22 = arith.constant dense<0.000000e+00> : vector<16x16xf32>
    %86 = vector.multi_reduction <add>, %85, %cst_22 [2] : vector<16x16x16xf32> to vector<16x16xf32>
    %87 = vector.shape_cast %86 : vector<16x16xf32> to vector<16x16x1xf32>
    %88 = vector.broadcast %0 : f32 to vector<16x16x1xf32>
    %89 = arith.mulf %88, %87 : vector<16x16x1xf32>
    %90 = vector.broadcast %1 : f32 to vector<16x16x1xf32>
    %91 = arith.addf %89, %90 : vector<16x16x1xf32>
    %92 = vector.broadcast %91 : vector<16x16x1xf32> to vector<16x16x16xf32>
    %93 = vector.broadcast %82 : vector<16x1x16xf32> to vector<16x16x16xf32>
    %94 = arith.addf %92, %93 : vector<16x16x16xf32>
    %cst_23 = arith.constant 0.000000e+00 : f32
    %95 = vector.broadcast %cst_23 : f32 to vector<16x16x16xf32>
    %96 = arith.cmpf oge, %94, %95 : vector<16x16x16xf32>
    %cst_24 = arith.constant 2.000000e-01 : f32
    %97 = vector.broadcast %cst_24 : f32 to vector<16x16x16xf32>
    %98 = arith.mulf %97, %94 : vector<16x16x16xf32>
    %99 = arith.select %96, %94, %98 : vector<16x16x16xi1>, vector<16x16x16xf32>
    %cst_25 = arith.constant 0.000000e+00 : f32
    %100 = vector.broadcast %cst_25 : f32 to vector<16x16x16xf32>
    %101 = arith.cmpf ogt, %7, %100 : vector<16x16x16xf32>
    %102 = vector.broadcast %4 : f32 to vector<16x16x16xf32>
    %103 = arith.mulf %102, %99 : vector<16x16x16xf32>
    %cst_26 = arith.constant -1.000000e+30 : f32
    %104 = vector.broadcast %cst_26 : f32 to vector<16x16x16xf32>
    %105 = arith.select %101, %103, %104 : vector<16x16x16xi1>, vector<16x16x16xf32>
    %cst_27 = arith.constant dense<0xFF800000> : vector<16x16xf32>
    %106 = vector.multi_reduction <maximumf>, %105, %cst_27 [1] : vector<16x16x16xf32> to vector<16x16xf32>
    %107 = vector.shape_cast %106 : vector<16x16xf32> to vector<16x1x16xf32>
    %108 = vector.broadcast %107 : vector<16x1x16xf32> to vector<16x16x16xf32>
    %109 = arith.subf %105, %108 : vector<16x16x16xf32>
    %110 = math.exp %109 : vector<16x16x16xf32>
    %cst_28 = arith.constant dense<0.000000e+00> : vector<16x16xf32>
    %111 = vector.multi_reduction <add>, %110, %cst_28 [1] : vector<16x16x16xf32> to vector<16x16xf32>
    %112 = vector.shape_cast %111 : vector<16x16xf32> to vector<16x1x16xf32>
    %113 = tpu.reciprocal %112 {approx = true} : vector<16x1x16xf32> -> vector<16x1x16xf32>
    %114 = arith.mulf %112, %113 : vector<16x1x16xf32>
    %cst_29 = arith.constant 2.000000e+00 : f32
    %115 = vector.broadcast %cst_29 : f32 to vector<16x1x16xf32>
    %116 = arith.subf %115, %114 : vector<16x1x16xf32>
    %117 = arith.mulf %113, %116 : vector<16x1x16xf32>
    %118 = vector.broadcast %117 : vector<16x1x16xf32> to vector<16x16x16xf32>
    %119 = arith.mulf %110, %118 : vector<16x16x16xf32>
    %120 = vector.broadcast %91 : vector<16x16x1xf32> to vector<16x16x16xf32>
    %121 = arith.mulf %119, %120 : vector<16x16x16xf32>
    %cst_30 = arith.constant dense<0.000000e+00> : vector<16x16xf32>
    %122 = vector.multi_reduction <add>, %121, %cst_30 [1] : vector<16x16x16xf32> to vector<16x16xf32>
    %123 = vector.shape_cast %122 : vector<16x16xf32> to vector<16x1x16xf32>
    %124 = vector.broadcast %5 : f32 to vector<16x1x16xf32>
    %125 = arith.addf %123, %124 : vector<16x1x16xf32>
    %c0_31 = arith.constant 0 : index
    %c0_32 = arith.constant 0 : index
    %c0_33 = arith.constant 0 : index
    %126 = vector.load %arg6[%c0_31, %c0_32, %c0_33] : memref<16x1x16xf32, #tpu.memory_space<vmem>>, vector<16x1x16xf32>
    tpu.vector_store %arg6[%c0_31, %c0_32, %c0_33], %125 {strides = array<i32>} : memref<16x1x16xf32, #tpu.memory_space<vmem>>, vector<16x1x16xf32>,
    return
  }
  func.func @transform_0(%arg0: i32) -> i32 {
    %c0_i32 = arith.constant 0 : i32
    %c0_i32_0 = arith.constant 0 : i32
    return %c0_i32 : i32
  }
  func.func @transform_1(%arg0: i32) -> (i32, i32, i32) {
    %c0_i32 = arith.constant 0 : i32
    %c0_i32_0 = arith.constant 0 : i32
    %c0_i32_1 = arith.constant 0 : i32
    return %arg0, %c0_i32, %c0_i32_0 : i32, i32, i32
  }
  func.func @transform_2(%arg0: i32) -> (i32, i32, i32) {
    %c0_i32 = arith.constant 0 : i32
    %c0_i32_0 = arith.constant 0 : i32
    %c0_i32_1 = arith.constant 0 : i32
    return %arg0, %c0_i32, %c0_i32_0 : i32, i32, i32
  }
  func.func @transform_3(%arg0: i32) -> (i32, i32, i32) {
    %c0_i32 = arith.constant 0 : i32
    %c0_i32_0 = arith.constant 0 : i32
    %c0_i32_1 = arith.constant 0 : i32
    return %arg0, %c0_i32, %c0_i32_0 : i32, i32, i32
  }
  func.func @transform_4(%arg0: i32) -> (i32, i32, i32) {
    %c0_i32 = arith.constant 0 : i32
    %c0_i32_0 = arith.constant 0 : i32
    %c0_i32_1 = arith.constant 0 : i32
    return %arg0, %c0_i32, %c0_i32_0 : i32, i32, i32
  }
  func.func @transform_5(%arg0: i32) -> (i32, i32, i32) {
    %c0_i32 = arith.constant 0 : i32
    %c0_i32_0 = arith.constant 0 : i32
    %c0_i32_1 = arith.constant 0 : i32
    return %arg0, %c0_i32, %c0_i32_0 : i32, i32, i32
  }
}

module attributes {stable_mosaic.version = 11 : i64} {
  func.func @_propagate_kernel(%arg0: i32, %arg1: memref<16x64xf32, #tpu.memory_space<vmem>>, %arg2: memref<64x16xf32, #tpu.memory_space<vmem>>, %arg3: memref<8x16xf32, #tpu.memory_space<vmem>>, %arg4: memref<16x16xf32, #tpu.memory_space<vmem>>, %arg5: memref<16x16xf32, #tpu.memory_space<vmem>>) attributes {dimension_semantics = [#tpu.dimension_semantics<parallel>], iteration_bounds = array<i64: 4>, scalar_prefetch = 0 : i64, scratch_operands = 0 : i64, tpu.core_type = #tpu.core_type<tc>, window_params = [{transform_indices = @transform_0, window_bounds = array<i64: 16, 64>}, {pipeline_mode = #tpu.pipeline_mode<synchronous>, transform_indices = @transform_1, window_bounds = array<i64: 64, 16>}, {pipeline_mode = #tpu.pipeline_mode<synchronous>, transform_indices = @transform_2, window_bounds = array<i64: 8, 16>}, {transform_indices = @transform_3, window_bounds = array<i64: 16, 16>}, {transform_indices = @transform_4, window_bounds = array<i64: 16, 16>}]} {
    %c0 = arith.constant 0 : index
    %c0_0 = arith.constant 0 : index
    %0 = vector.load %arg1[%c0, %c0_0] : memref<16x64xf32, #tpu.memory_space<vmem>>, vector<16x64xf32>
    %c0_1 = arith.constant 0 : index
    %c0_2 = arith.constant 0 : index
    %1 = vector.load %arg2[%c0_1, %c0_2] : memref<64x16xf32, #tpu.memory_space<vmem>>, vector<64x16xf32>
    %cst = arith.constant dense<0.000000e+00> : vector<16x16xf32>
    %2 = tpu.matmul %0, %1, %cst {dimension_numbers = #tpu.dot_dimension_numbers<[1], [0], [0], [1], [0, 0, 1, 1], [], []>} : vector<16x64xf32>, vector<64x16xf32>, vector<16x16xf32> -> vector<16x16xf32>
    %c0_3 = arith.constant 0 : index
    %c0_4 = arith.constant 0 : index
    %3 = vector.load %arg4[%c0_3, %c0_4] : memref<16x16xf32, #tpu.memory_space<vmem>>, vector<16x16xf32>
    tpu.vector_store %arg4[%c0_3, %c0_4], %2 {strides = array<i32>} : memref<16x16xf32, #tpu.memory_space<vmem>>, vector<16x16xf32>,
    %4 = vector.extract_strided_slice %2 {offsets = [0, 0], sizes = [16, 8], strides = [1, 1]} : vector<16x16xf32> to vector<16x8xf32>
    %c0_5 = arith.constant 0 : index
    %c0_6 = arith.constant 0 : index
    %5 = vector.load %arg3[%c0_5, %c0_6] : memref<8x16xf32, #tpu.memory_space<vmem>>, vector<8x16xf32>
    %cst_7 = arith.constant dense<0.000000e+00> : vector<16x16xf32>
    %6 = tpu.matmul %4, %5, %cst_7 {dimension_numbers = #tpu.dot_dimension_numbers<[1], [0], [0], [1], [0, 0, 1, 1], [], []>} : vector<16x8xf32>, vector<8x16xf32>, vector<16x16xf32> -> vector<16x16xf32>
    %c0_8 = arith.constant 0 : index
    %c0_9 = arith.constant 0 : index
    %7 = vector.load %arg5[%c0_8, %c0_9] : memref<16x16xf32, #tpu.memory_space<vmem>>, vector<16x16xf32>
    tpu.vector_store %arg5[%c0_8, %c0_9], %6 {strides = array<i32>} : memref<16x16xf32, #tpu.memory_space<vmem>>, vector<16x16xf32>,
    return
  }
  func.func @transform_0(%arg0: i32) -> (i32, i32) {
    %c0_i32 = arith.constant 0 : i32
    %c0_i32_0 = arith.constant 0 : i32
    return %arg0, %c0_i32 : i32, i32
  }
  func.func @transform_1(%arg0: i32) -> (i32, i32) {
    %c0_i32 = arith.constant 0 : i32
    %c0_i32_0 = arith.constant 0 : i32
    %c0_i32_1 = arith.constant 0 : i32
    return %c0_i32, %c0_i32_0 : i32, i32
  }
  func.func @transform_2(%arg0: i32) -> (i32, i32) {
    %c0_i32 = arith.constant 0 : i32
    %c0_i32_0 = arith.constant 0 : i32
    %c0_i32_1 = arith.constant 0 : i32
    return %c0_i32, %c0_i32_0 : i32, i32
  }
  func.func @transform_3(%arg0: i32) -> (i32, i32) {
    %c0_i32 = arith.constant 0 : i32
    %c0_i32_0 = arith.constant 0 : i32
    return %arg0, %c0_i32 : i32, i32
  }
  func.func @transform_4(%arg0: i32) -> (i32, i32) {
    %c0_i32 = arith.constant 0 : i32
    %c0_i32_0 = arith.constant 0 : i32
    return %arg0, %c0_i32 : i32, i32
  }
}

module attributes {stable_mosaic.version = 11 : i64} {
  func.func @_project_kernel(%arg0: i32, %arg1: memref<16x16xf32, #tpu.memory_space<vmem>>, %arg2: memref<16x16xf32, #tpu.memory_space<vmem>>, %arg3: memref<16x8xf32, #tpu.memory_space<vmem>>, %arg4: memref<16x16xf32, #tpu.memory_space<vmem>>) attributes {dimension_semantics = [#tpu.dimension_semantics<parallel>], iteration_bounds = array<i64: 4>, scalar_prefetch = 0 : i64, scratch_operands = 0 : i64, tpu.core_type = #tpu.core_type<tc>, window_params = [{transform_indices = @transform_0, window_bounds = array<i64: 16, 16>}, {transform_indices = @transform_1, window_bounds = array<i64: 16, 16>}, {pipeline_mode = #tpu.pipeline_mode<synchronous>, transform_indices = @transform_2, window_bounds = array<i64: 16, 8>}, {transform_indices = @transform_3, window_bounds = array<i64: 16, 16>}]} {
    %c0 = arith.constant 0 : index
    %c0_0 = arith.constant 0 : index
    %0 = vector.load %arg3[%c0, %c0_0] : memref<16x8xf32, #tpu.memory_space<vmem>>, vector<16x8xf32>
    %c0_1 = arith.constant 0 : index
    %c0_2 = arith.constant 0 : index
    %1 = vector.load %arg1[%c0_1, %c0_2] : memref<16x16xf32, #tpu.memory_space<vmem>>, vector<16x16xf32>
    %cst = arith.constant dense<0.000000e+00> : vector<16x8xf32>
    %2 = tpu.matmul %1, %0, %cst {dimension_numbers = #tpu.dot_dimension_numbers<[1], [0], [0], [1], [0, 0, 1, 1], [], []>} : vector<16x16xf32>, vector<16x8xf32>, vector<16x8xf32> -> vector<16x8xf32>
    %c0_3 = arith.constant 0 : index
    %c0_4 = arith.constant 0 : index
    %3 = vector.load %arg2[%c0_3, %c0_4] : memref<16x16xf32, #tpu.memory_space<vmem>>, vector<16x16xf32>
    %cst_5 = arith.constant dense<0.000000e+00> : vector<16x8xf32>
    %4 = tpu.matmul %3, %0, %cst_5 {dimension_numbers = #tpu.dot_dimension_numbers<[1], [0], [0], [1], [0, 0, 1, 1], [], []>} : vector<16x16xf32>, vector<16x8xf32>, vector<16x8xf32> -> vector<16x8xf32>
    %5 = tpu.concatenate %2, %4 in 1 : vector<16x8xf32>, vector<16x8xf32> -> vector<16x16xf32>
    %c0_6 = arith.constant 0 : index
    %c0_7 = arith.constant 0 : index
    %6 = vector.load %arg4[%c0_6, %c0_7] : memref<16x16xf32, #tpu.memory_space<vmem>>, vector<16x16xf32>
    tpu.vector_store %arg4[%c0_6, %c0_7], %5 {strides = array<i32>} : memref<16x16xf32, #tpu.memory_space<vmem>>, vector<16x16xf32>,
    return
  }
  func.func @transform_0(%arg0: i32) -> (i32, i32) {
    %c0_i32 = arith.constant 0 : i32
    %c0_i32_0 = arith.constant 0 : i32
    return %arg0, %c0_i32 : i32, i32
  }
  func.func @transform_1(%arg0: i32) -> (i32, i32) {
    %c0_i32 = arith.constant 0 : i32
    %c0_i32_0 = arith.constant 0 : i32
    return %arg0, %c0_i32 : i32, i32
  }
  func.func @transform_2(%arg0: i32) -> (i32, i32) {
    %c0_i32 = arith.constant 0 : i32
    %c0_i32_0 = arith.constant 0 : i32
    %c0_i32_1 = arith.constant 0 : i32
    return %c0_i32, %c0_i32_0 : i32, i32
  }
  func.func @transform_3(%arg0: i32) -> (i32, i32) {
    %c0_i32 = arith.constant 0 : i32
    %c0_i32_0 = arith.constant 0 : i32
    return %arg0, %c0_i32 : i32, i32
  }
}

module attributes {stable_mosaic.version = 11 : i64} {
  func.func @_finalize_kernel(%arg0: i32, %arg1: memref<16x64xf32, #tpu.memory_space<vmem>>, %arg2: memref<16x64xf32, #tpu.memory_space<vmem>>, %arg3: memref<64x16xf32, #tpu.memory_space<vmem>>, %arg4: memref<16x16xf32, #tpu.memory_space<vmem>>, %arg5: memref<64x16xf32, #tpu.memory_space<vmem>>, %arg6: memref<8x8xf32, #tpu.memory_space<vmem>>, %arg7: memref<1xf32, #tpu.memory_space<smem>>, %arg8: memref<16x16xf32, #tpu.memory_space<vmem>>, %arg9: memref<16x4xf32, #tpu.memory_space<vmem>>) attributes {dimension_semantics = [#tpu.dimension_semantics<parallel>], iteration_bounds = array<i64: 4>, scalar_prefetch = 0 : i64, scratch_operands = 0 : i64, tpu.core_type = #tpu.core_type<tc>, window_params = [{transform_indices = @transform_0, window_bounds = array<i64: 16, 64>}, {transform_indices = @transform_1, window_bounds = array<i64: 16, 64>}, {pipeline_mode = #tpu.pipeline_mode<synchronous>, transform_indices = @transform_2, window_bounds = array<i64: 64, 16>}, {transform_indices = @transform_3, window_bounds = array<i64: 16, 16>}, {pipeline_mode = #tpu.pipeline_mode<synchronous>, transform_indices = @transform_4, window_bounds = array<i64: 64, 16>}, {pipeline_mode = #tpu.pipeline_mode<synchronous>, transform_indices = @transform_5, window_bounds = array<i64: 8, 8>}, {transform_indices = @transform_6, window_bounds = array<i64: 1>}, {transform_indices = @transform_7, window_bounds = array<i64: 16, 16>}, {transform_indices = @transform_8, window_bounds = array<i64: 16, 4>}]} {
    %c0 = arith.constant 0 : index
    %0 = memref.load %arg7[%c0] : memref<1xf32, #tpu.memory_space<smem>>
    %c0_0 = arith.constant 0 : index
    %c0_1 = arith.constant 0 : index
    %1 = vector.load %arg1[%c0_0, %c0_1] : memref<16x64xf32, #tpu.memory_space<vmem>>, vector<16x64xf32>
    %c0_2 = arith.constant 0 : index
    %c0_3 = arith.constant 0 : index
    %2 = vector.load %arg2[%c0_2, %c0_3] : memref<16x64xf32, #tpu.memory_space<vmem>>, vector<16x64xf32>
    %c0_4 = arith.constant 0 : index
    %c0_5 = arith.constant 0 : index
    %3 = vector.load %arg5[%c0_4, %c0_5] : memref<64x16xf32, #tpu.memory_space<vmem>>, vector<64x16xf32>
    %cst = arith.constant dense<0.000000e+00> : vector<16x16xf32>
    %4 = tpu.matmul %1, %3, %cst {dimension_numbers = #tpu.dot_dimension_numbers<[1], [0], [0], [1], [0, 0, 1, 1], [], []>} : vector<16x64xf32>, vector<64x16xf32>, vector<16x16xf32> -> vector<16x16xf32>
    %c0_6 = arith.constant 0 : index
    %c0_7 = arith.constant 0 : index
    %5 = vector.load %arg8[%c0_6, %c0_7] : memref<16x16xf32, #tpu.memory_space<vmem>>, vector<16x16xf32>
    tpu.vector_store %arg8[%c0_6, %c0_7], %4 {strides = array<i32>} : memref<16x16xf32, #tpu.memory_space<vmem>>, vector<16x16xf32>,
    %c0_8 = arith.constant 0 : index
    %c0_9 = arith.constant 0 : index
    %6 = vector.load %arg3[%c0_8, %c0_9] : memref<64x16xf32, #tpu.memory_space<vmem>>, vector<64x16xf32>
    %cst_10 = arith.constant 0.000000e+00 : f32
    %7 = vector.broadcast %cst_10 : f32 to vector<64x16xf32>
    %8 = arith.maximumf %6, %7 : vector<64x16xf32>
    %cst_11 = arith.constant dense<0.000000e+00> : vector<16x16xf32>
    %9 = tpu.matmul %2, %8, %cst_11 {dimension_numbers = #tpu.dot_dimension_numbers<[1], [0], [0], [1], [0, 0, 1, 1], [], []>} : vector<16x64xf32>, vector<64x16xf32>, vector<16x16xf32> -> vector<16x16xf32>
    %cst_12 = arith.constant dense<0.000000e+00> : vector<16xf32>
    %10 = vector.multi_reduction <add>, %2, %cst_12 [1] : vector<16x64xf32> to vector<16xf32>
    %11 = vector.shape_cast %10 : vector<16xf32> to vector<16x1xf32>
    %12 = tpu.reciprocal %11 {approx = true} : vector<16x1xf32> -> vector<16x1xf32>
    %13 = arith.mulf %11, %12 : vector<16x1xf32>
    %cst_13 = arith.constant 2.000000e+00 : f32
    %14 = vector.broadcast %cst_13 : f32 to vector<16x1xf32>
    %15 = arith.subf %14, %13 : vector<16x1xf32>
    %16 = arith.mulf %12, %15 : vector<16x1xf32>
    %17 = vector.broadcast %16 : vector<16x1xf32> to vector<16x16xf32>
    %18 = arith.mulf %9, %17 : vector<16x16xf32>
    %19 = vector.extract_strided_slice %18 {offsets = [0, 0], sizes = [16, 8], strides = [1, 1]} : vector<16x16xf32> to vector<16x8xf32>
    %20 = arith.mulf %19, %19 : vector<16x8xf32>
    %cst_14 = arith.constant dense<0.000000e+00> : vector<16xf32>
    %21 = vector.multi_reduction <add>, %20, %cst_14 [1] : vector<16x8xf32> to vector<16xf32>
    %22 = vector.shape_cast %21 : vector<16xf32> to vector<16x1xf32>
    %cst_15 = arith.constant 1.000000e-24 : f32
    %23 = vector.broadcast %cst_15 : f32 to vector<16x1xf32>
    %24 = arith.maximumf %22, %23 : vector<16x1xf32>
    %25 = math.rsqrt %24 : vector<16x1xf32>
    %26 = vector.broadcast %25 : vector<16x1xf32> to vector<16x8xf32>
    %27 = arith.mulf %19, %26 : vector<16x8xf32>
    %cst_16 = arith.constant 0.000000e+00 : f32
    %28 = vector.broadcast %cst_16 : f32 to vector<16x8xf32>
    %29 = arith.subf %28, %27 : vector<16x8xf32>
    %30 = math.exp %29 : vector<16x8xf32>
    %cst_17 = arith.constant 1.000000e+00 : f32
    %31 = vector.broadcast %cst_17 : f32 to vector<16x8xf32>
    %32 = arith.addf %31, %30 : vector<16x8xf32>
    %33 = tpu.reciprocal %32 {approx = true} : vector<16x8xf32> -> vector<16x8xf32>
    %34 = arith.mulf %32, %33 : vector<16x8xf32>
    %cst_18 = arith.constant 2.000000e+00 : f32
    %35 = vector.broadcast %cst_18 : f32 to vector<16x8xf32>
    %36 = arith.subf %35, %34 : vector<16x8xf32>
    %37 = arith.mulf %33, %36 : vector<16x8xf32>
    %38 = vector.extract_strided_slice %18 {offsets = [0, 8], sizes = [16, 8], strides = [1, 1]} : vector<16x16xf32> to vector<16x8xf32>
    %39 = arith.mulf %38, %38 : vector<16x8xf32>
    %cst_19 = arith.constant dense<0.000000e+00> : vector<16xf32>
    %40 = vector.multi_reduction <add>, %39, %cst_19 [1] : vector<16x8xf32> to vector<16xf32>
    %41 = vector.shape_cast %40 : vector<16xf32> to vector<16x1xf32>
    %cst_20 = arith.constant 1.000000e-24 : f32
    %42 = vector.broadcast %cst_20 : f32 to vector<16x1xf32>
    %43 = arith.maximumf %41, %42 : vector<16x1xf32>
    %44 = math.rsqrt %43 : vector<16x1xf32>
    %45 = vector.broadcast %44 : vector<16x1xf32> to vector<16x8xf32>
    %46 = arith.mulf %38, %45 : vector<16x8xf32>
    %cst_21 = arith.constant 0.000000e+00 : f32
    %47 = vector.broadcast %cst_21 : f32 to vector<16x8xf32>
    %48 = arith.subf %47, %46 : vector<16x8xf32>
    %49 = math.exp %48 : vector<16x8xf32>
    %cst_22 = arith.constant 1.000000e+00 : f32
    %50 = vector.broadcast %cst_22 : f32 to vector<16x8xf32>
    %51 = arith.addf %50, %49 : vector<16x8xf32>
    %52 = tpu.reciprocal %51 {approx = true} : vector<16x8xf32> -> vector<16x8xf32>
    %53 = arith.mulf %51, %52 : vector<16x8xf32>
    %cst_23 = arith.constant 2.000000e+00 : f32
    %54 = vector.broadcast %cst_23 : f32 to vector<16x8xf32>
    %55 = arith.subf %54, %53 : vector<16x8xf32>
    %56 = arith.mulf %52, %55 : vector<16x8xf32>
    %c0_24 = arith.constant 0 : index
    %c0_25 = arith.constant 0 : index
    %57 = vector.load %arg4[%c0_24, %c0_25] : memref<16x16xf32, #tpu.memory_space<vmem>>, vector<16x16xf32>
    %cst_26 = arith.constant 0.000000e+00 : f32
    %58 = vector.broadcast %cst_26 : f32 to vector<16x16xf32>
    %59 = arith.maximumf %57, %58 : vector<16x16xf32>
    %60 = vector.extract_strided_slice %59 {offsets = [0, 0], sizes = [16, 8], strides = [1, 1]} : vector<16x16xf32> to vector<16x8xf32>
    %61 = vector.extract_strided_slice %59 {offsets = [0, 8], sizes = [16, 8], strides = [1, 1]} : vector<16x16xf32> to vector<16x8xf32>
    %c0_27 = arith.constant 0 : index
    %c0_28 = arith.constant 0 : index
    %62 = vector.load %arg6[%c0_27, %c0_28] : memref<8x8xf32, #tpu.memory_space<vmem>>, vector<8x8xf32>
    %cst_29 = arith.constant dense<0.000000e+00> : vector<16x8xf32>
    %63 = tpu.matmul %37, %62, %cst_29 {dimension_numbers = #tpu.dot_dimension_numbers<[1], [0], [0], [1], [0, 0, 1, 1], [], []>} : vector<16x8xf32>, vector<8x8xf32>, vector<16x8xf32> -> vector<16x8xf32>
    %c0_30 = arith.constant 0 : index
    %c0_31 = arith.constant 0 : index
    %64 = vector.load %arg6[%c0_30, %c0_31] : memref<8x8xf32, #tpu.memory_space<vmem>>, vector<8x8xf32>
    %cst_32 = arith.constant dense<0.000000e+00> : vector<16x8xf32>
    %65 = tpu.matmul %56, %64, %cst_32 {dimension_numbers = #tpu.dot_dimension_numbers<[1], [0], [0], [1], [0, 0, 1, 1], [], []>} : vector<16x8xf32>, vector<8x8xf32>, vector<16x8xf32> -> vector<16x8xf32>
    %66 = arith.mulf %60, %63 : vector<16x8xf32>
    %cst_33 = arith.constant dense<0.000000e+00> : vector<16xf32>
    %67 = vector.multi_reduction <add>, %66, %cst_33 [1] : vector<16x8xf32> to vector<16xf32>
    %68 = vector.shape_cast %67 : vector<16xf32> to vector<16x1xf32>
    %69 = vector.broadcast %0 : f32 to vector<16x1xf32>
    %70 = arith.addf %68, %69 : vector<16x1xf32>
    %71 = arith.mulf %61, %63 : vector<16x8xf32>
    %cst_34 = arith.constant dense<0.000000e+00> : vector<16xf32>
    %72 = vector.multi_reduction <add>, %71, %cst_34 [1] : vector<16x8xf32> to vector<16xf32>
    %73 = vector.shape_cast %72 : vector<16xf32> to vector<16x1xf32>
    %74 = vector.broadcast %0 : f32 to vector<16x1xf32>
    %75 = arith.addf %73, %74 : vector<16x1xf32>
    %76 = arith.mulf %61, %65 : vector<16x8xf32>
    %cst_35 = arith.constant dense<0.000000e+00> : vector<16xf32>
    %77 = vector.multi_reduction <add>, %76, %cst_35 [1] : vector<16x8xf32> to vector<16xf32>
    %78 = vector.shape_cast %77 : vector<16xf32> to vector<16x1xf32>
    %79 = vector.broadcast %0 : f32 to vector<16x1xf32>
    %80 = arith.addf %78, %79 : vector<16x1xf32>
    %81 = arith.mulf %60, %65 : vector<16x8xf32>
    %cst_36 = arith.constant dense<0.000000e+00> : vector<16xf32>
    %82 = vector.multi_reduction <add>, %81, %cst_36 [1] : vector<16x8xf32> to vector<16xf32>
    %83 = vector.shape_cast %82 : vector<16xf32> to vector<16x1xf32>
    %84 = vector.broadcast %0 : f32 to vector<16x1xf32>
    %85 = arith.addf %83, %84 : vector<16x1xf32>
    %86 = tpu.concatenate %70, %75, %80, %85 in 1 : vector<16x1xf32>, vector<16x1xf32>, vector<16x1xf32>, vector<16x1xf32> -> vector<16x4xf32>
    %c0_37 = arith.constant 0 : index
    %c0_38 = arith.constant 0 : index
    %87 = vector.load %arg9[%c0_37, %c0_38] : memref<16x4xf32, #tpu.memory_space<vmem>>, vector<16x4xf32>
    tpu.vector_store %arg9[%c0_37, %c0_38], %86 {strides = array<i32>} : memref<16x4xf32, #tpu.memory_space<vmem>>, vector<16x4xf32>,
    return
  }
  func.func @transform_0(%arg0: i32) -> (i32, i32) {
    %c0_i32 = arith.constant 0 : i32
    %c0_i32_0 = arith.constant 0 : i32
    return %arg0, %c0_i32 : i32, i32
  }
  func.func @transform_1(%arg0: i32) -> (i32, i32) {
    %c0_i32 = arith.constant 0 : i32
    %c0_i32_0 = arith.constant 0 : i32
    return %arg0, %c0_i32 : i32, i32
  }
  func.func @transform_2(%arg0: i32) -> (i32, i32) {
    %c0_i32 = arith.constant 0 : i32
    %c0_i32_0 = arith.constant 0 : i32
    %c0_i32_1 = arith.constant 0 : i32
    return %c0_i32, %c0_i32_0 : i32, i32
  }
  func.func @transform_3(%arg0: i32) -> (i32, i32) {
    %c0_i32 = arith.constant 0 : i32
    %c0_i32_0 = arith.constant 0 : i32
    return %arg0, %c0_i32 : i32, i32
  }
  func.func @transform_4(%arg0: i32) -> (i32, i32) {
    %c0_i32 = arith.constant 0 : i32
    %c0_i32_0 = arith.constant 0 : i32
    %c0_i32_1 = arith.constant 0 : i32
    return %c0_i32, %c0_i32_0 : i32, i32
  }
  func.func @transform_5(%arg0: i32) -> (i32, i32) {
    %c0_i32 = arith.constant 0 : i32
    %c0_i32_0 = arith.constant 0 : i32
    %c0_i32_1 = arith.constant 0 : i32
    return %c0_i32, %c0_i32_0 : i32, i32
  }
  func.func @transform_6(%arg0: i32) -> i32 {
    %c0_i32 = arith.constant 0 : i32
    %c0_i32_0 = arith.constant 0 : i32
    return %c0_i32 : i32
  }
  func.func @transform_7(%arg0: i32) -> (i32, i32) {
    %c0_i32 = arith.constant 0 : i32
    %c0_i32_0 = arith.constant 0 : i32
    return %arg0, %c0_i32 : i32, i32
  }
  func.func @transform_8(%arg0: i32) -> (i32, i32) {
    %c0_i32 = arith.constant 0 : i32
    %c0_i32_0 = arith.constant 0 : i32
    return %arg0, %c0_i32 : i32, i32
  }
}

</mosaic_0001>

<llo_original>
// kernel: encoder_forward.8
$region0: #{encoder_forward.8}
  #allocation0 [shape = 'u32[]', space=smem, size = 0x4, offset = 0x4, fixed_abs, tag = 'smem constant byte address 0x4 - core index']
  #allocation1 [shape = 'u32[144,128]{1,0:T(1,128)}', space=vmem, size = 0x12000, scoped, tag = 'internal scratch']
  %s0 = inlined_call_operand.vmem [shape: f32[64,64], index: 0, kind: input, shape index: {}]
  %s1 = inlined_call_operand.vmem [shape: f32[64,16], index: 1, kind: input, shape index: {}]
  %s2 = inlined_call_operand.vmem [shape: f32[8,16], index: 2, kind: input, shape index: {}]
  %s3 = inlined_call_operand.vmem [shape: f32[64,16], index: 3, kind: output, shape index: {0}]
  %s4 = inlined_call_operand.vmem [shape: f32[64,16], index: 4, kind: output, shape index: {1}]
  %5 = xla_tuple %s3, %s4
  %s6 = sld [smem:[#allocation0]]
  $region53: #{encoder_forward.8} parent=0
    _
  %s8 = ssub.s32 1, %s6
  %s9 = scalar_select 0, %s8, %s6
  loop: start=0, step=1, limit=6
  $region2: #{encoder_forward.8} parent=0 // loop_pre_header
    _
  $region3: #{encoder_forward.8} parent=0 // loop_header
    %s11 = sphi 0, %s15
    %p12 = scmp.ge.s32.totalorder %s11, 6
    %s21 = sphi 0, %s23
    %s24 = sphi 0, %s21
    %s25 = sphi 0, %s24
    %s41 = sphi 0, %s25
    %s45 = sphi 0, %s45
    %s47 = sphi 0, %s45
    %s48 = sphi 0, %s47
    %s62 = sphi 0, %s48
    %s66 = sphi 0, %s66
    %s68 = sphi 0, %s66
    %s69 = sphi 0, %s68
    %s83 = sphi 0, %s69
    %s89 = sphi 0, %s91
    %s92 = sphi 0, %s89
    %s93 = sphi 0, %s92
    %s109 = sphi 0, %s93
    %s115 = sphi 0, %s117
    %s118 = sphi 0, %s115
    %s119 = sphi 0, %s118
    %s135 = sphi 0, %s119
  $region4: #{encoder_forward.8} parent=0 // loop_header_branch
    %14 = sbr.rel (%p12) target = $region8
  $region5: #{encoder_forward.8} parent=0 // loop_body
    %s16 = ssub.s32 %s11, 1
    %s17 = ssub.s32 %s11, 2
    %s18 = sadd.s32 %s11, 1
    %s19 = ssub.s32 %s11, %s18
    %p20 = scmp.eq.s32.totalorder %s19, 0
    %s22 = sadd.s32 %s21, 1
    %s23 = scalar_select %p20, %s21, %s22
    %p26 = pneg %p20
    %p27 = scmp.eq.s32.totalorder %s11, 3
    %p28 = por %p26, %p27
    %p29 = scmp.ne.s32.totalorder %s21, %s24
    %p30 = scmp.eq.s32.totalorder %s11, 0
    %p31 = por %p29, %p30
    %p32 = scmp.ne.s32.totalorder %s21, %s24
    %p33 = scmp.eq.s32.totalorder %s16, 3
    %p34 = por %p32, %p33
    %p35 = scmp.ne.s32.totalorder %s24, %s25
    %p36 = scmp.eq.s32.totalorder %s16, 0
    %p37 = por %p35, %p36
    %p38 = scmp.ne.s32.totalorder %s24, %s25
    %p39 = scmp.eq.s32.totalorder %s17, 3
    %p40 = por %p38, %p39
    %p42 = scmp.ne.s32.totalorder %s25, %s41
    %p43 = scmp.eq.s32.totalorder %s17, 0
    %p44 = por %p42, %p43
    %s46 = sadd.s32 %s45, 1
    %p49 = scmp.eq.s32.totalorder %s11, 3
    %p50 = scmp.ne.s32.totalorder %s45, %s47
    %p51 = scmp.eq.s32.totalorder %s11, 0
    %p52 = por %p50, %p51
    %p53 = scmp.ne.s32.totalorder %s45, %s47
    %p54 = scmp.eq.s32.totalorder %s16, 3
    %p55 = por %p53, %p54
    %p56 = scmp.ne.s32.totalorder %s47, %s48
    %p57 = scmp.eq.s32.totalorder %s16, 0
    %p58 = por %p56, %p57
    %p59 = scmp.ne.s32.totalorder %s47, %s48
    %p60 = scmp.eq.s32.totalorder %s17, 3
    %p61 = por %p59, %p60
    %p63 = scmp.ne.s32.totalorder %s48, %s62
    %p64 = scmp.eq.s32.totalorder %s17, 0
    %p65 = por %p63, %p64
    %s67 = sadd.s32 %s66, 1
    %p70 = scmp.eq.s32.totalorder %s11, 3
    %p71 = scmp.ne.s32.totalorder %s66, %s68
    %p72 = scmp.eq.s32.totalorder %s11, 0
    %p73 = por %p71, %p72
    %p74 = scmp.ne.s32.totalorder %s66, %s68
    %p75 = scmp.eq.s32.totalorder %s16, 3
    %p76 = por %p74, %p75
    %p77 = scmp.ne.s32.totalorder %s68, %s69
    %p78 = scmp.eq.s32.totalorder %s16, 0
    %p79 = por %p77, %p78
    %p80 = scmp.ne.s32.totalorder %s68, %s69
    %p81 = scmp.eq.s32.totalorder %s17, 3
    %p82 = por %p80, %p81
    %p84 = scmp.ne.s32.totalorder %s69, %s83
    %p85 = scmp.eq.s32.totalorder %s17, 0
    %p86 = por %p84, %p85
    %s87 = ssub.s32 %s11, %s18
    %p88 = scmp.eq.s32.totalorder %s87, 0
    %s90 = sadd.s32 %s89, 1
    %s91 = scalar_select %p88, %s89, %s90
    %p94 = pneg %p88
    %p95 = scmp.eq.s32.totalorder %s11, 3
    %p96 = por %p94, %p95
    %p97 = scmp.ne.s32.totalorder %s89, %s92
    %p98 = scmp.eq.s32.totalorder %s11, 0
    %p99 = por %p97, %p98
    %p100 = scmp.ne.s32.totalorder %s89, %s92
    %p101 = scmp.eq.s32.totalorder %s16, 3
    %p102 = por %p100, %p101
    %p103 = scmp.ne.s32.totalorder %s92, %s93
    %p104 = scmp.eq.s32.totalorder %s16, 0
    %p105 = por %p103, %p104
    %p106 = scmp.ne.s32.totalorder %s92, %s93
    %p107 = scmp.eq.s32.totalorder %s17, 3
    %p108 = por %p106, %p107
    %p110 = scmp.ne.s32.totalorder %s93, %s109
    %p111 = scmp.eq.s32.totalorder %s17, 0
    %p112 = por %p110, %p111
    %s113 = ssub.s32 %s11, %s18
    %p114 = scmp.eq.s32.totalorder %s113, 0
    %s116 = sadd.s32 %s115, 1
    %s117 = scalar_select %p114, %s115, %s116
    %p120 = pneg %p114
    %p121 = scmp.eq.s32.totalorder %s11, 3
    %p122 = por %p120, %p121
    %p123 = scmp.ne.s32.totalorder %s115, %s118
    %p124 = scmp.eq.s32.totalorder %s11, 0
    %p125 = por %p123, %p124
    %p126 = scmp.ne.s32.totalorder %s115, %s118
    %p127 = scmp.eq.s32.totalorder %s16, 3
    %p128 = por %p126, %p127
    %p129 = scmp.ne.s32.totalorder %s118, %s119
    %p130 = scmp.eq.s32.totalorder %s16, 0
    %p131 = por %p129, %p130
    %p132 = scmp.ne.s32.totalorder %s118, %s119
    %p133 = scmp.eq.s32.totalorder %s17, 3
    %p134 = por %p132, %p133
    %p136 = scmp.ne.s32.totalorder %s119, %s135
    %p137 = scmp.eq.s32.totalorder %s17, 0
    %p138 = por %p136, %p137
    %p139 = scmp.le.s32.totalorder 1, %s11
    %p140 = scmp.lt.s32.totalorder %s11, 5
    %p141 = pnand %p139, %p140
    %p142 = pneg %p141
    // Predicated region
    $region9: #{encoder_forward.8} parent=5 // pred_check
      _
    $region10: #{encoder_forward.8} parent=5 // pred_check_branch
      %144 = sbr.rel (%p141) target = $region12
    $region11: #{encoder_forward.8} parent=5 // pred_region
      %s145 = ssub.s32 %s11, 1
      // Predicated region
      $region13: #{encoder_forward.8} parent=11 // pred_check
        %p146 = pneg %p58
      $region14: #{encoder_forward.8} parent=11 // pred_check_branch
        %148 = sbr.rel (%p146) target = $region16
      $region15: #{encoder_forward.8} parent=11 // pred_region
        _
      $region16: #{encoder_forward.8} parent=11 // pred_fallthru
        _
      // Predicated region
      $region17: #{encoder_forward.8} parent=11 // pred_check
        %p149 = pneg %p79
      $region18: #{encoder_forward.8} parent=11 // pred_check_branch
        %151 = sbr.rel (%p149) target = $region20
      $region19: #{encoder_forward.8} parent=11 // pred_region
        _
      $region20: #{encoder_forward.8} parent=11 // pred_fallthru
        _
    $region12: #{encoder_forward.8} parent=5 // pred_fallthru
      _
    %p152 = scmp.lt.s32.totalorder %s11, 4
    // Predicated region
    $region21: #{encoder_forward.8} parent=5 // pred_check
      %p153 = pneg %p152
    $region22: #{encoder_forward.8} parent=5 // pred_check_branch
      %155 = sbr.rel (%p153) target = $region24
    $region23: #{encoder_forward.8} parent=5 // pred_region
      // Predicated region
      $region25: #{encoder_forward.8} parent=23 // pred_check
        %p156 = pneg %p31
      $region26: #{encoder_forward.8} parent=23 // pred_check_branch
        %158 = sbr.rel (%p156) target = $region28
      $region27: #{encoder_forward.8} parent=23 // pred_region
        %s159 = smul.u32 2, %s11
        %p160 = scmp.lt.s32.totalorder %s159, 7
        %s161 = scalar_select %p160, %s159, 7
        %s162 = smul.addr %s161, 8
        %s163 = scalar_lea.vmem %s0, %s162
        %s164 = smul.u32 2, %s11
      $region28: #{encoder_forward.8} parent=23 // pred_fallthru
        _
    $region24: #{encoder_forward.8} parent=5 // pred_fallthru
      _
    %p165 = scmp.le.s32.totalorder 1, %s11
    %p166 = scmp.lt.s32.totalorder %s11, 5
    %p167 = pnand %p165, %p166
    %p168 = pneg %p167
    // Predicated region
    $region29: #{encoder_forward.8} parent=5 // pred_check
      _
    $region30: #{encoder_forward.8} parent=5 // pred_check_branch
      %170 = sbr.rel (%p167) target = $region32
    $region31: #{encoder_forward.8} parent=5 // pred_region
      %s171 = ssub.s32 %s11, 1
      %s172 = smul.u32 2, %s16
      %p173 = scmp.lt.s32.totalorder %s172, 7
      %s174 = scalar_select %p173, %s172, 7
      %s175 = smul.addr %s174, 8
      %s176 = scalar_lea.vmem %s0, %s175
      %p177 = pneg %p37
      %p178 = pneg %p34
      %p179 = pneg %p58
      %p180 = pneg %p55
      %p181 = pneg %p79
      %p182 = pneg %p76
      %p183 = pneg %p105
      %p184 = pneg %p102
      %s185 = smul.u32 2, %s16
      %p186 = scmp.lt.s32.totalorder %s185, 7
      %s187 = scalar_select %p186, %s185, 7
      %s188 = smul.addr %s187, 8
      %s189 = scalar_lea.vmem %s3, %s188
      %p190 = pneg %p131
      %p191 = pneg %p128
      %s192 = smul.u32 2, %s16
      %p193 = scmp.lt.s32.totalorder %s192, 7
      %s194 = scalar_select %p193, %s192, 7
      %s195 = smul.addr %s194, 8
      %s196 = scalar_lea.vmem %s4, %s195
      %s197 = smul.u32 2, %s16
      %p198 = scmp.lt.s32.totalorder %s197, 7
      %s199 = scalar_select %p198, %s197, 7
      %s200 = smul.addr %s199, 8
      %s201 = scalar_lea.vmem %s0, %s200
      %s202 = smul.u32 2, %s16
      %s203 = smul.u32 2, %s16
      %p204 = scmp.lt.s32.totalorder %s203, 7
      %s205 = scalar_select %p204, %s203, 7
      %s206 = smul.addr %s205, 8
      %s207 = scalar_lea.vmem %s3, %s206
      %s208 = smul.u32 2, %s16
      %s209 = smul.u32 2, %s16
      %p210 = scmp.lt.s32.totalorder %s209, 7
      %s211 = scalar_select %p210, %s209, 7
      %s212 = smul.addr %s211, 8
      %s213 = scalar_lea.vmem %s4, %s212
      %s214 = smul.u32 2, %s16
      %v215 = vld [vmem:[%s201] sm:$0xff]
      %v216 = vld [vmem:[%s201 + $0x8] sm:$0xff]
      %v217 = vld [vmem:[%s1] sm:$0xff]
      %v218 = vld [vmem:[%s1 + $0x8] sm:$0xff]
      %v219 = vld [vmem:[%s1 + $0x10] sm:$0xff]
      %v220 = vld [vmem:[%s1 + $0x18] sm:$0xff]
      %v221 = vld [vmem:[%s1 + $0x20] sm:$0xff]
      %v222 = vld [vmem:[%s1 + $0x28] sm:$0xff]
      %v223 = vld [vmem:[%s1 + $0x30] sm:$0xff]
      %v224 = vld [vmem:[%s1 + $0x38] sm:$0xff]
      %vm225 = vcmask 523264
      %v227 = vsel %vm225, %v215, 0
      %v230 = vsel %vm225, %v216, 0
      %232 = vmatprep.subr.mxu0 0.0
      %233 = vmatpush1.msra.mxu0 %v217
      %234 = vmatprep.subr.mxu0 0.0
      %235 = vmatpush1.msra.mxu0 %v218
      %236 = vmatprep.subr.mxu0 0.0
      %237 = vmatpush1.msra.mxu0 %v219
      %238 = vmatprep.subr.mxu0 0.0
      %239 = vmatpush1.msra.mxu0 %v220
      %240 = vmatprep.subr.mxu0 0.0
      %241 = vmatpush1.msra.mxu0 %v221
      %242 = vmatprep.subr.mxu0 0.0
      %243 = vmatpush1.msra.mxu0 %v222
      %244 = vmatprep.subr.mxu0 0.0
      %245 = vmatpush1.msra.mxu0 %v223
      %246 = vmatprep.subr.mxu0 0.0
      %247 = vmatpush1.msra.mxu0 %v224
      %248 = vmatprep.subr.mxu0 0.0
      %249 = vmatpush1.msra.mxu0 0.0
      %250 = vmatprep.subr.mxu0 0.0
      %251 = vmatpush1.msra.mxu0 0.0
      %252 = vmatprep.subr.mxu0 0.0
      %253 = vmatpush1.msra.mxu0 0.0
      %254 = vmatprep.subr.mxu0 0.0
      %255 = vmatpush1.msra.mxu0 0.0
      %256 = vmatprep.subr.mxu0 0.0
      %257 = vmatpush1.msra.mxu0 0.0
      %258 = vmatprep.subr.mxu0 0.0
      %259 = vmatpush1.msra.mxu0 0.0
      %260 = vmatprep.subr.mxu0 0.0
      %261 = vmatpush1.msra.mxu0 0.0
      %262 = vmatprep.subr.mxu0 0.0
      %263 = vmatpush1.msra.mxu0 0.0
      %264 = vmatprep.subr.mxu0 0.0
      %265 = vmatpush1.msra.mxu0 0.0
      %266 = vmatprep.subr.mxu0 0.0
      %267 = vmatpush1.msra.mxu0 0.0
      %268 = vmatprep.subr.mxu0 0.0
      %269 = vmatpush1.msra.mxu0 0.0
      %270 = vmatprep.subr.mxu0 0.0
      %271 = vmatpush1.msra.mxu0 0.0
      %272 = vmatprep.subr.mxu0 0.0
      %273 = vmatpush1.msra.mxu0 0.0
      %274 = vmatprep.subr.mxu0 0.0
      %275 = vmatpush1.msra.mxu0 0.0
      %276 = vmatprep.subr.mxu0 0.0
      %277 = vmatpush1.msra.mxu0 0.0
      %278 = vmatprep.subr.mxu0 0.0
      %279 = vmatpush1.msra.mxu0 0.0
      %280 = vmatprep.subr.mxu0 0.0
      %281 = vmatpush1.msra.mxu0 0.0
      %282 = vmatprep.subr.mxu0 0.0
      %283 = vmatpush1.msra.mxu0 0.0
      %284 = vmatprep.subr.mxu0 0.0
      %285 = vmatpush1.msra.mxu0 0.0
      %286 = vmatprep.subr.mxu0 0.0
      %287 = vmatpush1.msra.mxu0 0.0
      %288 = vmatprep.subr.mxu0 0.0
      %289 = vmatpush1.msra.mxu0 0.0
      %290 = vmatprep.subr.mxu0 0.0
      %291 = vmatpush1.msra.mxu0 0.0
      %292 = vmatprep.subr.mxu0 0.0
      %293 = vmatpush1.msra.mxu0 0.0
      %294 = vmatprep.subr.mxu0 0.0
      %295 = vmatpush1.msra.mxu0 0.0
      %296 = vmatprep.mubr.f32.mxu0 0.0
      %297 = vmatmul.mubr.f32.gmra.mrb[0].mxu0 %v227
      %v298 = vpop.f32.mrb[0].mxu0
      %v299 = vadd.f32 0.0, %v298
      %v300 = vpop.f32.mrb[0].mxu0
      %301 = vmatprep.mubr.f32.mxu0 0.0
      %302 = vmatmul.mubr.f32.gmra.mrb[0].mxu0 %v230
      %v303 = vpop.f32.mrb[0].mxu0
      %v304 = vadd.f32 0.0, %v303
      %v305 = vpop.f32.mrb[0].mxu0
      %306 = vdwg.mxu0
      %vm307 = vcmask 130048
      %308 = vst.msk [vmem:[%s207] sm:$0xff] %vm307, %v299
      %309 = vst.msk [vmem:[%s207 + $0x8] sm:$0xff] %vm307, %v304
      %v310 = vld [vmem:[%s2] sm:$0xff]
      %vm311 = vcmask 64512
      %v313 = vsel %vm311, %v299, 0
      %v316 = vsel %vm311, %v304, 0
      %318 = vmatprep.subr.mxu0 0.0
      %319 = vmatpush1.msra.mxu0 %v310
      %320 = vmatprep.subr.mxu0 0.0
      %321 = vmatpush1.msra.mxu0 0.0
      %322 = vmatprep.subr.mxu0 0.0
      %323 = vmatpush1.msra.mxu0 0.0
      %324 = vmatprep.subr.mxu0 0.0
      %325 = vmatpush1.msra.mxu0 0.0
      %326 = vmatprep.subr.mxu0 0.0
      %327 = vmatpush1.msra.mxu0 0.0
      %328 = vmatprep.subr.mxu0 0.0
      %329 = vmatpush1.msra.mxu0 0.0
      %330 = vmatprep.subr.mxu0 0.0
      %331 = vmatpush1.msra.mxu0 0.0
      %332 = vmatprep.subr.mxu0 0.0
      %333 = vmatpush1.msra.mxu0 0.0
      %334 = vmatprep.subr.mxu0 0.0
      %335 = vmatpush1.msra.mxu0 0.0
      %336 = vmatprep.subr.mxu0 0.0
      %337 = vmatpush1.msra.mxu0 0.0
      %338 = vmatprep.subr.mxu0 0.0
      %339 = vmatpush1.msra.mxu0 0.0
      %340 = vmatprep.subr.mxu0 0.0
      %341 = vmatpush1.msra.mxu0 0.0
      %342 = vmatprep.subr.mxu0 0.0
      %343 = vmatpush1.msra.mxu0 0.0
      %344 = vmatprep.subr.mxu0 0.0
      %345 = vmatpush1.msra.mxu0 0.0
      %346 = vmatprep.subr.mxu0 0.0
      %347 = vmatpush1.msra.mxu0 0.0
      %348 = vmatprep.subr.mxu0 0.0
      %349 = vmatpush1.msra.mxu0 0.0
      %350 = vmatprep.subr.mxu0 0.0
      %351 = vmatpush1.msra.mxu0 0.0
      %352 = vmatprep.subr.mxu0 0.0
      %353 = vmatpush1.msra.mxu0 0.0
      %354 = vmatprep.subr.mxu0 0.0
      %355 = vmatpush1.msra.mxu0 0.0
      %356 = vmatprep.subr.mxu0 0.0
      %357 = vmatpush1.msra.mxu0 0.0
      %358 = vmatprep.subr.mxu0 0.0
      %359 = vmatpush1.msra.mxu0 0.0
      %360 = vmatprep.subr.mxu0 0.0
      %361 = vmatpush1.msra.mxu0 0.0
      %362 = vmatprep.subr.mxu0 0.0
      %363 = vmatpush1.msra.mxu0 0.0
      %364 = vmatprep.subr.mxu0 0.0
      %365 = vmatpush1.msra.mxu0 0.0
      %366 = vmatprep.subr.mxu0 0.0
      %367 = vmatpush1.msra.mxu0 0.0
      %368 = vmatprep.subr.mxu0 0.0
      %369 = vmatpush1.msra.mxu0 0.0
      %370 = vmatprep.subr.mxu0 0.0
      %371 = vmatpush1.msra.mxu0 0.0
      %372 = vmatprep.subr.mxu0 0.0
      %373 = vmatpush1.msra.mxu0 0.0
      %374 = vmatprep.subr.mxu0 0.0
      %375 = vmatpush1.msra.mxu0 0.0
      %376 = vmatprep.subr.mxu0 0.0
      %377 = vmatpush1.msra.mxu0 0.0
      %378 = vmatprep.subr.mxu0 0.0
      %379 = vmatpush1.msra.mxu0 0.0
      %380 = vmatprep.subr.mxu0 0.0
      %381 = vmatpush1.msra.mxu0 0.0
      %382 = vmatprep.mubr.f32.mxu0 0.0
      %383 = vmatmul.mubr.f32.gmra.mrb[0].mxu0 %v313
      %v384 = vpop.f32.mrb[0].mxu0
      %v385 = vadd.f32 0.0, %v384
      %v386 = vpop.f32.mrb[0].mxu0
      %387 = vmatprep.mubr.f32.mxu0 0.0
      %388 = vmatmul.mubr.f32.gmra.mrb[0].mxu0 %v316
      %v389 = vpop.f32.mrb[0].mxu0
      %v390 = vadd.f32 0.0, %v389
      %v391 = vpop.f32.mrb[0].mxu0
      %392 = vdwg.mxu0
      %393 = vst.msk [vmem:[%s213] sm:$0xff] %vm307, %v385
      %394 = vst.msk [vmem:[%s213 + $0x8] sm:$0xff] %vm307, %v390
      %s395 = smul.u32 2, %s16
      %p396 = scmp.lt.s32.totalorder %s395, 7
      %s397 = scalar_select %p396, %s395, 7
      %s398 = smul.addr %s397, 8
      %s399 = scalar_lea.vmem %s3, %s398
      %s400 = smul.u32 2, %s16
      %p401 = scmp.lt.s32.totalorder %s400, 7
      %s402 = scalar_select %p401, %s400, 7
      %s403 = smul.addr %s402, 8
      %s404 = scalar_lea.vmem %s4, %s403
      // Predicated region
      $region33: #{encoder_forward.8} parent=31 // pred_check
        %p405 = pneg %p102
      $region34: #{encoder_forward.8} parent=31 // pred_check_branch
        %407 = sbr.rel (%p405) target = $region36
      $region35: #{encoder_forward.8} parent=31 // pred_region
        %s408 = smul.u32 2, %s16
      $region36: #{encoder_forward.8} parent=31 // pred_fallthru
        _
      // Predicated region
      $region37: #{encoder_forward.8} parent=31 // pred_check
        %p409 = pneg %p128
      $region38: #{encoder_forward.8} parent=31 // pred_check_branch
        %411 = sbr.rel (%p409) target = $region40
      $region39: #{encoder_forward.8} parent=31 // pred_region
        %s412 = smul.u32 2, %s16
      $region40: #{encoder_forward.8} parent=31 // pred_fallthru
        _
    $region32: #{encoder_forward.8} parent=5 // pred_fallthru
      _
    %p413 = scmp.le.s32.totalorder 2, %s11
    // Predicated region
    $region41: #{encoder_forward.8} parent=5 // pred_check
      %p414 = pneg %p413
    $region42: #{encoder_forward.8} parent=5 // pred_check_branch
      %416 = sbr.rel (%p414) target = $region44
    $region43: #{encoder_forward.8} parent=5 // pred_region
      %s417 = ssub.s32 %s11, 2
      // Predicated region
      $region45: #{encoder_forward.8} parent=43 // pred_check
        %p418 = pneg %p108
      $region46: #{encoder_forward.8} parent=43 // pred_check_branch
        %420 = sbr.rel (%p418) target = $region48
      $region47: #{encoder_forward.8} parent=43 // pred_region
        %s421 = smul.u32 2, %s17
        %p422 = scmp.lt.s32.totalorder %s421, 7
        %s423 = scalar_select %p422, %s421, 7
        %s424 = smul.addr %s423, 8
        %s425 = scalar_lea.vmem %s3, %s424
      $region48: #{encoder_forward.8} parent=43 // pred_fallthru
        _
      // Predicated region
      $region49: #{encoder_forward.8} parent=43 // pred_check
        %p426 = pneg %p134
      $region50: #{encoder_forward.8} parent=43 // pred_check_branch
        %428 = sbr.rel (%p426) target = $region52
      $region51: #{encoder_forward.8} parent=43 // pred_region
        %s429 = smul.u32 2, %s17
        %p430 = scmp.lt.s32.totalorder %s429, 7
        %s431 = scalar_select %p430, %s429, 7
        %s432 = smul.addr %s431, 8
        %s433 = scalar_lea.vmem %s4, %s432
      $region52: #{encoder_forward.8} parent=43 // pred_fallthru
        _
    $region44: #{encoder_forward.8} parent=5 // pred_fallthru
      _
  $region6: #{encoder_forward.8} parent=0 // loop_footer
    %s15 = sadd.s32 1, %s11
  $region7: #{encoder_forward.8} parent=0 // loop_footer_branch
    %10 = sbr.rel target = $region3
  $region8: #{encoder_forward.8} parent=0 // loop_exit
    _

// kernel: encoder_forward.7
$region0: #{encoder_forward.7}
  #allocation0 [shape = 'u32[]', space=smem, size = 0x4, offset = 0x4, fixed_abs, tag = 'smem constant byte address 0x4 - core index']
  #allocation1 [shape = 'u32[144,128]{1,0:T(1,128)}', space=vmem, size = 0x12000, scoped, tag = 'internal scratch']
  %s0 = inlined_call_operand.vmem [shape: f32[64,16], index: 0, kind: input, shape index: {}]
  %s1 = inlined_call_operand.vmem [shape: f32[64,16], index: 1, kind: input, shape index: {}]
  %s2 = inlined_call_operand.vmem [shape: f32[16,8], index: 2, kind: input, shape index: {}]
  %s3 = inlined_call_operand.vmem [shape: f32[64,16], index: 3, kind: output, shape index: {}]
  %s4 = sld [smem:[#allocation0]]
  $region45: #{encoder_forward.7} parent=0
    _
  %s6 = ssub.s32 1, %s4
  %s7 = scalar_select 0, %s6, %s4
  loop: start=0, step=1, limit=6
  $region2: #{encoder_forward.7} parent=0 // loop_pre_header
    _
  $region3: #{encoder_forward.7} parent=0 // loop_header
    %s9 = sphi 0, %s13
    %p10 = scmp.ge.s32.totalorder %s9, 6
    %s19 = sphi 0, %s21
    %s22 = sphi 0, %s19
    %s23 = sphi 0, %s22
    %s39 = sphi 0, %s23
    %s45 = sphi 0, %s47
    %s48 = sphi 0, %s45
    %s49 = sphi 0, %s48
    %s65 = sphi 0, %s49
    %s69 = sphi 0, %s69
    %s71 = sphi 0, %s69
    %s72 = sphi 0, %s71
    %s86 = sphi 0, %s72
    %s92 = sphi 0, %s94
    %s95 = sphi 0, %s92
    %s96 = sphi 0, %s95
    %s112 = sphi 0, %s96
  $region4: #{encoder_forward.7} parent=0 // loop_header_branch
    %12 = sbr.rel (%p10) target = $region8
  $region5: #{encoder_forward.7} parent=0 // loop_body
    %s14 = ssub.s32 %s9, 1
    %s15 = ssub.s32 %s9, 2
    %s16 = sadd.s32 %s9, 1
    %s17 = ssub.s32 %s9, %s16
    %p18 = scmp.eq.s32.totalorder %s17, 0
    %s20 = sadd.s32 %s19, 1
    %s21 = scalar_select %p18, %s19, %s20
    %p24 = pneg %p18
    %p25 = scmp.eq.s32.totalorder %s9, 3
    %p26 = por %p24, %p25
    %p27 = scmp.ne.s32.totalorder %s19, %s22
    %p28 = scmp.eq.s32.totalorder %s9, 0
    %p29 = por %p27, %p28
    %p30 = scmp.ne.s32.totalorder %s19, %s22
    %p31 = scmp.eq.s32.totalorder %s14, 3
    %p32 = por %p30, %p31
    %p33 = scmp.ne.s32.totalorder %s22, %s23
    %p34 = scmp.eq.s32.totalorder %s14, 0
    %p35 = por %p33, %p34
    %p36 = scmp.ne.s32.totalorder %s22, %s23
    %p37 = scmp.eq.s32.totalorder %s15, 3
    %p38 = por %p36, %p37
    %p40 = scmp.ne.s32.totalorder %s23, %s39
    %p41 = scmp.eq.s32.totalorder %s15, 0
    %p42 = por %p40, %p41
    %s43 = ssub.s32 %s9, %s16
    %p44 = scmp.eq.s32.totalorder %s43, 0
    %s46 = sadd.s32 %s45, 1
    %s47 = scalar_select %p44, %s45, %s46
    %p50 = pneg %p44
    %p51 = scmp.eq.s32.totalorder %s9, 3
    %p52 = por %p50, %p51
    %p53 = scmp.ne.s32.totalorder %s45, %s48
    %p54 = scmp.eq.s32.totalorder %s9, 0
    %p55 = por %p53, %p54
    %p56 = scmp.ne.s32.totalorder %s45, %s48
    %p57 = scmp.eq.s32.totalorder %s14, 3
    %p58 = por %p56, %p57
    %p59 = scmp.ne.s32.totalorder %s48, %s49
    %p60 = scmp.eq.s32.totalorder %s14, 0
    %p61 = por %p59, %p60
    %p62 = scmp.ne.s32.totalorder %s48, %s49
    %p63 = scmp.eq.s32.totalorder %s15, 3
    %p64 = por %p62, %p63
    %p66 = scmp.ne.s32.totalorder %s49, %s65
    %p67 = scmp.eq.s32.totalorder %s15, 0
    %p68 = por %p66, %p67
    %s70 = sadd.s32 %s69, 1
    %p73 = scmp.eq.s32.totalorder %s9, 3
    %p74 = scmp.ne.s32.totalorder %s69, %s71
    %p75 = scmp.eq.s32.totalorder %s9, 0
    %p76 = por %p74, %p75
    %p77 = scmp.ne.s32.totalorder %s69, %s71
    %p78 = scmp.eq.s32.totalorder %s14, 3
    %p79 = por %p77, %p78
    %p80 = scmp.ne.s32.totalorder %s71, %s72
    %p81 = scmp.eq.s32.totalorder %s14, 0
    %p82 = por %p80, %p81
    %p83 = scmp.ne.s32.totalorder %s71, %s72
    %p84 = scmp.eq.s32.totalorder %s15, 3
    %p85 = por %p83, %p84
    %p87 = scmp.ne.s32.totalorder %s72, %s86
    %p88 = scmp.eq.s32.totalorder %s15, 0
    %p89 = por %p87, %p88
    %s90 = ssub.s32 %s9, %s16
    %p91 = scmp.eq.s32.totalorder %s90, 0
    %s93 = sadd.s32 %s92, 1
    %s94 = scalar_select %p91, %s92, %s93
    %p97 = pneg %p91
    %p98 = scmp.eq.s32.totalorder %s9, 3
    %p99 = por %p97, %p98
    %p100 = scmp.ne.s32.totalorder %s92, %s95
    %p101 = scmp.eq.s32.totalorder %s9, 0
    %p102 = por %p100, %p101
    %p103 = scmp.ne.s32.totalorder %s92, %s95
    %p104 = scmp.eq.s32.totalorder %s14, 3
    %p105 = por %p103, %p104
    %p106 = scmp.ne.s32.totalorder %s95, %s96
    %p107 = scmp.eq.s32.totalorder %s14, 0
    %p108 = por %p106, %p107
    %p109 = scmp.ne.s32.totalorder %s95, %s96
    %p110 = scmp.eq.s32.totalorder %s15, 3
    %p111 = por %p109, %p110
    %p113 = scmp.ne.s32.totalorder %s96, %s112
    %p114 = scmp.eq.s32.totalorder %s15, 0
    %p115 = por %p113, %p114
    %p116 = scmp.le.s32.totalorder 1, %s9
    %p117 = scmp.lt.s32.totalorder %s9, 5
    %p118 = pnand %p116, %p117
    %p119 = pneg %p118
    // Predicated region
    $region9: #{encoder_forward.7} parent=5 // pred_check
      _
    $region10: #{encoder_forward.7} parent=5 // pred_check_branch
      %121 = sbr.rel (%p118) target = $region12
    $region11: #{encoder_forward.7} parent=5 // pred_region
      %s122 = ssub.s32 %s9, 1
      // Predicated region
      $region13: #{encoder_forward.7} parent=11 // pred_check
        %p123 = pneg %p82
      $region14: #{encoder_forward.7} parent=11 // pred_check_branch
        %125 = sbr.rel (%p123) target = $region16
      $region15: #{encoder_forward.7} parent=11 // pred_region
        _
      $region16: #{encoder_forward.7} parent=11 // pred_fallthru
        _
    $region12: #{encoder_forward.7} parent=5 // pred_fallthru
      _
    %p126 = scmp.lt.s32.totalorder %s9, 4
    // Predicated region
    $region17: #{encoder_forward.7} parent=5 // pred_check
      %p127 = pneg %p126
    $region18: #{encoder_forward.7} parent=5 // pred_check_branch
      %129 = sbr.rel (%p127) target = $region20
    $region19: #{encoder_forward.7} parent=5 // pred_region
      // Predicated region
      $region21: #{encoder_forward.7} parent=19 // pred_check
        %p130 = pneg %p29
      $region22: #{encoder_forward.7} parent=19 // pred_check_branch
        %132 = sbr.rel (%p130) target = $region24
      $region23: #{encoder_forward.7} parent=19 // pred_region
        %s133 = smul.u32 2, %s9
        %p134 = scmp.lt.s32.totalorder %s133, 7
        %s135 = scalar_select %p134, %s133, 7
        %s136 = smul.addr %s135, 8
        %s137 = scalar_lea.vmem %s0, %s136
        %s138 = smul.u32 2, %s9
      $region24: #{encoder_forward.7} parent=19 // pred_fallthru
        _
      // Predicated region
      $region25: #{encoder_forward.7} parent=19 // pred_check
        %p139 = pneg %p55
      $region26: #{encoder_forward.7} parent=19 // pred_check_branch
        %141 = sbr.rel (%p139) target = $region28
      $region27: #{encoder_forward.7} parent=19 // pred_region
        %s142 = smul.u32 2, %s9
        %p143 = scmp.lt.s32.totalorder %s142, 7
        %s144 = scalar_select %p143, %s142, 7
        %s145 = smul.addr %s144, 8
        %s146 = scalar_lea.vmem %s1, %s145
        %s147 = smul.u32 2, %s9
      $region28: #{encoder_forward.7} parent=19 // pred_fallthru
        _
    $region20: #{encoder_forward.7} parent=5 // pred_fallthru
      _
    %p148 = scmp.le.s32.totalorder 1, %s9
    %p149 = scmp.lt.s32.totalorder %s9, 5
    %p150 = pnand %p148, %p149
    %p151 = pneg %p150
    // Predicated region
    $region29: #{encoder_forward.7} parent=5 // pred_check
      _
    $region30: #{encoder_forward.7} parent=5 // pred_check_branch
      %153 = sbr.rel (%p150) target = $region32
    $region31: #{encoder_forward.7} parent=5 // pred_region
      %s154 = ssub.s32 %s9, 1
      %s155 = smul.u32 2, %s14
      %p156 = scmp.lt.s32.totalorder %s155, 7
      %s157 = scalar_select %p156, %s155, 7
      %s158 = smul.addr %s157, 8
      %s159 = scalar_lea.vmem %s0, %s158
      %p160 = pneg %p35
      %p161 = pneg %p32
      %s162 = smul.u32 2, %s14
      %p163 = scmp.lt.s32.totalorder %s162, 7
      %s164 = scalar_select %p163, %s162, 7
      %s165 = smul.addr %s164, 8
      %s166 = scalar_lea.vmem %s1, %s165
      %p167 = pneg %p61
      %p168 = pneg %p58
      %p169 = pneg %p82
      %p170 = pneg %p79
      %p171 = pneg %p108
      %p172 = pneg %p105
      %s173 = smul.u32 2, %s14
      %p174 = scmp.lt.s32.totalorder %s173, 7
      %s175 = scalar_select %p174, %s173, 7
      %s176 = smul.addr %s175, 8
      %s177 = scalar_lea.vmem %s3, %s176
      %s178 = smul.u32 2, %s14
      %p179 = scmp.lt.s32.totalorder %s178, 7
      %s180 = scalar_select %p179, %s178, 7
      %s181 = smul.addr %s180, 8
      %s182 = scalar_lea.vmem %s0, %s181
      %s183 = smul.u32 2, %s14
      %s184 = smul.u32 2, %s14
      %p185 = scmp.lt.s32.totalorder %s184, 7
      %s186 = scalar_select %p185, %s184, 7
      %s187 = smul.addr %s186, 8
      %s188 = scalar_lea.vmem %s1, %s187
      %s189 = smul.u32 2, %s14
      %s190 = smul.u32 2, %s14
      %p191 = scmp.lt.s32.totalorder %s190, 7
      %s192 = scalar_select %p191, %s190, 7
      %s193 = smul.addr %s192, 8
      %s194 = scalar_lea.vmem %s3, %s193
      %s195 = smul.u32 2, %s14
      %v196 = vld [vmem:[%s2] sm:$0xff]
      %v197 = vld [vmem:[%s2 + $0x8] sm:$0xff]
      %v198 = vld [vmem:[%s182] sm:$0xff]
      %v199 = vld [vmem:[%s182 + $0x8] sm:$0xff]
      %vm200 = vcmask 130048
      %v202 = vsel %vm200, %v198, 0
      %v205 = vsel %vm200, %v199, 0
      %207 = vmatprep.subr.mxu0 0.0
      %208 = vmatpush1.msra.mxu0 %v196
      %209 = vmatprep.subr.mxu0 0.0
      %210 = vmatpush1.msra.mxu0 %v197
      %211 = vmatprep.subr.mxu0 0.0
      %212 = vmatpush1.msra.mxu0 0.0
      %213 = vmatprep.subr.mxu0 0.0
      %214 = vmatpush1.msra.mxu0 0.0
      %215 = vmatprep.subr.mxu0 0.0
      %216 = vmatpush1.msra.mxu0 0.0
      %217 = vmatprep.subr.mxu0 0.0
      %218 = vmatpush1.msra.mxu0 0.0
      %219 = vmatprep.subr.mxu0 0.0
      %220 = vmatpush1.msra.mxu0 0.0
      %221 = vmatprep.subr.mxu0 0.0
      %222 = vmatpush1.msra.mxu0 0.0
      %223 = vmatprep.subr.mxu0 0.0
      %224 = vmatpush1.msra.mxu0 0.0
      %225 = vmatprep.subr.mxu0 0.0
      %226 = vmatpush1.msra.mxu0 0.0
      %227 = vmatprep.subr.mxu0 0.0
      %228 = vmatpush1.msra.mxu0 0.0
      %229 = vmatprep.subr.mxu0 0.0
      %230 = vmatpush1.msra.mxu0 0.0
      %231 = vmatprep.subr.mxu0 0.0
      %232 = vmatpush1.msra.mxu0 0.0
      %233 = vmatprep.subr.mxu0 0.0
      %234 = vmatpush1.msra.mxu0 0.0
      %235 = vmatprep.subr.mxu0 0.0
      %236 = vmatpush1.msra.mxu0 0.0
      %237 = vmatprep.subr.mxu0 0.0
      %238 = vmatpush1.msra.mxu0 0.0
      %239 = vmatprep.subr.mxu0 0.0
      %240 = vmatpush1.msra.mxu0 0.0
      %241 = vmatprep.subr.mxu0 0.0
      %242 = vmatpush1.msra.mxu0 0.0
      %243 = vmatprep.subr.mxu0 0.0
      %244 = vmatpush1.msra.mxu0 0.0
      %245 = vmatprep.subr.mxu0 0.0
      %246 = vmatpush1.msra.mxu0 0.0
      %247 = vmatprep.subr.mxu0 0.0
      %248 = vmatpush1.msra.mxu0 0.0
      %249 = vmatprep.subr.mxu0 0.0
      %250 = vmatpush1.msra.mxu0 0.0
      %251 = vmatprep.subr.mxu0 0.0
      %252 = vmatpush1.msra.mxu0 0.0
      %253 = vmatprep.subr.mxu0 0.0
      %254 = vmatpush1.msra.mxu0 0.0
      %255 = vmatprep.subr.mxu0 0.0
      %256 = vmatpush1.msra.mxu0 0.0
      %257 = vmatprep.subr.mxu0 0.0
      %258 = vmatpush1.msra.mxu0 0.0
      %259 = vmatprep.subr.mxu0 0.0
      %260 = vmatpush1.msra.mxu0 0.0
      %261 = vmatprep.subr.mxu0 0.0
      %262 = vmatpush1.msra.mxu0 0.0
      %263 = vmatprep.subr.mxu0 0.0
      %264 = vmatpush1.msra.mxu0 0.0
      %265 = vmatprep.subr.mxu0 0.0
      %266 = vmatpush1.msra.mxu0 0.0
      %267 = vmatprep.subr.mxu0 0.0
      %268 = vmatpush1.msra.mxu0 0.0
      %269 = vmatprep.subr.mxu0 0.0
      %270 = vmatpush1.msra.mxu0 0.0
      %271 = vmatprep.mubr.f32.mxu0 0.0
      %272 = vmatmul.mubr.f32.gmra.mrb[0].mxu0 %v202
      %v273 = vpop.f32.mrb[0].mxu0
      %v274 = vadd.f32 0.0, %v273
      %v275 = vpop.f32.mrb[0].mxu0
      %276 = vmatprep.mubr.f32.mxu0 0.0
      %277 = vmatmul.mubr.f32.gmra.mrb[0].mxu0 %v205
      %v278 = vpop.f32.mrb[0].mxu0
      %v279 = vadd.f32 0.0, %v278
      %v280 = vpop.f32.mrb[0].mxu0
      %281 = vdwg.mxu0
      %v282 = vld [vmem:[%s188] sm:$0xff]
      %v283 = vld [vmem:[%s188 + $0x8] sm:$0xff]
      %v285 = vsel %vm200, %v282, 0
      %v288 = vsel %vm200, %v283, 0
      %290 = vmatprep.subr.mxu0 0.0
      %291 = vmatpush1.msra.mxu0 %v196
      %292 = vmatprep.subr.mxu0 0.0
      %293 = vmatpush1.msra.mxu0 %v197
      %294 = vmatprep.subr.mxu0 0.0
      %295 = vmatpush1.msra.mxu0 0.0
      %296 = vmatprep.subr.mxu0 0.0
      %297 = vmatpush1.msra.mxu0 0.0
      %298 = vmatprep.subr.mxu0 0.0
      %299 = vmatpush1.msra.mxu0 0.0
      %300 = vmatprep.subr.mxu0 0.0
      %301 = vmatpush1.msra.mxu0 0.0
      %302 = vmatprep.subr.mxu0 0.0
      %303 = vmatpush1.msra.mxu0 0.0
      %304 = vmatprep.subr.mxu0 0.0
      %305 = vmatpush1.msra.mxu0 0.0
      %306 = vmatprep.subr.mxu0 0.0
      %307 = vmatpush1.msra.mxu0 0.0
      %308 = vmatprep.subr.mxu0 0.0
      %309 = vmatpush1.msra.mxu0 0.0
      %310 = vmatprep.subr.mxu0 0.0
      %311 = vmatpush1.msra.mxu0 0.0
      %312 = vmatprep.subr.mxu0 0.0
      %313 = vmatpush1.msra.mxu0 0.0
      %314 = vmatprep.subr.mxu0 0.0
      %315 = vmatpush1.msra.mxu0 0.0
      %316 = vmatprep.subr.mxu0 0.0
      %317 = vmatpush1.msra.mxu0 0.0
      %318 = vmatprep.subr.mxu0 0.0
      %319 = vmatpush1.msra.mxu0 0.0
      %320 = vmatprep.subr.mxu0 0.0
      %321 = vmatpush1.msra.mxu0 0.0
      %322 = vmatprep.subr.mxu0 0.0
      %323 = vmatpush1.msra.mxu0 0.0
      %324 = vmatprep.subr.mxu0 0.0
      %325 = vmatpush1.msra.mxu0 0.0
      %326 = vmatprep.subr.mxu0 0.0
      %327 = vmatpush1.msra.mxu0 0.0
      %328 = vmatprep.subr.mxu0 0.0
      %329 = vmatpush1.msra.mxu0 0.0
      %330 = vmatprep.subr.mxu0 0.0
      %331 = vmatpush1.msra.mxu0 0.0
      %332 = vmatprep.subr.mxu0 0.0
      %333 = vmatpush1.msra.mxu0 0.0
      %334 = vmatprep.subr.mxu0 0.0
      %335 = vmatpush1.msra.mxu0 0.0
      %336 = vmatprep.subr.mxu0 0.0
      %337 = vmatpush1.msra.mxu0 0.0
      %338 = vmatprep.subr.mxu0 0.0
      %339 = vmatpush1.msra.mxu0 0.0
      %340 = vmatprep.subr.mxu0 0.0
      %341 = vmatpush1.msra.mxu0 0.0
      %342 = vmatprep.subr.mxu0 0.0
      %343 = vmatpush1.msra.mxu0 0.0
      %344 = vmatprep.subr.mxu0 0.0
      %345 = vmatpush1.msra.mxu0 0.0
      %346 = vmatprep.subr.mxu0 0.0
      %347 = vmatpush1.msra.mxu0 0.0
      %348 = vmatprep.subr.mxu0 0.0
      %349 = vmatpush1.msra.mxu0 0.0
      %350 = vmatprep.subr.mxu0 0.0
      %351 = vmatpush1.msra.mxu0 0.0
      %352 = vmatprep.subr.mxu0 0.0
      %353 = vmatpush1.msra.mxu0 0.0
      %354 = vmatprep.mubr.f32.mxu0 0.0
      %355 = vmatmul.mubr.f32.gmra.mrb[0].mxu0 %v285
      %v356 = vpop.f32.mrb[0].mxu0
      %v357 = vadd.f32 0.0, %v356
      %v358 = vpop.f32.mrb[0].mxu0
      %359 = vmatprep.mubr.f32.mxu0 0.0
      %360 = vmatmul.mubr.f32.gmra.mrb[0].mxu0 %v288
      %v361 = vpop.f32.mrb[0].mxu0
      %v362 = vadd.f32 0.0, %v361
      %v363 = vpop.f32.mrb[0].mxu0
      %364 = vdwg.mxu0
      %367 = vrot.lane.b32.xlu0 %v357, 8
      %v368 = vpop.permute.xlu0 %367
      %369 = vrot.lane.b32.xlu0 %v362, 8
      %v370 = vpop.permute.xlu0 %369
      %vm373 = vcmask 64512
      %v374 = vsel %vm373, %v274, %v368
      %v375 = vsel %vm373, %v279, %v370
      %376 = vst.msk [vmem:[%s194] sm:$0xff] %vm200, %v374
      %377 = vst.msk [vmem:[%s194 + $0x8] sm:$0xff] %vm200, %v375
      %s378 = smul.u32 2, %s14
      %p379 = scmp.lt.s32.totalorder %s378, 7
      %s380 = scalar_select %p379, %s378, 7
      %s381 = smul.addr %s380, 8
      %s382 = scalar_lea.vmem %s3, %s381
      // Predicated region
      $region33: #{encoder_forward.7} parent=31 // pred_check
        %p383 = pneg %p105
      $region34: #{encoder_forward.7} parent=31 // pred_check_branch
        %385 = sbr.rel (%p383) target = $region36
      $region35: #{encoder_forward.7} parent=31 // pred_region
        %s386 = smul.u32 2, %s14
      $region36: #{encoder_forward.7} parent=31 // pred_fallthru
        _
    $region32: #{encoder_forward.7} parent=5 // pred_fallthru
      _
    %p387 = scmp.le.s32.totalorder 2, %s9
    // Predicated region
    $region37: #{encoder_forward.7} parent=5 // pred_check
      %p388 = pneg %p387
    $region38: #{encoder_forward.7} parent=5 // pred_check_branch
      %390 = sbr.rel (%p388) target = $region40
    $region39: #{encoder_forward.7} parent=5 // pred_region
      %s391 = ssub.s32 %s9, 2
      // Predicated region
      $region41: #{encoder_forward.7} parent=39 // pred_check
        %p392 = pneg %p111
      $region42: #{encoder_forward.7} parent=39 // pred_check_branch
        %394 = sbr.rel (%p392) target = $region44
      $region43: #{encoder_forward.7} parent=39 // pred_region
        %s395 = smul.u32 2, %s15
        %p396 = scmp.lt.s32.totalorder %s395, 7
        %s397 = scalar_select %p396, %s395, 7
        %s398 = smul.addr %s397, 8
        %s399 = scalar_lea.vmem %s3, %s398
      $region44: #{encoder_forward.7} parent=39 // pred_fallthru
        _
    $region40: #{encoder_forward.7} parent=5 // pred_fallthru
      _
  $region6: #{encoder_forward.7} parent=0 // loop_footer
    %s13 = sadd.s32 1, %s9
  $region7: #{encoder_forward.7} parent=0 // loop_footer_branch
    %8 = sbr.rel target = $region3
  $region8: #{encoder_forward.7} parent=0 // loop_exit
    _

// kernel: encoder_forward.5
$region0: #{encoder_forward.5}
  #allocation0 [shape = 'u32[]', space=smem, size = 0x4, offset = 0x4, fixed_abs, tag = 'smem constant byte address 0x4 - core index']
  #allocation1 [shape = 'u32[144,128]{1,0:T(1,128)}', space=vmem, size = 0x12000, scoped, tag = 'internal scratch']
  %s0 = inlined_call_operand.vmem [shape: f32[4], index: 0, kind: input, shape index: {}]
  %s1 = inlined_call_operand.vmem [shape: f32[2,1,1], index: 1, kind: input, shape index: {}]
  %s2 = inlined_call_operand.vmem [shape: f32[64,16,1], index: 2, kind: input, shape index: {}]
  %s3 = inlined_call_operand.vmem [shape: f32[64,16,1], index: 3, kind: input, shape index: {}]
  %s4 = inlined_call_operand.vmem [shape: s8[64,16,16], index: 4, kind: input, shape index: {}]
  %s5 = inlined_call_operand.vmem [shape: f32[64,1,16], index: 5, kind: output, shape index: {0}]
  %s6 = inlined_call_operand.vmem [shape: f32[64,1,16], index: 6, kind: output, shape index: {1}]
  %s7 = inlined_call_operand.hbm [shape: f32[64,16,16], index: 7, kind: output, shape index: {2}]
  %8 = xla_tuple %s5, %s6, %s7
  %s9 = sld [smem:[#allocation0]]
  $region73: #{encoder_forward.5} parent=0
    _
  %s11 = ssub.s32 1, %s9
  %s12 = scalar_select 0, %s11, %s9
  $region1: #{encoder_forward.5} parent=0
    #allocation2 [shape = 'u8[512]{0}', space=smem, size = 0x200, scoped, tag = 'input window, operand 0, single buffered']
    #allocation3 [shape = 's32[2]{0}', space=sflag, size = 0x8, scoped, tag = 'scoped memory for encoder_forward.5']
    #allocation4 [shape = 's32[2]{0}', space=sflag, size = 0x8, scoped, tag = 'scoped memory for encoder_forward.5']
    #allocation5 [shape = 'u8[262144]{0}', space=vmem, size = 0x40000, scoped, tag = 'output window, operand 2']
    %13 = vsyncpa [#allocation4], 0
    %14 = vsyncpa [#allocation3], 0
    %s15 = scalar_lea.sflag [#allocation3], 1
    %16 = vsyncpa %s15, 0
    loop: start=0, step=1, limit=6
    $region2: #{encoder_forward.5} parent=1 // loop_pre_header
      _
    $region3: #{encoder_forward.5} parent=1 // loop_header
      %s18 = sphi 0, %s22
      %p19 = scmp.ge.s32.totalorder %s18, 6
      %s26 = sphi 0, %s26
      %s28 = sphi 0, %s26
      %s29 = sphi 0, %s28
      %s43 = sphi 0, %s29
      %s47 = sphi 0, %s47
      %s49 = sphi 0, %s47
      %s50 = sphi 0, %s49
      %s64 = sphi 0, %s50
      %s70 = sphi 0, %s72
      %s73 = sphi 0, %s70
      %s74 = sphi 0, %s73
      %s90 = sphi 0, %s74
      %s96 = sphi 0, %s98
      %s99 = sphi 0, %s96
      %s100 = sphi 0, %s99
      %s116 = sphi 0, %s100
      %s122 = sphi 0, %s124
      %s125 = sphi 0, %s122
      %s126 = sphi 0, %s125
      %s142 = sphi 0, %s126
      %s148 = sphi 0, %s150
      %s151 = sphi 0, %s148
      %s152 = sphi 0, %s151
      %s168 = sphi 0, %s152
      %s174 = sphi 0, %s176
      %s177 = sphi 0, %s174
      %s178 = sphi 0, %s177
      %s194 = sphi 0, %s178
      %s200 = sphi 0, %s202
      %s203 = sphi 0, %s200
      %s204 = sphi 0, %s203
      %s220 = sphi 0, %s204
    $region4: #{encoder_forward.5} parent=1 // loop_header_branch
      %21 = sbr.rel (%p19) target = $region8
    $region5: #{encoder_forward.5} parent=1 // loop_body
      %s23 = ssub.s32 %s18, 1
      %s24 = ssub.s32 %s18, 2
      %s25 = sadd.s32 %s18, 1
      %s27 = sadd.s32 %s26, 1
      %p30 = scmp.eq.s32.totalorder %s18, 3
      %p31 = scmp.ne.s32.totalorder %s26, %s28
      %p32 = scmp.eq.s32.totalorder %s18, 0
      %p33 = por %p31, %p32
      %p34 = scmp.ne.s32.totalorder %s26, %s28
      %p35 = scmp.eq.s32.totalorder %s23, 3
      %p36 = por %p34, %p35
      %p37 = scmp.ne.s32.totalorder %s28, %s29
      %p38 = scmp.eq.s32.totalorder %s23, 0
      %p39 = por %p37, %p38
      %p40 = scmp.ne.s32.totalorder %s28, %s29
      %p41 = scmp.eq.s32.totalorder %s24, 3
      %p42 = por %p40, %p41
      %p44 = scmp.ne.s32.totalorder %s29, %s43
      %p45 = scmp.eq.s32.totalorder %s24, 0
      %p46 = por %p44, %p45
      %s48 = sadd.s32 %s47, 1
      %p51 = scmp.eq.s32.totalorder %s18, 3
      %p52 = scmp.ne.s32.totalorder %s47, %s49
      %p53 = scmp.eq.s32.totalorder %s18, 0
      %p54 = por %p52, %p53
      %p55 = scmp.ne.s32.totalorder %s47, %s49
      %p56 = scmp.eq.s32.totalorder %s23, 3
      %p57 = por %p55, %p56
      %p58 = scmp.ne.s32.totalorder %s49, %s50
      %p59 = scmp.eq.s32.totalorder %s23, 0
      %p60 = por %p58, %p59
      %p61 = scmp.ne.s32.totalorder %s49, %s50
      %p62 = scmp.eq.s32.totalorder %s24, 3
      %p63 = por %p61, %p62
      %p65 = scmp.ne.s32.totalorder %s50, %s64
      %p66 = scmp.eq.s32.totalorder %s24, 0
      %p67 = por %p65, %p66
      %s68 = ssub.s32 %s18, %s25
      %p69 = scmp.eq.s32.totalorder %s68, 0
      %s71 = sadd.s32 %s70, 1
      %s72 = scalar_select %p69, %s70, %s71
      %p75 = pneg %p69
      %p76 = scmp.eq.s32.totalorder %s18, 3
      %p77 = por %p75, %p76
      %p78 = scmp.ne.s32.totalorder %s70, %s73
      %p79 = scmp.eq.s32.totalorder %s18, 0
      %p80 = por %p78, %p79
      %p81 = scmp.ne.s32.totalorder %s70, %s73
      %p82 = scmp.eq.s32.totalorder %s23, 3
      %p83 = por %p81, %p82
      %p84 = scmp.ne.s32.totalorder %s73, %s74
      %p85 = scmp.eq.s32.totalorder %s23, 0
      %p86 = por %p84, %p85
      %p87 = scmp.ne.s32.totalorder %s73, %s74
      %p88 = scmp.eq.s32.totalorder %s24, 3
      %p89 = por %p87, %p88
      %p91 = scmp.ne.s32.totalorder %s74, %s90
      %p92 = scmp.eq.s32.totalorder %s24, 0
      %p93 = por %p91, %p92
      %s94 = ssub.s32 %s18, %s25
      %p95 = scmp.eq.s32.totalorder %s94, 0
      %s97 = sadd.s32 %s96, 1
      %s98 = scalar_select %p95, %s96, %s97
      %p101 = pneg %p95
      %p102 = scmp.eq.s32.totalorder %s18, 3
      %p103 = por %p101, %p102
      %p104 = scmp.ne.s32.totalorder %s96, %s99
      %p105 = scmp.eq.s32.totalorder %s18, 0
      %p106 = por %p104, %p105
      %p107 = scmp.ne.s32.totalorder %s96, %s99
      %p108 = scmp.eq.s32.totalorder %s23, 3
      %p109 = por %p107, %p108
      %p110 = scmp.ne.s32.totalorder %s99, %s100
      %p111 = scmp.eq.s32.totalorder %s23, 0
      %p112 = por %p110, %p111
      %p113 = scmp.ne.s32.totalorder %s99, %s100
      %p114 = scmp.eq.s32.totalorder %s24, 3
      %p115 = por %p113, %p114
      %p117 = scmp.ne.s32.totalorder %s100, %s116
      %p118 = scmp.eq.s32.totalorder %s24, 0
      %p119 = por %p117, %p118
      %s120 = ssub.s32 %s18, %s25
      %p121 = scmp.eq.s32.totalorder %s120, 0
      %s123 = sadd.s32 %s122, 1
      %s124 = scalar_select %p121, %s122, %s123
      %p127 = pneg %p121
      %p128 = scmp.eq.s32.totalorder %s18, 3
      %p129 = por %p127, %p128
      %p130 = scmp.ne.s32.totalorder %s122, %s125
      %p131 = scmp.eq.s32.totalorder %s18, 0
      %p132 = por %p130, %p131
      %p133 = scmp.ne.s32.totalorder %s122, %s125
      %p134 = scmp.eq.s32.totalorder %s23, 3
      %p135 = por %p133, %p134
      %p136 = scmp.ne.s32.totalorder %s125, %s126
      %p137 = scmp.eq.s32.totalorder %s23, 0
      %p138 = por %p136, %p137
      %p139 = scmp.ne.s32.totalorder %s125, %s126
      %p140 = scmp.eq.s32.totalorder %s24, 3
      %p141 = por %p139, %p140
      %p143 = scmp.ne.s32.totalorder %s126, %s142
      %p144 = scmp.eq.s32.totalorder %s24, 0
      %p145 = por %p143, %p144
      %s146 = ssub.s32 %s18, %s25
      %p147 = scmp.eq.s32.totalorder %s146, 0
      %s149 = sadd.s32 %s148, 1
      %s150 = scalar_select %p147, %s148, %s149
      %p153 = pneg %p147
      %p154 = scmp.eq.s32.totalorder %s18, 3
      %p155 = por %p153, %p154
      %p156 = scmp.ne.s32.totalorder %s148, %s151
      %p157 = scmp.eq.s32.totalorder %s18, 0
      %p158 = por %p156, %p157
      %p159 = scmp.ne.s32.totalorder %s148, %s151
      %p160 = scmp.eq.s32.totalorder %s23, 3
      %p161 = por %p159, %p160
      %p162 = scmp.ne.s32.totalorder %s151, %s152
      %p163 = scmp.eq.s32.totalorder %s23, 0
      %p164 = por %p162, %p163
      %p165 = scmp.ne.s32.totalorder %s151, %s152
      %p166 = scmp.eq.s32.totalorder %s24, 3
      %p167 = por %p165, %p166
      %p169 = scmp.ne.s32.totalorder %s152, %s168
      %p170 = scmp.eq.s32.totalorder %s24, 0
      %p171 = por %p169, %p170
      %s172 = ssub.s32 %s18, %s25
      %p173 = scmp.eq.s32.totalorder %s172, 0
      %s175 = sadd.s32 %s174, 1
      %s176 = scalar_select %p173, %s174, %s175
      %p179 = pneg %p173
      %p180 = scmp.eq.s32.totalorder %s18, 3
      %p181 = por %p179, %p180
      %p182 = scmp.ne.s32.totalorder %s174, %s177
      %p183 = scmp.eq.s32.totalorder %s18, 0
      %p184 = por %p182, %p183
      %p185 = scmp.ne.s32.totalorder %s174, %s177
      %p186 = scmp.eq.s32.totalorder %s23, 3
      %p187 = por %p185, %p186
      %p188 = scmp.ne.s32.totalorder %s177, %s178
      %p189 = scmp.eq.s32.totalorder %s23, 0
      %p190 = por %p188, %p189
      %p191 = scmp.ne.s32.totalorder %s177, %s178
      %p192 = scmp.eq.s32.totalorder %s24, 3
      %p193 = por %p191, %p192
      %p195 = scmp.ne.s32.totalorder %s178, %s194
      %p196 = scmp.eq.s32.totalorder %s24, 0
      %p197 = por %p195, %p196
      %s198 = ssub.s32 %s18, %s25
      %p199 = scmp.eq.s32.totalorder %s198, 0
      %s201 = sadd.s32 %s200, 1
      %s202 = scalar_select %p199, %s200, %s201
      %p205 = pneg %p199
      %p206 = scmp.eq.s32.totalorder %s18, 3
      %p207 = por %p205, %p206
      %p208 = scmp.ne.s32.totalorder %s200, %s203
      %p209 = scmp.eq.s32.totalorder %s18, 0
      %p210 = por %p208, %p209
      %p211 = scmp.ne.s32.totalorder %s200, %s203
      %p212 = scmp.eq.s32.totalorder %s23, 3
      %p213 = por %p211, %p212
      %p214 = scmp.ne.s32.totalorder %s203, %s204
      %p215 = scmp.eq.s32.totalorder %s23, 0
      %p216 = por %p214, %p215
      %p217 = scmp.ne.s32.totalorder %s203, %s204
      %p218 = scmp.eq.s32.totalorder %s24, 3
      %p219 = por %p217, %p218
      %p221 = scmp.ne.s32.totalorder %s204, %s220
      %p222 = scmp.eq.s32.totalorder %s24, 0
      %p223 = por %p221, %p222
      %p224 = scmp.le.s32.totalorder 1, %s18
      %p225 = scmp.lt.s32.totalorder %s18, 5
      %p226 = pnand %p224, %p225
      %p227 = pneg %p226
      // Predicated region
      $region9: #{encoder_forward.5} parent=5 // pred_check
        _
      $region10: #{encoder_forward.5} parent=5 // pred_check_branch
        %229 = sbr.rel (%p226) target = $region12
      $region11: #{encoder_forward.5} parent=5 // pred_region
        %s230 = ssub.s32 %s18, 1
        // Predicated region
        $region13: #{encoder_forward.5} parent=11 // pred_check
          %p231 = pneg %p39
        $region14: #{encoder_forward.5} parent=11 // pred_check_branch
          %233 = sbr.rel (%p231) target = $region16
        $region15: #{encoder_forward.5} parent=11 // pred_region
          %s235 = ssub.s32 16, 16
          %236 = vsyncadd [#allocation4], %s235
          %s238 = sshll.u32 %s0, 4
          %s239 = int_to_ptr.vmem [resolvable:$true] %s238
          %241 = dma.vmem_to_smem %s239, 16, [#allocation2], [#allocation4]
        $region16: #{encoder_forward.5} parent=11 // pred_fallthru
          _
        // Predicated region
        $region17: #{encoder_forward.5} parent=11 // pred_check
          %p242 = pneg %p60
        $region18: #{encoder_forward.5} parent=11 // pred_check_branch
          %244 = sbr.rel (%p242) target = $region20
        $region19: #{encoder_forward.5} parent=11 // pred_region
          _
        $region20: #{encoder_forward.5} parent=11 // pred_fallthru
          _
      $region12: #{encoder_forward.5} parent=5 // pred_fallthru
        _
      %p245 = scmp.lt.s32.totalorder %s18, 4
      // Predicated region
      $region21: #{encoder_forward.5} parent=5 // pred_check
        %p246 = pneg %p245
      $region22: #{encoder_forward.5} parent=5 // pred_check_branch
        %248 = sbr.rel (%p246) target = $region24
      $region23: #{encoder_forward.5} parent=5 // pred_region
        // Predicated region
        $region25: #{encoder_forward.5} parent=23 // pred_check
          %p249 = pneg %p80
        $region26: #{encoder_forward.5} parent=23 // pred_check_branch
          %251 = sbr.rel (%p249) target = $region28
        $region27: #{encoder_forward.5} parent=23 // pred_region
          %s252 = smul.u32 16, %s18
          %p253 = scmp.lt.s32.totalorder %s252, 63
          %s254 = scalar_select %p253, %s252, 63
          %s255 = smul.addr %s254, 2
          %s256 = smul.addr %s255, 8
          %s257 = scalar_lea.vmem %s2, %s256
          %s258 = smul.u32 16, %s18
        $region28: #{encoder_forward.5} parent=23 // pred_fallthru
          _
        // Predicated region
        $region29: #{encoder_forward.5} parent=23 // pred_check
          %p259 = pneg %p106
        $region30: #{encoder_forward.5} parent=23 // pred_check_branch
          %261 = sbr.rel (%p259) target = $region32
        $region31: #{encoder_forward.5} parent=23 // pred_region
          %s262 = smul.u32 16, %s18
          %p263 = scmp.lt.s32.totalorder %s262, 63
          %s264 = scalar_select %p263, %s262, 63
          %s265 = smul.addr %s264, 2
          %s266 = smul.addr %s265, 8
          %s267 = scalar_lea.vmem %s3, %s266
          %s268 = smul.u32 16, %s18
        $region32: #{encoder_forward.5} parent=23 // pred_fallthru
          _
        // Predicated region
        $region33: #{encoder_forward.5} parent=23 // pred_check
          %p269 = pneg %p132
        $region34: #{encoder_forward.5} parent=23 // pred_check_branch
          %271 = sbr.rel (%p269) target = $region36
        $region35: #{encoder_forward.5} parent=23 // pred_region
          %s272 = smul.u32 16, %s18
          %p273 = scmp.lt.s32.totalorder %s272, 63
          %s274 = scalar_select %p273, %s272, 63
          %s275 = smul.addr %s274, 2
          %s276 = smul.addr %s275, 2
          %s277 = scalar_lea.vmem %s4, %s276
          %s278 = smul.u32 16, %s18
        $region36: #{encoder_forward.5} parent=23 // pred_fallthru
          _
      $region24: #{encoder_forward.5} parent=5 // pred_fallthru
        _
      %p279 = scmp.le.s32.totalorder 1, %s18
      %p280 = scmp.lt.s32.totalorder %s18, 5
      %p281 = pnand %p279, %p280
      %p282 = pneg %p281
      // Predicated region
      $region37: #{encoder_forward.5} parent=5 // pred_check
        _
      $region38: #{encoder_forward.5} parent=5 // pred_check_branch
        %284 = sbr.rel (%p281) target = $region40
      $region39: #{encoder_forward.5} parent=5 // pred_region
        %s285 = ssub.s32 %s18, 1
        // Predicated region
        $region41: #{encoder_forward.5} parent=39 // pred_check
          %p286 = pneg %p39
        $region42: #{encoder_forward.5} parent=39 // pred_check_branch
          %288 = sbr.rel (%p286) target = $region44
        $region43: #{encoder_forward.5} parent=39 // pred_region
          %289 = dma.done [#allocation4], 16
        $region44: #{encoder_forward.5} parent=39 // pred_fallthru
          _
        %290 = sfence
        %p291 = pneg %p39
        %p292 = pneg %p36
        %p293 = pneg %p60
        %p294 = pneg %p57
        %s295 = smul.u32 16, %s23
        %p296 = scmp.lt.s32.totalorder %s295, 63
        %s297 = scalar_select %p296, %s295, 63
        %s298 = smul.addr %s297, 2
        %s299 = smul.addr %s298, 8
        %s300 = scalar_lea.vmem %s2, %s299
        %p301 = pneg %p86
        %p302 = pneg %p83
        %s303 = smul.u32 16, %s23
        %p304 = scmp.lt.s32.totalorder %s303, 63
        %s305 = scalar_select %p304, %s303, 63
        %s306 = smul.addr %s305, 2
        %s307 = smul.addr %s306, 8
        %s308 = scalar_lea.vmem %s3, %s307
        %p309 = pneg %p112
        %p310 = pneg %p109
        %s311 = smul.u32 16, %s23
        %p312 = scmp.lt.s32.totalorder %s311, 63
        %s313 = scalar_select %p312, %s311, 63
        %s314 = smul.addr %s313, 2
        %s315 = smul.addr %s314, 2
        %s316 = scalar_lea.vmem %s4, %s315
        %p317 = pneg %p138
        %p318 = pneg %p135
        %p319 = pneg %p164
        %p320 = pneg %p161
        %s321 = smul.u32 16, %s23
        %p322 = scmp.lt.s32.totalorder %s321, 63
        %s323 = scalar_select %p322, %s321, 63
        %s324 = scalar_lea.vmem %s5, %s323
        %p325 = pneg %p190
        %p326 = pneg %p187
        %s327 = smul.u32 16, %s23
        %p328 = scmp.lt.s32.totalorder %s327, 63
        %s329 = scalar_select %p328, %s327, 63
        %s330 = scalar_lea.vmem %s6, %s329
        %p331 = pneg %p216
        %p332 = pneg %p213
        %s333 = sand.u32 %s203, 1
        %s334 = scalar_lea.sflag [#allocation3], %s333
        %s335 = sand.u32 %s203, 1
        %s336 = smul.addr %s335, 256
        %s337 = scalar_lea.vmem [#allocation5], %s336
        %s338 = smul.u32 16, %s23
        %p339 = scmp.lt.s32.totalorder %s338, 63
        %s340 = scalar_select %p339, %s338, 63
        %s341 = smul.addr %s340, 2
        %s342 = smul.addr %s341, 8
        %s343 = scalar_lea.vmem %s2, %s342
        %s344 = smul.u32 16, %s23
        %s345 = smul.u32 16, %s23
        %p346 = scmp.lt.s32.totalorder %s345, 63
        %s347 = scalar_select %p346, %s345, 63
        %s348 = smul.addr %s347, 2
        %s349 = smul.addr %s348, 8
        %s350 = scalar_lea.vmem %s3, %s349
        %s351 = smul.u32 16, %s23
        %s352 = smul.u32 16, %s23
        %p353 = scmp.lt.s32.totalorder %s352, 63
        %s354 = scalar_select %p353, %s352, 63
        %s355 = smul.addr %s354, 2
        %s356 = smul.addr %s355, 2
        %s357 = scalar_lea.vmem %s4, %s356
        %s358 = smul.u32 16, %s23
        %s359 = smul.u32 16, %s23
        %p360 = scmp.lt.s32.totalorder %s359, 63
        %s361 = scalar_select %p360, %s359, 63
        %s362 = scalar_lea.vmem %s5, %s361
        %s363 = smul.u32 16, %s23
        %s364 = smul.u32 16, %s23
        %p365 = scmp.lt.s32.totalorder %s364, 63
        %s366 = scalar_select %p365, %s364, 63
        %s367 = scalar_lea.vmem %s6, %s366
        %s368 = smul.u32 16, %s23
        %s369 = smul.u32 16, %s23
        %s370 = sld [smem:[#allocation2]]
        %s371 = sld [smem:[#allocation2 + $0x1]]
        %s372 = sld [smem:[#allocation2 + $0x2]]
        %s373 = sld [smem:[#allocation2 + $0x3]]
        %v374 = vld [vmem:[%s1] sm:$0x1]
        %v375 = vld [vmem:[%s1 + $0x1] sm:$0x1]
        %v376 = vld [vmem:[%s357] sm:$0x3]
        %v377 = vld [vmem:[%s357 + $0x2] sm:$0x3]
        %v378 = vld [vmem:[%s357 + $0x4] sm:$0x3]
        %v379 = vld [vmem:[%s357 + $0x6] sm:$0x3]
        %v380 = vld [vmem:[%s357 + $0x8] sm:$0x3]
        %v381 = vld [vmem:[%s357 + $0xa] sm:$0x3]
        %v382 = vld [vmem:[%s357 + $0xc] sm:$0x3]
        %v383 = vld [vmem:[%s357 + $0xe] sm:$0x3]
        %v384 = vld [vmem:[%s357 + $0x10] sm:$0x3]
        %v385 = vld [vmem:[%s357 + $0x12] sm:$0x3]
        %v386 = vld [vmem:[%s357 + $0x14] sm:$0x3]
        %v387 = vld [vmem:[%s357 + $0x16] sm:$0x3]
        %v388 = vld [vmem:[%s357 + $0x18] sm:$0x3]
        %v389 = vld [vmem:[%s357 + $0x1a] sm:$0x3]
        %v390 = vld [vmem:[%s357 + $0x1c] sm:$0x3]
        %v391 = vld [vmem:[%s357 + $0x1e] sm:$0x3]
        %v392 = vld [vmem:[%s357 + $0x20] sm:$0x3]
        %v393 = vld [vmem:[%s357 + $0x22] sm:$0x3]
        %v394 = vld [vmem:[%s357 + $0x24] sm:$0x3]
        %v395 = vld [vmem:[%s357 + $0x26] sm:$0x3]
        %v396 = vld [vmem:[%s357 + $0x28] sm:$0x3]
        %v397 = vld [vmem:[%s357 + $0x2a] sm:$0x3]
        %v398 = vld [vmem:[%s357 + $0x2c] sm:$0x3]
        %v399 = vld [vmem:[%s357 + $0x2e] sm:$0x3]
        %v400 = vld [vmem:[%s357 + $0x30] sm:$0x3]
        %v401 = vld [vmem:[%s357 + $0x32] sm:$0x3]
        %v402 = vld [vmem:[%s357 + $0x34] sm:$0x3]
        %v403 = vld [vmem:[%s357 + $0x36] sm:$0x3]
        %v404 = vld [vmem:[%s357 + $0x38] sm:$0x3]
        %v405 = vld [vmem:[%s357 + $0x3a] sm:$0x3]
        %v406 = vld [vmem:[%s357 + $0x3c] sm:$0x3]
        %v407 = vld [vmem:[%s357 + $0x3e] sm:$0x3]
        %v408 = vunpack.c.0.s8 %v376
        %v409 = vunpack.c.0.s8 %v377
        %v410 = vunpack.c.0.s8 %v378
        %v411 = vunpack.c.0.s8 %v379
        %v412 = vunpack.c.0.s8 %v380
        %v413 = vunpack.c.0.s8 %v381
        %v414 = vunpack.c.0.s8 %v382
        %v415 = vunpack.c.0.s8 %v383
        %v416 = vunpack.c.0.s8 %v384
        %v417 = vunpack.c.0.s8 %v385
        %v418 = vunpack.c.0.s8 %v386
        %v419 = vunpack.c.0.s8 %v387
        %v420 = vunpack.c.0.s8 %v388
        %v421 = vunpack.c.0.s8 %v389
        %v422 = vunpack.c.0.s8 %v390
        %v423 = vunpack.c.0.s8 %v391
        %v424 = vunpack.c.0.s8 %v392
        %v425 = vunpack.c.0.s8 %v393
        %v426 = vunpack.c.0.s8 %v394
        %v427 = vunpack.c.0.s8 %v395
        %v428 = vunpack.c.0.s8 %v396
        %v429 = vunpack.c.0.s8 %v397
        %v430 = vunpack.c.0.s8 %v398
        %v431 = vunpack.c.0.s8 %v399
        %v432 = vunpack.c.0.s8 %v400
        %v433 = vunpack.c.0.s8 %v401
        %v434 = vunpack.c.0.s8 %v402
        %v435 = vunpack.c.0.s8 %v403
        %v436 = vunpack.c.0.s8 %v404
        %v437 = vunpack.c.0.s8 %v405
        %v438 = vunpack.c.0.s8 %v406
        %v439 = vunpack.c.0.s8 %v407
        %v440 = vcvt.s32.f32 %v408
        %v441 = vcvt.s32.f32 %v409
        %v442 = vcvt.s32.f32 %v410
        %v443 = vcvt.s32.f32 %v411
        %v444 = vcvt.s32.f32 %v412
        %v445 = vcvt.s32.f32 %v413
        %v446 = vcvt.s32.f32 %v414
        %v447 = vcvt.s32.f32 %v415
        %v448 = vcvt.s32.f32 %v416
        %v449 = vcvt.s32.f32 %v417
        %v450 = vcvt.s32.f32 %v418
        %v451 = vcvt.s32.f32 %v419
        %v452 = vcvt.s32.f32 %v420
        %v453 = vcvt.s32.f32 %v421
        %v454 = vcvt.s32.f32 %v422
        %v455 = vcvt.s32.f32 %v423
        %v456 = vcvt.s32.f32 %v424
        %v457 = vcvt.s32.f32 %v425
        %v458 = vcvt.s32.f32 %v426
        %v459 = vcvt.s32.f32 %v427
        %v460 = vcvt.s32.f32 %v428
        %v461 = vcvt.s32.f32 %v429
        %v462 = vcvt.s32.f32 %v430
        %v463 = vcvt.s32.f32 %v431
        %v464 = vcvt.s32.f32 %v432
        %v465 = vcvt.s32.f32 %v433
        %v466 = vcvt.s32.f32 %v434
        %v467 = vcvt.s32.f32 %v435
        %v468 = vcvt.s32.f32 %v436
        %v469 = vcvt.s32.f32 %v437
        %v470 = vcvt.s32.f32 %v438
        %v471 = vcvt.s32.f32 %v439
        %v472 = vlaneseq
        %v473 = vshrl.u32 %v472, 7
        %v474 = vadd.s32 %v473, 8
        %v475 = vlaneseq
        %v476 = vand.u32 %v475, 127
        %vm477 = vcmp.eq.s32.totalorder %v473, %v476
        %vm478 = vcmp.eq.s32.totalorder %v474, %v476
        %v479 = vsel %vm477, 1, 0
        %v480 = vsel %vm478, 1, 0
        %v481 = vcvt.s32.f32 %v479
        %v482 = vcvt.s32.f32 %v480
        %v483 = vld [vmem:[%s343] sm:$0xff]
        %v484 = vld [vmem:[%s343 + $0x8] sm:$0xff]
        %v485 = vld [vmem:[%s343 + $0x10] sm:$0xff]
        %v486 = vld [vmem:[%s343 + $0x18] sm:$0xff]
        %v487 = vld [vmem:[%s343 + $0x20] sm:$0xff]
        %v488 = vld [vmem:[%s343 + $0x28] sm:$0xff]
        %v489 = vld [vmem:[%s343 + $0x30] sm:$0xff]
        %v490 = vld [vmem:[%s343 + $0x38] sm:$0xff]
        %v491 = vld [vmem:[%s343 + $0x40] sm:$0xff]
        %v492 = vld [vmem:[%s343 + $0x48] sm:$0xff]
        %v493 = vld [vmem:[%s343 + $0x50] sm:$0xff]
        %v494 = vld [vmem:[%s343 + $0x58] sm:$0xff]
        %v495 = vld [vmem:[%s343 + $0x60] sm:$0xff]
        %v496 = vld [vmem:[%s343 + $0x68] sm:$0xff]
        %v497 = vld [vmem:[%s343 + $0x70] sm:$0xff]
        %v498 = vld [vmem:[%s343 + $0x78] sm:$0xff]
        %v499 = vld [vmem:[%s343 + $0x80] sm:$0xff]
        %v500 = vld [vmem:[%s343 + $0x88] sm:$0xff]
        %v501 = vld [vmem:[%s343 + $0x90] sm:$0xff]
        %v502 = vld [vmem:[%s343 + $0x98] sm:$0xff]
        %v503 = vld [vmem:[%s343 + $0xa0] sm:$0xff]
        %v504 = vld [vmem:[%s343 + $0xa8] sm:$0xff]
        %v505 = vld [vmem:[%s343 + $0xb0] sm:$0xff]
        %v506 = vld [vmem:[%s343 + $0xb8] sm:$0xff]
        %v507 = vld [vmem:[%s343 + $0xc0] sm:$0xff]
        %v508 = vld [vmem:[%s343 + $0xc8] sm:$0xff]
        %v509 = vld [vmem:[%s343 + $0xd0] sm:$0xff]
        %v510 = vld [vmem:[%s343 + $0xd8] sm:$0xff]
        %v511 = vld [vmem:[%s343 + $0xe0] sm:$0xff]
        %v512 = vld [vmem:[%s343 + $0xe8] sm:$0xff]
        %v513 = vld [vmem:[%s343 + $0xf0] sm:$0xff]
        %v514 = vld [vmem:[%s343 + $0xf8] sm:$0xff]
        %v516 = vlaneseq
        %v517 = vshrl.u32 %v516, 7
        %v518 = vsub.s32 0, %v517
        %v519 = vrot.slane %v374, %v518
        %v521 = vmul.f32 %v483, %v519
        %v522 = vmul.f32 %v484, %v519
        %v523 = vmul.f32 %v485, %v519
        %v524 = vmul.f32 %v486, %v519
        %v525 = vmul.f32 %v487, %v519
        %v526 = vmul.f32 %v488, %v519
        %v527 = vmul.f32 %v489, %v519
        %v528 = vmul.f32 %v490, %v519
        %v529 = vmul.f32 %v491, %v519
        %v530 = vmul.f32 %v492, %v519
        %v531 = vmul.f32 %v493, %v519
        %v532 = vmul.f32 %v494, %v519
        %v533 = vmul.f32 %v495, %v519
        %v534 = vmul.f32 %v496, %v519
        %v535 = vmul.f32 %v497, %v519
        %v536 = vmul.f32 %v498, %v519
        %v537 = vmul.f32 %v499, %v519
        %v538 = vmul.f32 %v500, %v519
        %v539 = vmul.f32 %v501, %v519
        %v540 = vmul.f32 %v502, %v519
        %v541 = vmul.f32 %v503, %v519
        %v542 = vmul.f32 %v504, %v519
        %v543 = vmul.f32 %v505, %v519
        %v544 = vmul.f32 %v506, %v519
        %v545 = vmul.f32 %v507, %v519
        %v546 = vmul.f32 %v508, %v519
        %v547 = vmul.f32 %v509, %v519
        %v548 = vmul.f32 %v510, %v519
        %v549 = vmul.f32 %v511, %v519
        %v550 = vmul.f32 %v512, %v519
        %v551 = vmul.f32 %v513, %v519
        %v552 = vmul.f32 %v514, %v519
        %v553 = vadd.f32 %v521, 0.0
        %v554 = vadd.f32 %v522, 0.0
        %v555 = vadd.f32 %v523, 0.0
        %v556 = vadd.f32 %v524, 0.0
        %v557 = vadd.f32 %v525, 0.0
        %v558 = vadd.f32 %v526, 0.0
        %v559 = vadd.f32 %v527, 0.0
        %v560 = vadd.f32 %v528, 0.0
        %v561 = vadd.f32 %v529, 0.0
        %v562 = vadd.f32 %v530, 0.0
        %v563 = vadd.f32 %v531, 0.0
        %v564 = vadd.f32 %v532, 0.0
        %v565 = vadd.f32 %v533, 0.0
        %v566 = vadd.f32 %v534, 0.0
        %v567 = vadd.f32 %v535, 0.0
        %v568 = vadd.f32 %v536, 0.0
        %v569 = vadd.f32 %v537, 0.0
        %v570 = vadd.f32 %v538, 0.0
        %v571 = vadd.f32 %v539, 0.0
        %v572 = vadd.f32 %v540, 0.0
        %v573 = vadd.f32 %v541, 0.0
        %v574 = vadd.f32 %v542, 0.0
        %v575 = vadd.f32 %v543, 0.0
        %v576 = vadd.f32 %v544, 0.0
        %v577 = vadd.f32 %v545, 0.0
        %v578 = vadd.f32 %v546, 0.0
        %v579 = vadd.f32 %v547, 0.0
        %v580 = vadd.f32 %v548, 0.0
        %v581 = vadd.f32 %v549, 0.0
        %v582 = vadd.f32 %v550, 0.0
        %v583 = vadd.f32 %v551, 0.0
        %v584 = vadd.f32 %v552, 0.0
        %v585 = vstv %s370
        %v586 = vadd.f32 %v553, %v585
        %v587 = vadd.f32 %v554, %v585
        %v588 = vadd.f32 %v555, %v585
        %v589 = vadd.f32 %v556, %v585
        %v590 = vadd.f32 %v557, %v585
        %v591 = vadd.f32 %v558, %v585
        %v592 = vadd.f32 %v559, %v585
        %v593 = vadd.f32 %v560, %v585
        %v594 = vadd.f32 %v561, %v585
        %v595 = vadd.f32 %v562, %v585
        %v596 = vadd.f32 %v563, %v585
        %v597 = vadd.f32 %v564, %v585
        %v598 = vadd.f32 %v565, %v585
        %v599 = vadd.f32 %v566, %v585
        %v600 = vadd.f32 %v567, %v585
        %v601 = vadd.f32 %v568, %v585
        %v602 = vadd.f32 %v569, %v585
        %v603 = vadd.f32 %v570, %v585
        %v604 = vadd.f32 %v571, %v585
        %v605 = vadd.f32 %v572, %v585
        %v606 = vadd.f32 %v573, %v585
        %v607 = vadd.f32 %v574, %v585
        %v608 = vadd.f32 %v575, %v585
        %v609 = vadd.f32 %v576, %v585
        %v610 = vadd.f32 %v577, %v585
        %v611 = vadd.f32 %v578, %v585
        %v612 = vadd.f32 %v579, %v585
        %v613 = vadd.f32 %v580, %v585
        %v614 = vadd.f32 %v581, %v585
        %v615 = vadd.f32 %v582, %v585
        %v616 = vadd.f32 %v583, %v585
        %v617 = vadd.f32 %v584, %v585
        %v619 = vlaneseq
        %v620 = vshrl.u32 %v619, 7
        %v621 = vsub.s32 0, %v620
        %v622 = vrot.slane %v375, %v621
        %v624 = vmul.f32 %v483, %v622
        %v625 = vmul.f32 %v484, %v622
        %v626 = vmul.f32 %v485, %v622
        %v627 = vmul.f32 %v486, %v622
        %v628 = vmul.f32 %v487, %v622
        %v629 = vmul.f32 %v488, %v622
        %v630 = vmul.f32 %v489, %v622
        %v631 = vmul.f32 %v490, %v622
        %v632 = vmul.f32 %v491, %v622
        %v633 = vmul.f32 %v492, %v622
        %v634 = vmul.f32 %v493, %v622
        %v635 = vmul.f32 %v494, %v622
        %v636 = vmul.f32 %v495, %v622
        %v637 = vmul.f32 %v496, %v622
        %v638 = vmul.f32 %v497, %v622
        %v639 = vmul.f32 %v498, %v622
        %v640 = vmul.f32 %v499, %v622
        %v641 = vmul.f32 %v500, %v622
        %v642 = vmul.f32 %v501, %v622
        %v643 = vmul.f32 %v502, %v622
        %v644 = vmul.f32 %v503, %v622
        %v645 = vmul.f32 %v504, %v622
        %v646 = vmul.f32 %v505, %v622
        %v647 = vmul.f32 %v506, %v622
        %v648 = vmul.f32 %v507, %v622
        %v649 = vmul.f32 %v508, %v622
        %v650 = vmul.f32 %v509, %v622
        %v651 = vmul.f32 %v510, %v622
        %v652 = vmul.f32 %v511, %v622
        %v653 = vmul.f32 %v512, %v622
        %v654 = vmul.f32 %v513, %v622
        %v655 = vmul.f32 %v514, %v622
        %v656 = vadd.f32 %v624, 0.0
        %v657 = vadd.f32 %v625, 0.0
        %v658 = vadd.f32 %v626, 0.0
        %v659 = vadd.f32 %v627, 0.0
        %v660 = vadd.f32 %v628, 0.0
        %v661 = vadd.f32 %v629, 0.0
        %v662 = vadd.f32 %v630, 0.0
        %v663 = vadd.f32 %v631, 0.0
        %v664 = vadd.f32 %v632, 0.0
        %v665 = vadd.f32 %v633, 0.0
        %v666 = vadd.f32 %v634, 0.0
        %v667 = vadd.f32 %v635, 0.0
        %v668 = vadd.f32 %v636, 0.0
        %v669 = vadd.f32 %v637, 0.0
        %v670 = vadd.f32 %v638, 0.0
        %v671 = vadd.f32 %v639, 0.0
        %v672 = vadd.f32 %v640, 0.0
        %v673 = vadd.f32 %v641, 0.0
        %v674 = vadd.f32 %v642, 0.0
        %v675 = vadd.f32 %v643, 0.0
        %v676 = vadd.f32 %v644, 0.0
        %v677 = vadd.f32 %v645, 0.0
        %v678 = vadd.f32 %v646, 0.0
        %v679 = vadd.f32 %v647, 0.0
        %v680 = vadd.f32 %v648, 0.0
        %v681 = vadd.f32 %v649, 0.0
        %v682 = vadd.f32 %v650, 0.0
        %v683 = vadd.f32 %v651, 0.0
        %v684 = vadd.f32 %v652, 0.0
        %v685 = vadd.f32 %v653, 0.0
        %v686 = vadd.f32 %v654, 0.0
        %v687 = vadd.f32 %v655, 0.0
        %v688 = vstv %s371
        %v689 = vadd.f32 %v656, %v688
        %v690 = vadd.f32 %v657, %v688
        %v691 = vadd.f32 %v658, %v688
        %v692 = vadd.f32 %v659, %v688
        %v693 = vadd.f32 %v660, %v688
        %v694 = vadd.f32 %v661, %v688
        %v695 = vadd.f32 %v662, %v688
        %v696 = vadd.f32 %v663, %v688
        %v697 = vadd.f32 %v664, %v688
        %v698 = vadd.f32 %v665, %v688
        %v699 = vadd.f32 %v666, %v688
        %v700 = vadd.f32 %v667, %v688
        %v701 = vadd.f32 %v668, %v688
        %v702 = vadd.f32 %v669, %v688
        %v703 = vadd.f32 %v670, %v688
        %v704 = vadd.f32 %v671, %v688
        %v705 = vadd.f32 %v672, %v688
        %v706 = vadd.f32 %v673, %v688
        %v707 = vadd.f32 %v674, %v688
        %v708 = vadd.f32 %v675, %v688
        %v709 = vadd.f32 %v676, %v688
        %v710 = vadd.f32 %v677, %v688
        %v711 = vadd.f32 %v678, %v688
        %v712 = vadd.f32 %v679, %v688
        %v713 = vadd.f32 %v680, %v688
        %v714 = vadd.f32 %v681, %v688
        %v715 = vadd.f32 %v682, %v688
        %v716 = vadd.f32 %v683, %v688
        %v717 = vadd.f32 %v684, %v688
        %v718 = vadd.f32 %v685, %v688
        %v719 = vadd.f32 %v686, %v688
        %v720 = vadd.f32 %v687, %v688
        %722 = vset.pattern.permute.xlu0 0
        %723 = vperm.xlu0 %722, %v689
        %v724 = vpop.permute.xlu0 %723
        %727 = vset.pattern.permute.xlu0 0
        %728 = vperm.xlu0 %727, %v690
        %v729 = vpop.permute.xlu0 %728
        %732 = vset.pattern.permute.xlu0 0
        %733 = vperm.xlu0 %732, %v691
        %v734 = vpop.permute.xlu0 %733
        %737 = vset.pattern.permute.xlu0 0
        %738 = vperm.xlu0 %737, %v692
        %v739 = vpop.permute.xlu0 %738
        %742 = vset.pattern.permute.xlu0 0
        %743 = vperm.xlu0 %742, %v693
        %v744 = vpop.permute.xlu0 %743
        %747 = vset.pattern.permute.xlu0 0
        %748 = vperm.xlu0 %747, %v694
        %v749 = vpop.permute.xlu0 %748
        %752 = vset.pattern.permute.xlu0 0
        %753 = vperm.xlu0 %752, %v695
        %v754 = vpop.permute.xlu0 %753
        %757 = vset.pattern.permute.xlu0 0
        %758 = vperm.xlu0 %757, %v696
        %v759 = vpop.permute.xlu0 %758
        %762 = vset.pattern.permute.xlu0 0
        %763 = vperm.xlu0 %762, %v697
        %v764 = vpop.permute.xlu0 %763
        %767 = vset.pattern.permute.xlu0 0
        %768 = vperm.xlu0 %767, %v698
        %v769 = vpop.permute.xlu0 %768
        %772 = vset.pattern.permute.xlu0 0
        %773 = vperm.xlu0 %772, %v699
        %v774 = vpop.permute.xlu0 %773
        %777 = vset.pattern.permute.xlu0 0
        %778 = vperm.xlu0 %777, %v700
        %v779 = vpop.permute.xlu0 %778
        %782 = vset.pattern.permute.xlu0 0
        %783 = vperm.xlu0 %782, %v701
        %v784 = vpop.permute.xlu0 %783
        %787 = vset.pattern.permute.xlu0 0
        %788 = vperm.xlu0 %787, %v702
        %v789 = vpop.permute.xlu0 %788
        %792 = vset.pattern.permute.xlu0 0
        %793 = vperm.xlu0 %792, %v703
        %v794 = vpop.permute.xlu0 %793
        %797 = vset.pattern.permute.xlu0 0
        %798 = vperm.xlu0 %797, %v704
        %v799 = vpop.permute.xlu0 %798
        %802 = vset.pattern.permute.xlu0 0
        %803 = vperm.xlu0 %802, %v705
        %v804 = vpop.permute.xlu0 %803
        %807 = vset.pattern.permute.xlu0 0
        %808 = vperm.xlu0 %807, %v706
        %v809 = vpop.permute.xlu0 %808
        %812 = vset.pattern.permute.xlu0 0
        %813 = vperm.xlu0 %812, %v707
        %v814 = vpop.permute.xlu0 %813
        %817 = vset.pattern.permute.xlu0 0
        %818 = vperm.xlu0 %817, %v708
        %v819 = vpop.permute.xlu0 %818
        %822 = vset.pattern.permute.xlu0 0
        %823 = vperm.xlu0 %822, %v709
        %v824 = vpop.permute.xlu0 %823
        %827 = vset.pattern.permute.xlu0 0
        %828 = vperm.xlu0 %827, %v710
        %v829 = vpop.permute.xlu0 %828
        %832 = vset.pattern.permute.xlu0 0
        %833 = vperm.xlu0 %832, %v711
        %v834 = vpop.permute.xlu0 %833
        %837 = vset.pattern.permute.xlu0 0
        %838 = vperm.xlu0 %837, %v712
        %v839 = vpop.permute.xlu0 %838
        %842 = vset.pattern.permute.xlu0 0
        %843 = vperm.xlu0 %842, %v713
        %v844 = vpop.permute.xlu0 %843
        %847 = vset.pattern.permute.xlu0 0
        %848 = vperm.xlu0 %847, %v714
        %v849 = vpop.permute.xlu0 %848
        %852 = vset.pattern.permute.xlu0 0
        %853 = vperm.xlu0 %852, %v715
        %v854 = vpop.permute.xlu0 %853
        %857 = vset.pattern.permute.xlu0 0
        %858 = vperm.xlu0 %857, %v716
        %v859 = vpop.permute.xlu0 %858
        %862 = vset.pattern.permute.xlu0 0
        %863 = vperm.xlu0 %862, %v717
        %v864 = vpop.permute.xlu0 %863
        %867 = vset.pattern.permute.xlu0 0
        %868 = vperm.xlu0 %867, %v718
        %v869 = vpop.permute.xlu0 %868
        %872 = vset.pattern.permute.xlu0 0
        %873 = vperm.xlu0 %872, %v719
        %v874 = vpop.permute.xlu0 %873
        %877 = vset.pattern.permute.xlu0 0
        %878 = vperm.xlu0 %877, %v720
        %v879 = vpop.permute.xlu0 %878
        %v881 = vmul.f32 %v724, %v481
        %v882 = vmul.f32 %v729, %v482
        %v883 = vmul.f32 %v734, %v481
        %v884 = vmul.f32 %v739, %v482
        %v885 = vmul.f32 %v744, %v481
        %v886 = vmul.f32 %v749, %v482
        %v887 = vmul.f32 %v754, %v481
        %v888 = vmul.f32 %v759, %v482
        %v889 = vmul.f32 %v764, %v481
        %v890 = vmul.f32 %v769, %v482
        %v891 = vmul.f32 %v774, %v481
        %v892 = vmul.f32 %v779, %v482
        %v893 = vmul.f32 %v784, %v481
        %v894 = vmul.f32 %v789, %v482
        %v895 = vmul.f32 %v794, %v481
        %v896 = vmul.f32 %v799, %v482
        %v897 = vmul.f32 %v804, %v481
        %v898 = vmul.f32 %v809, %v482
        %v899 = vmul.f32 %v814, %v481
        %v900 = vmul.f32 %v819, %v482
        %v901 = vmul.f32 %v824, %v481
        %v902 = vmul.f32 %v829, %v482
        %v903 = vmul.f32 %v834, %v481
        %v904 = vmul.f32 %v839, %v482
        %v905 = vmul.f32 %v844, %v481
        %v906 = vmul.f32 %v849, %v482
        %v907 = vmul.f32 %v854, %v481
        %v908 = vmul.f32 %v859, %v482
        %v909 = vmul.f32 %v864, %v481
        %v910 = vmul.f32 %v869, %v482
        %v911 = vmul.f32 %v874, %v481
        %v912 = vmul.f32 %v879, %v482
        %vm913 = vcmask 130048
        %v914 = vsel %vm913, %v881, 0.0
        %v915 = vsel %vm913, %v882, 0.0
        %v916 = vadd.f32 %v914, %v915
        %v917 = vrot.slane %v916, 4
        %v918 = vadd.f32 %v916, %v917
        %v919 = vrot.slane %v918, 2
        %v920 = vadd.f32 %v918, %v919
        %v921 = vrot.slane %v920, 1
        %v922 = vadd.f32 %v920, %v921
        %v923 = vsel %vm913, %v883, 0.0
        %v924 = vsel %vm913, %v884, 0.0
        %v925 = vadd.f32 %v923, %v924
        %v926 = vrot.slane %v925, 4
        %v927 = vadd.f32 %v925, %v926
        %v928 = vrot.slane %v927, 2
        %v929 = vadd.f32 %v927, %v928
        %v930 = vrot.slane %v929, 1
        %v931 = vadd.f32 %v929, %v930
        %v932 = vsel %vm913, %v885, 0.0
        %v933 = vsel %vm913, %v886, 0.0
        %v934 = vadd.f32 %v932, %v933
        %v935 = vrot.slane %v934, 4
        %v936 = vadd.f32 %v934, %v935
        %v937 = vrot.slane %v936, 2
        %v938 = vadd.f32 %v936, %v937
        %v939 = vrot.slane %v938, 1
        %v940 = vadd.f32 %v938, %v939
        %v941 = vsel %vm913, %v887, 0.0
        %v942 = vsel %vm913, %v888, 0.0
        %v943 = vadd.f32 %v941, %v942
        %v944 = vrot.slane %v943, 4
        %v945 = vadd.f32 %v943, %v944
        %v946 = vrot.slane %v945, 2
        %v947 = vadd.f32 %v945, %v946
        %v948 = vrot.slane %v947, 1
        %v949 = vadd.f32 %v947, %v948
        %v950 = vsel %vm913, %v889, 0.0
        %v951 = vsel %vm913, %v890, 0.0
        %v952 = vadd.f32 %v950, %v951
        %v953 = vrot.slane %v952, 4
        %v954 = vadd.f32 %v952, %v953
        %v955 = vrot.slane %v954, 2
        %v956 = vadd.f32 %v954, %v955
        %v957 = vrot.slane %v956, 1
        %v958 = vadd.f32 %v956, %v957
        %v959 = vsel %vm913, %v891, 0.0
        %v960 = vsel %vm913, %v892, 0.0
        %v961 = vadd.f32 %v959, %v960
        %v962 = vrot.slane %v961, 4
        %v963 = vadd.f32 %v961, %v962
        %v964 = vrot.slane %v963, 2
        %v965 = vadd.f32 %v963, %v964
        %v966 = vrot.slane %v965, 1
        %v967 = vadd.f32 %v965, %v966
        %v968 = vsel %vm913, %v893, 0.0
        %v969 = vsel %vm913, %v894, 0.0
        %v970 = vadd.f32 %v968, %v969
        %v971 = vrot.slane %v970, 4
        %v972 = vadd.f32 %v970, %v971
        %v973 = vrot.slane %v972, 2
        %v974 = vadd.f32 %v972, %v973
        %v975 = vrot.slane %v974, 1
        %v976 = vadd.f32 %v974, %v975
        %v977 = vsel %vm913, %v895, 0.0
        %v978 = vsel %vm913, %v896, 0.0
        %v979 = vadd.f32 %v977, %v978
        %v980 = vrot.slane %v979, 4
        %v981 = vadd.f32 %v979, %v980
        %v982 = vrot.slane %v981, 2
        %v983 = vadd.f32 %v981, %v982
        %v984 = vrot.slane %v983, 1
        %v985 = vadd.f32 %v983, %v984
        %v986 = vsel %vm913, %v897, 0.0
        %v987 = vsel %vm913, %v898, 0.0
        %v988 = vadd.f32 %v986, %v987
        %v989 = vrot.slane %v988, 4
        %v990 = vadd.f32 %v988, %v989
        %v991 = vrot.slane %v990, 2
        %v992 = vadd.f32 %v990, %v991
        %v993 = vrot.slane %v992, 1
        %v994 = vadd.f32 %v992, %v993
        %v995 = vsel %vm913, %v899, 0.0
        %v996 = vsel %vm913, %v900, 0.0
        %v997 = vadd.f32 %v995, %v996
        %v998 = vrot.slane %v997, 4
        %v999 = vadd.f32 %v997, %v998
        %v1000 = vrot.slane %v999, 2
        %v1001 = vadd.f32 %v999, %v1000
        %v1002 = vrot.slane %v1001, 1
        %v1003 = vadd.f32 %v1001, %v1002
        %v1004 = vsel %vm913, %v901, 0.0
        %v1005 = vsel %vm913, %v902, 0.0
        %v1006 = vadd.f32 %v1004, %v1005
        %v1007 = vrot.slane %v1006, 4
        %v1008 = vadd.f32 %v1006, %v1007
        %v1009 = vrot.slane %v1008, 2
        %v1010 = vadd.f32 %v1008, %v1009
        %v1011 = vrot.slane %v1010, 1
        %v1012 = vadd.f32 %v1010, %v1011
        %v1013 = vsel %vm913, %v903, 0.0
        %v1014 = vsel %vm913, %v904, 0.0
        %v1015 = vadd.f32 %v1013, %v1014
        %v1016 = vrot.slane %v1015, 4
        %v1017 = vadd.f32 %v1015, %v1016
        %v1018 = vrot.slane %v1017, 2
        %v1019 = vadd.f32 %v1017, %v1018
        %v1020 = vrot.slane %v1019, 1
        %v1021 = vadd.f32 %v1019, %v1020
        %v1022 = vsel %vm913, %v905, 0.0
        %v1023 = vsel %vm913, %v906, 0.0
        %v1024 = vadd.f32 %v1022, %v1023
        %v1025 = vrot.slane %v1024, 4
        %v1026 = vadd.f32 %v1024, %v1025
        %v1027 = vrot.slane %v1026, 2
        %v1028 = vadd.f32 %v1026, %v1027
        %v1029 = vrot.slane %v1028, 1
        %v1030 = vadd.f32 %v1028, %v1029
        %v1031 = vsel %vm913, %v907, 0.0
        %v1032 = vsel %vm913, %v908, 0.0
        %v1033 = vadd.f32 %v1031, %v1032
        %v1034 = vrot.slane %v1033, 4
        %v1035 = vadd.f32 %v1033, %v1034
        %v1036 = vrot.slane %v1035, 2
        %v1037 = vadd.f32 %v1035, %v1036
        %v1038 = vrot.slane %v1037, 1
        %v1039 = vadd.f32 %v1037, %v1038
        %v1040 = vsel %vm913, %v909, 0.0
        %v1041 = vsel %vm913, %v910, 0.0
        %v1042 = vadd.f32 %v1040, %v1041
        %v1043 = vrot.slane %v1042, 4
        %v1044 = vadd.f32 %v1042, %v1043
        %v1045 = vrot.slane %v1044, 2
        %v1046 = vadd.f32 %v1044, %v1045
        %v1047 = vrot.slane %v1046, 1
        %v1048 = vadd.f32 %v1046, %v1047
        %v1049 = vsel %vm913, %v911, 0.0
        %v1050 = vsel %vm913, %v912, 0.0
        %v1051 = vadd.f32 %v1049, %v1050
        %v1052 = vrot.slane %v1051, 4
        %v1053 = vadd.f32 %v1051, %v1052
        %v1054 = vrot.slane %v1053, 2
        %v1055 = vadd.f32 %v1053, %v1054
        %v1056 = vrot.slane %v1055, 1
        %v1057 = vadd.f32 %v1055, %v1056
        %1059 = vset.pattern.permute.xlu0 0
        %1060 = vperm.xlu0 %1059, %v586
        %v1061 = vpop.permute.xlu0 %1060
        %1064 = vset.pattern.permute.xlu0 0
        %1065 = vperm.xlu0 %1064, %v587
        %v1066 = vpop.permute.xlu0 %1065
        %1069 = vset.pattern.permute.xlu0 0
        %1070 = vperm.xlu0 %1069, %v588
        %v1071 = vpop.permute.xlu0 %1070
        %1074 = vset.pattern.permute.xlu0 0
        %1075 = vperm.xlu0 %1074, %v589
        %v1076 = vpop.permute.xlu0 %1075
        %1079 = vset.pattern.permute.xlu0 0
        %1080 = vperm.xlu0 %1079, %v590
        %v1081 = vpop.permute.xlu0 %1080
        %1084 = vset.pattern.permute.xlu0 0
        %1085 = vperm.xlu0 %1084, %v591
        %v1086 = vpop.permute.xlu0 %1085
        %1089 = vset.pattern.permute.xlu0 0
        %1090 = vperm.xlu0 %1089, %v592
        %v1091 = vpop.permute.xlu0 %1090
        %1094 = vset.pattern.permute.xlu0 0
        %1095 = vperm.xlu0 %1094, %v593
        %v1096 = vpop.permute.xlu0 %1095
        %1099 = vset.pattern.permute.xlu0 0
        %1100 = vperm.xlu0 %1099, %v594
        %v1101 = vpop.permute.xlu0 %1100
        %1104 = vset.pattern.permute.xlu0 0
        %1105 = vperm.xlu0 %1104, %v595
        %v1106 = vpop.permute.xlu0 %1105
        %1109 = vset.pattern.permute.xlu0 0
        %1110 = vperm.xlu0 %1109, %v596
        %v1111 = vpop.permute.xlu0 %1110
        %1114 = vset.pattern.permute.xlu0 0
        %1115 = vperm.xlu0 %1114, %v597
        %v1116 = vpop.permute.xlu0 %1115
        %1119 = vset.pattern.permute.xlu0 0
        %1120 = vperm.xlu0 %1119, %v598
        %v1121 = vpop.permute.xlu0 %1120
        %1124 = vset.pattern.permute.xlu0 0
        %1125 = vperm.xlu0 %1124, %v599
        %v1126 = vpop.permute.xlu0 %1125
        %1129 = vset.pattern.permute.xlu0 0
        %1130 = vperm.xlu0 %1129, %v600
        %v1131 = vpop.permute.xlu0 %1130
        %1134 = vset.pattern.permute.xlu0 0
        %1135 = vperm.xlu0 %1134, %v601
        %v1136 = vpop.permute.xlu0 %1135
        %1139 = vset.pattern.permute.xlu0 0
        %1140 = vperm.xlu0 %1139, %v602
        %v1141 = vpop.permute.xlu0 %1140
        %1144 = vset.pattern.permute.xlu0 0
        %1145 = vperm.xlu0 %1144, %v603
        %v1146 = vpop.permute.xlu0 %1145
        %1149 = vset.pattern.permute.xlu0 0
        %1150 = vperm.xlu0 %1149, %v604
        %v1151 = vpop.permute.xlu0 %1150
        %1154 = vset.pattern.permute.xlu0 0
        %1155 = vperm.xlu0 %1154, %v605
        %v1156 = vpop.permute.xlu0 %1155
        %1159 = vset.pattern.permute.xlu0 0
        %1160 = vperm.xlu0 %1159, %v606
        %v1161 = vpop.permute.xlu0 %1160
        %1164 = vset.pattern.permute.xlu0 0
        %1165 = vperm.xlu0 %1164, %v607
        %v1166 = vpop.permute.xlu0 %1165
        %1169 = vset.pattern.permute.xlu0 0
        %1170 = vperm.xlu0 %1169, %v608
        %v1171 = vpop.permute.xlu0 %1170
        %1174 = vset.pattern.permute.xlu0 0
        %1175 = vperm.xlu0 %1174, %v609
        %v1176 = vpop.permute.xlu0 %1175
        %1179 = vset.pattern.permute.xlu0 0
        %1180 = vperm.xlu0 %1179, %v610
        %v1181 = vpop.permute.xlu0 %1180
        %1184 = vset.pattern.permute.xlu0 0
        %1185 = vperm.xlu0 %1184, %v611
        %v1186 = vpop.permute.xlu0 %1185
        %1189 = vset.pattern.permute.xlu0 0
        %1190 = vperm.xlu0 %1189, %v612
        %v1191 = vpop.permute.xlu0 %1190
        %1194 = vset.pattern.permute.xlu0 0
        %1195 = vperm.xlu0 %1194, %v613
        %v1196 = vpop.permute.xlu0 %1195
        %1199 = vset.pattern.permute.xlu0 0
        %1200 = vperm.xlu0 %1199, %v614
        %v1201 = vpop.permute.xlu0 %1200
        %1204 = vset.pattern.permute.xlu0 0
        %1205 = vperm.xlu0 %1204, %v615
        %v1206 = vpop.permute.xlu0 %1205
        %1209 = vset.pattern.permute.xlu0 0
        %1210 = vperm.xlu0 %1209, %v616
        %v1211 = vpop.permute.xlu0 %1210
        %1214 = vset.pattern.permute.xlu0 0
        %1215 = vperm.xlu0 %1214, %v617
        %v1216 = vpop.permute.xlu0 %1215
        %v1218 = vadd.f32 %v1061, %v922
        %v1219 = vadd.f32 %v1066, %v922
        %v1220 = vadd.f32 %v1071, %v931
        %v1221 = vadd.f32 %v1076, %v931
        %v1222 = vadd.f32 %v1081, %v940
        %v1223 = vadd.f32 %v1086, %v940
        %v1224 = vadd.f32 %v1091, %v949
        %v1225 = vadd.f32 %v1096, %v949
        %v1226 = vadd.f32 %v1101, %v958
        %v1227 = vadd.f32 %v1106, %v958
        %v1228 = vadd.f32 %v1111, %v967
        %v1229 = vadd.f32 %v1116, %v967
        %v1230 = vadd.f32 %v1121, %v976
        %v1231 = vadd.f32 %v1126, %v976
        %v1232 = vadd.f32 %v1131, %v985
        %v1233 = vadd.f32 %v1136, %v985
        %v1234 = vadd.f32 %v1141, %v994
        %v1235 = vadd.f32 %v1146, %v994
        %v1236 = vadd.f32 %v1151, %v1003
        %v1237 = vadd.f32 %v1156, %v1003
        %v1238 = vadd.f32 %v1161, %v1012
        %v1239 = vadd.f32 %v1166, %v1012
        %v1240 = vadd.f32 %v1171, %v1021
        %v1241 = vadd.f32 %v1176, %v1021
        %v1242 = vadd.f32 %v1181, %v1030
        %v1243 = vadd.f32 %v1186, %v1030
        %v1244 = vadd.f32 %v1191, %v1039
        %v1245 = vadd.f32 %v1196, %v1039
        %v1246 = vadd.f32 %v1201, %v1048
        %v1247 = vadd.f32 %v1206, %v1048
        %v1248 = vadd.f32 %v1211, %v1057
        %v1249 = vadd.f32 %v1216, %v1057
        %vm1250 = vcmp.ge.f32.partialorder %v1218, 0.0
        %vm1251 = vcmp.ge.f32.partialorder %v1219, 0.0
        %vm1252 = vcmp.ge.f32.partialorder %v1220, 0.0
        %vm1253 = vcmp.ge.f32.partialorder %v1221, 0.0
        %vm1254 = vcmp.ge.f32.partialorder %v1222, 0.0
        %vm1255 = vcmp.ge.f32.partialorder %v1223, 0.0
        %vm1256 = vcmp.ge.f32.partialorder %v1224, 0.0
        %vm1257 = vcmp.ge.f32.partialorder %v1225, 0.0
        %vm1258 = vcmp.ge.f32.partialorder %v1226, 0.0
        %vm1259 = vcmp.ge.f32.partialorder %v1227, 0.0
        %vm1260 = vcmp.ge.f32.partialorder %v1228, 0.0
        %vm1261 = vcmp.ge.f32.partialorder %v1229, 0.0
        %vm1262 = vcmp.ge.f32.partialorder %v1230, 0.0
        %vm1263 = vcmp.ge.f32.partialorder %v1231, 0.0
        %vm1264 = vcmp.ge.f32.partialorder %v1232, 0.0
        %vm1265 = vcmp.ge.f32.partialorder %v1233, 0.0
        %vm1266 = vcmp.ge.f32.partialorder %v1234, 0.0
        %vm1267 = vcmp.ge.f32.partialorder %v1235, 0.0
        %vm1268 = vcmp.ge.f32.partialorder %v1236, 0.0
        %vm1269 = vcmp.ge.f32.partialorder %v1237, 0.0
        %vm1270 = vcmp.ge.f32.partialorder %v1238, 0.0
        %vm1271 = vcmp.ge.f32.partialorder %v1239, 0.0
        %vm1272 = vcmp.ge.f32.partialorder %v1240, 0.0
        %vm1273 = vcmp.ge.f32.partialorder %v1241, 0.0
        %vm1274 = vcmp.ge.f32.partialorder %v1242, 0.0
        %vm1275 = vcmp.ge.f32.partialorder %v1243, 0.0
        %vm1276 = vcmp.ge.f32.partialorder %v1244, 0.0
        %vm1277 = vcmp.ge.f32.partialorder %v1245, 0.0
        %vm1278 = vcmp.ge.f32.partialorder %v1246, 0.0
        %vm1279 = vcmp.ge.f32.partialorder %v1247, 0.0
        %vm1280 = vcmp.ge.f32.partialorder %v1248, 0.0
        %vm1281 = vcmp.ge.f32.partialorder %v1249, 0.0
        %v1282 = vmul.f32 %v1218, 0.2
        %v1283 = vmul.f32 %v1219, 0.2
        %v1284 = vmul.f32 %v1220, 0.2
        %v1285 = vmul.f32 %v1221, 0.2
        %v1286 = vmul.f32 %v1222, 0.2
        %v1287 = vmul.f32 %v1223, 0.2
        %v1288 = vmul.f32 %v1224, 0.2
        %v1289 = vmul.f32 %v1225, 0.2
        %v1290 = vmul.f32 %v1226, 0.2
        %v1291 = vmul.f32 %v1227, 0.2
        %v1292 = vmul.f32 %v1228, 0.2
        %v1293 = vmul.f32 %v1229, 0.2
        %v1294 = vmul.f32 %v1230, 0.2
        %v1295 = vmul.f32 %v1231, 0.2
        %v1296 = vmul.f32 %v1232, 0.2
        %v1297 = vmul.f32 %v1233, 0.2
        %v1298 = vmul.f32 %v1234, 0.2
        %v1299 = vmul.f32 %v1235, 0.2
        %v1300 = vmul.f32 %v1236, 0.2
        %v1301 = vmul.f32 %v1237, 0.2
        %v1302 = vmul.f32 %v1238, 0.2
        %v1303 = vmul.f32 %v1239, 0.2
        %v1304 = vmul.f32 %v1240, 0.2
        %v1305 = vmul.f32 %v1241, 0.2
        %v1306 = vmul.f32 %v1242, 0.2
        %v1307 = vmul.f32 %v1243, 0.2
        %v1308 = vmul.f32 %v1244, 0.2
        %v1309 = vmul.f32 %v1245, 0.2
        %v1310 = vmul.f32 %v1246, 0.2
        %v1311 = vmul.f32 %v1247, 0.2
        %v1312 = vmul.f32 %v1248, 0.2
        %v1313 = vmul.f32 %v1249, 0.2
        %v1314 = vsel %vm1250, %v1218, %v1282
        %v1315 = vsel %vm1251, %v1219, %v1283
        %v1316 = vsel %vm1252, %v1220, %v1284
        %v1317 = vsel %vm1253, %v1221, %v1285
        %v1318 = vsel %vm1254, %v1222, %v1286
        %v1319 = vsel %vm1255, %v1223, %v1287
        %v1320 = vsel %vm1256, %v1224, %v1288
        %v1321 = vsel %vm1257, %v1225, %v1289
        %v1322 = vsel %vm1258, %v1226, %v1290
        %v1323 = vsel %vm1259, %v1227, %v1291
        %v1324 = vsel %vm1260, %v1228, %v1292
        %v1325 = vsel %vm1261, %v1229, %v1293
        %v1326 = vsel %vm1262, %v1230, %v1294
        %v1327 = vsel %vm1263, %v1231, %v1295
        %v1328 = vsel %vm1264, %v1232, %v1296
        %v1329 = vsel %vm1265, %v1233, %v1297
        %v1330 = vsel %vm1266, %v1234, %v1298
        %v1331 = vsel %vm1267, %v1235, %v1299
        %v1332 = vsel %vm1268, %v1236, %v1300
        %v1333 = vsel %vm1269, %v1237, %v1301
        %v1334 = vsel %vm1270, %v1238, %v1302
        %v1335 = vsel %vm1271, %v1239, %v1303
        %v1336 = vsel %vm1272, %v1240, %v1304
        %v1337 = vsel %vm1273, %v1241, %v1305
        %v1338 = vsel %vm1274, %v1242, %v1306
        %v1339 = vsel %vm1275, %v1243, %v1307
        %v1340 = vsel %vm1276, %v1244, %v1308
        %v1341 = vsel %vm1277, %v1245, %v1309
        %v1342 = vsel %vm1278, %v1246, %v1310
        %v1343 = vsel %vm1279, %v1247, %v1311
        %v1344 = vsel %vm1280, %v1248, %v1312
        %v1345 = vsel %vm1281, %v1249, %v1313
        %vm1346 = vcmp.gt.f32.partialorder %v440, 0.0
        %vm1347 = vcmp.gt.f32.partialorder %v441, 0.0
        %vm1348 = vcmp.gt.f32.partialorder %v442, 0.0
        %vm1349 = vcmp.gt.f32.partialorder %v443, 0.0
        %vm1350 = vcmp.gt.f32.partialorder %v444, 0.0
        %vm1351 = vcmp.gt.f32.partialorder %v445, 0.0
        %vm1352 = vcmp.gt.f32.partialorder %v446, 0.0
        %vm1353 = vcmp.gt.f32.partialorder %v447, 0.0
        %vm1354 = vcmp.gt.f32.partialorder %v448, 0.0
        %vm1355 = vcmp.gt.f32.partialorder %v449, 0.0
        %vm1356 = vcmp.gt.f32.partialorder %v450, 0.0
        %vm1357 = vcmp.gt.f32.partialorder %v451, 0.0
        %vm1358 = vcmp.gt.f32.partialorder %v452, 0.0
        %vm1359 = vcmp.gt.f32.partialorder %v453, 0.0
        %vm1360 = vcmp.gt.f32.partialorder %v454, 0.0
        %vm1361 = vcmp.gt.f32.partialorder %v455, 0.0
        %vm1362 = vcmp.gt.f32.partialorder %v456, 0.0
        %vm1363 = vcmp.gt.f32.partialorder %v457, 0.0
        %vm1364 = vcmp.gt.f32.partialorder %v458, 0.0
        %vm1365 = vcmp.gt.f32.partialorder %v459, 0.0
        %vm1366 = vcmp.gt.f32.partialorder %v460, 0.0
        %vm1367 = vcmp.gt.f32.partialorder %v461, 0.0
        %vm1368 = vcmp.gt.f32.partialorder %v462, 0.0
        %vm1369 = vcmp.gt.f32.partialorder %v463, 0.0
        %vm1370 = vcmp.gt.f32.partialorder %v464, 0.0
        %vm1371 = vcmp.gt.f32.partialorder %v465, 0.0
        %vm1372 = vcmp.gt.f32.partialorder %v466, 0.0
        %vm1373 = vcmp.gt.f32.partialorder %v467, 0.0
        %vm1374 = vcmp.gt.f32.partialorder %v468, 0.0
        %vm1375 = vcmp.gt.f32.partialorder %v469, 0.0
        %vm1376 = vcmp.gt.f32.partialorder %v470, 0.0
        %vm1377 = vcmp.gt.f32.partialorder %v471, 0.0
        %v1378 = vstv %s372
        %v1379 = vmul.f32 %v1378, %v1314
        %v1380 = vmul.f32 %v1378, %v1315
        %v1381 = vmul.f32 %v1378, %v1316
        %v1382 = vmul.f32 %v1378, %v1317
        %v1383 = vmul.f32 %v1378, %v1318
        %v1384 = vmul.f32 %v1378, %v1319
        %v1385 = vmul.f32 %v1378, %v1320
        %v1386 = vmul.f32 %v1378, %v1321
        %v1387 = vmul.f32 %v1378, %v1322
        %v1388 = vmul.f32 %v1378, %v1323
        %v1389 = vmul.f32 %v1378, %v1324
        %v1390 = vmul.f32 %v1378, %v1325
        %v1391 = vmul.f32 %v1378, %v1326
        %v1392 = vmul.f32 %v1378, %v1327
        %v1393 = vmul.f32 %v1378, %v1328
        %v1394 = vmul.f32 %v1378, %v1329
        %v1395 = vmul.f32 %v1378, %v1330
        %v1396 = vmul.f32 %v1378, %v1331
        %v1397 = vmul.f32 %v1378, %v1332
        %v1398 = vmul.f32 %v1378, %v1333
        %v1399 = vmul.f32 %v1378, %v1334
        %v1400 = vmul.f32 %v1378, %v1335
        %v1401 = vmul.f32 %v1378, %v1336
        %v1402 = vmul.f32 %v1378, %v1337
        %v1403 = vmul.f32 %v1378, %v1338
        %v1404 = vmul.f32 %v1378, %v1339
        %v1405 = vmul.f32 %v1378, %v1340
        %v1406 = vmul.f32 %v1378, %v1341
        %v1407 = vmul.f32 %v1378, %v1342
        %v1408 = vmul.f32 %v1378, %v1343
        %v1409 = vmul.f32 %v1378, %v1344
        %v1410 = vmul.f32 %v1378, %v1345
        %v1411 = vsel %vm1346, %v1379, -1e+30
        %v1412 = vsel %vm1347, %v1380, -1e+30
        %v1413 = vsel %vm1348, %v1381, -1e+30
        %v1414 = vsel %vm1349, %v1382, -1e+30
        %v1415 = vsel %vm1350, %v1383, -1e+30
        %v1416 = vsel %vm1351, %v1384, -1e+30
        %v1417 = vsel %vm1352, %v1385, -1e+30
        %v1418 = vsel %vm1353, %v1386, -1e+30
        %v1419 = vsel %vm1354, %v1387, -1e+30
        %v1420 = vsel %vm1355, %v1388, -1e+30
        %v1421 = vsel %vm1356, %v1389, -1e+30
        %v1422 = vsel %vm1357, %v1390, -1e+30
        %v1423 = vsel %vm1358, %v1391, -1e+30
        %v1424 = vsel %vm1359, %v1392, -1e+30
        %v1425 = vsel %vm1360, %v1393, -1e+30
        %v1426 = vsel %vm1361, %v1394, -1e+30
        %v1427 = vsel %vm1362, %v1395, -1e+30
        %v1428 = vsel %vm1363, %v1396, -1e+30
        %v1429 = vsel %vm1364, %v1397, -1e+30
        %v1430 = vsel %vm1365, %v1398, -1e+30
        %v1431 = vsel %vm1366, %v1399, -1e+30
        %v1432 = vsel %vm1367, %v1400, -1e+30
        %v1433 = vsel %vm1368, %v1401, -1e+30
        %v1434 = vsel %vm1369, %v1402, -1e+30
        %v1435 = vsel %vm1370, %v1403, -1e+30
        %v1436 = vsel %vm1371, %v1404, -1e+30
        %v1437 = vsel %vm1372, %v1405, -1e+30
        %v1438 = vsel %vm1373, %v1406, -1e+30
        %v1439 = vsel %vm1374, %v1407, -1e+30
        %v1440 = vsel %vm1375, %v1408, -1e+30
        %v1441 = vsel %vm1376, %v1409, -1e+30
        %v1442 = vsel %vm1377, %v1410, -1e+30
        %v1443 = vsel %vm913, %v1411, -inf
        %v1444 = vsel %vm913, %v1412, -inf
        %v1445 = vmax.f32 %v1443, %v1444
        %v1446 = vrot.slane %v1445, 4
        %v1447 = vmax.f32 %v1445, %v1446
        %v1448 = vrot.slane %v1447, 2
        %v1449 = vmax.f32 %v1447, %v1448
        %v1450 = vrot.slane %v1449, 1
        %v1451 = vmax.f32 %v1449, %v1450
        %v1452 = vsel %vm913, %v1413, -inf
        %v1453 = vsel %vm913, %v1414, -inf
        %v1454 = vmax.f32 %v1452, %v1453
        %v1455 = vrot.slane %v1454, 4
        %v1456 = vmax.f32 %v1454, %v1455
        %v1457 = vrot.slane %v1456, 2
        %v1458 = vmax.f32 %v1456, %v1457
        %v1459 = vrot.slane %v1458, 1
        %v1460 = vmax.f32 %v1458, %v1459
        %v1461 = vsel %vm913, %v1415, -inf
        %v1462 = vsel %vm913, %v1416, -inf
        %v1463 = vmax.f32 %v1461, %v1462
        %v1464 = vrot.slane %v1463, 4
        %v1465 = vmax.f32 %v1463, %v1464
        %v1466 = vrot.slane %v1465, 2
        %v1467 = vmax.f32 %v1465, %v1466
        %v1468 = vrot.slane %v1467, 1
        %v1469 = vmax.f32 %v1467, %v1468
        %v1470 = vsel %vm913, %v1417, -inf
        %v1471 = vsel %vm913, %v1418, -inf
        %v1472 = vmax.f32 %v1470, %v1471
        %v1473 = vrot.slane %v1472, 4
        %v1474 = vmax.f32 %v1472, %v1473
        %v1475 = vrot.slane %v1474, 2
        %v1476 = vmax.f32 %v1474, %v1475
        %v1477 = vrot.slane %v1476, 1
        %v1478 = vmax.f32 %v1476, %v1477
        %v1479 = vsel %vm913, %v1419, -inf
        %v1480 = vsel %vm913, %v1420, -inf
        %v1481 = vmax.f32 %v1479, %v1480
        %v1482 = vrot.slane %v1481, 4
        %v1483 = vmax.f32 %v1481, %v1482
        %v1484 = vrot.slane %v1483, 2
        %v1485 = vmax.f32 %v1483, %v1484
        %v1486 = vrot.slane %v1485, 1
        %v1487 = vmax.f32 %v1485, %v1486
        %v1488 = vsel %vm913, %v1421, -inf
        %v1489 = vsel %vm913, %v1422, -inf
        %v1490 = vmax.f32 %v1488, %v1489
        %v1491 = vrot.slane %v1490, 4
        %v1492 = vmax.f32 %v1490, %v1491
        %v1493 = vrot.slane %v1492, 2
        %v1494 = vmax.f32 %v1492, %v1493
        %v1495 = vrot.slane %v1494, 1
        %v1496 = vmax.f32 %v1494, %v1495
        %v1497 = vsel %vm913, %v1423, -inf
        %v1498 = vsel %vm913, %v1424, -inf
        %v1499 = vmax.f32 %v1497, %v1498
        %v1500 = vrot.slane %v1499, 4
        %v1501 = vmax.f32 %v1499, %v1500
        %v1502 = vrot.slane %v1501, 2
        %v1503 = vmax.f32 %v1501, %v1502
        %v1504 = vrot.slane %v1503, 1
        %v1505 = vmax.f32 %v1503, %v1504
        %v1506 = vsel %vm913, %v1425, -inf
        %v1507 = vsel %vm913, %v1426, -inf
        %v1508 = vmax.f32 %v1506, %v1507
        %v1509 = vrot.slane %v1508, 4
        %v1510 = vmax.f32 %v1508, %v1509
        %v1511 = vrot.slane %v1510, 2
        %v1512 = vmax.f32 %v1510, %v1511
        %v1513 = vrot.slane %v1512, 1
        %v1514 = vmax.f32 %v1512, %v1513
        %v1515 = vsel %vm913, %v1427, -inf
        %v1516 = vsel %vm913, %v1428, -inf
        %v1517 = vmax.f32 %v1515, %v1516
        %v1518 = vrot.slane %v1517, 4
        %v1519 = vmax.f32 %v1517, %v1518
        %v1520 = vrot.slane %v1519, 2
        %v1521 = vmax.f32 %v1519, %v1520
        %v1522 = vrot.slane %v1521, 1
        %v1523 = vmax.f32 %v1521, %v1522
        %v1524 = vsel %vm913, %v1429, -inf
        %v1525 = vsel %vm913, %v1430, -inf
        %v1526 = vmax.f32 %v1524, %v1525
        %v1527 = vrot.slane %v1526, 4
        %v1528 = vmax.f32 %v1526, %v1527
        %v1529 = vrot.slane %v1528, 2
        %v1530 = vmax.f32 %v1528, %v1529
        %v1531 = vrot.slane %v1530, 1
        %v1532 = vmax.f32 %v1530, %v1531
        %v1533 = vsel %vm913, %v1431, -inf
        %v1534 = vsel %vm913, %v1432, -inf
        %v1535 = vmax.f32 %v1533, %v1534
        %v1536 = vrot.slane %v1535, 4
        %v1537 = vmax.f32 %v1535, %v1536
        %v1538 = vrot.slane %v1537, 2
        %v1539 = vmax.f32 %v1537, %v1538
        %v1540 = vrot.slane %v1539, 1
        %v1541 = vmax.f32 %v1539, %v1540
        %v1542 = vsel %vm913, %v1433, -inf
        %v1543 = vsel %vm913, %v1434, -inf
        %v1544 = vmax.f32 %v1542, %v1543
        %v1545 = vrot.slane %v1544, 4
        %v1546 = vmax.f32 %v1544, %v1545
        %v1547 = vrot.slane %v1546, 2
        %v1548 = vmax.f32 %v1546, %v1547
        %v1549 = vrot.slane %v1548, 1
        %v1550 = vmax.f32 %v1548, %v1549
        %v1551 = vsel %vm913, %v1435, -inf
        %v1552 = vsel %vm913, %v1436, -inf
        %v1553 = vmax.f32 %v1551, %v1552
        %v1554 = vrot.slane %v1553, 4
        %v1555 = vmax.f32 %v1553, %v1554
        %v1556 = vrot.slane %v1555, 2
        %v1557 = vmax.f32 %v1555, %v1556
        %v1558 = vrot.slane %v1557, 1
        %v1559 = vmax.f32 %v1557, %v1558
        %v1560 = vsel %vm913, %v1437, -inf
        %v1561 = vsel %vm913, %v1438, -inf
        %v1562 = vmax.f32 %v1560, %v1561
        %v1563 = vrot.slane %v1562, 4
        %v1564 = vmax.f32 %v1562, %v1563
        %v1565 = vrot.slane %v1564, 2
        %v1566 = vmax.f32 %v1564, %v1565
        %v1567 = vrot.slane %v1566, 1
        %v1568 = vmax.f32 %v1566, %v1567
        %v1569 = vsel %vm913, %v1439, -inf
        %v1570 = vsel %vm913, %v1440, -inf
        %v1571 = vmax.f32 %v1569, %v1570
        %v1572 = vrot.slane %v1571, 4
        %v1573 = vmax.f32 %v1571, %v1572
        %v1574 = vrot.slane %v1573, 2
        %v1575 = vmax.f32 %v1573, %v1574
        %v1576 = vrot.slane %v1575, 1
        %v1577 = vmax.f32 %v1575, %v1576
        %v1578 = vsel %vm913, %v1441, -inf
        %v1579 = vsel %vm913, %v1442, -inf
        %v1580 = vmax.f32 %v1578, %v1579
        %v1581 = vrot.slane %v1580, 4
        %v1582 = vmax.f32 %v1580, %v1581
        %v1583 = vrot.slane %v1582, 2
        %v1584 = vmax.f32 %v1582, %v1583
        %v1585 = vrot.slane %v1584, 1
        %v1586 = vmax.f32 %v1584, %v1585
        %v1587 = vsub.f32 %v1411, %v1451
        %v1588 = vsub.f32 %v1412, %v1451
        %v1589 = vsub.f32 %v1413, %v1460
        %v1590 = vsub.f32 %v1414, %v1460
        %v1591 = vsub.f32 %v1415, %v1469
        %v1592 = vsub.f32 %v1416, %v1469
        %v1593 = vsub.f32 %v1417, %v1478
        %v1594 = vsub.f32 %v1418, %v1478
        %v1595 = vsub.f32 %v1419, %v1487
        %v1596 = vsub.f32 %v1420, %v1487
        %v1597 = vsub.f32 %v1421, %v1496
        %v1598 = vsub.f32 %v1422, %v1496
        %v1599 = vsub.f32 %v1423, %v1505
        %v1600 = vsub.f32 %v1424, %v1505
        %v1601 = vsub.f32 %v1425, %v1514
        %v1602 = vsub.f32 %v1426, %v1514
        %v1603 = vsub.f32 %v1427, %v1523
        %v1604 = vsub.f32 %v1428, %v1523
        %v1605 = vsub.f32 %v1429, %v1532
        %v1606 = vsub.f32 %v1430, %v1532
        %v1607 = vsub.f32 %v1431, %v1541
        %v1608 = vsub.f32 %v1432, %v1541
        %v1609 = vsub.f32 %v1433, %v1550
        %v1610 = vsub.f32 %v1434, %v1550
        %v1611 = vsub.f32 %v1435, %v1559
        %v1612 = vsub.f32 %v1436, %v1559
        %v1613 = vsub.f32 %v1437, %v1568
        %v1614 = vsub.f32 %v1438, %v1568
        %v1615 = vsub.f32 %v1439, %v1577
        %v1616 = vsub.f32 %v1440, %v1577
        %v1617 = vsub.f32 %v1441, %v1586
        %v1618 = vsub.f32 %v1442, %v1586
        %v1619 = vmul.f32 %v1587, 1.442695
        %v1620 = vpow.pop %v1619
        %v1621 = vmul.f32 %v1588, 1.442695
        %v1622 = vpow.pop %v1621
        %v1623 = vmul.f32 %v1589, 1.442695
        %v1624 = vpow.pop %v1623
        %v1625 = vmul.f32 %v1590, 1.442695
        %v1626 = vpow.pop %v1625
        %v1627 = vmul.f32 %v1591, 1.442695
        %v1628 = vpow.pop %v1627
        %v1629 = vmul.f32 %v1592, 1.442695
        %v1630 = vpow.pop %v1629
        %v1631 = vmul.f32 %v1593, 1.442695
        %v1632 = vpow.pop %v1631
        %v1633 = vmul.f32 %v1594, 1.442695
        %v1634 = vpow.pop %v1633
        %v1635 = vmul.f32 %v1595, 1.442695
        %v1636 = vpow.pop %v1635
        %v1637 = vmul.f32 %v1596, 1.442695
        %v1638 = vpow.pop %v1637
        %v1639 = vmul.f32 %v1597, 1.442695
        %v1640 = vpow.pop %v1639
        %v1641 = vmul.f32 %v1598, 1.442695
        %v1642 = vpow.pop %v1641
        %v1643 = vmul.f32 %v1599, 1.442695
        %v1644 = vpow.pop %v1643
        %v1645 = vmul.f32 %v1600, 1.442695
        %v1646 = vpow.pop %v1645
        %v1647 = vmul.f32 %v1601, 1.442695
        %v1648 = vpow.pop %v1647
        %v1649 = vmul.f32 %v1602, 1.442695
        %v1650 = vpow.pop %v1649
        %v1651 = vmul.f32 %v1603, 1.442695
        %v1652 = vpow.pop %v1651
        %v1653 = vmul.f32 %v1604, 1.442695
        %v1654 = vpow.pop %v1653
        %v1655 = vmul.f32 %v1605, 1.442695
        %v1656 = vpow.pop %v1655
        %v1657 = vmul.f32 %v1606, 1.442695
        %v1658 = vpow.pop %v1657
        %v1659 = vmul.f32 %v1607, 1.442695
        %v1660 = vpow.pop %v1659
        %v1661 = vmul.f32 %v1608, 1.442695
        %v1662 = vpow.pop %v1661
        %v1663 = vmul.f32 %v1609, 1.442695
        %v1664 = vpow.pop %v1663
        %v1665 = vmul.f32 %v1610, 1.442695
        %v1666 = vpow.pop %v1665
        %v1667 = vmul.f32 %v1611, 1.442695
        %v1668 = vpow.pop %v1667
        %v1669 = vmul.f32 %v1612, 1.442695
        %v1670 = vpow.pop %v1669
        %v1671 = vmul.f32 %v1613, 1.442695
        %v1672 = vpow.pop %v1671
        %v1673 = vmul.f32 %v1614, 1.442695
        %v1674 = vpow.pop %v1673
        %v1675 = vmul.f32 %v1615, 1.442695
        %v1676 = vpow.pop %v1675
        %v1677 = vmul.f32 %v1616, 1.442695
        %v1678 = vpow.pop %v1677
        %v1679 = vmul.f32 %v1617, 1.442695
        %v1680 = vpow.pop %v1679
        %v1681 = vmul.f32 %v1618, 1.442695
        %v1682 = vpow.pop %v1681
        %v1683 = vsel %vm913, %v1620, 0.0
        %v1684 = vsel %vm913, %v1622, 0.0
        %v1685 = vadd.f32 %v1683, %v1684
        %v1686 = vrot.slane %v1685, 4
        %v1687 = vadd.f32 %v1685, %v1686
        %v1688 = vrot.slane %v1687, 2
        %v1689 = vadd.f32 %v1687, %v1688
        %v1690 = vrot.slane %v1689, 1
        %v1691 = vadd.f32 %v1689, %v1690
        %v1692 = vsel %vm913, %v1624, 0.0
        %v1693 = vsel %vm913, %v1626, 0.0
        %v1694 = vadd.f32 %v1692, %v1693
        %v1695 = vrot.slane %v1694, 4
        %v1696 = vadd.f32 %v1694, %v1695
        %v1697 = vrot.slane %v1696, 2
        %v1698 = vadd.f32 %v1696, %v1697
        %v1699 = vrot.slane %v1698, 1
        %v1700 = vadd.f32 %v1698, %v1699
        %v1701 = vsel %vm913, %v1628, 0.0
        %v1702 = vsel %vm913, %v1630, 0.0
        %v1703 = vadd.f32 %v1701, %v1702
        %v1704 = vrot.slane %v1703, 4
        %v1705 = vadd.f32 %v1703, %v1704
        %v1706 = vrot.slane %v1705, 2
        %v1707 = vadd.f32 %v1705, %v1706
        %v1708 = vrot.slane %v1707, 1
        %v1709 = vadd.f32 %v1707, %v1708
        %v1710 = vsel %vm913, %v1632, 0.0
        %v1711 = vsel %vm913, %v1634, 0.0
        %v1712 = vadd.f32 %v1710, %v1711
        %v1713 = vrot.slane %v1712, 4
        %v1714 = vadd.f32 %v1712, %v1713
        %v1715 = vrot.slane %v1714, 2
        %v1716 = vadd.f32 %v1714, %v1715
        %v1717 = vrot.slane %v1716, 1
        %v1718 = vadd.f32 %v1716, %v1717
        %v1719 = vsel %vm913, %v1636, 0.0
        %v1720 = vsel %vm913, %v1638, 0.0
        %v1721 = vadd.f32 %v1719, %v1720
        %v1722 = vrot.slane %v1721, 4
        %v1723 = vadd.f32 %v1721, %v1722
        %v1724 = vrot.slane %v1723, 2
        %v1725 = vadd.f32 %v1723, %v1724
        %v1726 = vrot.slane %v1725, 1
        %v1727 = vadd.f32 %v1725, %v1726
        %v1728 = vsel %vm913, %v1640, 0.0
        %v1729 = vsel %vm913, %v1642, 0.0
        %v1730 = vadd.f32 %v1728, %v1729
        %v1731 = vrot.slane %v1730, 4
        %v1732 = vadd.f32 %v1730, %v1731
        %v1733 = vrot.slane %v1732, 2
        %v1734 = vadd.f32 %v1732, %v1733
        %v1735 = vrot.slane %v1734, 1
        %v1736 = vadd.f32 %v1734, %v1735
        %v1737 = vsel %vm913, %v1644, 0.0
        %v1738 = vsel %vm913, %v1646, 0.0
        %v1739 = vadd.f32 %v1737, %v1738
        %v1740 = vrot.slane %v1739, 4
        %v1741 = vadd.f32 %v1739, %v1740
        %v1742 = vrot.slane %v1741, 2
        %v1743 = vadd.f32 %v1741, %v1742
        %v1744 = vrot.slane %v1743, 1
        %v1745 = vadd.f32 %v1743, %v1744
        %v1746 = vsel %vm913, %v1648, 0.0
        %v1747 = vsel %vm913, %v1650, 0.0
        %v1748 = vadd.f32 %v1746, %v1747
        %v1749 = vrot.slane %v1748, 4
        %v1750 = vadd.f32 %v1748, %v1749
        %v1751 = vrot.slane %v1750, 2
        %v1752 = vadd.f32 %v1750, %v1751
        %v1753 = vrot.slane %v1752, 1
        %v1754 = vadd.f32 %v1752, %v1753
        %v1755 = vsel %vm913, %v1652, 0.0
        %v1756 = vsel %vm913, %v1654, 0.0
        %v1757 = vadd.f32 %v1755, %v1756
        %v1758 = vrot.slane %v1757, 4
        %v1759 = vadd.f32 %v1757, %v1758
        %v1760 = vrot.slane %v1759, 2
        %v1761 = vadd.f32 %v1759, %v1760
        %v1762 = vrot.slane %v1761, 1
        %v1763 = vadd.f32 %v1761, %v1762
        %v1764 = vsel %vm913, %v1656, 0.0
        %v1765 = vsel %vm913, %v1658, 0.0
        %v1766 = vadd.f32 %v1764, %v1765
        %v1767 = vrot.slane %v1766, 4
        %v1768 = vadd.f32 %v1766, %v1767
        %v1769 = vrot.slane %v1768, 2
        %v1770 = vadd.f32 %v1768, %v1769
        %v1771 = vrot.slane %v1770, 1
        %v1772 = vadd.f32 %v1770, %v1771
        %v1773 = vsel %vm913, %v1660, 0.0
        %v1774 = vsel %vm913, %v1662, 0.0
        %v1775 = vadd.f32 %v1773, %v1774
        %v1776 = vrot.slane %v1775, 4
        %v1777 = vadd.f32 %v1775, %v1776
        %v1778 = vrot.slane %v1777, 2
        %v1779 = vadd.f32 %v1777, %v1778
        %v1780 = vrot.slane %v1779, 1
        %v1781 = vadd.f32 %v1779, %v1780
        %v1782 = vsel %vm913, %v1664, 0.0
        %v1783 = vsel %vm913, %v1666, 0.0
        %v1784 = vadd.f32 %v1782, %v1783
        %v1785 = vrot.slane %v1784, 4
        %v1786 = vadd.f32 %v1784, %v1785
        %v1787 = vrot.slane %v1786, 2
        %v1788 = vadd.f32 %v1786, %v1787
        %v1789 = vrot.slane %v1788, 1
        %v1790 = vadd.f32 %v1788, %v1789
        %v1791 = vsel %vm913, %v1668, 0.0
        %v1792 = vsel %vm913, %v1670, 0.0
        %v1793 = vadd.f32 %v1791, %v1792
        %v1794 = vrot.slane %v1793, 4
        %v1795 = vadd.f32 %v1793, %v1794
        %v1796 = vrot.slane %v1795, 2
        %v1797 = vadd.f32 %v1795, %v1796
        %v1798 = vrot.slane %v1797, 1
        %v1799 = vadd.f32 %v1797, %v1798
        %v1800 = vsel %vm913, %v1672, 0.0
        %v1801 = vsel %vm913, %v1674, 0.0
        %v1802 = vadd.f32 %v1800, %v1801
        %v1803 = vrot.slane %v1802, 4
        %v1804 = vadd.f32 %v1802, %v1803
        %v1805 = vrot.slane %v1804, 2
        %v1806 = vadd.f32 %v1804, %v1805
        %v1807 = vrot.slane %v1806, 1
        %v1808 = vadd.f32 %v1806, %v1807
        %v1809 = vsel %vm913, %v1676, 0.0
        %v1810 = vsel %vm913, %v1678, 0.0
        %v1811 = vadd.f32 %v1809, %v1810
        %v1812 = vrot.slane %v1811, 4
        %v1813 = vadd.f32 %v1811, %v1812
        %v1814 = vrot.slane %v1813, 2
        %v1815 = vadd.f32 %v1813, %v1814
        %v1816 = vrot.slane %v1815, 1
        %v1817 = vadd.f32 %v1815, %v1816
        %v1818 = vsel %vm913, %v1680, 0.0
        %v1819 = vsel %vm913, %v1682, 0.0
        %v1820 = vadd.f32 %v1818, %v1819
        %v1821 = vrot.slane %v1820, 4
        %v1822 = vadd.f32 %v1820, %v1821
        %v1823 = vrot.slane %v1822, 2
        %v1824 = vadd.f32 %v1822, %v1823
        %v1825 = vrot.slane %v1824, 1
        %v1826 = vadd.f32 %v1824, %v1825
        %v1827 = vrcp.pop %v1691
        %v1828 = vrcp.pop %v1700
        %v1829 = vrcp.pop %v1709
        %v1830 = vrcp.pop %v1718
        %v1831 = vrcp.pop %v1727
        %v1832 = vrcp.pop %v1736
        %v1833 = vrcp.pop %v1745
        %v1834 = vrcp.pop %v1754
        %v1835 = vrcp.pop %v1763
        %v1836 = vrcp.pop %v1772
        %v1837 = vrcp.pop %v1781
        %v1838 = vrcp.pop %v1790
        %v1839 = vrcp.pop %v1799
        %v1840 = vrcp.pop %v1808
        %v1841 = vrcp.pop %v1817
        %v1842 = vrcp.pop %v1826
        %v1843 = vmul.f32 %v1691, %v1827
        %v1844 = vmul.f32 %v1700, %v1828
        %v1845 = vmul.f32 %v1709, %v1829
        %v1846 = vmul.f32 %v1718, %v1830
        %v1847 = vmul.f32 %v1727, %v1831
        %v1848 = vmul.f32 %v1736, %v1832
        %v1849 = vmul.f32 %v1745, %v1833
        %v1850 = vmul.f32 %v1754, %v1834
        %v1851 = vmul.f32 %v1763, %v1835
        %v1852 = vmul.f32 %v1772, %v1836
        %v1853 = vmul.f32 %v1781, %v1837
        %v1854 = vmul.f32 %v1790, %v1838
        %v1855 = vmul.f32 %v1799, %v1839
        %v1856 = vmul.f32 %v1808, %v1840
        %v1857 = vmul.f32 %v1817, %v1841
        %v1858 = vmul.f32 %v1826, %v1842
        %v1859 = vsub.f32 2.0, %v1843
        %v1860 = vsub.f32 2.0, %v1844
        %v1861 = vsub.f32 2.0, %v1845
        %v1862 = vsub.f32 2.0, %v1846
        %v1863 = vsub.f32 2.0, %v1847
        %v1864 = vsub.f32 2.0, %v1848
        %v1865 = vsub.f32 2.0, %v1849
        %v1866 = vsub.f32 2.0, %v1850
        %v1867 = vsub.f32 2.0, %v1851
        %v1868 = vsub.f32 2.0, %v1852
        %v1869 = vsub.f32 2.0, %v1853
        %v1870 = vsub.f32 2.0, %v1854
        %v1871 = vsub.f32 2.0, %v1855
        %v1872 = vsub.f32 2.0, %v1856
        %v1873 = vsub.f32 2.0, %v1857
        %v1874 = vsub.f32 2.0, %v1858
        %v1875 = vmul.f32 %v1827, %v1859
        %v1876 = vmul.f32 %v1828, %v1860
        %v1877 = vmul.f32 %v1829, %v1861
        %v1878 = vmul.f32 %v1830, %v1862
        %v1879 = vmul.f32 %v1831, %v1863
        %v1880 = vmul.f32 %v1832, %v1864
        %v1881 = vmul.f32 %v1833, %v1865
        %v1882 = vmul.f32 %v1834, %v1866
        %v1883 = vmul.f32 %v1835, %v1867
        %v1884 = vmul.f32 %v1836, %v1868
        %v1885 = vmul.f32 %v1837, %v1869
        %v1886 = vmul.f32 %v1838, %v1870
        %v1887 = vmul.f32 %v1839, %v1871
        %v1888 = vmul.f32 %v1840, %v1872
        %v1889 = vmul.f32 %v1841, %v1873
        %v1890 = vmul.f32 %v1842, %v1874
        %v1891 = vmul.f32 %v1620, %v1875
        %v1892 = vmul.f32 %v1622, %v1875
        %v1893 = vmul.f32 %v1624, %v1876
        %v1894 = vmul.f32 %v1626, %v1876
        %v1895 = vmul.f32 %v1628, %v1877
        %v1896 = vmul.f32 %v1630, %v1877
        %v1897 = vmul.f32 %v1632, %v1878
        %v1898 = vmul.f32 %v1634, %v1878
        %v1899 = vmul.f32 %v1636, %v1879
        %v1900 = vmul.f32 %v1638, %v1879
        %v1901 = vmul.f32 %v1640, %v1880
        %v1902 = vmul.f32 %v1642, %v1880
        %v1903 = vmul.f32 %v1644, %v1881
        %v1904 = vmul.f32 %v1646, %v1881
        %v1905 = vmul.f32 %v1648, %v1882
        %v1906 = vmul.f32 %v1650, %v1882
        %v1907 = vmul.f32 %v1652, %v1883
        %v1908 = vmul.f32 %v1654, %v1883
        %v1909 = vmul.f32 %v1656, %v1884
        %v1910 = vmul.f32 %v1658, %v1884
        %v1911 = vmul.f32 %v1660, %v1885
        %v1912 = vmul.f32 %v1662, %v1885
        %v1913 = vmul.f32 %v1664, %v1886
        %v1914 = vmul.f32 %v1666, %v1886
        %v1915 = vmul.f32 %v1668, %v1887
        %v1916 = vmul.f32 %v1670, %v1887
        %v1917 = vmul.f32 %v1672, %v1888
        %v1918 = vmul.f32 %v1674, %v1888
        %v1919 = vmul.f32 %v1676, %v1889
        %v1920 = vmul.f32 %v1678, %v1889
        %v1921 = vmul.f32 %v1680, %v1890
        %v1922 = vmul.f32 %v1682, %v1890
        %v1923 = vmul.f32 %v1891, %v1061
        %v1924 = vmul.f32 %v1892, %v1066
        %v1925 = vmul.f32 %v1893, %v1071
        %v1926 = vmul.f32 %v1894, %v1076
        %v1927 = vmul.f32 %v1895, %v1081
        %v1928 = vmul.f32 %v1896, %v1086
        %v1929 = vmul.f32 %v1897, %v1091
        %v1930 = vmul.f32 %v1898, %v1096
        %v1931 = vmul.f32 %v1899, %v1101
        %v1932 = vmul.f32 %v1900, %v1106
        %v1933 = vmul.f32 %v1901, %v1111
        %v1934 = vmul.f32 %v1902, %v1116
        %v1935 = vmul.f32 %v1903, %v1121
        %v1936 = vmul.f32 %v1904, %v1126
        %v1937 = vmul.f32 %v1905, %v1131
        %v1938 = vmul.f32 %v1906, %v1136
        %v1939 = vmul.f32 %v1907, %v1141
        %v1940 = vmul.f32 %v1908, %v1146
        %v1941 = vmul.f32 %v1909, %v1151
        %v1942 = vmul.f32 %v1910, %v1156
        %v1943 = vmul.f32 %v1911, %v1161
        %v1944 = vmul.f32 %v1912, %v1166
        %v1945 = vmul.f32 %v1913, %v1171
        %v1946 = vmul.f32 %v1914, %v1176
        %v1947 = vmul.f32 %v1915, %v1181
        %v1948 = vmul.f32 %v1916, %v1186
        %v1949 = vmul.f32 %v1917, %v1191
        %v1950 = vmul.f32 %v1918, %v1196
        %v1951 = vmul.f32 %v1919, %v1201
        %v1952 = vmul.f32 %v1920, %v1206
        %v1953 = vmul.f32 %v1921, %v1211
        %v1954 = vmul.f32 %v1922, %v1216
        %v1955 = vsel %vm913, %v1923, 0.0
        %v1956 = vsel %vm913, %v1924, 0.0
        %v1957 = vadd.f32 %v1955, %v1956
        %v1958 = vrot.slane %v1957, 4
        %v1959 = vadd.f32 %v1957, %v1958
        %v1960 = vrot.slane %v1959, 2
        %v1961 = vadd.f32 %v1959, %v1960
        %v1962 = vrot.slane %v1961, 1
        %v1963 = vadd.f32 %v1961, %v1962
        %v1964 = vsel %vm913, %v1925, 0.0
        %v1965 = vsel %vm913, %v1926, 0.0
        %v1966 = vadd.f32 %v1964, %v1965
        %v1967 = vrot.slane %v1966, 4
        %v1968 = vadd.f32 %v1966, %v1967
        %v1969 = vrot.slane %v1968, 2
        %v1970 = vadd.f32 %v1968, %v1969
        %v1971 = vrot.slane %v1970, 1
        %v1972 = vadd.f32 %v1970, %v1971
        %v1973 = vsel %vm913, %v1927, 0.0
        %v1974 = vsel %vm913, %v1928, 0.0
        %v1975 = vadd.f32 %v1973, %v1974
        %v1976 = vrot.slane %v1975, 4
        %v1977 = vadd.f32 %v1975, %v1976
        %v1978 = vrot.slane %v1977, 2
        %v1979 = vadd.f32 %v1977, %v1978
        %v1980 = vrot.slane %v1979, 1
        %v1981 = vadd.f32 %v1979, %v1980
        %v1982 = vsel %vm913, %v1929, 0.0
        %v1983 = vsel %vm913, %v1930, 0.0
        %v1984 = vadd.f32 %v1982, %v1983
        %v1985 = vrot.slane %v1984, 4
        %v1986 = vadd.f32 %v1984, %v1985
        %v1987 = vrot.slane %v1986, 2
        %v1988 = vadd.f32 %v1986, %v1987
        %v1989 = vrot.slane %v1988, 1
        %v1990 = vadd.f32 %v1988, %v1989
        %v1991 = vsel %vm913, %v1931, 0.0
        %v1992 = vsel %vm913, %v1932, 0.0
        %v1993 = vadd.f32 %v1991, %v1992
        %v1994 = vrot.slane %v1993, 4
        %v1995 = vadd.f32 %v1993, %v1994
        %v1996 = vrot.slane %v1995, 2
        %v1997 = vadd.f32 %v1995, %v1996
        %v1998 = vrot.slane %v1997, 1
        %v1999 = vadd.f32 %v1997, %v1998
        %v2000 = vsel %vm913, %v1933, 0.0
        %v2001 = vsel %vm913, %v1934, 0.0
        %v2002 = vadd.f32 %v2000, %v2001
        %v2003 = vrot.slane %v2002, 4
        %v2004 = vadd.f32 %v2002, %v2003
        %v2005 = vrot.slane %v2004, 2
        %v2006 = vadd.f32 %v2004, %v2005
        %v2007 = vrot.slane %v2006, 1
        %v2008 = vadd.f32 %v2006, %v2007
        %v2009 = vsel %vm913, %v1935, 0.0
        %v2010 = vsel %vm913, %v1936, 0.0
        %v2011 = vadd.f32 %v2009, %v2010
        %v2012 = vrot.slane %v2011, 4
        %v2013 = vadd.f32 %v2011, %v2012
        %v2014 = vrot.slane %v2013, 2
        %v2015 = vadd.f32 %v2013, %v2014
        %v2016 = vrot.slane %v2015, 1
        %v2017 = vadd.f32 %v2015, %v2016
        %v2018 = vsel %vm913, %v1937, 0.0
        %v2019 = vsel %vm913, %v1938, 0.0
        %v2020 = vadd.f32 %v2018, %v2019
        %v2021 = vrot.slane %v2020, 4
        %v2022 = vadd.f32 %v2020, %v2021
        %v2023 = vrot.slane %v2022, 2
        %v2024 = vadd.f32 %v2022, %v2023
        %v2025 = vrot.slane %v2024, 1
        %v2026 = vadd.f32 %v2024, %v2025
        %v2027 = vsel %vm913, %v1939, 0.0
        %v2028 = vsel %vm913, %v1940, 0.0
        %v2029 = vadd.f32 %v2027, %v2028
        %v2030 = vrot.slane %v2029, 4
        %v2031 = vadd.f32 %v2029, %v2030
        %v2032 = vrot.slane %v2031, 2
        %v2033 = vadd.f32 %v2031, %v2032
        %v2034 = vrot.slane %v2033, 1
        %v2035 = vadd.f32 %v2033, %v2034
        %v2036 = vsel %vm913, %v1941, 0.0
        %v2037 = vsel %vm913, %v1942, 0.0
        %v2038 = vadd.f32 %v2036, %v2037
        %v2039 = vrot.slane %v2038, 4
        %v2040 = vadd.f32 %v2038, %v2039
        %v2041 = vrot.slane %v2040, 2
        %v2042 = vadd.f32 %v2040, %v2041
        %v2043 = vrot.slane %v2042, 1
        %v2044 = vadd.f32 %v2042, %v2043
        %v2045 = vsel %vm913, %v1943, 0.0
        %v2046 = vsel %vm913, %v1944, 0.0
        %v2047 = vadd.f32 %v2045, %v2046
        %v2048 = vrot.slane %v2047, 4
        %v2049 = vadd.f32 %v2047, %v2048
        %v2050 = vrot.slane %v2049, 2
        %v2051 = vadd.f32 %v2049, %v2050
        %v2052 = vrot.slane %v2051, 1
        %v2053 = vadd.f32 %v2051, %v2052
        %v2054 = vsel %vm913, %v1945, 0.0
        %v2055 = vsel %vm913, %v1946, 0.0
        %v2056 = vadd.f32 %v2054, %v2055
        %v2057 = vrot.slane %v2056, 4
        %v2058 = vadd.f32 %v2056, %v2057
        %v2059 = vrot.slane %v2058, 2
        %v2060 = vadd.f32 %v2058, %v2059
        %v2061 = vrot.slane %v2060, 1
        %v2062 = vadd.f32 %v2060, %v2061
        %v2063 = vsel %vm913, %v1947, 0.0
        %v2064 = vsel %vm913, %v1948, 0.0
        %v2065 = vadd.f32 %v2063, %v2064
        %v2066 = vrot.slane %v2065, 4
        %v2067 = vadd.f32 %v2065, %v2066
        %v2068 = vrot.slane %v2067, 2
        %v2069 = vadd.f32 %v2067, %v2068
        %v2070 = vrot.slane %v2069, 1
        %v2071 = vadd.f32 %v2069, %v2070
        %v2072 = vsel %vm913, %v1949, 0.0
        %v2073 = vsel %vm913, %v1950, 0.0
        %v2074 = vadd.f32 %v2072, %v2073
        %v2075 = vrot.slane %v2074, 4
        %v2076 = vadd.f32 %v2074, %v2075
        %v2077 = vrot.slane %v2076, 2
        %v2078 = vadd.f32 %v2076, %v2077
        %v2079 = vrot.slane %v2078, 1
        %v2080 = vadd.f32 %v2078, %v2079
        %v2081 = vsel %vm913, %v1951, 0.0
        %v2082 = vsel %vm913, %v1952, 0.0
        %v2083 = vadd.f32 %v2081, %v2082
        %v2084 = vrot.slane %v2083, 4
        %v2085 = vadd.f32 %v2083, %v2084
        %v2086 = vrot.slane %v2085, 2
        %v2087 = vadd.f32 %v2085, %v2086
        %v2088 = vrot.slane %v2087, 1
        %v2089 = vadd.f32 %v2087, %v2088
        %v2090 = vsel %vm913, %v1953, 0.0
        %v2091 = vsel %vm913, %v1954, 0.0
        %v2092 = vadd.f32 %v2090, %v2091
        %v2093 = vrot.slane %v2092, 4
        %v2094 = vadd.f32 %v2092, %v2093
        %v2095 = vrot.slane %v2094, 2
        %v2096 = vadd.f32 %v2094, %v2095
        %v2097 = vrot.slane %v2096, 1
        %v2098 = vadd.f32 %v2096, %v2097
        %v2099 = vstv %s373
        %v2100 = vadd.f32 %v1963, %v2099
        %v2101 = vadd.f32 %v1972, %v2099
        %v2102 = vadd.f32 %v1981, %v2099
        %v2103 = vadd.f32 %v1990, %v2099
        %v2104 = vadd.f32 %v1999, %v2099
        %v2105 = vadd.f32 %v2008, %v2099
        %v2106 = vadd.f32 %v2017, %v2099
        %v2107 = vadd.f32 %v2026, %v2099
        %v2108 = vadd.f32 %v2035, %v2099
        %v2109 = vadd.f32 %v2044, %v2099
        %v2110 = vadd.f32 %v2053, %v2099
        %v2111 = vadd.f32 %v2062, %v2099
        %v2112 = vadd.f32 %v2071, %v2099
        %v2113 = vadd.f32 %v2080, %v2099
        %v2114 = vadd.f32 %v2089, %v2099
        %v2115 = vadd.f32 %v2098, %v2099
        %v2116 = vld [vmem:[%s350] sm:$0xff]
        %v2117 = vld [vmem:[%s350 + $0x8] sm:$0xff]
        %v2118 = vld [vmem:[%s350 + $0x10] sm:$0xff]
        %v2119 = vld [vmem:[%s350 + $0x18] sm:$0xff]
        %v2120 = vld [vmem:[%s350 + $0x20] sm:$0xff]
        %v2121 = vld [vmem:[%s350 + $0x28] sm:$0xff]
        %v2122 = vld [vmem:[%s350 + $0x30] sm:$0xff]
        %v2123 = vld [vmem:[%s350 + $0x38] sm:$0xff]
        %v2124 = vld [vmem:[%s350 + $0x40] sm:$0xff]
        %v2125 = vld [vmem:[%s350 + $0x48] sm:$0xff]
        %v2126 = vld [vmem:[%s350 + $0x50] sm:$0xff]
        %v2127 = vld [vmem:[%s350 + $0x58] sm:$0xff]
        %v2128 = vld [vmem:[%s350 + $0x60] sm:$0xff]
        %v2129 = vld [vmem:[%s350 + $0x68] sm:$0xff]
        %v2130 = vld [vmem:[%s350 + $0x70] sm:$0xff]
        %v2131 = vld [vmem:[%s350 + $0x78] sm:$0xff]
        %v2132 = vld [vmem:[%s350 + $0x80] sm:$0xff]
        %v2133 = vld [vmem:[%s350 + $0x88] sm:$0xff]
        %v2134 = vld [vmem:[%s350 + $0x90] sm:$0xff]
        %v2135 = vld [vmem:[%s350 + $0x98] sm:$0xff]
        %v2136 = vld [vmem:[%s350 + $0xa0] sm:$0xff]
        %v2137 = vld [vmem:[%s350 + $0xa8] sm:$0xff]
        %v2138 = vld [vmem:[%s350 + $0xb0] sm:$0xff]
        %v2139 = vld [vmem:[%s350 + $0xb8] sm:$0xff]
        %v2140 = vld [vmem:[%s350 + $0xc0] sm:$0xff]
        %v2141 = vld [vmem:[%s350 + $0xc8] sm:$0xff]
        %v2142 = vld [vmem:[%s350 + $0xd0] sm:$0xff]
        %v2143 = vld [vmem:[%s350 + $0xd8] sm:$0xff]
        %v2144 = vld [vmem:[%s350 + $0xe0] sm:$0xff]
        %v2145 = vld [vmem:[%s350 + $0xe8] sm:$0xff]
        %v2146 = vld [vmem:[%s350 + $0xf0] sm:$0xff]
        %v2147 = vld [vmem:[%s350 + $0xf8] sm:$0xff]
        %v2148 = vmul.f32 %v2116, %v519
        %v2149 = vmul.f32 %v2117, %v519
        %v2150 = vmul.f32 %v2118, %v519
        %v2151 = vmul.f32 %v2119, %v519
        %v2152 = vmul.f32 %v2120, %v519
        %v2153 = vmul.f32 %v2121, %v519
        %v2154 = vmul.f32 %v2122, %v519
        %v2155 = vmul.f32 %v2123, %v519
        %v2156 = vmul.f32 %v2124, %v519
        %v2157 = vmul.f32 %v2125, %v519
        %v2158 = vmul.f32 %v2126, %v519
        %v2159 = vmul.f32 %v2127, %v519
        %v2160 = vmul.f32 %v2128, %v519
        %v2161 = vmul.f32 %v2129, %v519
        %v2162 = vmul.f32 %v2130, %v519
        %v2163 = vmul.f32 %v2131, %v519
        %v2164 = vmul.f32 %v2132, %v519
        %v2165 = vmul.f32 %v2133, %v519
        %v2166 = vmul.f32 %v2134, %v519
        %v2167 = vmul.f32 %v2135, %v519
        %v2168 = vmul.f32 %v2136, %v519
        %v2169 = vmul.f32 %v2137, %v519
        %v2170 = vmul.f32 %v2138, %v519
        %v2171 = vmul.f32 %v2139, %v519
        %v2172 = vmul.f32 %v2140, %v519
        %v2173 = vmul.f32 %v2141, %v519
        %v2174 = vmul.f32 %v2142, %v519
        %v2175 = vmul.f32 %v2143, %v519
        %v2176 = vmul.f32 %v2144, %v519
        %v2177 = vmul.f32 %v2145, %v519
        %v2178 = vmul.f32 %v2146, %v519
        %v2179 = vmul.f32 %v2147, %v519
        %v2180 = vadd.f32 %v2148, 0.0
        %v2181 = vadd.f32 %v2149, 0.0
        %v2182 = vadd.f32 %v2150, 0.0
        %v2183 = vadd.f32 %v2151, 0.0
        %v2184 = vadd.f32 %v2152, 0.0
        %v2185 = vadd.f32 %v2153, 0.0
        %v2186 = vadd.f32 %v2154, 0.0
        %v2187 = vadd.f32 %v2155, 0.0
        %v2188 = vadd.f32 %v2156, 0.0
        %v2189 = vadd.f32 %v2157, 0.0
        %v2190 = vadd.f32 %v2158, 0.0
        %v2191 = vadd.f32 %v2159, 0.0
        %v2192 = vadd.f32 %v2160, 0.0
        %v2193 = vadd.f32 %v2161, 0.0
        %v2194 = vadd.f32 %v2162, 0.0
        %v2195 = vadd.f32 %v2163, 0.0
        %v2196 = vadd.f32 %v2164, 0.0
        %v2197 = vadd.f32 %v2165, 0.0
        %v2198 = vadd.f32 %v2166, 0.0
        %v2199 = vadd.f32 %v2167, 0.0
        %v2200 = vadd.f32 %v2168, 0.0
        %v2201 = vadd.f32 %v2169, 0.0
        %v2202 = vadd.f32 %v2170, 0.0
        %v2203 = vadd.f32 %v2171, 0.0
        %v2204 = vadd.f32 %v2172, 0.0
        %v2205 = vadd.f32 %v2173, 0.0
        %v2206 = vadd.f32 %v2174, 0.0
        %v2207 = vadd.f32 %v2175, 0.0
        %v2208 = vadd.f32 %v2176, 0.0
        %v2209 = vadd.f32 %v2177, 0.0
        %v2210 = vadd.f32 %v2178, 0.0
        %v2211 = vadd.f32 %v2179, 0.0
        %v2212 = vadd.f32 %v2180, %v585
        %v2213 = vadd.f32 %v2181, %v585
        %v2214 = vadd.f32 %v2182, %v585
        %v2215 = vadd.f32 %v2183, %v585
        %v2216 = vadd.f32 %v2184, %v585
        %v2217 = vadd.f32 %v2185, %v585
        %v2218 = vadd.f32 %v2186, %v585
        %v2219 = vadd.f32 %v2187, %v585
        %v2220 = vadd.f32 %v2188, %v585
        %v2221 = vadd.f32 %v2189, %v585
        %v2222 = vadd.f32 %v2190, %v585
        %v2223 = vadd.f32 %v2191, %v585
        %v2224 = vadd.f32 %v2192, %v585
        %v2225 = vadd.f32 %v2193, %v585
        %v2226 = vadd.f32 %v2194, %v585
        %v2227 = vadd.f32 %v2195, %v585
        %v2228 = vadd.f32 %v2196, %v585
        %v2229 = vadd.f32 %v2197, %v585
        %v2230 = vadd.f32 %v2198, %v585
        %v2231 = vadd.f32 %v2199, %v585
        %v2232 = vadd.f32 %v2200, %v585
        %v2233 = vadd.f32 %v2201, %v585
        %v2234 = vadd.f32 %v2202, %v585
        %v2235 = vadd.f32 %v2203, %v585
        %v2236 = vadd.f32 %v2204, %v585
        %v2237 = vadd.f32 %v2205, %v585
        %v2238 = vadd.f32 %v2206, %v585
        %v2239 = vadd.f32 %v2207, %v585
        %v2240 = vadd.f32 %v2208, %v585
        %v2241 = vadd.f32 %v2209, %v585
        %v2242 = vadd.f32 %v2210, %v585
        %v2243 = vadd.f32 %v2211, %v585
        %v2244 = vmul.f32 %v2116, %v622
        %v2245 = vmul.f32 %v2117, %v622
        %v2246 = vmul.f32 %v2118, %v622
        %v2247 = vmul.f32 %v2119, %v622
        %v2248 = vmul.f32 %v2120, %v622
        %v2249 = vmul.f32 %v2121, %v622
        %v2250 = vmul.f32 %v2122, %v622
        %v2251 = vmul.f32 %v2123, %v622
        %v2252 = vmul.f32 %v2124, %v622
        %v2253 = vmul.f32 %v2125, %v622
        %v2254 = vmul.f32 %v2126, %v622
        %v2255 = vmul.f32 %v2127, %v622
        %v2256 = vmul.f32 %v2128, %v622
        %v2257 = vmul.f32 %v2129, %v622
        %v2258 = vmul.f32 %v2130, %v622
        %v2259 = vmul.f32 %v2131, %v622
        %v2260 = vmul.f32 %v2132, %v622
        %v2261 = vmul.f32 %v2133, %v622
        %v2262 = vmul.f32 %v2134, %v622
        %v2263 = vmul.f32 %v2135, %v622
        %v2264 = vmul.f32 %v2136, %v622
        %v2265 = vmul.f32 %v2137, %v622
        %v2266 = vmul.f32 %v2138, %v622
        %v2267 = vmul.f32 %v2139, %v622
        %v2268 = vmul.f32 %v2140, %v622
        %v2269 = vmul.f32 %v2141, %v622
        %v2270 = vmul.f32 %v2142, %v622
        %v2271 = vmul.f32 %v2143, %v622
        %v2272 = vmul.f32 %v2144, %v622
        %v2273 = vmul.f32 %v2145, %v622
        %v2274 = vmul.f32 %v2146, %v622
        %v2275 = vmul.f32 %v2147, %v622
        %v2276 = vadd.f32 %v2244, 0.0
        %v2277 = vadd.f32 %v2245, 0.0
        %v2278 = vadd.f32 %v2246, 0.0
        %v2279 = vadd.f32 %v2247, 0.0
        %v2280 = vadd.f32 %v2248, 0.0
        %v2281 = vadd.f32 %v2249, 0.0
        %v2282 = vadd.f32 %v2250, 0.0
        %v2283 = vadd.f32 %v2251, 0.0
        %v2284 = vadd.f32 %v2252, 0.0
        %v2285 = vadd.f32 %v2253, 0.0
        %v2286 = vadd.f32 %v2254, 0.0
        %v2287 = vadd.f32 %v2255, 0.0
        %v2288 = vadd.f32 %v2256, 0.0
        %v2289 = vadd.f32 %v2257, 0.0
        %v2290 = vadd.f32 %v2258, 0.0
        %v2291 = vadd.f32 %v2259, 0.0
        %v2292 = vadd.f32 %v2260, 0.0
        %v2293 = vadd.f32 %v2261, 0.0
        %v2294 = vadd.f32 %v2262, 0.0
        %v2295 = vadd.f32 %v2263, 0.0
        %v2296 = vadd.f32 %v2264, 0.0
        %v2297 = vadd.f32 %v2265, 0.0
        %v2298 = vadd.f32 %v2266, 0.0
        %v2299 = vadd.f32 %v2267, 0.0
        %v2300 = vadd.f32 %v2268, 0.0
        %v2301 = vadd.f32 %v2269, 0.0
        %v2302 = vadd.f32 %v2270, 0.0
        %v2303 = vadd.f32 %v2271, 0.0
        %v2304 = vadd.f32 %v2272, 0.0
        %v2305 = vadd.f32 %v2273, 0.0
        %v2306 = vadd.f32 %v2274, 0.0
        %v2307 = vadd.f32 %v2275, 0.0
        %v2308 = vadd.f32 %v2276, %v688
        %v2309 = vadd.f32 %v2277, %v688
        %v2310 = vadd.f32 %v2278, %v688
        %v2311 = vadd.f32 %v2279, %v688
        %v2312 = vadd.f32 %v2280, %v688
        %v2313 = vadd.f32 %v2281, %v688
        %v2314 = vadd.f32 %v2282, %v688
        %v2315 = vadd.f32 %v2283, %v688
        %v2316 = vadd.f32 %v2284, %v688
        %v2317 = vadd.f32 %v2285, %v688
        %v2318 = vadd.f32 %v2286, %v688
        %v2319 = vadd.f32 %v2287, %v688
        %v2320 = vadd.f32 %v2288, %v688
        %v2321 = vadd.f32 %v2289, %v688
        %v2322 = vadd.f32 %v2290, %v688
        %v2323 = vadd.f32 %v2291, %v688
        %v2324 = vadd.f32 %v2292, %v688
        %v2325 = vadd.f32 %v2293, %v688
        %v2326 = vadd.f32 %v2294, %v688
        %v2327 = vadd.f32 %v2295, %v688
        %v2328 = vadd.f32 %v2296, %v688
        %v2329 = vadd.f32 %v2297, %v688
        %v2330 = vadd.f32 %v2298, %v688
        %v2331 = vadd.f32 %v2299, %v688
        %v2332 = vadd.f32 %v2300, %v688
        %v2333 = vadd.f32 %v2301, %v688
        %v2334 = vadd.f32 %v2302, %v688
        %v2335 = vadd.f32 %v2303, %v688
        %v2336 = vadd.f32 %v2304, %v688
        %v2337 = vadd.f32 %v2305, %v688
        %v2338 = vadd.f32 %v2306, %v688
        %v2339 = vadd.f32 %v2307, %v688
        %2341 = vset.pattern.permute.xlu0 0
        %2342 = vperm.xlu0 %2341, %v2308
        %v2343 = vpop.permute.xlu0 %2342
        %2346 = vset.pattern.permute.xlu0 0
        %2347 = vperm.xlu0 %2346, %v2309
        %v2348 = vpop.permute.xlu0 %2347
        %2351 = vset.pattern.permute.xlu0 0
        %2352 = vperm.xlu0 %2351, %v2310
        %v2353 = vpop.permute.xlu0 %2352
        %2356 = vset.pattern.permute.xlu0 0
        %2357 = vperm.xlu0 %2356, %v2311
        %v2358 = vpop.permute.xlu0 %2357
        %2361 = vset.pattern.permute.xlu0 0
        %2362 = vperm.xlu0 %2361, %v2312
        %v2363 = vpop.permute.xlu0 %2362
        %2366 = vset.pattern.permute.xlu0 0
        %2367 = vperm.xlu0 %2366, %v2313
        %v2368 = vpop.permute.xlu0 %2367
        %2371 = vset.pattern.permute.xlu0 0
        %2372 = vperm.xlu0 %2371, %v2314
        %v2373 = vpop.permute.xlu0 %2372
        %2376 = vset.pattern.permute.xlu0 0
        %2377 = vperm.xlu0 %2376, %v2315
        %v2378 = vpop.permute.xlu0 %2377
        %2381 = vset.pattern.permute.xlu0 0
        %2382 = vperm.xlu0 %2381, %v2316
        %v2383 = vpop.permute.xlu0 %2382
        %2386 = vset.pattern.permute.xlu0 0
        %2387 = vperm.xlu0 %2386, %v2317
        %v2388 = vpop.permute.xlu0 %2387
        %2391 = vset.pattern.permute.xlu0 0
        %2392 = vperm.xlu0 %2391, %v2318
        %v2393 = vpop.permute.xlu0 %2392
        %2396 = vset.pattern.permute.xlu0 0
        %2397 = vperm.xlu0 %2396, %v2319
        %v2398 = vpop.permute.xlu0 %2397
        %2401 = vset.pattern.permute.xlu0 0
        %2402 = vperm.xlu0 %2401, %v2320
        %v2403 = vpop.permute.xlu0 %2402
        %2406 = vset.pattern.permute.xlu0 0
        %2407 = vperm.xlu0 %2406, %v2321
        %v2408 = vpop.permute.xlu0 %2407
        %2411 = vset.pattern.permute.xlu0 0
        %2412 = vperm.xlu0 %2411, %v2322
        %v2413 = vpop.permute.xlu0 %2412
        %2416 = vset.pattern.permute.xlu0 0
        %2417 = vperm.xlu0 %2416, %v2323
        %v2418 = vpop.permute.xlu0 %2417
        %2421 = vset.pattern.permute.xlu0 0
        %2422 = vperm.xlu0 %2421, %v2324
        %v2423 = vpop.permute.xlu0 %2422
        %2426 = vset.pattern.permute.xlu0 0
        %2427 = vperm.xlu0 %2426, %v2325
        %v2428 = vpop.permute.xlu0 %2427
        %2431 = vset.pattern.permute.xlu0 0
        %2432 = vperm.xlu0 %2431, %v2326
        %v2433 = vpop.permute.xlu0 %2432
        %2436 = vset.pattern.permute.xlu0 0
        %2437 = vperm.xlu0 %2436, %v2327
        %v2438 = vpop.permute.xlu0 %2437
        %2441 = vset.pattern.permute.xlu0 0
        %2442 = vperm.xlu0 %2441, %v2328
        %v2443 = vpop.permute.xlu0 %2442
        %2446 = vset.pattern.permute.xlu0 0
        %2447 = vperm.xlu0 %2446, %v2329
        %v2448 = vpop.permute.xlu0 %2447
        %2451 = vset.pattern.permute.xlu0 0
        %2452 = vperm.xlu0 %2451, %v2330
        %v2453 = vpop.permute.xlu0 %2452
        %2456 = vset.pattern.permute.xlu0 0
        %2457 = vperm.xlu0 %2456, %v2331
        %v2458 = vpop.permute.xlu0 %2457
        %2461 = vset.pattern.permute.xlu0 0
        %2462 = vperm.xlu0 %2461, %v2332
        %v2463 = vpop.permute.xlu0 %2462
        %2466 = vset.pattern.permute.xlu0 0
        %2467 = vperm.xlu0 %2466, %v2333
        %v2468 = vpop.permute.xlu0 %2467
        %2471 = vset.pattern.permute.xlu0 0
        %2472 = vperm.xlu0 %2471, %v2334
        %v2473 = vpop.permute.xlu0 %2472
        %2476 = vset.pattern.permute.xlu0 0
        %2477 = vperm.xlu0 %2476, %v2335
        %v2478 = vpop.permute.xlu0 %2477
        %2481 = vset.pattern.permute.xlu0 0
        %2482 = vperm.xlu0 %2481, %v2336
        %v2483 = vpop.permute.xlu0 %2482
        %2486 = vset.pattern.permute.xlu0 0
        %2487 = vperm.xlu0 %2486, %v2337
        %v2488 = vpop.permute.xlu0 %2487
        %2491 = vset.pattern.permute.xlu0 0
        %2492 = vperm.xlu0 %2491, %v2338
        %v2493 = vpop.permute.xlu0 %2492
        %2496 = vset.pattern.permute.xlu0 0
        %2497 = vperm.xlu0 %2496, %v2339
        %v2498 = vpop.permute.xlu0 %2497
        %v2500 = vmul.f32 %v2343, %v481
        %v2501 = vmul.f32 %v2348, %v482
        %v2502 = vmul.f32 %v2353, %v481
        %v2503 = vmul.f32 %v2358, %v482
        %v2504 = vmul.f32 %v2363, %v481
        %v2505 = vmul.f32 %v2368, %v482
        %v2506 = vmul.f32 %v2373, %v481
        %v2507 = vmul.f32 %v2378, %v482
        %v2508 = vmul.f32 %v2383, %v481
        %v2509 = vmul.f32 %v2388, %v482
        %v2510 = vmul.f32 %v2393, %v481
        %v2511 = vmul.f32 %v2398, %v482
        %v2512 = vmul.f32 %v2403, %v481
        %v2513 = vmul.f32 %v2408, %v482
        %v2514 = vmul.f32 %v2413, %v481
        %v2515 = vmul.f32 %v2418, %v482
        %v2516 = vmul.f32 %v2423, %v481
        %v2517 = vmul.f32 %v2428, %v482
        %v2518 = vmul.f32 %v2433, %v481
        %v2519 = vmul.f32 %v2438, %v482
        %v2520 = vmul.f32 %v2443, %v481
        %v2521 = vmul.f32 %v2448, %v482
        %v2522 = vmul.f32 %v2453, %v481
        %v2523 = vmul.f32 %v2458, %v482
        %v2524 = vmul.f32 %v2463, %v481
        %v2525 = vmul.f32 %v2468, %v482
        %v2526 = vmul.f32 %v2473, %v481
        %v2527 = vmul.f32 %v2478, %v482
        %v2528 = vmul.f32 %v2483, %v481
        %v2529 = vmul.f32 %v2488, %v482
        %v2530 = vmul.f32 %v2493, %v481
        %v2531 = vmul.f32 %v2498, %v482
        %v2532 = vsel %vm913, %v2500, 0.0
        %v2533 = vsel %vm913, %v2501, 0.0
        %v2534 = vadd.f32 %v2532, %v2533
        %v2535 = vrot.slane %v2534, 4
        %v2536 = vadd.f32 %v2534, %v2535
        %v2537 = vrot.slane %v2536, 2
        %v2538 = vadd.f32 %v2536, %v2537
        %v2539 = vrot.slane %v2538, 1
        %v2540 = vadd.f32 %v2538, %v2539
        %v2541 = vsel %vm913, %v2502, 0.0
        %v2542 = vsel %vm913, %v2503, 0.0
        %v2543 = vadd.f32 %v2541, %v2542
        %v2544 = vrot.slane %v2543, 4
        %v2545 = vadd.f32 %v2543, %v2544
        %v2546 = vrot.slane %v2545, 2
        %v2547 = vadd.f32 %v2545, %v2546
        %v2548 = vrot.slane %v2547, 1
        %v2549 = vadd.f32 %v2547, %v2548
        %v2550 = vsel %vm913, %v2504, 0.0
        %v2551 = vsel %vm913, %v2505, 0.0
        %v2552 = vadd.f32 %v2550, %v2551
        %v2553 = vrot.slane %v2552, 4
        %v2554 = vadd.f32 %v2552, %v2553
        %v2555 = vrot.slane %v2554, 2
        %v2556 = vadd.f32 %v2554, %v2555
        %v2557 = vrot.slane %v2556, 1
        %v2558 = vadd.f32 %v2556, %v2557
        %v2559 = vsel %vm913, %v2506, 0.0
        %v2560 = vsel %vm913, %v2507, 0.0
        %v2561 = vadd.f32 %v2559, %v2560
        %v2562 = vrot.slane %v2561, 4
        %v2563 = vadd.f32 %v2561, %v2562
        %v2564 = vrot.slane %v2563, 2
        %v2565 = vadd.f32 %v2563, %v2564
        %v2566 = vrot.slane %v2565, 1
        %v2567 = vadd.f32 %v2565, %v2566
        %v2568 = vsel %vm913, %v2508, 0.0
        %v2569 = vsel %vm913, %v2509, 0.0
        %v2570 = vadd.f32 %v2568, %v2569
        %v2571 = vrot.slane %v2570, 4
        %v2572 = vadd.f32 %v2570, %v2571
        %v2573 = vrot.slane %v2572, 2
        %v2574 = vadd.f32 %v2572, %v2573
        %v2575 = vrot.slane %v2574, 1
        %v2576 = vadd.f32 %v2574, %v2575
        %v2577 = vsel %vm913, %v2510, 0.0
        %v2578 = vsel %vm913, %v2511, 0.0
        %v2579 = vadd.f32 %v2577, %v2578
        %v2580 = vrot.slane %v2579, 4
        %v2581 = vadd.f32 %v2579, %v2580
        %v2582 = vrot.slane %v2581, 2
        %v2583 = vadd.f32 %v2581, %v2582
        %v2584 = vrot.slane %v2583, 1
        %v2585 = vadd.f32 %v2583, %v2584
        %v2586 = vsel %vm913, %v2512, 0.0
        %v2587 = vsel %vm913, %v2513, 0.0
        %v2588 = vadd.f32 %v2586, %v2587
        %v2589 = vrot.slane %v2588, 4
        %v2590 = vadd.f32 %v2588, %v2589
        %v2591 = vrot.slane %v2590, 2
        %v2592 = vadd.f32 %v2590, %v2591
        %v2593 = vrot.slane %v2592, 1
        %v2594 = vadd.f32 %v2592, %v2593
        %v2595 = vsel %vm913, %v2514, 0.0
        %v2596 = vsel %vm913, %v2515, 0.0
        %v2597 = vadd.f32 %v2595, %v2596
        %v2598 = vrot.slane %v2597, 4
        %v2599 = vadd.f32 %v2597, %v2598
        %v2600 = vrot.slane %v2599, 2
        %v2601 = vadd.f32 %v2599, %v2600
        %v2602 = vrot.slane %v2601, 1
        %v2603 = vadd.f32 %v2601, %v2602
        %v2604 = vsel %vm913, %v2516, 0.0
        %v2605 = vsel %vm913, %v2517, 0.0
        %v2606 = vadd.f32 %v2604, %v2605
        %v2607 = vrot.slane %v2606, 4
        %v2608 = vadd.f32 %v2606, %v2607
        %v2609 = vrot.slane %v2608, 2
        %v2610 = vadd.f32 %v2608, %v2609
        %v2611 = vrot.slane %v2610, 1
        %v2612 = vadd.f32 %v2610, %v2611
        %v2613 = vsel %vm913, %v2518, 0.0
        %v2614 = vsel %vm913, %v2519, 0.0
        %v2615 = vadd.f32 %v2613, %v2614
        %v2616 = vrot.slane %v2615, 4
        %v2617 = vadd.f32 %v2615, %v2616
        %v2618 = vrot.slane %v2617, 2
        %v2619 = vadd.f32 %v2617, %v2618
        %v2620 = vrot.slane %v2619, 1
        %v2621 = vadd.f32 %v2619, %v2620
        %v2622 = vsel %vm913, %v2520, 0.0
        %v2623 = vsel %vm913, %v2521, 0.0
        %v2624 = vadd.f32 %v2622, %v2623
        %v2625 = vrot.slane %v2624, 4
        %v2626 = vadd.f32 %v2624, %v2625
        %v2627 = vrot.slane %v2626, 2
        %v2628 = vadd.f32 %v2626, %v2627
        %v2629 = vrot.slane %v2628, 1
        %v2630 = vadd.f32 %v2628, %v2629
        %v2631 = vsel %vm913, %v2522, 0.0
        %v2632 = vsel %vm913, %v2523, 0.0
        %v2633 = vadd.f32 %v2631, %v2632
        %v2634 = vrot.slane %v2633, 4
        %v2635 = vadd.f32 %v2633, %v2634
        %v2636 = vrot.slane %v2635, 2
        %v2637 = vadd.f32 %v2635, %v2636
        %v2638 = vrot.slane %v2637, 1
        %v2639 = vadd.f32 %v2637, %v2638
        %v2640 = vsel %vm913, %v2524, 0.0
        %v2641 = vsel %vm913, %v2525, 0.0
        %v2642 = vadd.f32 %v2640, %v2641
        %v2643 = vrot.slane %v2642, 4
        %v2644 = vadd.f32 %v2642, %v2643
        %v2645 = vrot.slane %v2644, 2
        %v2646 = vadd.f32 %v2644, %v2645
        %v2647 = vrot.slane %v2646, 1
        %v2648 = vadd.f32 %v2646, %v2647
        %v2649 = vsel %vm913, %v2526, 0.0
        %v2650 = vsel %vm913, %v2527, 0.0
        %v2651 = vadd.f32 %v2649, %v2650
        %v2652 = vrot.slane %v2651, 4
        %v2653 = vadd.f32 %v2651, %v2652
        %v2654 = vrot.slane %v2653, 2
        %v2655 = vadd.f32 %v2653, %v2654
        %v2656 = vrot.slane %v2655, 1
        %v2657 = vadd.f32 %v2655, %v2656
        %v2658 = vsel %vm913, %v2528, 0.0
        %v2659 = vsel %vm913, %v2529, 0.0
        %v2660 = vadd.f32 %v2658, %v2659
        %v2661 = vrot.slane %v2660, 4
        %v2662 = vadd.f32 %v2660, %v2661
        %v2663 = vrot.slane %v2662, 2
        %v2664 = vadd.f32 %v2662, %v2663
        %v2665 = vrot.slane %v2664, 1
        %v2666 = vadd.f32 %v2664, %v2665
        %v2667 = vsel %vm913, %v2530, 0.0
        %v2668 = vsel %vm913, %v2531, 0.0
        %v2669 = vadd.f32 %v2667, %v2668
        %v2670 = vrot.slane %v2669, 4
        %v2671 = vadd.f32 %v2669, %v2670
        %v2672 = vrot.slane %v2671, 2
        %v2673 = vadd.f32 %v2671, %v2672
        %v2674 = vrot.slane %v2673, 1
        %v2675 = vadd.f32 %v2673, %v2674
        %2677 = vset.pattern.permute.xlu0 0
        %2678 = vperm.xlu0 %2677, %v2212
        %v2679 = vpop.permute.xlu0 %2678
        %2682 = vset.pattern.permute.xlu0 0
        %2683 = vperm.xlu0 %2682, %v2213
        %v2684 = vpop.permute.xlu0 %2683
        %2687 = vset.pattern.permute.xlu0 0
        %2688 = vperm.xlu0 %2687, %v2214
        %v2689 = vpop.permute.xlu0 %2688
        %2692 = vset.pattern.permute.xlu0 0
        %2693 = vperm.xlu0 %2692, %v2215
        %v2694 = vpop.permute.xlu0 %2693
        %2697 = vset.pattern.permute.xlu0 0
        %2698 = vperm.xlu0 %2697, %v2216
        %v2699 = vpop.permute.xlu0 %2698
        %2702 = vset.pattern.permute.xlu0 0
        %2703 = vperm.xlu0 %2702, %v2217
        %v2704 = vpop.permute.xlu0 %2703
        %2707 = vset.pattern.permute.xlu0 0
        %2708 = vperm.xlu0 %2707, %v2218
        %v2709 = vpop.permute.xlu0 %2708
        %2712 = vset.pattern.permute.xlu0 0
        %2713 = vperm.xlu0 %2712, %v2219
        %v2714 = vpop.permute.xlu0 %2713
        %2717 = vset.pattern.permute.xlu0 0
        %2718 = vperm.xlu0 %2717, %v2220
        %v2719 = vpop.permute.xlu0 %2718
        %2722 = vset.pattern.permute.xlu0 0
        %2723 = vperm.xlu0 %2722, %v2221
        %v2724 = vpop.permute.xlu0 %2723
        %2727 = vset.pattern.permute.xlu0 0
        %2728 = vperm.xlu0 %2727, %v2222
        %v2729 = vpop.permute.xlu0 %2728
        %2732 = vset.pattern.permute.xlu0 0
        %2733 = vperm.xlu0 %2732, %v2223
        %v2734 = vpop.permute.xlu0 %2733
        %2737 = vset.pattern.permute.xlu0 0
        %2738 = vperm.xlu0 %2737, %v2224
        %v2739 = vpop.permute.xlu0 %2738
        %2742 = vset.pattern.permute.xlu0 0
        %2743 = vperm.xlu0 %2742, %v2225
        %v2744 = vpop.permute.xlu0 %2743
        %2747 = vset.pattern.permute.xlu0 0
        %2748 = vperm.xlu0 %2747, %v2226
        %v2749 = vpop.permute.xlu0 %2748
        %2752 = vset.pattern.permute.xlu0 0
        %2753 = vperm.xlu0 %2752, %v2227
        %v2754 = vpop.permute.xlu0 %2753
        %2757 = vset.pattern.permute.xlu0 0
        %2758 = vperm.xlu0 %2757, %v2228
        %v2759 = vpop.permute.xlu0 %2758
        %2762 = vset.pattern.permute.xlu0 0
        %2763 = vperm.xlu0 %2762, %v2229
        %v2764 = vpop.permute.xlu0 %2763
        %2767 = vset.pattern.permute.xlu0 0
        %2768 = vperm.xlu0 %2767, %v2230
        %v2769 = vpop.permute.xlu0 %2768
        %2772 = vset.pattern.permute.xlu0 0
        %2773 = vperm.xlu0 %2772, %v2231
        %v2774 = vpop.permute.xlu0 %2773
        %2777 = vset.pattern.permute.xlu0 0
        %2778 = vperm.xlu0 %2777, %v2232
        %v2779 = vpop.permute.xlu0 %2778
        %2782 = vset.pattern.permute.xlu0 0
        %2783 = vperm.xlu0 %2782, %v2233
        %v2784 = vpop.permute.xlu0 %2783
        %2787 = vset.pattern.permute.xlu0 0
        %2788 = vperm.xlu0 %2787, %v2234
        %v2789 = vpop.permute.xlu0 %2788
        %2792 = vset.pattern.permute.xlu0 0
        %2793 = vperm.xlu0 %2792, %v2235
        %v2794 = vpop.permute.xlu0 %2793
        %2797 = vset.pattern.permute.xlu0 0
        %2798 = vperm.xlu0 %2797, %v2236
        %v2799 = vpop.permute.xlu0 %2798
        %2802 = vset.pattern.permute.xlu0 0
        %2803 = vperm.xlu0 %2802, %v2237
        %v2804 = vpop.permute.xlu0 %2803
        %2807 = vset.pattern.permute.xlu0 0
        %2808 = vperm.xlu0 %2807, %v2238
        %v2809 = vpop.permute.xlu0 %2808
        %2812 = vset.pattern.permute.xlu0 0
        %2813 = vperm.xlu0 %2812, %v2239
        %v2814 = vpop.permute.xlu0 %2813
        %2817 = vset.pattern.permute.xlu0 0
        %2818 = vperm.xlu0 %2817, %v2240
        %v2819 = vpop.permute.xlu0 %2818
        %2822 = vset.pattern.permute.xlu0 0
        %2823 = vperm.xlu0 %2822, %v2241
        %v2824 = vpop.permute.xlu0 %2823
        %2827 = vset.pattern.permute.xlu0 0
        %2828 = vperm.xlu0 %2827, %v2242
        %v2829 = vpop.permute.xlu0 %2828
        %2832 = vset.pattern.permute.xlu0 0
        %2833 = vperm.xlu0 %2832, %v2243
        %v2834 = vpop.permute.xlu0 %2833
        %v2836 = vadd.f32 %v2679, %v2540
        %v2837 = vadd.f32 %v2684, %v2540
        %v2838 = vadd.f32 %v2689, %v2549
        %v2839 = vadd.f32 %v2694, %v2549
        %v2840 = vadd.f32 %v2699, %v2558
        %v2841 = vadd.f32 %v2704, %v2558
        %v2842 = vadd.f32 %v2709, %v2567
        %v2843 = vadd.f32 %v2714, %v2567
        %v2844 = vadd.f32 %v2719, %v2576
        %v2845 = vadd.f32 %v2724, %v2576
        %v2846 = vadd.f32 %v2729, %v2585
        %v2847 = vadd.f32 %v2734, %v2585
        %v2848 = vadd.f32 %v2739, %v2594
        %v2849 = vadd.f32 %v2744, %v2594
        %v2850 = vadd.f32 %v2749, %v2603
        %v2851 = vadd.f32 %v2754, %v2603
        %v2852 = vadd.f32 %v2759, %v2612
        %v2853 = vadd.f32 %v2764, %v2612
        %v2854 = vadd.f32 %v2769, %v2621
        %v2855 = vadd.f32 %v2774, %v2621
        %v2856 = vadd.f32 %v2779, %v2630
        %v2857 = vadd.f32 %v2784, %v2630
        %v2858 = vadd.f32 %v2789, %v2639
        %v2859 = vadd.f32 %v2794, %v2639
        %v2860 = vadd.f32 %v2799, %v2648
        %v2861 = vadd.f32 %v2804, %v2648
        %v2862 = vadd.f32 %v2809, %v2657
        %v2863 = vadd.f32 %v2814, %v2657
        %v2864 = vadd.f32 %v2819, %v2666
        %v2865 = vadd.f32 %v2824, %v2666
        %v2866 = vadd.f32 %v2829, %v2675
        %v2867 = vadd.f32 %v2834, %v2675
        %vm2868 = vcmp.ge.f32.partialorder %v2836, 0.0
        %vm2869 = vcmp.ge.f32.partialorder %v2837, 0.0
        %vm2870 = vcmp.ge.f32.partialorder %v2838, 0.0
        %vm2871 = vcmp.ge.f32.partialorder %v2839, 0.0
        %vm2872 = vcmp.ge.f32.partialorder %v2840, 0.0
        %vm2873 = vcmp.ge.f32.partialorder %v2841, 0.0
        %vm2874 = vcmp.ge.f32.partialorder %v2842, 0.0
        %vm2875 = vcmp.ge.f32.partialorder %v2843, 0.0
        %vm2876 = vcmp.ge.f32.partialorder %v2844, 0.0
        %vm2877 = vcmp.ge.f32.partialorder %v2845, 0.0
        %vm2878 = vcmp.ge.f32.partialorder %v2846, 0.0
        %vm2879 = vcmp.ge.f32.partialorder %v2847, 0.0
        %vm2880 = vcmp.ge.f32.partialorder %v2848, 0.0
        %vm2881 = vcmp.ge.f32.partialorder %v2849, 0.0
        %vm2882 = vcmp.ge.f32.partialorder %v2850, 0.0
        %vm2883 = vcmp.ge.f32.partialorder %v2851, 0.0
        %vm2884 = vcmp.ge.f32.partialorder %v2852, 0.0
        %vm2885 = vcmp.ge.f32.partialorder %v2853, 0.0
        %vm2886 = vcmp.ge.f32.partialorder %v2854, 0.0
        %vm2887 = vcmp.ge.f32.partialorder %v2855, 0.0
        %vm2888 = vcmp.ge.f32.partialorder %v2856, 0.0
        %vm2889 = vcmp.ge.f32.partialorder %v2857, 0.0
        %vm2890 = vcmp.ge.f32.partialorder %v2858, 0.0
        %vm2891 = vcmp.ge.f32.partialorder %v2859, 0.0
        %vm2892 = vcmp.ge.f32.partialorder %v2860, 0.0
        %vm2893 = vcmp.ge.f32.partialorder %v2861, 0.0
        %vm2894 = vcmp.ge.f32.partialorder %v2862, 0.0
        %vm2895 = vcmp.ge.f32.partialorder %v2863, 0.0
        %vm2896 = vcmp.ge.f32.partialorder %v2864, 0.0
        %vm2897 = vcmp.ge.f32.partialorder %v2865, 0.0
        %vm2898 = vcmp.ge.f32.partialorder %v2866, 0.0
        %vm2899 = vcmp.ge.f32.partialorder %v2867, 0.0
        %v2900 = vmul.f32 %v2836, 0.2
        %v2901 = vmul.f32 %v2837, 0.2
        %v2902 = vmul.f32 %v2838, 0.2
        %v2903 = vmul.f32 %v2839, 0.2
        %v2904 = vmul.f32 %v2840, 0.2
        %v2905 = vmul.f32 %v2841, 0.2
        %v2906 = vmul.f32 %v2842, 0.2
        %v2907 = vmul.f32 %v2843, 0.2
        %v2908 = vmul.f32 %v2844, 0.2
        %v2909 = vmul.f32 %v2845, 0.2
        %v2910 = vmul.f32 %v2846, 0.2
        %v2911 = vmul.f32 %v2847, 0.2
        %v2912 = vmul.f32 %v2848, 0.2
        %v2913 = vmul.f32 %v2849, 0.2
        %v2914 = vmul.f32 %v2850, 0.2
        %v2915 = vmul.f32 %v2851, 0.2
        %v2916 = vmul.f32 %v2852, 0.2
        %v2917 = vmul.f32 %v2853, 0.2
        %v2918 = vmul.f32 %v2854, 0.2
        %v2919 = vmul.f32 %v2855, 0.2
        %v2920 = vmul.f32 %v2856, 0.2
        %v2921 = vmul.f32 %v2857, 0.2
        %v2922 = vmul.f32 %v2858, 0.2
        %v2923 = vmul.f32 %v2859, 0.2
        %v2924 = vmul.f32 %v2860, 0.2
        %v2925 = vmul.f32 %v2861, 0.2
        %v2926 = vmul.f32 %v2862, 0.2
        %v2927 = vmul.f32 %v2863, 0.2
        %v2928 = vmul.f32 %v2864, 0.2
        %v2929 = vmul.f32 %v2865, 0.2
        %v2930 = vmul.f32 %v2866, 0.2
        %v2931 = vmul.f32 %v2867, 0.2
        %v2932 = vsel %vm2868, %v2836, %v2900
        %v2933 = vsel %vm2869, %v2837, %v2901
        %v2934 = vsel %vm2870, %v2838, %v2902
        %v2935 = vsel %vm2871, %v2839, %v2903
        %v2936 = vsel %vm2872, %v2840, %v2904
        %v2937 = vsel %vm2873, %v2841, %v2905
        %v2938 = vsel %vm2874, %v2842, %v2906
        %v2939 = vsel %vm2875, %v2843, %v2907
        %v2940 = vsel %vm2876, %v2844, %v2908
        %v2941 = vsel %vm2877, %v2845, %v2909
        %v2942 = vsel %vm2878, %v2846, %v2910
        %v2943 = vsel %vm2879, %v2847, %v2911
        %v2944 = vsel %vm2880, %v2848, %v2912
        %v2945 = vsel %vm2881, %v2849, %v2913
        %v2946 = vsel %vm2882, %v2850, %v2914
        %v2947 = vsel %vm2883, %v2851, %v2915
        %v2948 = vsel %vm2884, %v2852, %v2916
        %v2949 = vsel %vm2885, %v2853, %v2917
        %v2950 = vsel %vm2886, %v2854, %v2918
        %v2951 = vsel %vm2887, %v2855, %v2919
        %v2952 = vsel %vm2888, %v2856, %v2920
        %v2953 = vsel %vm2889, %v2857, %v2921
        %v2954 = vsel %vm2890, %v2858, %v2922
        %v2955 = vsel %vm2891, %v2859, %v2923
        %v2956 = vsel %vm2892, %v2860, %v2924
        %v2957 = vsel %vm2893, %v2861, %v2925
        %v2958 = vsel %vm2894, %v2862, %v2926
        %v2959 = vsel %vm2895, %v2863, %v2927
        %v2960 = vsel %vm2896, %v2864, %v2928
        %v2961 = vsel %vm2897, %v2865, %v2929
        %v2962 = vsel %vm2898, %v2866, %v2930
        %v2963 = vsel %vm2899, %v2867, %v2931
        %v2964 = vmul.f32 %v1378, %v2932
        %v2965 = vmul.f32 %v1378, %v2933
        %v2966 = vmul.f32 %v1378, %v2934
        %v2967 = vmul.f32 %v1378, %v2935
        %v2968 = vmul.f32 %v1378, %v2936
        %v2969 = vmul.f32 %v1378, %v2937
        %v2970 = vmul.f32 %v1378, %v2938
        %v2971 = vmul.f32 %v1378, %v2939
        %v2972 = vmul.f32 %v1378, %v2940
        %v2973 = vmul.f32 %v1378, %v2941
        %v2974 = vmul.f32 %v1378, %v2942
        %v2975 = vmul.f32 %v1378, %v2943
        %v2976 = vmul.f32 %v1378, %v2944
        %v2977 = vmul.f32 %v1378, %v2945
        %v2978 = vmul.f32 %v1378, %v2946
        %v2979 = vmul.f32 %v1378, %v2947
        %v2980 = vmul.f32 %v1378, %v2948
        %v2981 = vmul.f32 %v1378, %v2949
        %v2982 = vmul.f32 %v1378, %v2950
        %v2983 = vmul.f32 %v1378, %v2951
        %v2984 = vmul.f32 %v1378, %v2952
        %v2985 = vmul.f32 %v1378, %v2953
        %v2986 = vmul.f32 %v1378, %v2954
        %v2987 = vmul.f32 %v1378, %v2955
        %v2988 = vmul.f32 %v1378, %v2956
        %v2989 = vmul.f32 %v1378, %v2957
        %v2990 = vmul.f32 %v1378, %v2958
        %v2991 = vmul.f32 %v1378, %v2959
        %v2992 = vmul.f32 %v1378, %v2960
        %v2993 = vmul.f32 %v1378, %v2961
        %v2994 = vmul.f32 %v1378, %v2962
        %v2995 = vmul.f32 %v1378, %v2963
        %v2996 = vsel %vm1346, %v2964, -1e+30
        %v2997 = vsel %vm1347, %v2965, -1e+30
        %v2998 = vsel %vm1348, %v2966, -1e+30
        %v2999 = vsel %vm1349, %v2967, -1e+30
        %v3000 = vsel %vm1350, %v2968, -1e+30
        %v3001 = vsel %vm1351, %v2969, -1e+30
        %v3002 = vsel %vm1352, %v2970, -1e+30
        %v3003 = vsel %vm1353, %v2971, -1e+30
        %v3004 = vsel %vm1354, %v2972, -1e+30
        %v3005 = vsel %vm1355, %v2973, -1e+30
        %v3006 = vsel %vm1356, %v2974, -1e+30
        %v3007 = vsel %vm1357, %v2975, -1e+30
        %v3008 = vsel %vm1358, %v2976, -1e+30
        %v3009 = vsel %vm1359, %v2977, -1e+30
        %v3010 = vsel %vm1360, %v2978, -1e+30
        %v3011 = vsel %vm1361, %v2979, -1e+30
        %v3012 = vsel %vm1362, %v2980, -1e+30
        %v3013 = vsel %vm1363, %v2981, -1e+30
        %v3014 = vsel %vm1364, %v2982, -1e+30
        %v3015 = vsel %vm1365, %v2983, -1e+30
        %v3016 = vsel %vm1366, %v2984, -1e+30
        %v3017 = vsel %vm1367, %v2985, -1e+30
        %v3018 = vsel %vm1368, %v2986, -1e+30
        %v3019 = vsel %vm1369, %v2987, -1e+30
        %v3020 = vsel %vm1370, %v2988, -1e+30
        %v3021 = vsel %vm1371, %v2989, -1e+30
        %v3022 = vsel %vm1372, %v2990, -1e+30
        %v3023 = vsel %vm1373, %v2991, -1e+30
        %v3024 = vsel %vm1374, %v2992, -1e+30
        %v3025 = vsel %vm1375, %v2993, -1e+30
        %v3026 = vsel %vm1376, %v2994, -1e+30
        %v3027 = vsel %vm1377, %v2995, -1e+30
        %v3028 = vsel %vm913, %v2996, -inf
        %v3029 = vsel %vm913, %v2997, -inf
        %v3030 = vmax.f32 %v3028, %v3029
        %v3031 = vrot.slane %v3030, 4
        %v3032 = vmax.f32 %v3030, %v3031
        %v3033 = vrot.slane %v3032, 2
        %v3034 = vmax.f32 %v3032, %v3033
        %v3035 = vrot.slane %v3034, 1
        %v3036 = vmax.f32 %v3034, %v3035
        %v3037 = vsel %vm913, %v2998, -inf
        %v3038 = vsel %vm913, %v2999, -inf
        %v3039 = vmax.f32 %v3037, %v3038
        %v3040 = vrot.slane %v3039, 4
        %v3041 = vmax.f32 %v3039, %v3040
        %v3042 = vrot.slane %v3041, 2
        %v3043 = vmax.f32 %v3041, %v3042
        %v3044 = vrot.slane %v3043, 1
        %v3045 = vmax.f32 %v3043, %v3044
        %v3046 = vsel %vm913, %v3000, -inf
        %v3047 = vsel %vm913, %v3001, -inf
        %v3048 = vmax.f32 %v3046, %v3047
        %v3049 = vrot.slane %v3048, 4
        %v3050 = vmax.f32 %v3048, %v3049
        %v3051 = vrot.slane %v3050, 2
        %v3052 = vmax.f32 %v3050, %v3051
        %v3053 = vrot.slane %v3052, 1
        %v3054 = vmax.f32 %v3052, %v3053
        %v3055 = vsel %vm913, %v3002, -inf
        %v3056 = vsel %vm913, %v3003, -inf
        %v3057 = vmax.f32 %v3055, %v3056
        %v3058 = vrot.slane %v3057, 4
        %v3059 = vmax.f32 %v3057, %v3058
        %v3060 = vrot.slane %v3059, 2
        %v3061 = vmax.f32 %v3059, %v3060
        %v3062 = vrot.slane %v3061, 1
        %v3063 = vmax.f32 %v3061, %v3062
        %v3064 = vsel %vm913, %v3004, -inf
        %v3065 = vsel %vm913, %v3005, -inf
        %v3066 = vmax.f32 %v3064, %v3065
        %v3067 = vrot.slane %v3066, 4
        %v3068 = vmax.f32 %v3066, %v3067
        %v3069 = vrot.slane %v3068, 2
        %v3070 = vmax.f32 %v3068, %v3069
        %v3071 = vrot.slane %v3070, 1
        %v3072 = vmax.f32 %v3070, %v3071
        %v3073 = vsel %vm913, %v3006, -inf
        %v3074 = vsel %vm913, %v3007, -inf
        %v3075 = vmax.f32 %v3073, %v3074
        %v3076 = vrot.slane %v3075, 4
        %v3077 = vmax.f32 %v3075, %v3076
        %v3078 = vrot.slane %v3077, 2
        %v3079 = vmax.f32 %v3077, %v3078
        %v3080 = vrot.slane %v3079, 1
        %v3081 = vmax.f32 %v3079, %v3080
        %v3082 = vsel %vm913, %v3008, -inf
        %v3083 = vsel %vm913, %v3009, -inf
        %v3084 = vmax.f32 %v3082, %v3083
        %v3085 = vrot.slane %v3084, 4
        %v3086 = vmax.f32 %v3084, %v3085
        %v3087 = vrot.slane %v3086, 2
        %v3088 = vmax.f32 %v3086, %v3087
        %v3089 = vrot.slane %v3088, 1
        %v3090 = vmax.f32 %v3088, %v3089
        %v3091 = vsel %vm913, %v3010, -inf
        %v3092 = vsel %vm913, %v3011, -inf
        %v3093 = vmax.f32 %v3091, %v3092
        %v3094 = vrot.slane %v3093, 4
        %v3095 = vmax.f32 %v3093, %v3094
        %v3096 = vrot.slane %v3095, 2
        %v3097 = vmax.f32 %v3095, %v3096
        %v3098 = vrot.slane %v3097, 1
        %v3099 = vmax.f32 %v3097, %v3098
        %v3100 = vsel %vm913, %v3012, -inf
        %v3101 = vsel %vm913, %v3013, -inf
        %v3102 = vmax.f32 %v3100, %v3101
        %v3103 = vrot.slane %v3102, 4
        %v3104 = vmax.f32 %v3102, %v3103
        %v3105 = vrot.slane %v3104, 2
        %v3106 = vmax.f32 %v3104, %v3105
        %v3107 = vrot.slane %v3106, 1
        %v3108 = vmax.f32 %v3106, %v3107
        %v3109 = vsel %vm913, %v3014, -inf
        %v3110 = vsel %vm913, %v3015, -inf
        %v3111 = vmax.f32 %v3109, %v3110
        %v3112 = vrot.slane %v3111, 4
        %v3113 = vmax.f32 %v3111, %v3112
        %v3114 = vrot.slane %v3113, 2
        %v3115 = vmax.f32 %v3113, %v3114
        %v3116 = vrot.slane %v3115, 1
        %v3117 = vmax.f32 %v3115, %v3116
        %v3118 = vsel %vm913, %v3016, -inf
        %v3119 = vsel %vm913, %v3017, -inf
        %v3120 = vmax.f32 %v3118, %v3119
        %v3121 = vrot.slane %v3120, 4
        %v3122 = vmax.f32 %v3120, %v3121
        %v3123 = vrot.slane %v3122, 2
        %v3124 = vmax.f32 %v3122, %v3123
        %v3125 = vrot.slane %v3124, 1
        %v3126 = vmax.f32 %v3124, %v3125
        %v3127 = vsel %vm913, %v3018, -inf
        %v3128 = vsel %vm913, %v3019, -inf
        %v3129 = vmax.f32 %v3127, %v3128
        %v3130 = vrot.slane %v3129, 4
        %v3131 = vmax.f32 %v3129, %v3130
        %v3132 = vrot.slane %v3131, 2
        %v3133 = vmax.f32 %v3131, %v3132
        %v3134 = vrot.slane %v3133, 1
        %v3135 = vmax.f32 %v3133, %v3134
        %v3136 = vsel %vm913, %v3020, -inf
        %v3137 = vsel %vm913, %v3021, -inf
        %v3138 = vmax.f32 %v3136, %v3137
        %v3139 = vrot.slane %v3138, 4
        %v3140 = vmax.f32 %v3138, %v3139
        %v3141 = vrot.slane %v3140, 2
        %v3142 = vmax.f32 %v3140, %v3141
        %v3143 = vrot.slane %v3142, 1
        %v3144 = vmax.f32 %v3142, %v3143
        %v3145 = vsel %vm913, %v3022, -inf
        %v3146 = vsel %vm913, %v3023, -inf
        %v3147 = vmax.f32 %v3145, %v3146
        %v3148 = vrot.slane %v3147, 4
        %v3149 = vmax.f32 %v3147, %v3148
        %v3150 = vrot.slane %v3149, 2
        %v3151 = vmax.f32 %v3149, %v3150
        %v3152 = vrot.slane %v3151, 1
        %v3153 = vmax.f32 %v3151, %v3152
        %v3154 = vsel %vm913, %v3024, -inf
        %v3155 = vsel %vm913, %v3025, -inf
        %v3156 = vmax.f32 %v3154, %v3155
        %v3157 = vrot.slane %v3156, 4
        %v3158 = vmax.f32 %v3156, %v3157
        %v3159 = vrot.slane %v3158, 2
        %v3160 = vmax.f32 %v3158, %v3159
        %v3161 = vrot.slane %v3160, 1
        %v3162 = vmax.f32 %v3160, %v3161
        %v3163 = vsel %vm913, %v3026, -inf
        %v3164 = vsel %vm913, %v3027, -inf
        %v3165 = vmax.f32 %v3163, %v3164
        %v3166 = vrot.slane %v3165, 4
        %v3167 = vmax.f32 %v3165, %v3166
        %v3168 = vrot.slane %v3167, 2
        %v3169 = vmax.f32 %v3167, %v3168
        %v3170 = vrot.slane %v3169, 1
        %v3171 = vmax.f32 %v3169, %v3170
        %v3172 = vsub.f32 %v2996, %v3036
        %v3173 = vsub.f32 %v2997, %v3036
        %v3174 = vsub.f32 %v2998, %v3045
        %v3175 = vsub.f32 %v2999, %v3045
        %v3176 = vsub.f32 %v3000, %v3054
        %v3177 = vsub.f32 %v3001, %v3054
        %v3178 = vsub.f32 %v3002, %v3063
        %v3179 = vsub.f32 %v3003, %v3063
        %v3180 = vsub.f32 %v3004, %v3072
        %v3181 = vsub.f32 %v3005, %v3072
        %v3182 = vsub.f32 %v3006, %v3081
        %v3183 = vsub.f32 %v3007, %v3081
        %v3184 = vsub.f32 %v3008, %v3090
        %v3185 = vsub.f32 %v3009, %v3090
        %v3186 = vsub.f32 %v3010, %v3099
        %v3187 = vsub.f32 %v3011, %v3099
        %v3188 = vsub.f32 %v3012, %v3108
        %v3189 = vsub.f32 %v3013, %v3108
        %v3190 = vsub.f32 %v3014, %v3117
        %v3191 = vsub.f32 %v3015, %v3117
        %v3192 = vsub.f32 %v3016, %v3126
        %v3193 = vsub.f32 %v3017, %v3126
        %v3194 = vsub.f32 %v3018, %v3135
        %v3195 = vsub.f32 %v3019, %v3135
        %v3196 = vsub.f32 %v3020, %v3144
        %v3197 = vsub.f32 %v3021, %v3144
        %v3198 = vsub.f32 %v3022, %v3153
        %v3199 = vsub.f32 %v3023, %v3153
        %v3200 = vsub.f32 %v3024, %v3162
        %v3201 = vsub.f32 %v3025, %v3162
        %v3202 = vsub.f32 %v3026, %v3171
        %v3203 = vsub.f32 %v3027, %v3171
        %v3204 = vmul.f32 %v3172, 1.442695
        %v3205 = vpow.pop %v3204
        %v3206 = vmul.f32 %v3173, 1.442695
        %v3207 = vpow.pop %v3206
        %v3208 = vmul.f32 %v3174, 1.442695
        %v3209 = vpow.pop %v3208
        %v3210 = vmul.f32 %v3175, 1.442695
        %v3211 = vpow.pop %v3210
        %v3212 = vmul.f32 %v3176, 1.442695
        %v3213 = vpow.pop %v3212
        %v3214 = vmul.f32 %v3177, 1.442695
        %v3215 = vpow.pop %v3214
        %v3216 = vmul.f32 %v3178, 1.442695
        %v3217 = vpow.pop %v3216
        %v3218 = vmul.f32 %v3179, 1.442695
        %v3219 = vpow.pop %v3218
        %v3220 = vmul.f32 %v3180, 1.442695
        %v3221 = vpow.pop %v3220
        %v3222 = vmul.f32 %v3181, 1.442695
        %v3223 = vpow.pop %v3222
        %v3224 = vmul.f32 %v3182, 1.442695
        %v3225 = vpow.pop %v3224
        %v3226 = vmul.f32 %v3183, 1.442695
        %v3227 = vpow.pop %v3226
        %v3228 = vmul.f32 %v3184, 1.442695
        %v3229 = vpow.pop %v3228
        %v3230 = vmul.f32 %v3185, 1.442695
        %v3231 = vpow.pop %v3230
        %v3232 = vmul.f32 %v3186, 1.442695
        %v3233 = vpow.pop %v3232
        %v3234 = vmul.f32 %v3187, 1.442695
        %v3235 = vpow.pop %v3234
        %v3236 = vmul.f32 %v3188, 1.442695
        %v3237 = vpow.pop %v3236
        %v3238 = vmul.f32 %v3189, 1.442695
        %v3239 = vpow.pop %v3238
        %v3240 = vmul.f32 %v3190, 1.442695
        %v3241 = vpow.pop %v3240
        %v3242 = vmul.f32 %v3191, 1.442695
        %v3243 = vpow.pop %v3242
        %v3244 = vmul.f32 %v3192, 1.442695
        %v3245 = vpow.pop %v3244
        %v3246 = vmul.f32 %v3193, 1.442695
        %v3247 = vpow.pop %v3246
        %v3248 = vmul.f32 %v3194, 1.442695
        %v3249 = vpow.pop %v3248
        %v3250 = vmul.f32 %v3195, 1.442695
        %v3251 = vpow.pop %v3250
        %v3252 = vmul.f32 %v3196, 1.442695
        %v3253 = vpow.pop %v3252
        %v3254 = vmul.f32 %v3197, 1.442695
        %v3255 = vpow.pop %v3254
        %v3256 = vmul.f32 %v3198, 1.442695
        %v3257 = vpow.pop %v3256
        %v3258 = vmul.f32 %v3199, 1.442695
        %v3259 = vpow.pop %v3258
        %v3260 = vmul.f32 %v3200, 1.442695
        %v3261 = vpow.pop %v3260
        %v3262 = vmul.f32 %v3201, 1.442695
        %v3263 = vpow.pop %v3262
        %v3264 = vmul.f32 %v3202, 1.442695
        %v3265 = vpow.pop %v3264
        %v3266 = vmul.f32 %v3203, 1.442695
        %v3267 = vpow.pop %v3266
        %v3268 = vsel %vm913, %v3205, 0.0
        %v3269 = vsel %vm913, %v3207, 0.0
        %v3270 = vadd.f32 %v3268, %v3269
        %v3271 = vrot.slane %v3270, 4
        %v3272 = vadd.f32 %v3270, %v3271
        %v3273 = vrot.slane %v3272, 2
        %v3274 = vadd.f32 %v3272, %v3273
        %v3275 = vrot.slane %v3274, 1
        %v3276 = vadd.f32 %v3274, %v3275
        %v3277 = vsel %vm913, %v3209, 0.0
        %v3278 = vsel %vm913, %v3211, 0.0
        %v3279 = vadd.f32 %v3277, %v3278
        %v3280 = vrot.slane %v3279, 4
        %v3281 = vadd.f32 %v3279, %v3280
        %v3282 = vrot.slane %v3281, 2
        %v3283 = vadd.f32 %v3281, %v3282
        %v3284 = vrot.slane %v3283, 1
        %v3285 = vadd.f32 %v3283, %v3284
        %v3286 = vsel %vm913, %v3213, 0.0
        %v3287 = vsel %vm913, %v3215, 0.0
        %v3288 = vadd.f32 %v3286, %v3287
        %v3289 = vrot.slane %v3288, 4
        %v3290 = vadd.f32 %v3288, %v3289
        %v3291 = vrot.slane %v3290, 2
        %v3292 = vadd.f32 %v3290, %v3291
        %v3293 = vrot.slane %v3292, 1
        %v3294 = vadd.f32 %v3292, %v3293
        %v3295 = vsel %vm913, %v3217, 0.0
        %v3296 = vsel %vm913, %v3219, 0.0
        %v3297 = vadd.f32 %v3295, %v3296
        %v3298 = vrot.slane %v3297, 4
        %v3299 = vadd.f32 %v3297, %v3298
        %v3300 = vrot.slane %v3299, 2
        %v3301 = vadd.f32 %v3299, %v3300
        %v3302 = vrot.slane %v3301, 1
        %v3303 = vadd.f32 %v3301, %v3302
        %v3304 = vsel %vm913, %v3221, 0.0
        %v3305 = vsel %vm913, %v3223, 0.0
        %v3306 = vadd.f32 %v3304, %v3305
        %v3307 = vrot.slane %v3306, 4
        %v3308 = vadd.f32 %v3306, %v3307
        %v3309 = vrot.slane %v3308, 2
        %v3310 = vadd.f32 %v3308, %v3309
        %v3311 = vrot.slane %v3310, 1
        %v3312 = vadd.f32 %v3310, %v3311
        %v3313 = vsel %vm913, %v3225, 0.0
        %v3314 = vsel %vm913, %v3227, 0.0
        %v3315 = vadd.f32 %v3313, %v3314
        %v3316 = vrot.slane %v3315, 4
        %v3317 = vadd.f32 %v3315, %v3316
        %v3318 = vrot.slane %v3317, 2
        %v3319 = vadd.f32 %v3317, %v3318
        %v3320 = vrot.slane %v3319, 1
        %v3321 = vadd.f32 %v3319, %v3320
        %v3322 = vsel %vm913, %v3229, 0.0
        %v3323 = vsel %vm913, %v3231, 0.0
        %v3324 = vadd.f32 %v3322, %v3323
        %v3325 = vrot.slane %v3324, 4
        %v3326 = vadd.f32 %v3324, %v3325
        %v3327 = vrot.slane %v3326, 2
        %v3328 = vadd.f32 %v3326, %v3327
        %v3329 = vrot.slane %v3328, 1
        %v3330 = vadd.f32 %v3328, %v3329
        %v3331 = vsel %vm913, %v3233, 0.0
        %v3332 = vsel %vm913, %v3235, 0.0
        %v3333 = vadd.f32 %v3331, %v3332
        %v3334 = vrot.slane %v3333, 4
        %v3335 = vadd.f32 %v3333, %v3334
        %v3336 = vrot.slane %v3335, 2
        %v3337 = vadd.f32 %v3335, %v3336
        %v3338 = vrot.slane %v3337, 1
        %v3339 = vadd.f32 %v3337, %v3338
        %v3340 = vsel %vm913, %v3237, 0.0
        %v3341 = vsel %vm913, %v3239, 0.0
        %v3342 = vadd.f32 %v3340, %v3341
        %v3343 = vrot.slane %v3342, 4
        %v3344 = vadd.f32 %v3342, %v3343
        %v3345 = vrot.slane %v3344, 2
        %v3346 = vadd.f32 %v3344, %v3345
        %v3347 = vrot.slane %v3346, 1
        %v3348 = vadd.f32 %v3346, %v3347
        %v3349 = vsel %vm913, %v3241, 0.0
        %v3350 = vsel %vm913, %v3243, 0.0
        %v3351 = vadd.f32 %v3349, %v3350
        %v3352 = vrot.slane %v3351, 4
        %v3353 = vadd.f32 %v3351, %v3352
        %v3354 = vrot.slane %v3353, 2
        %v3355 = vadd.f32 %v3353, %v3354
        %v3356 = vrot.slane %v3355, 1
        %v3357 = vadd.f32 %v3355, %v3356
        %v3358 = vsel %vm913, %v3245, 0.0
        %v3359 = vsel %vm913, %v3247, 0.0
        %v3360 = vadd.f32 %v3358, %v3359
        %v3361 = vrot.slane %v3360, 4
        %v3362 = vadd.f32 %v3360, %v3361
        %v3363 = vrot.slane %v3362, 2
        %v3364 = vadd.f32 %v3362, %v3363
        %v3365 = vrot.slane %v3364, 1
        %v3366 = vadd.f32 %v3364, %v3365
        %v3367 = vsel %vm913, %v3249, 0.0
        %v3368 = vsel %vm913, %v3251, 0.0
        %v3369 = vadd.f32 %v3367, %v3368
        %v3370 = vrot.slane %v3369, 4
        %v3371 = vadd.f32 %v3369, %v3370
        %v3372 = vrot.slane %v3371, 2
        %v3373 = vadd.f32 %v3371, %v3372
        %v3374 = vrot.slane %v3373, 1
        %v3375 = vadd.f32 %v3373, %v3374
        %v3376 = vsel %vm913, %v3253, 0.0
        %v3377 = vsel %vm913, %v3255, 0.0
        %v3378 = vadd.f32 %v3376, %v3377
        %v3379 = vrot.slane %v3378, 4
        %v3380 = vadd.f32 %v3378, %v3379
        %v3381 = vrot.slane %v3380, 2
        %v3382 = vadd.f32 %v3380, %v3381
        %v3383 = vrot.slane %v3382, 1
        %v3384 = vadd.f32 %v3382, %v3383
        %v3385 = vsel %vm913, %v3257, 0.0
        %v3386 = vsel %vm913, %v3259, 0.0
        %v3387 = vadd.f32 %v3385, %v3386
        %v3388 = vrot.slane %v3387, 4
        %v3389 = vadd.f32 %v3387, %v3388
        %v3390 = vrot.slane %v3389, 2
        %v3391 = vadd.f32 %v3389, %v3390
        %v3392 = vrot.slane %v3391, 1
        %v3393 = vadd.f32 %v3391, %v3392
        %v3394 = vsel %vm913, %v3261, 0.0
        %v3395 = vsel %vm913, %v3263, 0.0
        %v3396 = vadd.f32 %v3394, %v3395
        %v3397 = vrot.slane %v3396, 4
        %v3398 = vadd.f32 %v3396, %v3397
        %v3399 = vrot.slane %v3398, 2
        %v3400 = vadd.f32 %v3398, %v3399
        %v3401 = vrot.slane %v3400, 1
        %v3402 = vadd.f32 %v3400, %v3401
        %v3403 = vsel %vm913, %v3265, 0.0
        %v3404 = vsel %vm913, %v3267, 0.0
        %v3405 = vadd.f32 %v3403, %v3404
        %v3406 = vrot.slane %v3405, 4
        %v3407 = vadd.f32 %v3405, %v3406
        %v3408 = vrot.slane %v3407, 2
        %v3409 = vadd.f32 %v3407, %v3408
        %v3410 = vrot.slane %v3409, 1
        %v3411 = vadd.f32 %v3409, %v3410
        %v3412 = vrcp.pop %v3276
        %v3413 = vrcp.pop %v3285
        %v3414 = vrcp.pop %v3294
        %v3415 = vrcp.pop %v3303
        %v3416 = vrcp.pop %v3312
        %v3417 = vrcp.pop %v3321
        %v3418 = vrcp.pop %v3330
        %v3419 = vrcp.pop %v3339
        %v3420 = vrcp.pop %v3348
        %v3421 = vrcp.pop %v3357
        %v3422 = vrcp.pop %v3366
        %v3423 = vrcp.pop %v3375
        %v3424 = vrcp.pop %v3384
        %v3425 = vrcp.pop %v3393
        %v3426 = vrcp.pop %v3402
        %v3427 = vrcp.pop %v3411
        %v3428 = vmul.f32 %v3276, %v3412
        %v3429 = vmul.f32 %v3285, %v3413
        %v3430 = vmul.f32 %v3294, %v3414
        %v3431 = vmul.f32 %v3303, %v3415
        %v3432 = vmul.f32 %v3312, %v3416
        %v3433 = vmul.f32 %v3321, %v3417
        %v3434 = vmul.f32 %v3330, %v3418
        %v3435 = vmul.f32 %v3339, %v3419
        %v3436 = vmul.f32 %v3348, %v3420
        %v3437 = vmul.f32 %v3357, %v3421
        %v3438 = vmul.f32 %v3366, %v3422
        %v3439 = vmul.f32 %v3375, %v3423
        %v3440 = vmul.f32 %v3384, %v3424
        %v3441 = vmul.f32 %v3393, %v3425
        %v3442 = vmul.f32 %v3402, %v3426
        %v3443 = vmul.f32 %v3411, %v3427
        %v3444 = vsub.f32 2.0, %v3428
        %v3445 = vsub.f32 2.0, %v3429
        %v3446 = vsub.f32 2.0, %v3430
        %v3447 = vsub.f32 2.0, %v3431
        %v3448 = vsub.f32 2.0, %v3432
        %v3449 = vsub.f32 2.0, %v3433
        %v3450 = vsub.f32 2.0, %v3434
        %v3451 = vsub.f32 2.0, %v3435
        %v3452 = vsub.f32 2.0, %v3436
        %v3453 = vsub.f32 2.0, %v3437
        %v3454 = vsub.f32 2.0, %v3438
        %v3455 = vsub.f32 2.0, %v3439
        %v3456 = vsub.f32 2.0, %v3440
        %v3457 = vsub.f32 2.0, %v3441
        %v3458 = vsub.f32 2.0, %v3442
        %v3459 = vsub.f32 2.0, %v3443
        %v3460 = vmul.f32 %v3412, %v3444
        %v3461 = vmul.f32 %v3413, %v3445
        %v3462 = vmul.f32 %v3414, %v3446
        %v3463 = vmul.f32 %v3415, %v3447
        %v3464 = vmul.f32 %v3416, %v3448
        %v3465 = vmul.f32 %v3417, %v3449
        %v3466 = vmul.f32 %v3418, %v3450
        %v3467 = vmul.f32 %v3419, %v3451
        %v3468 = vmul.f32 %v3420, %v3452
        %v3469 = vmul.f32 %v3421, %v3453
        %v3470 = vmul.f32 %v3422, %v3454
        %v3471 = vmul.f32 %v3423, %v3455
        %v3472 = vmul.f32 %v3424, %v3456
        %v3473 = vmul.f32 %v3425, %v3457
        %v3474 = vmul.f32 %v3426, %v3458
        %v3475 = vmul.f32 %v3427, %v3459
        %v3476 = vmul.f32 %v3205, %v3460
        %v3477 = vmul.f32 %v3207, %v3460
        %v3478 = vmul.f32 %v3209, %v3461
        %v3479 = vmul.f32 %v3211, %v3461
        %v3480 = vmul.f32 %v3213, %v3462
        %v3481 = vmul.f32 %v3215, %v3462
        %v3482 = vmul.f32 %v3217, %v3463
        %v3483 = vmul.f32 %v3219, %v3463
        %v3484 = vmul.f32 %v3221, %v3464
        %v3485 = vmul.f32 %v3223, %v3464
        %v3486 = vmul.f32 %v3225, %v3465
        %v3487 = vmul.f32 %v3227, %v3465
        %v3488 = vmul.f32 %v3229, %v3466
        %v3489 = vmul.f32 %v3231, %v3466
        %v3490 = vmul.f32 %v3233, %v3467
        %v3491 = vmul.f32 %v3235, %v3467
        %v3492 = vmul.f32 %v3237, %v3468
        %v3493 = vmul.f32 %v3239, %v3468
        %v3494 = vmul.f32 %v3241, %v3469
        %v3495 = vmul.f32 %v3243, %v3469
        %v3496 = vmul.f32 %v3245, %v3470
        %v3497 = vmul.f32 %v3247, %v3470
        %v3498 = vmul.f32 %v3249, %v3471
        %v3499 = vmul.f32 %v3251, %v3471
        %v3500 = vmul.f32 %v3253, %v3472
        %v3501 = vmul.f32 %v3255, %v3472
        %v3502 = vmul.f32 %v3257, %v3473
        %v3503 = vmul.f32 %v3259, %v3473
        %v3504 = vmul.f32 %v3261, %v3474
        %v3505 = vmul.f32 %v3263, %v3474
        %v3506 = vmul.f32 %v3265, %v3475
        %v3507 = vmul.f32 %v3267, %v3475
        %v3508 = vmul.f32 %v3476, %v2679
        %v3509 = vmul.f32 %v3477, %v2684
        %v3510 = vmul.f32 %v3478, %v2689
        %v3511 = vmul.f32 %v3479, %v2694
        %v3512 = vmul.f32 %v3480, %v2699
        %v3513 = vmul.f32 %v3481, %v2704
        %v3514 = vmul.f32 %v3482, %v2709
        %v3515 = vmul.f32 %v3483, %v2714
        %v3516 = vmul.f32 %v3484, %v2719
        %v3517 = vmul.f32 %v3485, %v2724
        %v3518 = vmul.f32 %v3486, %v2729
        %v3519 = vmul.f32 %v3487, %v2734
        %v3520 = vmul.f32 %v3488, %v2739
        %v3521 = vmul.f32 %v3489, %v2744
        %v3522 = vmul.f32 %v3490, %v2749
        %v3523 = vmul.f32 %v3491, %v2754
        %v3524 = vmul.f32 %v3492, %v2759
        %v3525 = vmul.f32 %v3493, %v2764
        %v3526 = vmul.f32 %v3494, %v2769
        %v3527 = vmul.f32 %v3495, %v2774
        %v3528 = vmul.f32 %v3496, %v2779
        %v3529 = vmul.f32 %v3497, %v2784
        %v3530 = vmul.f32 %v3498, %v2789
        %v3531 = vmul.f32 %v3499, %v2794
        %v3532 = vmul.f32 %v3500, %v2799
        %v3533 = vmul.f32 %v3501, %v2804
        %v3534 = vmul.f32 %v3502, %v2809
        %v3535 = vmul.f32 %v3503, %v2814
        %v3536 = vmul.f32 %v3504, %v2819
        %v3537 = vmul.f32 %v3505, %v2824
        %v3538 = vmul.f32 %v3506, %v2829
        %v3539 = vmul.f32 %v3507, %v2834
        %v3540 = vsel %vm913, %v3508, 0.0
        %v3541 = vsel %vm913, %v3509, 0.0
        %v3542 = vadd.f32 %v3540, %v3541
        %v3543 = vrot.slane %v3542, 4
        %v3544 = vadd.f32 %v3542, %v3543
        %v3545 = vrot.slane %v3544, 2
        %v3546 = vadd.f32 %v3544, %v3545
        %v3547 = vrot.slane %v3546, 1
        %v3548 = vadd.f32 %v3546, %v3547
        %v3549 = vsel %vm913, %v3510, 0.0
        %v3550 = vsel %vm913, %v3511, 0.0
        %v3551 = vadd.f32 %v3549, %v3550
        %v3552 = vrot.slane %v3551, 4
        %v3553 = vadd.f32 %v3551, %v3552
        %v3554 = vrot.slane %v3553, 2
        %v3555 = vadd.f32 %v3553, %v3554
        %v3556 = vrot.slane %v3555, 1
        %v3557 = vadd.f32 %v3555, %v3556
        %v3558 = vsel %vm913, %v3512, 0.0
        %v3559 = vsel %vm913, %v3513, 0.0
        %v3560 = vadd.f32 %v3558, %v3559
        %v3561 = vrot.slane %v3560, 4
        %v3562 = vadd.f32 %v3560, %v3561
        %v3563 = vrot.slane %v3562, 2
        %v3564 = vadd.f32 %v3562, %v3563
        %v3565 = vrot.slane %v3564, 1
        %v3566 = vadd.f32 %v3564, %v3565
        %v3567 = vsel %vm913, %v3514, 0.0
        %v3568 = vsel %vm913, %v3515, 0.0
        %v3569 = vadd.f32 %v3567, %v3568
        %v3570 = vrot.slane %v3569, 4
        %v3571 = vadd.f32 %v3569, %v3570
        %v3572 = vrot.slane %v3571, 2
        %v3573 = vadd.f32 %v3571, %v3572
        %v3574 = vrot.slane %v3573, 1
        %v3575 = vadd.f32 %v3573, %v3574
        %v3576 = vsel %vm913, %v3516, 0.0
        %v3577 = vsel %vm913, %v3517, 0.0
        %v3578 = vadd.f32 %v3576, %v3577
        %v3579 = vrot.slane %v3578, 4
        %v3580 = vadd.f32 %v3578, %v3579
        %v3581 = vrot.slane %v3580, 2
        %v3582 = vadd.f32 %v3580, %v3581
        %v3583 = vrot.slane %v3582, 1
        %v3584 = vadd.f32 %v3582, %v3583
        %v3585 = vsel %vm913, %v3518, 0.0
        %v3586 = vsel %vm913, %v3519, 0.0
        %v3587 = vadd.f32 %v3585, %v3586
        %v3588 = vrot.slane %v3587, 4
        %v3589 = vadd.f32 %v3587, %v3588
        %v3590 = vrot.slane %v3589, 2
        %v3591 = vadd.f32 %v3589, %v3590
        %v3592 = vrot.slane %v3591, 1
        %v3593 = vadd.f32 %v3591, %v3592
        %v3594 = vsel %vm913, %v3520, 0.0
        %v3595 = vsel %vm913, %v3521, 0.0
        %v3596 = vadd.f32 %v3594, %v3595
        %v3597 = vrot.slane %v3596, 4
        %v3598 = vadd.f32 %v3596, %v3597
        %v3599 = vrot.slane %v3598, 2
        %v3600 = vadd.f32 %v3598, %v3599
        %v3601 = vrot.slane %v3600, 1
        %v3602 = vadd.f32 %v3600, %v3601
        %v3603 = vsel %vm913, %v3522, 0.0
        %v3604 = vsel %vm913, %v3523, 0.0
        %v3605 = vadd.f32 %v3603, %v3604
        %v3606 = vrot.slane %v3605, 4
        %v3607 = vadd.f32 %v3605, %v3606
        %v3608 = vrot.slane %v3607, 2
        %v3609 = vadd.f32 %v3607, %v3608
        %v3610 = vrot.slane %v3609, 1
        %v3611 = vadd.f32 %v3609, %v3610
        %v3612 = vsel %vm913, %v3524, 0.0
        %v3613 = vsel %vm913, %v3525, 0.0
        %v3614 = vadd.f32 %v3612, %v3613
        %v3615 = vrot.slane %v3614, 4
        %v3616 = vadd.f32 %v3614, %v3615
        %v3617 = vrot.slane %v3616, 2
        %v3618 = vadd.f32 %v3616, %v3617
        %v3619 = vrot.slane %v3618, 1
        %v3620 = vadd.f32 %v3618, %v3619
        %v3621 = vsel %vm913, %v3526, 0.0
        %v3622 = vsel %vm913, %v3527, 0.0
        %v3623 = vadd.f32 %v3621, %v3622
        %v3624 = vrot.slane %v3623, 4
        %v3625 = vadd.f32 %v3623, %v3624
        %v3626 = vrot.slane %v3625, 2
        %v3627 = vadd.f32 %v3625, %v3626
        %v3628 = vrot.slane %v3627, 1
        %v3629 = vadd.f32 %v3627, %v3628
        %v3630 = vsel %vm913, %v3528, 0.0
        %v3631 = vsel %vm913, %v3529, 0.0
        %v3632 = vadd.f32 %v3630, %v3631
        %v3633 = vrot.slane %v3632, 4
        %v3634 = vadd.f32 %v3632, %v3633
        %v3635 = vrot.slane %v3634, 2
        %v3636 = vadd.f32 %v3634, %v3635
        %v3637 = vrot.slane %v3636, 1
        %v3638 = vadd.f32 %v3636, %v3637
        %v3639 = vsel %vm913, %v3530, 0.0
        %v3640 = vsel %vm913, %v3531, 0.0
        %v3641 = vadd.f32 %v3639, %v3640
        %v3642 = vrot.slane %v3641, 4
        %v3643 = vadd.f32 %v3641, %v3642
        %v3644 = vrot.slane %v3643, 2
        %v3645 = vadd.f32 %v3643, %v3644
        %v3646 = vrot.slane %v3645, 1
        %v3647 = vadd.f32 %v3645, %v3646
        %v3648 = vsel %vm913, %v3532, 0.0
        %v3649 = vsel %vm913, %v3533, 0.0
        %v3650 = vadd.f32 %v3648, %v3649
        %v3651 = vrot.slane %v3650, 4
        %v3652 = vadd.f32 %v3650, %v3651
        %v3653 = vrot.slane %v3652, 2
        %v3654 = vadd.f32 %v3652, %v3653
        %v3655 = vrot.slane %v3654, 1
        %v3656 = vadd.f32 %v3654, %v3655
        %v3657 = vsel %vm913, %v3534, 0.0
        %v3658 = vsel %vm913, %v3535, 0.0
        %v3659 = vadd.f32 %v3657, %v3658
        %v3660 = vrot.slane %v3659, 4
        %v3661 = vadd.f32 %v3659, %v3660
        %v3662 = vrot.slane %v3661, 2
        %v3663 = vadd.f32 %v3661, %v3662
        %v3664 = vrot.slane %v3663, 1
        %v3665 = vadd.f32 %v3663, %v3664
        %v3666 = vsel %vm913, %v3536, 0.0
        %v3667 = vsel %vm913, %v3537, 0.0
        %v3668 = vadd.f32 %v3666, %v3667
        %v3669 = vrot.slane %v3668, 4
        %v3670 = vadd.f32 %v3668, %v3669
        %v3671 = vrot.slane %v3670, 2
        %v3672 = vadd.f32 %v3670, %v3671
        %v3673 = vrot.slane %v3672, 1
        %v3674 = vadd.f32 %v3672, %v3673
        %v3675 = vsel %vm913, %v3538, 0.0
        %v3676 = vsel %vm913, %v3539, 0.0
        %v3677 = vadd.f32 %v3675, %v3676
        %v3678 = vrot.slane %v3677, 4
        %v3679 = vadd.f32 %v3677, %v3678
        %v3680 = vrot.slane %v3679, 2
        %v3681 = vadd.f32 %v3679, %v3680
        %v3682 = vrot.slane %v3681, 1
        %v3683 = vadd.f32 %v3681, %v3682
        %v3684 = vadd.f32 %v3548, %v2099
        %v3685 = vadd.f32 %v3557, %v2099
        %v3686 = vadd.f32 %v3566, %v2099
        %v3687 = vadd.f32 %v3575, %v2099
        %v3688 = vadd.f32 %v3584, %v2099
        %v3689 = vadd.f32 %v3593, %v2099
        %v3690 = vadd.f32 %v3602, %v2099
        %v3691 = vadd.f32 %v3611, %v2099
        %v3692 = vadd.f32 %v3620, %v2099
        %v3693 = vadd.f32 %v3629, %v2099
        %v3694 = vadd.f32 %v3638, %v2099
        %v3695 = vadd.f32 %v3647, %v2099
        %v3696 = vadd.f32 %v3656, %v2099
        %v3697 = vadd.f32 %v3665, %v2099
        %v3698 = vadd.f32 %v3674, %v2099
        %v3699 = vadd.f32 %v3683, %v2099
        %vm3700 = vcmask 122880
        %3701 = vst.msk [vmem:[%s362] sm:$0x1] %vm3700, %v2100
        %3702 = vst.msk [vmem:[%s362 + $0x1] sm:$0x1] %vm3700, %v2101
        %3703 = vst.msk [vmem:[%s362 + $0x2] sm:$0x1] %vm3700, %v2102
        %3704 = vst.msk [vmem:[%s362 + $0x3] sm:$0x1] %vm3700, %v2103
        %3705 = vst.msk [vmem:[%s362 + $0x4] sm:$0x1] %vm3700, %v2104
        %3706 = vst.msk [vmem:[%s362 + $0x5] sm:$0x1] %vm3700, %v2105
        %3707 = vst.msk [vmem:[%s362 + $0x6] sm:$0x1] %vm3700, %v2106
        %3708 = vst.msk [vmem:[%s362 + $0x7] sm:$0x1] %vm3700, %v2107
        %3709 = vst.msk [vmem:[%s362 + $0x8] sm:$0x1] %vm3700, %v2108
        %3710 = vst.msk [vmem:[%s362 + $0x9] sm:$0x1] %vm3700, %v2109
        %3711 = vst.msk [vmem:[%s362 + $0xa] sm:$0x1] %vm3700, %v2110
        %3712 = vst.msk [vmem:[%s362 + $0xb] sm:$0x1] %vm3700, %v2111
        %3713 = vst.msk [vmem:[%s362 + $0xc] sm:$0x1] %vm3700, %v2112
        %3714 = vst.msk [vmem:[%s362 + $0xd] sm:$0x1] %vm3700, %v2113
        %3715 = vst.msk [vmem:[%s362 + $0xe] sm:$0x1] %vm3700, %v2114
        %3716 = vst.msk [vmem:[%s362 + $0xf] sm:$0x1] %vm3700, %v2115
        %3717 = vst.msk [vmem:[%s367] sm:$0x1] %vm3700, %v3684
        %3718 = vst.msk [vmem:[%s367 + $0x1] sm:$0x1] %vm3700, %v3685
        %3719 = vst.msk [vmem:[%s367 + $0x2] sm:$0x1] %vm3700, %v3686
        %3720 = vst.msk [vmem:[%s367 + $0x3] sm:$0x1] %vm3700, %v3687
        %3721 = vst.msk [vmem:[%s367 + $0x4] sm:$0x1] %vm3700, %v3688
        %3722 = vst.msk [vmem:[%s367 + $0x5] sm:$0x1] %vm3700, %v3689
        %3723 = vst.msk [vmem:[%s367 + $0x6] sm:$0x1] %vm3700, %v3690
        %3724 = vst.msk [vmem:[%s367 + $0x7] sm:$0x1] %vm3700, %v3691
        %3725 = vst.msk [vmem:[%s367 + $0x8] sm:$0x1] %vm3700, %v3692
        %3726 = vst.msk [vmem:[%s367 + $0x9] sm:$0x1] %vm3700, %v3693
        %3727 = vst.msk [vmem:[%s367 + $0xa] sm:$0x1] %vm3700, %v3694
        %3728 = vst.msk [vmem:[%s367 + $0xb] sm:$0x1] %vm3700, %v3695
        %3729 = vst.msk [vmem:[%s367 + $0xc] sm:$0x1] %vm3700, %v3696
        %3730 = vst.msk [vmem:[%s367 + $0xd] sm:$0x1] %vm3700, %v3697
        %3731 = vst.msk [vmem:[%s367 + $0xe] sm:$0x1] %vm3700, %v3698
        %3732 = vst.msk [vmem:[%s367 + $0xf] sm:$0x1] %vm3700, %v3699
        %3733 = vst.msk [vmem:[%s337] sm:$0xff] %vm913, %v1891
        %3734 = vst.msk [vmem:[%s337 + $0x8] sm:$0xff] %vm913, %v1892
        %3735 = vst.msk [vmem:[%s337 + $0x10] sm:$0xff] %vm913, %v1893
        %3736 = vst.msk [vmem:[%s337 + $0x18] sm:$0xff] %vm913, %v1894
        %3737 = vst.msk [vmem:[%s337 + $0x20] sm:$0xff] %vm913, %v1895
        %3738 = vst.msk [vmem:[%s337 + $0x28] sm:$0xff] %vm913, %v1896
        %3739 = vst.msk [vmem:[%s337 + $0x30] sm:$0xff] %vm913, %v1897
        %3740 = vst.msk [vmem:[%s337 + $0x38] sm:$0xff] %vm913, %v1898
        %3741 = vst.msk [vmem:[%s337 + $0x40] sm:$0xff] %vm913, %v1899
        %3742 = vst.msk [vmem:[%s337 + $0x48] sm:$0xff] %vm913, %v1900
        %3743 = vst.msk [vmem:[%s337 + $0x50] sm:$0xff] %vm913, %v1901
        %3744 = vst.msk [vmem:[%s337 + $0x58] sm:$0xff] %vm913, %v1902
        %3745 = vst.msk [vmem:[%s337 + $0x60] sm:$0xff] %vm913, %v1903
        %3746 = vst.msk [vmem:[%s337 + $0x68] sm:$0xff] %vm913, %v1904
        %3747 = vst.msk [vmem:[%s337 + $0x70] sm:$0xff] %vm913, %v1905
        %3748 = vst.msk [vmem:[%s337 + $0x78] sm:$0xff] %vm913, %v1906
        %3749 = vst.msk [vmem:[%s337 + $0x80] sm:$0xff] %vm913, %v1907
        %3750 = vst.msk [vmem:[%s337 + $0x88] sm:$0xff] %vm913, %v1908
        %3751 = vst.msk [vmem:[%s337 + $0x90] sm:$0xff] %vm913, %v1909
        %3752 = vst.msk [vmem:[%s337 + $0x98] sm:$0xff] %vm913, %v1910
        %3753 = vst.msk [vmem:[%s337 + $0xa0] sm:$0xff] %vm913, %v1911
        %3754 = vst.msk [vmem:[%s337 + $0xa8] sm:$0xff] %vm913, %v1912
        %3755 = vst.msk [vmem:[%s337 + $0xb0] sm:$0xff] %vm913, %v1913
        %3756 = vst.msk [vmem:[%s337 + $0xb8] sm:$0xff] %vm913, %v1914
        %3757 = vst.msk [vmem:[%s337 + $0xc0] sm:$0xff] %vm913, %v1915
        %3758 = vst.msk [vmem:[%s337 + $0xc8] sm:$0xff] %vm913, %v1916
        %3759 = vst.msk [vmem:[%s337 + $0xd0] sm:$0xff] %vm913, %v1917
        %3760 = vst.msk [vmem:[%s337 + $0xd8] sm:$0xff] %vm913, %v1918
        %3761 = vst.msk [vmem:[%s337 + $0xe0] sm:$0xff] %vm913, %v1919
        %3762 = vst.msk [vmem:[%s337 + $0xe8] sm:$0xff] %vm913, %v1920
        %3763 = vst.msk [vmem:[%s337 + $0xf0] sm:$0xff] %vm913, %v1921
        %3764 = vst.msk [vmem:[%s337 + $0xf8] sm:$0xff] %vm913, %v1922
        %s3765 = smul.u32 16, %s23
        %p3766 = scmp.lt.s32.totalorder %s3765, 63
        %s3767 = scalar_select %p3766, %s3765, 63
        %s3768 = scalar_lea.vmem %s5, %s3767
        %s3769 = smul.u32 16, %s23
        %p3770 = scmp.lt.s32.totalorder %s3769, 63
        %s3771 = scalar_select %p3770, %s3769, 63
        %s3772 = scalar_lea.vmem %s6, %s3771
        %s3773 = sand.u32 %s203, 1
        %s3774 = scalar_lea.sflag [#allocation3], %s3773
        %s3775 = sand.u32 %s203, 1
        %s3776 = smul.addr %s3775, 256
        %s3777 = scalar_lea.vmem [#allocation5], %s3776
        // Predicated region
        $region45: #{encoder_forward.5} parent=39 // pred_check
          %p3778 = pneg %p161
        $region46: #{encoder_forward.5} parent=39 // pred_check_branch
          %3780 = sbr.rel (%p3778) target = $region48
        $region47: #{encoder_forward.5} parent=39 // pred_region
          %s3781 = smul.u32 16, %s23
        $region48: #{encoder_forward.5} parent=39 // pred_fallthru
          _
        // Predicated region
        $region49: #{encoder_forward.5} parent=39 // pred_check
          %p3782 = pneg %p187
        $region50: #{encoder_forward.5} parent=39 // pred_check_branch
          %3784 = sbr.rel (%p3782) target = $region52
        $region51: #{encoder_forward.5} parent=39 // pred_region
          %s3785 = smul.u32 16, %s23
        $region52: #{encoder_forward.5} parent=39 // pred_fallthru
          _
        // Predicated region
        $region53: #{encoder_forward.5} parent=39 // pred_check
          %p3786 = pneg %p213
        $region54: #{encoder_forward.5} parent=39 // pred_check_branch
          %3788 = sbr.rel (%p3786) target = $region56
        $region55: #{encoder_forward.5} parent=39 // pred_region
          %s3789 = smul.u32 16, %s23
          %s3791 = ssub.s32 4096, 4096
          %3792 = vsyncadd %s3774, %s3791
          %s3793 = smul.addr %s3789, 2
          %s3794 = smul.addr %s3793, 128
          %s3795 = scalar_lea.hbm %s7, %s3794
          %s3796 = sshll.u32 %s3777, 4
          %s3797 = int_to_ptr.vmem [resolvable:$true] %s3796
          %3802 = dma.vmem_to_hbm [thread:$0]  %s3797, 4096, %s3795, %s3774, 128, 128, 8
        $region56: #{encoder_forward.5} parent=39 // pred_fallthru
          _
      $region40: #{encoder_forward.5} parent=5 // pred_fallthru
        _
      %p3803 = scmp.le.s32.totalorder 2, %s18
      // Predicated region
      $region57: #{encoder_forward.5} parent=5 // pred_check
        %p3804 = pneg %p3803
      $region58: #{encoder_forward.5} parent=5 // pred_check_branch
        %3806 = sbr.rel (%p3804) target = $region60
      $region59: #{encoder_forward.5} parent=5 // pred_region
        %s3807 = ssub.s32 %s18, 2
        // Predicated region
        $region61: #{encoder_forward.5} parent=59 // pred_check
          %p3808 = pneg %p167
        $region62: #{encoder_forward.5} parent=59 // pred_check_branch
          %3810 = sbr.rel (%p3808) target = $region64
        $region63: #{encoder_forward.5} parent=59 // pred_region
          %s3811 = smul.u32 16, %s24
          %p3812 = scmp.lt.s32.totalorder %s3811, 63
          %s3813 = scalar_select %p3812, %s3811, 63
          %s3814 = scalar_lea.vmem %s5, %s3813
        $region64: #{encoder_forward.5} parent=59 // pred_fallthru
          _
        // Predicated region
        $region65: #{encoder_forward.5} parent=59 // pred_check
          %p3815 = pneg %p193
        $region66: #{encoder_forward.5} parent=59 // pred_check_branch
          %3817 = sbr.rel (%p3815) target = $region68
        $region67: #{encoder_forward.5} parent=59 // pred_region
          %s3818 = smul.u32 16, %s24
          %p3819 = scmp.lt.s32.totalorder %s3818, 63
          %s3820 = scalar_select %p3819, %s3818, 63
          %s3821 = scalar_lea.vmem %s6, %s3820
        $region68: #{encoder_forward.5} parent=59 // pred_fallthru
          _
        // Predicated region
        $region69: #{encoder_forward.5} parent=59 // pred_check
          %p3822 = pneg %p219
        $region70: #{encoder_forward.5} parent=59 // pred_check_branch
          %3824 = sbr.rel (%p3822) target = $region72
        $region71: #{encoder_forward.5} parent=59 // pred_region
          %s3825 = sand.u32 %s204, 1
          %s3826 = scalar_lea.sflag [#allocation3], %s3825
          %s3827 = sand.u32 %s204, 1
          %s3828 = smul.addr %s3827, 256
          %s3829 = scalar_lea.vmem [#allocation5], %s3828
          %3830 = dma.done %s3826, 4096
        $region72: #{encoder_forward.5} parent=59 // pred_fallthru
          _
      $region60: #{encoder_forward.5} parent=5 // pred_fallthru
        _
    $region6: #{encoder_forward.5} parent=1 // loop_footer
      %s22 = sadd.s32 1, %s18
    $region7: #{encoder_forward.5} parent=1 // loop_footer_branch
      %17 = sbr.rel target = $region3
    $region8: #{encoder_forward.5} parent=1 // loop_exit
      _
    %3831 = vsyncpa [#allocation3], 1
    %s3832 = scalar_lea.sflag [#allocation3], 1
    %3833 = vsyncpa %s3832, 1
    %3834 = vsyncpa [#allocation4], 1
    %s3835 = scalar_lea.sflag [#allocation4], 1
    %3836 = vsyncpa %s3835, 1

// kernel: encoder_forward.6
$region0: #{encoder_forward.6}
  #allocation0 [shape = 'u32[]', space=smem, size = 0x4, offset = 0x4, fixed_abs, tag = 'smem constant byte address 0x4 - core index']
  #allocation1 [shape = 'u32[144,128]{1,0:T(1,128)}', space=vmem, size = 0x12000, scoped, tag = 'internal scratch']
  %s0 = inlined_call_operand.vmem [shape: f32[10], index: 0, kind: input, shape index: {}]
  %s1 = inlined_call_operand.vmem [shape: f32[64,1,16], index: 1, kind: input, shape index: {}]
  %s2 = inlined_call_operand.vmem [shape: f32[64,1,16], index: 2, kind: input, shape index: {}]
  %s3 = inlined_call_operand.vmem [shape: s8[64,16,16], index: 3, kind: input, shape index: {}]
  %s4 = inlined_call_operand.vmem [shape: f32[64,1,16], index: 4, kind: output, shape index: {0}]
  %s5 = inlined_call_operand.vmem [shape: f32[64,1,16], index: 5, kind: output, shape index: {1}]
  %6 = xla_tuple %s4, %s5
  %s7 = sld [smem:[#allocation0]]
  $region61: #{encoder_forward.6} parent=0
    _
  %s9 = ssub.s32 1, %s7
  %s10 = scalar_select 0, %s9, %s7
  $region1: #{encoder_forward.6} parent=0
    #allocation2 [shape = 'u8[512]{0}', space=smem, size = 0x200, scoped, tag = 'input window, operand 0, single buffered']
    #allocation3 [shape = 's32[2]{0}', space=sflag, size = 0x8, scoped, tag = 'scoped memory for encoder_forward.6']
    %11 = vsyncpa [#allocation3], 0
    loop: start=0, step=1, limit=6
    $region2: #{encoder_forward.6} parent=1 // loop_pre_header
      _
    $region3: #{encoder_forward.6} parent=1 // loop_header
      %s13 = sphi 0, %s17
      %p14 = scmp.ge.s32.totalorder %s13, 6
      %s21 = sphi 0, %s21
      %s23 = sphi 0, %s21
      %s24 = sphi 0, %s23
      %s38 = sphi 0, %s24
      %s44 = sphi 0, %s46
      %s47 = sphi 0, %s44
      %s48 = sphi 0, %s47
      %s64 = sphi 0, %s48
      %s70 = sphi 0, %s72
      %s73 = sphi 0, %s70
      %s74 = sphi 0, %s73
      %s90 = sphi 0, %s74
      %s96 = sphi 0, %s98
      %s99 = sphi 0, %s96
      %s100 = sphi 0, %s99
      %s116 = sphi 0, %s100
      %s122 = sphi 0, %s124
      %s125 = sphi 0, %s122
      %s126 = sphi 0, %s125
      %s142 = sphi 0, %s126
      %s148 = sphi 0, %s150
      %s151 = sphi 0, %s148
      %s152 = sphi 0, %s151
      %s168 = sphi 0, %s152
    $region4: #{encoder_forward.6} parent=1 // loop_header_branch
      %16 = sbr.rel (%p14) target = $region8
    $region5: #{encoder_forward.6} parent=1 // loop_body
      %s18 = ssub.s32 %s13, 1
      %s19 = ssub.s32 %s13, 2
      %s20 = sadd.s32 %s13, 1
      %s22 = sadd.s32 %s21, 1
      %p25 = scmp.eq.s32.totalorder %s13, 3
      %p26 = scmp.ne.s32.totalorder %s21, %s23
      %p27 = scmp.eq.s32.totalorder %s13, 0
      %p28 = por %p26, %p27
      %p29 = scmp.ne.s32.totalorder %s21, %s23
      %p30 = scmp.eq.s32.totalorder %s18, 3
      %p31 = por %p29, %p30
      %p32 = scmp.ne.s32.totalorder %s23, %s24
      %p33 = scmp.eq.s32.totalorder %s18, 0
      %p34 = por %p32, %p33
      %p35 = scmp.ne.s32.totalorder %s23, %s24
      %p36 = scmp.eq.s32.totalorder %s19, 3
      %p37 = por %p35, %p36
      %p39 = scmp.ne.s32.totalorder %s24, %s38
      %p40 = scmp.eq.s32.totalorder %s19, 0
      %p41 = por %p39, %p40
      %s42 = ssub.s32 %s13, %s20
      %p43 = scmp.eq.s32.totalorder %s42, 0
      %s45 = sadd.s32 %s44, 1
      %s46 = scalar_select %p43, %s44, %s45
      %p49 = pneg %p43
      %p50 = scmp.eq.s32.totalorder %s13, 3
      %p51 = por %p49, %p50
      %p52 = scmp.ne.s32.totalorder %s44, %s47
      %p53 = scmp.eq.s32.totalorder %s13, 0
      %p54 = por %p52, %p53
      %p55 = scmp.ne.s32.totalorder %s44, %s47
      %p56 = scmp.eq.s32.totalorder %s18, 3
      %p57 = por %p55, %p56
      %p58 = scmp.ne.s32.totalorder %s47, %s48
      %p59 = scmp.eq.s32.totalorder %s18, 0
      %p60 = por %p58, %p59
      %p61 = scmp.ne.s32.totalorder %s47, %s48
      %p62 = scmp.eq.s32.totalorder %s19, 3
      %p63 = por %p61, %p62
      %p65 = scmp.ne.s32.totalorder %s48, %s64
      %p66 = scmp.eq.s32.totalorder %s19, 0
      %p67 = por %p65, %p66
      %s68 = ssub.s32 %s13, %s20
      %p69 = scmp.eq.s32.totalorder %s68, 0
      %s71 = sadd.s32 %s70, 1
      %s72 = scalar_select %p69, %s70, %s71
      %p75 = pneg %p69
      %p76 = scmp.eq.s32.totalorder %s13, 3
      %p77 = por %p75, %p76
      %p78 = scmp.ne.s32.totalorder %s70, %s73
      %p79 = scmp.eq.s32.totalorder %s13, 0
      %p80 = por %p78, %p79
      %p81 = scmp.ne.s32.totalorder %s70, %s73
      %p82 = scmp.eq.s32.totalorder %s18, 3
      %p83 = por %p81, %p82
      %p84 = scmp.ne.s32.totalorder %s73, %s74
      %p85 = scmp.eq.s32.totalorder %s18, 0
      %p86 = por %p84, %p85
      %p87 = scmp.ne.s32.totalorder %s73, %s74
      %p88 = scmp.eq.s32.totalorder %s19, 3
      %p89 = por %p87, %p88
      %p91 = scmp.ne.s32.totalorder %s74, %s90
      %p92 = scmp.eq.s32.totalorder %s19, 0
      %p93 = por %p91, %p92
      %s94 = ssub.s32 %s13, %s20
      %p95 = scmp.eq.s32.totalorder %s94, 0
      %s97 = sadd.s32 %s96, 1
      %s98 = scalar_select %p95, %s96, %s97
      %p101 = pneg %p95
      %p102 = scmp.eq.s32.totalorder %s13, 3
      %p103 = por %p101, %p102
      %p104 = scmp.ne.s32.totalorder %s96, %s99
      %p105 = scmp.eq.s32.totalorder %s13, 0
      %p106 = por %p104, %p105
      %p107 = scmp.ne.s32.totalorder %s96, %s99
      %p108 = scmp.eq.s32.totalorder %s18, 3
      %p109 = por %p107, %p108
      %p110 = scmp.ne.s32.totalorder %s99, %s100
      %p111 = scmp.eq.s32.totalorder %s18, 0
      %p112 = por %p110, %p111
      %p113 = scmp.ne.s32.totalorder %s99, %s100
      %p114 = scmp.eq.s32.totalorder %s19, 3
      %p115 = por %p113, %p114
      %p117 = scmp.ne.s32.totalorder %s100, %s116
      %p118 = scmp.eq.s32.totalorder %s19, 0
      %p119 = por %p117, %p118
      %s120 = ssub.s32 %s13, %s20
      %p121 = scmp.eq.s32.totalorder %s120, 0
      %s123 = sadd.s32 %s122, 1
      %s124 = scalar_select %p121, %s122, %s123
      %p127 = pneg %p121
      %p128 = scmp.eq.s32.totalorder %s13, 3
      %p129 = por %p127, %p128
      %p130 = scmp.ne.s32.totalorder %s122, %s125
      %p131 = scmp.eq.s32.totalorder %s13, 0
      %p132 = por %p130, %p131
      %p133 = scmp.ne.s32.totalorder %s122, %s125
      %p134 = scmp.eq.s32.totalorder %s18, 3
      %p135 = por %p133, %p134
      %p136 = scmp.ne.s32.totalorder %s125, %s126
      %p137 = scmp.eq.s32.totalorder %s18, 0
      %p138 = por %p136, %p137
      %p139 = scmp.ne.s32.totalorder %s125, %s126
      %p140 = scmp.eq.s32.totalorder %s19, 3
      %p141 = por %p139, %p140
      %p143 = scmp.ne.s32.totalorder %s126, %s142
      %p144 = scmp.eq.s32.totalorder %s19, 0
      %p145 = por %p143, %p144
      %s146 = ssub.s32 %s13, %s20
      %p147 = scmp.eq.s32.totalorder %s146, 0
      %s149 = sadd.s32 %s148, 1
      %s150 = scalar_select %p147, %s148, %s149
      %p153 = pneg %p147
      %p154 = scmp.eq.s32.totalorder %s13, 3
      %p155 = por %p153, %p154
      %p156 = scmp.ne.s32.totalorder %s148, %s151
      %p157 = scmp.eq.s32.totalorder %s13, 0
      %p158 = por %p156, %p157
      %p159 = scmp.ne.s32.totalorder %s148, %s151
      %p160 = scmp.eq.s32.totalorder %s18, 3
      %p161 = por %p159, %p160
      %p162 = scmp.ne.s32.totalorder %s151, %s152
      %p163 = scmp.eq.s32.totalorder %s18, 0
      %p164 = por %p162, %p163
      %p165 = scmp.ne.s32.totalorder %s151, %s152
      %p166 = scmp.eq.s32.totalorder %s19, 3
      %p167 = por %p165, %p166
      %p169 = scmp.ne.s32.totalorder %s152, %s168
      %p170 = scmp.eq.s32.totalorder %s19, 0
      %p171 = por %p169, %p170
      %p172 = scmp.le.s32.totalorder 1, %s13
      %p173 = scmp.lt.s32.totalorder %s13, 5
      %p174 = pnand %p172, %p173
      %p175 = pneg %p174
      // Predicated region
      $region9: #{encoder_forward.6} parent=5 // pred_check
        _
      $region10: #{encoder_forward.6} parent=5 // pred_check_branch
        %177 = sbr.rel (%p174) target = $region12
      $region11: #{encoder_forward.6} parent=5 // pred_region
        %s178 = ssub.s32 %s13, 1
        // Predicated region
        $region13: #{encoder_forward.6} parent=11 // pred_check
          %p179 = pneg %p34
        $region14: #{encoder_forward.6} parent=11 // pred_check_branch
          %181 = sbr.rel (%p179) target = $region16
        $region15: #{encoder_forward.6} parent=11 // pred_region
          %s183 = ssub.s32 16, 16
          %184 = vsyncadd [#allocation3], %s183
          %s186 = sshll.u32 %s0, 4
          %s187 = int_to_ptr.vmem [resolvable:$true] %s186
          %189 = dma.vmem_to_smem %s187, 16, [#allocation2], [#allocation3]
        $region16: #{encoder_forward.6} parent=11 // pred_fallthru
          _
      $region12: #{encoder_forward.6} parent=5 // pred_fallthru
        _
      %p190 = scmp.lt.s32.totalorder %s13, 4
      // Predicated region
      $region17: #{encoder_forward.6} parent=5 // pred_check
        %p191 = pneg %p190
      $region18: #{encoder_forward.6} parent=5 // pred_check_branch
        %193 = sbr.rel (%p191) target = $region20
      $region19: #{encoder_forward.6} parent=5 // pred_region
        // Predicated region
        $region21: #{encoder_forward.6} parent=19 // pred_check
          %p194 = pneg %p54
        $region22: #{encoder_forward.6} parent=19 // pred_check_branch
          %196 = sbr.rel (%p194) target = $region24
        $region23: #{encoder_forward.6} parent=19 // pred_region
          %s197 = smul.u32 16, %s13
          %p198 = scmp.lt.s32.totalorder %s197, 63
          %s199 = scalar_select %p198, %s197, 63
          %s200 = scalar_lea.vmem %s1, %s199
          %s201 = smul.u32 16, %s13
        $region24: #{encoder_forward.6} parent=19 // pred_fallthru
          _
        // Predicated region
        $region25: #{encoder_forward.6} parent=19 // pred_check
          %p202 = pneg %p80
        $region26: #{encoder_forward.6} parent=19 // pred_check_branch
          %204 = sbr.rel (%p202) target = $region28
        $region27: #{encoder_forward.6} parent=19 // pred_region
          %s205 = smul.u32 16, %s13
          %p206 = scmp.lt.s32.totalorder %s205, 63
          %s207 = scalar_select %p206, %s205, 63
          %s208 = scalar_lea.vmem %s2, %s207
          %s209 = smul.u32 16, %s13
        $region28: #{encoder_forward.6} parent=19 // pred_fallthru
          _
        // Predicated region
        $region29: #{encoder_forward.6} parent=19 // pred_check
          %p210 = pneg %p106
        $region30: #{encoder_forward.6} parent=19 // pred_check_branch
          %212 = sbr.rel (%p210) target = $region32
        $region31: #{encoder_forward.6} parent=19 // pred_region
          %s213 = smul.u32 16, %s13
          %p214 = scmp.lt.s32.totalorder %s213, 63
          %s215 = scalar_select %p214, %s213, 63
          %s216 = smul.addr %s215, 2
          %s217 = smul.addr %s216, 2
          %s218 = scalar_lea.vmem %s3, %s217
          %s219 = smul.u32 16, %s13
        $region32: #{encoder_forward.6} parent=19 // pred_fallthru
          _
      $region20: #{encoder_forward.6} parent=5 // pred_fallthru
        _
      %p220 = scmp.le.s32.totalorder 1, %s13
      %p221 = scmp.lt.s32.totalorder %s13, 5
      %p222 = pnand %p220, %p221
      %p223 = pneg %p222
      // Predicated region
      $region33: #{encoder_forward.6} parent=5 // pred_check
        _
      $region34: #{encoder_forward.6} parent=5 // pred_check_branch
        %225 = sbr.rel (%p222) target = $region36
      $region35: #{encoder_forward.6} parent=5 // pred_region
        %s226 = ssub.s32 %s13, 1
        // Predicated region
        $region37: #{encoder_forward.6} parent=35 // pred_check
          %p227 = pneg %p34
        $region38: #{encoder_forward.6} parent=35 // pred_check_branch
          %229 = sbr.rel (%p227) target = $region40
        $region39: #{encoder_forward.6} parent=35 // pred_region
          %230 = dma.done [#allocation3], 16
        $region40: #{encoder_forward.6} parent=35 // pred_fallthru
          _
        %231 = sfence
        %p232 = pneg %p34
        %p233 = pneg %p31
        %s234 = smul.u32 16, %s18
        %p235 = scmp.lt.s32.totalorder %s234, 63
        %s236 = scalar_select %p235, %s234, 63
        %s237 = scalar_lea.vmem %s1, %s236
        %p238 = pneg %p60
        %p239 = pneg %p57
        %s240 = smul.u32 16, %s18
        %p241 = scmp.lt.s32.totalorder %s240, 63
        %s242 = scalar_select %p241, %s240, 63
        %s243 = scalar_lea.vmem %s2, %s242
        %p244 = pneg %p86
        %p245 = pneg %p83
        %s246 = smul.u32 16, %s18
        %p247 = scmp.lt.s32.totalorder %s246, 63
        %s248 = scalar_select %p247, %s246, 63
        %s249 = smul.addr %s248, 2
        %s250 = smul.addr %s249, 2
        %s251 = scalar_lea.vmem %s3, %s250
        %p252 = pneg %p112
        %p253 = pneg %p109
        %p254 = pneg %p138
        %p255 = pneg %p135
        %s256 = smul.u32 16, %s18
        %p257 = scmp.lt.s32.totalorder %s256, 63
        %s258 = scalar_select %p257, %s256, 63
        %s259 = scalar_lea.vmem %s4, %s258
        %p260 = pneg %p164
        %p261 = pneg %p161
        %s262 = smul.u32 16, %s18
        %p263 = scmp.lt.s32.totalorder %s262, 63
        %s264 = scalar_select %p263, %s262, 63
        %s265 = scalar_lea.vmem %s5, %s264
        %s266 = smul.u32 16, %s18
        %p267 = scmp.lt.s32.totalorder %s266, 63
        %s268 = scalar_select %p267, %s266, 63
        %s269 = scalar_lea.vmem %s1, %s268
        %s270 = smul.u32 16, %s18
        %s271 = smul.u32 16, %s18
        %p272 = scmp.lt.s32.totalorder %s271, 63
        %s273 = scalar_select %p272, %s271, 63
        %s274 = scalar_lea.vmem %s2, %s273
        %s275 = smul.u32 16, %s18
        %s276 = smul.u32 16, %s18
        %p277 = scmp.lt.s32.totalorder %s276, 63
        %s278 = scalar_select %p277, %s276, 63
        %s279 = smul.addr %s278, 2
        %s280 = smul.addr %s279, 2
        %s281 = scalar_lea.vmem %s3, %s280
        %s282 = smul.u32 16, %s18
        %s283 = smul.u32 16, %s18
        %p284 = scmp.lt.s32.totalorder %s283, 63
        %s285 = scalar_select %p284, %s283, 63
        %s286 = scalar_lea.vmem %s4, %s285
        %s287 = smul.u32 16, %s18
        %s288 = smul.u32 16, %s18
        %p289 = scmp.lt.s32.totalorder %s288, 63
        %s290 = scalar_select %p289, %s288, 63
        %s291 = scalar_lea.vmem %s5, %s290
        %s292 = smul.u32 16, %s18
        %s293 = sld [smem:[#allocation2 + $0x4]]
        %s294 = sld [smem:[#allocation2 + $0x5]]
        %s295 = sld [smem:[#allocation2 + $0x6]]
        %s296 = sld [smem:[#allocation2 + $0x7]]
        %s297 = sld [smem:[#allocation2 + $0x8]]
        %s298 = sld [smem:[#allocation2 + $0x9]]
        %v299 = vld [vmem:[%s281] sm:$0x3]
        %v300 = vld [vmem:[%s281 + $0x2] sm:$0x3]
        %v301 = vld [vmem:[%s281 + $0x4] sm:$0x3]
        %v302 = vld [vmem:[%s281 + $0x6] sm:$0x3]
        %v303 = vld [vmem:[%s281 + $0x8] sm:$0x3]
        %v304 = vld [vmem:[%s281 + $0xa] sm:$0x3]
        %v305 = vld [vmem:[%s281 + $0xc] sm:$0x3]
        %v306 = vld [vmem:[%s281 + $0xe] sm:$0x3]
        %v307 = vld [vmem:[%s281 + $0x10] sm:$0x3]
        %v308 = vld [vmem:[%s281 + $0x12] sm:$0x3]
        %v309 = vld [vmem:[%s281 + $0x14] sm:$0x3]
        %v310 = vld [vmem:[%s281 + $0x16] sm:$0x3]
        %v311 = vld [vmem:[%s281 + $0x18] sm:$0x3]
        %v312 = vld [vmem:[%s281 + $0x1a] sm:$0x3]
        %v313 = vld [vmem:[%s281 + $0x1c] sm:$0x3]
        %v314 = vld [vmem:[%s281 + $0x1e] sm:$0x3]
        %v315 = vld [vmem:[%s281 + $0x20] sm:$0x3]
        %v316 = vld [vmem:[%s281 + $0x22] sm:$0x3]
        %v317 = vld [vmem:[%s281 + $0x24] sm:$0x3]
        %v318 = vld [vmem:[%s281 + $0x26] sm:$0x3]
        %v319 = vld [vmem:[%s281 + $0x28] sm:$0x3]
        %v320 = vld [vmem:[%s281 + $0x2a] sm:$0x3]
        %v321 = vld [vmem:[%s281 + $0x2c] sm:$0x3]
        %v322 = vld [vmem:[%s281 + $0x2e] sm:$0x3]
        %v323 = vld [vmem:[%s281 + $0x30] sm:$0x3]
        %v324 = vld [vmem:[%s281 + $0x32] sm:$0x3]
        %v325 = vld [vmem:[%s281 + $0x34] sm:$0x3]
        %v326 = vld [vmem:[%s281 + $0x36] sm:$0x3]
        %v327 = vld [vmem:[%s281 + $0x38] sm:$0x3]
        %v328 = vld [vmem:[%s281 + $0x3a] sm:$0x3]
        %v329 = vld [vmem:[%s281 + $0x3c] sm:$0x3]
        %v330 = vld [vmem:[%s281 + $0x3e] sm:$0x3]
        %v331 = vunpack.c.0.s8 %v299
        %v332 = vunpack.c.0.s8 %v300
        %v333 = vunpack.c.0.s8 %v301
        %v334 = vunpack.c.0.s8 %v302
        %v335 = vunpack.c.0.s8 %v303
        %v336 = vunpack.c.0.s8 %v304
        %v337 = vunpack.c.0.s8 %v305
        %v338 = vunpack.c.0.s8 %v306
        %v339 = vunpack.c.0.s8 %v307
        %v340 = vunpack.c.0.s8 %v308
        %v341 = vunpack.c.0.s8 %v309
        %v342 = vunpack.c.0.s8 %v310
        %v343 = vunpack.c.0.s8 %v311
        %v344 = vunpack.c.0.s8 %v312
        %v345 = vunpack.c.0.s8 %v313
        %v346 = vunpack.c.0.s8 %v314
        %v347 = vunpack.c.0.s8 %v315
        %v348 = vunpack.c.0.s8 %v316
        %v349 = vunpack.c.0.s8 %v317
        %v350 = vunpack.c.0.s8 %v318
        %v351 = vunpack.c.0.s8 %v319
        %v352 = vunpack.c.0.s8 %v320
        %v353 = vunpack.c.0.s8 %v321
        %v354 = vunpack.c.0.s8 %v322
        %v355 = vunpack.c.0.s8 %v323
        %v356 = vunpack.c.0.s8 %v324
        %v357 = vunpack.c.0.s8 %v325
        %v358 = vunpack.c.0.s8 %v326
        %v359 = vunpack.c.0.s8 %v327
        %v360 = vunpack.c.0.s8 %v328
        %v361 = vunpack.c.0.s8 %v329
        %v362 = vunpack.c.0.s8 %v330
        %v363 = vcvt.s32.f32 %v331
        %v364 = vcvt.s32.f32 %v332
        %v365 = vcvt.s32.f32 %v333
        %v366 = vcvt.s32.f32 %v334
        %v367 = vcvt.s32.f32 %v335
        %v368 = vcvt.s32.f32 %v336
        %v369 = vcvt.s32.f32 %v337
        %v370 = vcvt.s32.f32 %v338
        %v371 = vcvt.s32.f32 %v339
        %v372 = vcvt.s32.f32 %v340
        %v373 = vcvt.s32.f32 %v341
        %v374 = vcvt.s32.f32 %v342
        %v375 = vcvt.s32.f32 %v343
        %v376 = vcvt.s32.f32 %v344
        %v377 = vcvt.s32.f32 %v345
        %v378 = vcvt.s32.f32 %v346
        %v379 = vcvt.s32.f32 %v347
        %v380 = vcvt.s32.f32 %v348
        %v381 = vcvt.s32.f32 %v349
        %v382 = vcvt.s32.f32 %v350
        %v383 = vcvt.s32.f32 %v351
        %v384 = vcvt.s32.f32 %v352
        %v385 = vcvt.s32.f32 %v353
        %v386 = vcvt.s32.f32 %v354
        %v387 = vcvt.s32.f32 %v355
        %v388 = vcvt.s32.f32 %v356
        %v389 = vcvt.s32.f32 %v357
        %v390 = vcvt.s32.f32 %v358
        %v391 = vcvt.s32.f32 %v359
        %v392 = vcvt.s32.f32 %v360
        %v393 = vcvt.s32.f32 %v361
        %v394 = vcvt.s32.f32 %v362
        %v395 = vlaneseq
        %v396 = vshrl.u32 %v395, 7
        %v397 = vadd.s32 %v396, 8
        %v398 = vlaneseq
        %v399 = vand.u32 %v398, 127
        %vm400 = vcmp.eq.s32.totalorder %v396, %v399
        %vm401 = vcmp.eq.s32.totalorder %v397, %v399
        %v402 = vsel %vm400, 1, 0
        %v403 = vsel %vm401, 1, 0
        %v404 = vcvt.s32.f32 %v402
        %v405 = vcvt.s32.f32 %v403
        %v406 = vld [vmem:[%s269] sm:$0x1]
        %v407 = vld [vmem:[%s269 + $0x1] sm:$0x1]
        %v408 = vld [vmem:[%s269 + $0x2] sm:$0x1]
        %v409 = vld [vmem:[%s269 + $0x3] sm:$0x1]
        %v410 = vld [vmem:[%s269 + $0x4] sm:$0x1]
        %v411 = vld [vmem:[%s269 + $0x5] sm:$0x1]
        %v412 = vld [vmem:[%s269 + $0x6] sm:$0x1]
        %v413 = vld [vmem:[%s269 + $0x7] sm:$0x1]
        %v414 = vld [vmem:[%s269 + $0x8] sm:$0x1]
        %v415 = vld [vmem:[%s269 + $0x9] sm:$0x1]
        %v416 = vld [vmem:[%s269 + $0xa] sm:$0x1]
        %v417 = vld [vmem:[%s269 + $0xb] sm:$0x1]
        %v418 = vld [vmem:[%s269 + $0xc] sm:$0x1]
        %v419 = vld [vmem:[%s269 + $0xd] sm:$0x1]
        %v420 = vld [vmem:[%s269 + $0xe] sm:$0x1]
        %v421 = vld [vmem:[%s269 + $0xf] sm:$0x1]
        %s422 = sld [smem:[#allocation2]]
        %s423 = sld [smem:[#allocation2 + $0x1]]
        %v424 = vstv %s422
        %v425 = vmul.f32 %v424, %v406
        %v426 = vmul.f32 %v424, %v407
        %v427 = vmul.f32 %v424, %v408
        %v428 = vmul.f32 %v424, %v409
        %v429 = vmul.f32 %v424, %v410
        %v430 = vmul.f32 %v424, %v411
        %v431 = vmul.f32 %v424, %v412
        %v432 = vmul.f32 %v424, %v413
        %v433 = vmul.f32 %v424, %v414
        %v434 = vmul.f32 %v424, %v415
        %v435 = vmul.f32 %v424, %v416
        %v436 = vmul.f32 %v424, %v417
        %v437 = vmul.f32 %v424, %v418
        %v438 = vmul.f32 %v424, %v419
        %v439 = vmul.f32 %v424, %v420
        %v440 = vmul.f32 %v424, %v421
        %v441 = vstv %s423
        %v442 = vadd.f32 %v425, %v441
        %v443 = vadd.f32 %v426, %v441
        %v444 = vadd.f32 %v427, %v441
        %v445 = vadd.f32 %v428, %v441
        %v446 = vadd.f32 %v429, %v441
        %v447 = vadd.f32 %v430, %v441
        %v448 = vadd.f32 %v431, %v441
        %v449 = vadd.f32 %v432, %v441
        %v450 = vadd.f32 %v433, %v441
        %v451 = vadd.f32 %v434, %v441
        %v452 = vadd.f32 %v435, %v441
        %v453 = vadd.f32 %v436, %v441
        %v454 = vadd.f32 %v437, %v441
        %v455 = vadd.f32 %v438, %v441
        %v456 = vadd.f32 %v439, %v441
        %v457 = vadd.f32 %v440, %v441
        %v458 = vmax.f32 %v442, 0.0
        %v459 = vmax.f32 %v443, 0.0
        %v460 = vmax.f32 %v444, 0.0
        %v461 = vmax.f32 %v445, 0.0
        %v462 = vmax.f32 %v446, 0.0
        %v463 = vmax.f32 %v447, 0.0
        %v464 = vmax.f32 %v448, 0.0
        %v465 = vmax.f32 %v449, 0.0
        %v466 = vmax.f32 %v450, 0.0
        %v467 = vmax.f32 %v451, 0.0
        %v468 = vmax.f32 %v452, 0.0
        %v469 = vmax.f32 %v453, 0.0
        %v470 = vmax.f32 %v454, 0.0
        %v471 = vmax.f32 %v455, 0.0
        %v472 = vmax.f32 %v456, 0.0
        %v473 = vmax.f32 %v457, 0.0
        %v474 = vstv %s295
        %v475 = vmul.f32 %v474, %v458
        %v476 = vmul.f32 %v474, %v459
        %v477 = vmul.f32 %v474, %v460
        %v478 = vmul.f32 %v474, %v461
        %v479 = vmul.f32 %v474, %v462
        %v480 = vmul.f32 %v474, %v463
        %v481 = vmul.f32 %v474, %v464
        %v482 = vmul.f32 %v474, %v465
        %v483 = vmul.f32 %v474, %v466
        %v484 = vmul.f32 %v474, %v467
        %v485 = vmul.f32 %v474, %v468
        %v486 = vmul.f32 %v474, %v469
        %v487 = vmul.f32 %v474, %v470
        %v488 = vmul.f32 %v474, %v471
        %v489 = vmul.f32 %v474, %v472
        %v490 = vmul.f32 %v474, %v473
        %v491 = vstv %s296
        %v492 = vadd.f32 %v475, %v491
        %v493 = vadd.f32 %v476, %v491
        %v494 = vadd.f32 %v477, %v491
        %v495 = vadd.f32 %v478, %v491
        %v496 = vadd.f32 %v479, %v491
        %v497 = vadd.f32 %v480, %v491
        %v498 = vadd.f32 %v481, %v491
        %v499 = vadd.f32 %v482, %v491
        %v500 = vadd.f32 %v483, %v491
        %v501 = vadd.f32 %v484, %v491
        %v502 = vadd.f32 %v485, %v491
        %v503 = vadd.f32 %v486, %v491
        %v504 = vadd.f32 %v487, %v491
        %v505 = vadd.f32 %v488, %v491
        %v506 = vadd.f32 %v489, %v491
        %v507 = vadd.f32 %v490, %v491
        %v524 = vlaneseq
        %v525 = vshrl.u32 %v524, 7
        %v526 = vsub.s32 0, %v525
        %v527 = vrot.slane %v458, %v526
        %v528 = vlaneseq
        %v529 = vshrl.u32 %v528, 7
        %v530 = vsub.s32 0, %v529
        %v531 = vrot.slane %v459, %v530
        %v532 = vlaneseq
        %v533 = vshrl.u32 %v532, 7
        %v534 = vsub.s32 0, %v533
        %v535 = vrot.slane %v460, %v534
        %v536 = vlaneseq
        %v537 = vshrl.u32 %v536, 7
        %v538 = vsub.s32 0, %v537
        %v539 = vrot.slane %v461, %v538
        %v540 = vlaneseq
        %v541 = vshrl.u32 %v540, 7
        %v542 = vsub.s32 0, %v541
        %v543 = vrot.slane %v462, %v542
        %v544 = vlaneseq
        %v545 = vshrl.u32 %v544, 7
        %v546 = vsub.s32 0, %v545
        %v547 = vrot.slane %v463, %v546
        %v548 = vlaneseq
        %v549 = vshrl.u32 %v548, 7
        %v550 = vsub.s32 0, %v549
        %v551 = vrot.slane %v464, %v550
        %v552 = vlaneseq
        %v553 = vshrl.u32 %v552, 7
        %v554 = vsub.s32 0, %v553
        %v555 = vrot.slane %v465, %v554
        %v556 = vlaneseq
        %v557 = vshrl.u32 %v556, 7
        %v558 = vsub.s32 0, %v557
        %v559 = vrot.slane %v466, %v558
        %v560 = vlaneseq
        %v561 = vshrl.u32 %v560, 7
        %v562 = vsub.s32 0, %v561
        %v563 = vrot.slane %v467, %v562
        %v564 = vlaneseq
        %v565 = vshrl.u32 %v564, 7
        %v566 = vsub.s32 0, %v565
        %v567 = vrot.slane %v468, %v566
        %v568 = vlaneseq
        %v569 = vshrl.u32 %v568, 7
        %v570 = vsub.s32 0, %v569
        %v571 = vrot.slane %v469, %v570
        %v572 = vlaneseq
        %v573 = vshrl.u32 %v572, 7
        %v574 = vsub.s32 0, %v573
        %v575 = vrot.slane %v470, %v574
        %v576 = vlaneseq
        %v577 = vshrl.u32 %v576, 7
        %v578 = vsub.s32 0, %v577
        %v579 = vrot.slane %v471, %v578
        %v580 = vlaneseq
        %v581 = vshrl.u32 %v580, 7
        %v582 = vsub.s32 0, %v581
        %v583 = vrot.slane %v472, %v582
        %v584 = vlaneseq
        %v585 = vshrl.u32 %v584, 7
        %v586 = vsub.s32 0, %v585
        %v587 = vrot.slane %v473, %v586
        %v604 = vmul.f32 %v527, %v404
        %v605 = vmul.f32 %v527, %v405
        %v606 = vmul.f32 %v531, %v404
        %v607 = vmul.f32 %v531, %v405
        %v608 = vmul.f32 %v535, %v404
        %v609 = vmul.f32 %v535, %v405
        %v610 = vmul.f32 %v539, %v404
        %v611 = vmul.f32 %v539, %v405
        %v612 = vmul.f32 %v543, %v404
        %v613 = vmul.f32 %v543, %v405
        %v614 = vmul.f32 %v547, %v404
        %v615 = vmul.f32 %v547, %v405
        %v616 = vmul.f32 %v551, %v404
        %v617 = vmul.f32 %v551, %v405
        %v618 = vmul.f32 %v555, %v404
        %v619 = vmul.f32 %v555, %v405
        %v620 = vmul.f32 %v559, %v404
        %v621 = vmul.f32 %v559, %v405
        %v622 = vmul.f32 %v563, %v404
        %v623 = vmul.f32 %v563, %v405
        %v624 = vmul.f32 %v567, %v404
        %v625 = vmul.f32 %v567, %v405
        %v626 = vmul.f32 %v571, %v404
        %v627 = vmul.f32 %v571, %v405
        %v628 = vmul.f32 %v575, %v404
        %v629 = vmul.f32 %v575, %v405
        %v630 = vmul.f32 %v579, %v404
        %v631 = vmul.f32 %v579, %v405
        %v632 = vmul.f32 %v583, %v404
        %v633 = vmul.f32 %v583, %v405
        %v634 = vmul.f32 %v587, %v404
        %v635 = vmul.f32 %v587, %v405
        %vm636 = vcmask 130048
        %v637 = vsel %vm636, %v604, 0.0
        %638 = vadd.xlane.f32.xlu0 %v637
        %v639 = vpop.xlane.xlu0 %638
        %v640 = vsel %vm636, %v605, 0.0
        %641 = vadd.xlane.f32.xlu0 %v640
        %v642 = vpop.xlane.xlu0 %641
        %v643 = vsel %vm636, %v606, 0.0
        %644 = vadd.xlane.f32.xlu0 %v643
        %v645 = vpop.xlane.xlu0 %644
        %v646 = vsel %vm636, %v607, 0.0
        %647 = vadd.xlane.f32.xlu0 %v646
        %v648 = vpop.xlane.xlu0 %647
        %v649 = vsel %vm636, %v608, 0.0
        %650 = vadd.xlane.f32.xlu0 %v649
        %v651 = vpop.xlane.xlu0 %650
        %v652 = vsel %vm636, %v609, 0.0
        %653 = vadd.xlane.f32.xlu0 %v652
        %v654 = vpop.xlane.xlu0 %653
        %v655 = vsel %vm636, %v610, 0.0
        %656 = vadd.xlane.f32.xlu0 %v655
        %v657 = vpop.xlane.xlu0 %656
        %v658 = vsel %vm636, %v611, 0.0
        %659 = vadd.xlane.f32.xlu0 %v658
        %v660 = vpop.xlane.xlu0 %659
        %v661 = vsel %vm636, %v612, 0.0
        %662 = vadd.xlane.f32.xlu0 %v661
        %v663 = vpop.xlane.xlu0 %662
        %v664 = vsel %vm636, %v613, 0.0
        %665 = vadd.xlane.f32.xlu0 %v664
        %v666 = vpop.xlane.xlu0 %665
        %v667 = vsel %vm636, %v614, 0.0
        %668 = vadd.xlane.f32.xlu0 %v667
        %v669 = vpop.xlane.xlu0 %668
        %v670 = vsel %vm636, %v615, 0.0
        %671 = vadd.xlane.f32.xlu0 %v670
        %v672 = vpop.xlane.xlu0 %671
        %v673 = vsel %vm636, %v616, 0.0
        %674 = vadd.xlane.f32.xlu0 %v673
        %v675 = vpop.xlane.xlu0 %674
        %v676 = vsel %vm636, %v617, 0.0
        %677 = vadd.xlane.f32.xlu0 %v676
        %v678 = vpop.xlane.xlu0 %677
        %v679 = vsel %vm636, %v618, 0.0
        %680 = vadd.xlane.f32.xlu0 %v679
        %v681 = vpop.xlane.xlu0 %680
        %v682 = vsel %vm636, %v619, 0.0
        %683 = vadd.xlane.f32.xlu0 %v682
        %v684 = vpop.xlane.xlu0 %683
        %v685 = vsel %vm636, %v620, 0.0
        %686 = vadd.xlane.f32.xlu0 %v685
        %v687 = vpop.xlane.xlu0 %686
        %v688 = vsel %vm636, %v621, 0.0
        %689 = vadd.xlane.f32.xlu0 %v688
        %v690 = vpop.xlane.xlu0 %689
        %v691 = vsel %vm636, %v622, 0.0
        %692 = vadd.xlane.f32.xlu0 %v691
        %v693 = vpop.xlane.xlu0 %692
        %v694 = vsel %vm636, %v623, 0.0
        %695 = vadd.xlane.f32.xlu0 %v694
        %v696 = vpop.xlane.xlu0 %695
        %v697 = vsel %vm636, %v624, 0.0
        %698 = vadd.xlane.f32.xlu0 %v697
        %v699 = vpop.xlane.xlu0 %698
        %v700 = vsel %vm636, %v625, 0.0
        %701 = vadd.xlane.f32.xlu0 %v700
        %v702 = vpop.xlane.xlu0 %701
        %v703 = vsel %vm636, %v626, 0.0
        %704 = vadd.xlane.f32.xlu0 %v703
        %v705 = vpop.xlane.xlu0 %704
        %v706 = vsel %vm636, %v627, 0.0
        %707 = vadd.xlane.f32.xlu0 %v706
        %v708 = vpop.xlane.xlu0 %707
        %v709 = vsel %vm636, %v628, 0.0
        %710 = vadd.xlane.f32.xlu0 %v709
        %v711 = vpop.xlane.xlu0 %710
        %v712 = vsel %vm636, %v629, 0.0
        %713 = vadd.xlane.f32.xlu0 %v712
        %v714 = vpop.xlane.xlu0 %713
        %v715 = vsel %vm636, %v630, 0.0
        %716 = vadd.xlane.f32.xlu0 %v715
        %v717 = vpop.xlane.xlu0 %716
        %v718 = vsel %vm636, %v631, 0.0
        %719 = vadd.xlane.f32.xlu0 %v718
        %v720 = vpop.xlane.xlu0 %719
        %v721 = vsel %vm636, %v632, 0.0
        %722 = vadd.xlane.f32.xlu0 %v721
        %v723 = vpop.xlane.xlu0 %722
        %v724 = vsel %vm636, %v633, 0.0
        %725 = vadd.xlane.f32.xlu0 %v724
        %v726 = vpop.xlane.xlu0 %725
        %v727 = vsel %vm636, %v634, 0.0
        %728 = vadd.xlane.f32.xlu0 %v727
        %v729 = vpop.xlane.xlu0 %728
        %v730 = vsel %vm636, %v635, 0.0
        %731 = vadd.xlane.f32.xlu0 %v730
        %v732 = vpop.xlane.xlu0 %731
        %v733 = vstv %s293
        %v734 = vmul.f32 %v733, %v639
        %v735 = vmul.f32 %v733, %v642
        %v736 = vmul.f32 %v733, %v645
        %v737 = vmul.f32 %v733, %v648
        %v738 = vmul.f32 %v733, %v651
        %v739 = vmul.f32 %v733, %v654
        %v740 = vmul.f32 %v733, %v657
        %v741 = vmul.f32 %v733, %v660
        %v742 = vmul.f32 %v733, %v663
        %v743 = vmul.f32 %v733, %v666
        %v744 = vmul.f32 %v733, %v669
        %v745 = vmul.f32 %v733, %v672
        %v746 = vmul.f32 %v733, %v675
        %v747 = vmul.f32 %v733, %v678
        %v748 = vmul.f32 %v733, %v681
        %v749 = vmul.f32 %v733, %v684
        %v750 = vmul.f32 %v733, %v687
        %v751 = vmul.f32 %v733, %v690
        %v752 = vmul.f32 %v733, %v693
        %v753 = vmul.f32 %v733, %v696
        %v754 = vmul.f32 %v733, %v699
        %v755 = vmul.f32 %v733, %v702
        %v756 = vmul.f32 %v733, %v705
        %v757 = vmul.f32 %v733, %v708
        %v758 = vmul.f32 %v733, %v711
        %v759 = vmul.f32 %v733, %v714
        %v760 = vmul.f32 %v733, %v717
        %v761 = vmul.f32 %v733, %v720
        %v762 = vmul.f32 %v733, %v723
        %v763 = vmul.f32 %v733, %v726
        %v764 = vmul.f32 %v733, %v729
        %v765 = vmul.f32 %v733, %v732
        %v766 = vstv %s294
        %v767 = vadd.f32 %v734, %v766
        %v768 = vadd.f32 %v735, %v766
        %v769 = vadd.f32 %v736, %v766
        %v770 = vadd.f32 %v737, %v766
        %v771 = vadd.f32 %v738, %v766
        %v772 = vadd.f32 %v739, %v766
        %v773 = vadd.f32 %v740, %v766
        %v774 = vadd.f32 %v741, %v766
        %v775 = vadd.f32 %v742, %v766
        %v776 = vadd.f32 %v743, %v766
        %v777 = vadd.f32 %v744, %v766
        %v778 = vadd.f32 %v745, %v766
        %v779 = vadd.f32 %v746, %v766
        %v780 = vadd.f32 %v747, %v766
        %v781 = vadd.f32 %v748, %v766
        %v782 = vadd.f32 %v749, %v766
        %v783 = vadd.f32 %v750, %v766
        %v784 = vadd.f32 %v751, %v766
        %v785 = vadd.f32 %v752, %v766
        %v786 = vadd.f32 %v753, %v766
        %v787 = vadd.f32 %v754, %v766
        %v788 = vadd.f32 %v755, %v766
        %v789 = vadd.f32 %v756, %v766
        %v790 = vadd.f32 %v757, %v766
        %v791 = vadd.f32 %v758, %v766
        %v792 = vadd.f32 %v759, %v766
        %v793 = vadd.f32 %v760, %v766
        %v794 = vadd.f32 %v761, %v766
        %v795 = vadd.f32 %v762, %v766
        %v796 = vadd.f32 %v763, %v766
        %v797 = vadd.f32 %v764, %v766
        %v798 = vadd.f32 %v765, %v766
        %v815 = vlaneseq
        %v816 = vshrl.u32 %v815, 7
        %v817 = vsub.s32 0, %v816
        %v818 = vrot.slane %v492, %v817
        %v819 = vlaneseq
        %v820 = vshrl.u32 %v819, 7
        %v821 = vsub.s32 0, %v820
        %v822 = vrot.slane %v493, %v821
        %v823 = vlaneseq
        %v824 = vshrl.u32 %v823, 7
        %v825 = vsub.s32 0, %v824
        %v826 = vrot.slane %v494, %v825
        %v827 = vlaneseq
        %v828 = vshrl.u32 %v827, 7
        %v829 = vsub.s32 0, %v828
        %v830 = vrot.slane %v495, %v829
        %v831 = vlaneseq
        %v832 = vshrl.u32 %v831, 7
        %v833 = vsub.s32 0, %v832
        %v834 = vrot.slane %v496, %v833
        %v835 = vlaneseq
        %v836 = vshrl.u32 %v835, 7
        %v837 = vsub.s32 0, %v836
        %v838 = vrot.slane %v497, %v837
        %v839 = vlaneseq
        %v840 = vshrl.u32 %v839, 7
        %v841 = vsub.s32 0, %v840
        %v842 = vrot.slane %v498, %v841
        %v843 = vlaneseq
        %v844 = vshrl.u32 %v843, 7
        %v845 = vsub.s32 0, %v844
        %v846 = vrot.slane %v499, %v845
        %v847 = vlaneseq
        %v848 = vshrl.u32 %v847, 7
        %v849 = vsub.s32 0, %v848
        %v850 = vrot.slane %v500, %v849
        %v851 = vlaneseq
        %v852 = vshrl.u32 %v851, 7
        %v853 = vsub.s32 0, %v852
        %v854 = vrot.slane %v501, %v853
        %v855 = vlaneseq
        %v856 = vshrl.u32 %v855, 7
        %v857 = vsub.s32 0, %v856
        %v858 = vrot.slane %v502, %v857
        %v859 = vlaneseq
        %v860 = vshrl.u32 %v859, 7
        %v861 = vsub.s32 0, %v860
        %v862 = vrot.slane %v503, %v861
        %v863 = vlaneseq
        %v864 = vshrl.u32 %v863, 7
        %v865 = vsub.s32 0, %v864
        %v866 = vrot.slane %v504, %v865
        %v867 = vlaneseq
        %v868 = vshrl.u32 %v867, 7
        %v869 = vsub.s32 0, %v868
        %v870 = vrot.slane %v505, %v869
        %v871 = vlaneseq
        %v872 = vshrl.u32 %v871, 7
        %v873 = vsub.s32 0, %v872
        %v874 = vrot.slane %v506, %v873
        %v875 = vlaneseq
        %v876 = vshrl.u32 %v875, 7
        %v877 = vsub.s32 0, %v876
        %v878 = vrot.slane %v507, %v877
        %v895 = vadd.f32 %v767, %v818
        %v896 = vadd.f32 %v768, %v818
        %v897 = vadd.f32 %v769, %v822
        %v898 = vadd.f32 %v770, %v822
        %v899 = vadd.f32 %v771, %v826
        %v900 = vadd.f32 %v772, %v826
        %v901 = vadd.f32 %v773, %v830
        %v902 = vadd.f32 %v774, %v830
        %v903 = vadd.f32 %v775, %v834
        %v904 = vadd.f32 %v776, %v834
        %v905 = vadd.f32 %v777, %v838
        %v906 = vadd.f32 %v778, %v838
        %v907 = vadd.f32 %v779, %v842
        %v908 = vadd.f32 %v780, %v842
        %v909 = vadd.f32 %v781, %v846
        %v910 = vadd.f32 %v782, %v846
        %v911 = vadd.f32 %v783, %v850
        %v912 = vadd.f32 %v784, %v850
        %v913 = vadd.f32 %v785, %v854
        %v914 = vadd.f32 %v786, %v854
        %v915 = vadd.f32 %v787, %v858
        %v916 = vadd.f32 %v788, %v858
        %v917 = vadd.f32 %v789, %v862
        %v918 = vadd.f32 %v790, %v862
        %v919 = vadd.f32 %v791, %v866
        %v920 = vadd.f32 %v792, %v866
        %v921 = vadd.f32 %v793, %v870
        %v922 = vadd.f32 %v794, %v870
        %v923 = vadd.f32 %v795, %v874
        %v924 = vadd.f32 %v796, %v874
        %v925 = vadd.f32 %v797, %v878
        %v926 = vadd.f32 %v798, %v878
        %vm927 = vcmp.ge.f32.partialorder %v895, 0.0
        %vm928 = vcmp.ge.f32.partialorder %v896, 0.0
        %vm929 = vcmp.ge.f32.partialorder %v897, 0.0
        %vm930 = vcmp.ge.f32.partialorder %v898, 0.0
        %vm931 = vcmp.ge.f32.partialorder %v899, 0.0
        %vm932 = vcmp.ge.f32.partialorder %v900, 0.0
        %vm933 = vcmp.ge.f32.partialorder %v901, 0.0
        %vm934 = vcmp.ge.f32.partialorder %v902, 0.0
        %vm935 = vcmp.ge.f32.partialorder %v903, 0.0
        %vm936 = vcmp.ge.f32.partialorder %v904, 0.0
        %vm937 = vcmp.ge.f32.partialorder %v905, 0.0
        %vm938 = vcmp.ge.f32.partialorder %v906, 0.0
        %vm939 = vcmp.ge.f32.partialorder %v907, 0.0
        %vm940 = vcmp.ge.f32.partialorder %v908, 0.0
        %vm941 = vcmp.ge.f32.partialorder %v909, 0.0
        %vm942 = vcmp.ge.f32.partialorder %v910, 0.0
        %vm943 = vcmp.ge.f32.partialorder %v911, 0.0
        %vm944 = vcmp.ge.f32.partialorder %v912, 0.0
        %vm945 = vcmp.ge.f32.partialorder %v913, 0.0
        %vm946 = vcmp.ge.f32.partialorder %v914, 0.0
        %vm947 = vcmp.ge.f32.partialorder %v915, 0.0
        %vm948 = vcmp.ge.f32.partialorder %v916, 0.0
        %vm949 = vcmp.ge.f32.partialorder %v917, 0.0
        %vm950 = vcmp.ge.f32.partialorder %v918, 0.0
        %vm951 = vcmp.ge.f32.partialorder %v919, 0.0
        %vm952 = vcmp.ge.f32.partialorder %v920, 0.0
        %vm953 = vcmp.ge.f32.partialorder %v921, 0.0
        %vm954 = vcmp.ge.f32.partialorder %v922, 0.0
        %vm955 = vcmp.ge.f32.partialorder %v923, 0.0
        %vm956 = vcmp.ge.f32.partialorder %v924, 0.0
        %vm957 = vcmp.ge.f32.partialorder %v925, 0.0
        %vm958 = vcmp.ge.f32.partialorder %v926, 0.0
        %v959 = vmul.f32 %v895, 0.2
        %v960 = vmul.f32 %v896, 0.2
        %v961 = vmul.f32 %v897, 0.2
        %v962 = vmul.f32 %v898, 0.2
        %v963 = vmul.f32 %v899, 0.2
        %v964 = vmul.f32 %v900, 0.2
        %v965 = vmul.f32 %v901, 0.2
        %v966 = vmul.f32 %v902, 0.2
        %v967 = vmul.f32 %v903, 0.2
        %v968 = vmul.f32 %v904, 0.2
        %v969 = vmul.f32 %v905, 0.2
        %v970 = vmul.f32 %v906, 0.2
        %v971 = vmul.f32 %v907, 0.2
        %v972 = vmul.f32 %v908, 0.2
        %v973 = vmul.f32 %v909, 0.2
        %v974 = vmul.f32 %v910, 0.2
        %v975 = vmul.f32 %v911, 0.2
        %v976 = vmul.f32 %v912, 0.2
        %v977 = vmul.f32 %v913, 0.2
        %v978 = vmul.f32 %v914, 0.2
        %v979 = vmul.f32 %v915, 0.2
        %v980 = vmul.f32 %v916, 0.2
        %v981 = vmul.f32 %v917, 0.2
        %v982 = vmul.f32 %v918, 0.2
        %v983 = vmul.f32 %v919, 0.2
        %v984 = vmul.f32 %v920, 0.2
        %v985 = vmul.f32 %v921, 0.2
        %v986 = vmul.f32 %v922, 0.2
        %v987 = vmul.f32 %v923, 0.2
        %v988 = vmul.f32 %v924, 0.2
        %v989 = vmul.f32 %v925, 0.2
        %v990 = vmul.f32 %v926, 0.2
        %v991 = vsel %vm927, %v895, %v959
        %v992 = vsel %vm928, %v896, %v960
        %v993 = vsel %vm929, %v897, %v961
        %v994 = vsel %vm930, %v898, %v962
        %v995 = vsel %vm931, %v899, %v963
        %v996 = vsel %vm932, %v900, %v964
        %v997 = vsel %vm933, %v901, %v965
        %v998 = vsel %vm934, %v902, %v966
        %v999 = vsel %vm935, %v903, %v967
        %v1000 = vsel %vm936, %v904, %v968
        %v1001 = vsel %vm937, %v905, %v969
        %v1002 = vsel %vm938, %v906, %v970
        %v1003 = vsel %vm939, %v907, %v971
        %v1004 = vsel %vm940, %v908, %v972
        %v1005 = vsel %vm941, %v909, %v973
        %v1006 = vsel %vm942, %v910, %v974
        %v1007 = vsel %vm943, %v911, %v975
        %v1008 = vsel %vm944, %v912, %v976
        %v1009 = vsel %vm945, %v913, %v977
        %v1010 = vsel %vm946, %v914, %v978
        %v1011 = vsel %vm947, %v915, %v979
        %v1012 = vsel %vm948, %v916, %v980
        %v1013 = vsel %vm949, %v917, %v981
        %v1014 = vsel %vm950, %v918, %v982
        %v1015 = vsel %vm951, %v919, %v983
        %v1016 = vsel %vm952, %v920, %v984
        %v1017 = vsel %vm953, %v921, %v985
        %v1018 = vsel %vm954, %v922, %v986
        %v1019 = vsel %vm955, %v923, %v987
        %v1020 = vsel %vm956, %v924, %v988
        %v1021 = vsel %vm957, %v925, %v989
        %v1022 = vsel %vm958, %v926, %v990
        %vm1023 = vcmp.gt.f32.partialorder %v363, 0.0
        %vm1024 = vcmp.gt.f32.partialorder %v364, 0.0
        %vm1025 = vcmp.gt.f32.partialorder %v365, 0.0
        %vm1026 = vcmp.gt.f32.partialorder %v366, 0.0
        %vm1027 = vcmp.gt.f32.partialorder %v367, 0.0
        %vm1028 = vcmp.gt.f32.partialorder %v368, 0.0
        %vm1029 = vcmp.gt.f32.partialorder %v369, 0.0
        %vm1030 = vcmp.gt.f32.partialorder %v370, 0.0
        %vm1031 = vcmp.gt.f32.partialorder %v371, 0.0
        %vm1032 = vcmp.gt.f32.partialorder %v372, 0.0
        %vm1033 = vcmp.gt.f32.partialorder %v373, 0.0
        %vm1034 = vcmp.gt.f32.partialorder %v374, 0.0
        %vm1035 = vcmp.gt.f32.partialorder %v375, 0.0
        %vm1036 = vcmp.gt.f32.partialorder %v376, 0.0
        %vm1037 = vcmp.gt.f32.partialorder %v377, 0.0
        %vm1038 = vcmp.gt.f32.partialorder %v378, 0.0
        %vm1039 = vcmp.gt.f32.partialorder %v379, 0.0
        %vm1040 = vcmp.gt.f32.partialorder %v380, 0.0
        %vm1041 = vcmp.gt.f32.partialorder %v381, 0.0
        %vm1042 = vcmp.gt.f32.partialorder %v382, 0.0
        %vm1043 = vcmp.gt.f32.partialorder %v383, 0.0
        %vm1044 = vcmp.gt.f32.partialorder %v384, 0.0
        %vm1045 = vcmp.gt.f32.partialorder %v385, 0.0
        %vm1046 = vcmp.gt.f32.partialorder %v386, 0.0
        %vm1047 = vcmp.gt.f32.partialorder %v387, 0.0
        %vm1048 = vcmp.gt.f32.partialorder %v388, 0.0
        %vm1049 = vcmp.gt.f32.partialorder %v389, 0.0
        %vm1050 = vcmp.gt.f32.partialorder %v390, 0.0
        %vm1051 = vcmp.gt.f32.partialorder %v391, 0.0
        %vm1052 = vcmp.gt.f32.partialorder %v392, 0.0
        %vm1053 = vcmp.gt.f32.partialorder %v393, 0.0
        %vm1054 = vcmp.gt.f32.partialorder %v394, 0.0
        %v1055 = vstv %s297
        %v1056 = vmul.f32 %v1055, %v991
        %v1057 = vmul.f32 %v1055, %v992
        %v1058 = vmul.f32 %v1055, %v993
        %v1059 = vmul.f32 %v1055, %v994
        %v1060 = vmul.f32 %v1055, %v995
        %v1061 = vmul.f32 %v1055, %v996
        %v1062 = vmul.f32 %v1055, %v997
        %v1063 = vmul.f32 %v1055, %v998
        %v1064 = vmul.f32 %v1055, %v999
        %v1065 = vmul.f32 %v1055, %v1000
        %v1066 = vmul.f32 %v1055, %v1001
        %v1067 = vmul.f32 %v1055, %v1002
        %v1068 = vmul.f32 %v1055, %v1003
        %v1069 = vmul.f32 %v1055, %v1004
        %v1070 = vmul.f32 %v1055, %v1005
        %v1071 = vmul.f32 %v1055, %v1006
        %v1072 = vmul.f32 %v1055, %v1007
        %v1073 = vmul.f32 %v1055, %v1008
        %v1074 = vmul.f32 %v1055, %v1009
        %v1075 = vmul.f32 %v1055, %v1010
        %v1076 = vmul.f32 %v1055, %v1011
        %v1077 = vmul.f32 %v1055, %v1012
        %v1078 = vmul.f32 %v1055, %v1013
        %v1079 = vmul.f32 %v1055, %v1014
        %v1080 = vmul.f32 %v1055, %v1015
        %v1081 = vmul.f32 %v1055, %v1016
        %v1082 = vmul.f32 %v1055, %v1017
        %v1083 = vmul.f32 %v1055, %v1018
        %v1084 = vmul.f32 %v1055, %v1019
        %v1085 = vmul.f32 %v1055, %v1020
        %v1086 = vmul.f32 %v1055, %v1021
        %v1087 = vmul.f32 %v1055, %v1022
        %v1088 = vsel %vm1023, %v1056, -1e+30
        %v1089 = vsel %vm1024, %v1057, -1e+30
        %v1090 = vsel %vm1025, %v1058, -1e+30
        %v1091 = vsel %vm1026, %v1059, -1e+30
        %v1092 = vsel %vm1027, %v1060, -1e+30
        %v1093 = vsel %vm1028, %v1061, -1e+30
        %v1094 = vsel %vm1029, %v1062, -1e+30
        %v1095 = vsel %vm1030, %v1063, -1e+30
        %v1096 = vsel %vm1031, %v1064, -1e+30
        %v1097 = vsel %vm1032, %v1065, -1e+30
        %v1098 = vsel %vm1033, %v1066, -1e+30
        %v1099 = vsel %vm1034, %v1067, -1e+30
        %v1100 = vsel %vm1035, %v1068, -1e+30
        %v1101 = vsel %vm1036, %v1069, -1e+30
        %v1102 = vsel %vm1037, %v1070, -1e+30
        %v1103 = vsel %vm1038, %v1071, -1e+30
        %v1104 = vsel %vm1039, %v1072, -1e+30
        %v1105 = vsel %vm1040, %v1073, -1e+30
        %v1106 = vsel %vm1041, %v1074, -1e+30
        %v1107 = vsel %vm1042, %v1075, -1e+30
        %v1108 = vsel %vm1043, %v1076, -1e+30
        %v1109 = vsel %vm1044, %v1077, -1e+30
        %v1110 = vsel %vm1045, %v1078, -1e+30
        %v1111 = vsel %vm1046, %v1079, -1e+30
        %v1112 = vsel %vm1047, %v1080, -1e+30
        %v1113 = vsel %vm1048, %v1081, -1e+30
        %v1114 = vsel %vm1049, %v1082, -1e+30
        %v1115 = vsel %vm1050, %v1083, -1e+30
        %v1116 = vsel %vm1051, %v1084, -1e+30
        %v1117 = vsel %vm1052, %v1085, -1e+30
        %v1118 = vsel %vm1053, %v1086, -1e+30
        %v1119 = vsel %vm1054, %v1087, -1e+30
        %v1120 = vsel %vm636, %v1088, -inf
        %v1121 = vsel %vm636, %v1089, -inf
        %v1122 = vmax.f32 %v1120, %v1121
        %v1123 = vrot.slane %v1122, 4
        %v1124 = vmax.f32 %v1122, %v1123
        %v1125 = vrot.slane %v1124, 2
        %v1126 = vmax.f32 %v1124, %v1125
        %v1127 = vrot.slane %v1126, 1
        %v1128 = vmax.f32 %v1126, %v1127
        %v1129 = vsel %vm636, %v1090, -inf
        %v1130 = vsel %vm636, %v1091, -inf
        %v1131 = vmax.f32 %v1129, %v1130
        %v1132 = vrot.slane %v1131, 4
        %v1133 = vmax.f32 %v1131, %v1132
        %v1134 = vrot.slane %v1133, 2
        %v1135 = vmax.f32 %v1133, %v1134
        %v1136 = vrot.slane %v1135, 1
        %v1137 = vmax.f32 %v1135, %v1136
        %v1138 = vsel %vm636, %v1092, -inf
        %v1139 = vsel %vm636, %v1093, -inf
        %v1140 = vmax.f32 %v1138, %v1139
        %v1141 = vrot.slane %v1140, 4
        %v1142 = vmax.f32 %v1140, %v1141
        %v1143 = vrot.slane %v1142, 2
        %v1144 = vmax.f32 %v1142, %v1143
        %v1145 = vrot.slane %v1144, 1
        %v1146 = vmax.f32 %v1144, %v1145
        %v1147 = vsel %vm636, %v1094, -inf
        %v1148 = vsel %vm636, %v1095, -inf
        %v1149 = vmax.f32 %v1147, %v1148
        %v1150 = vrot.slane %v1149, 4
        %v1151 = vmax.f32 %v1149, %v1150
        %v1152 = vrot.slane %v1151, 2
        %v1153 = vmax.f32 %v1151, %v1152
        %v1154 = vrot.slane %v1153, 1
        %v1155 = vmax.f32 %v1153, %v1154
        %v1156 = vsel %vm636, %v1096, -inf
        %v1157 = vsel %vm636, %v1097, -inf
        %v1158 = vmax.f32 %v1156, %v1157
        %v1159 = vrot.slane %v1158, 4
        %v1160 = vmax.f32 %v1158, %v1159
        %v1161 = vrot.slane %v1160, 2
        %v1162 = vmax.f32 %v1160, %v1161
        %v1163 = vrot.slane %v1162, 1
        %v1164 = vmax.f32 %v1162, %v1163
        %v1165 = vsel %vm636, %v1098, -inf
        %v1166 = vsel %vm636, %v1099, -inf
        %v1167 = vmax.f32 %v1165, %v1166
        %v1168 = vrot.slane %v1167, 4
        %v1169 = vmax.f32 %v1167, %v1168
        %v1170 = vrot.slane %v1169, 2
        %v1171 = vmax.f32 %v1169, %v1170
        %v1172 = vrot.slane %v1171, 1
        %v1173 = vmax.f32 %v1171, %v1172
        %v1174 = vsel %vm636, %v1100, -inf
        %v1175 = vsel %vm636, %v1101, -inf
        %v1176 = vmax.f32 %v1174, %v1175
        %v1177 = vrot.slane %v1176, 4
        %v1178 = vmax.f32 %v1176, %v1177
        %v1179 = vrot.slane %v1178, 2
        %v1180 = vmax.f32 %v1178, %v1179
        %v1181 = vrot.slane %v1180, 1
        %v1182 = vmax.f32 %v1180, %v1181
        %v1183 = vsel %vm636, %v1102, -inf
        %v1184 = vsel %vm636, %v1103, -inf
        %v1185 = vmax.f32 %v1183, %v1184
        %v1186 = vrot.slane %v1185, 4
        %v1187 = vmax.f32 %v1185, %v1186
        %v1188 = vrot.slane %v1187, 2
        %v1189 = vmax.f32 %v1187, %v1188
        %v1190 = vrot.slane %v1189, 1
        %v1191 = vmax.f32 %v1189, %v1190
        %v1192 = vsel %vm636, %v1104, -inf
        %v1193 = vsel %vm636, %v1105, -inf
        %v1194 = vmax.f32 %v1192, %v1193
        %v1195 = vrot.slane %v1194, 4
        %v1196 = vmax.f32 %v1194, %v1195
        %v1197 = vrot.slane %v1196, 2
        %v1198 = vmax.f32 %v1196, %v1197
        %v1199 = vrot.slane %v1198, 1
        %v1200 = vmax.f32 %v1198, %v1199
        %v1201 = vsel %vm636, %v1106, -inf
        %v1202 = vsel %vm636, %v1107, -inf
        %v1203 = vmax.f32 %v1201, %v1202
        %v1204 = vrot.slane %v1203, 4
        %v1205 = vmax.f32 %v1203, %v1204
        %v1206 = vrot.slane %v1205, 2
        %v1207 = vmax.f32 %v1205, %v1206
        %v1208 = vrot.slane %v1207, 1
        %v1209 = vmax.f32 %v1207, %v1208
        %v1210 = vsel %vm636, %v1108, -inf
        %v1211 = vsel %vm636, %v1109, -inf
        %v1212 = vmax.f32 %v1210, %v1211
        %v1213 = vrot.slane %v1212, 4
        %v1214 = vmax.f32 %v1212, %v1213
        %v1215 = vrot.slane %v1214, 2
        %v1216 = vmax.f32 %v1214, %v1215
        %v1217 = vrot.slane %v1216, 1
        %v1218 = vmax.f32 %v1216, %v1217
        %v1219 = vsel %vm636, %v1110, -inf
        %v1220 = vsel %vm636, %v1111, -inf
        %v1221 = vmax.f32 %v1219, %v1220
        %v1222 = vrot.slane %v1221, 4
        %v1223 = vmax.f32 %v1221, %v1222
        %v1224 = vrot.slane %v1223, 2
        %v1225 = vmax.f32 %v1223, %v1224
        %v1226 = vrot.slane %v1225, 1
        %v1227 = vmax.f32 %v1225, %v1226
        %v1228 = vsel %vm636, %v1112, -inf
        %v1229 = vsel %vm636, %v1113, -inf
        %v1230 = vmax.f32 %v1228, %v1229
        %v1231 = vrot.slane %v1230, 4
        %v1232 = vmax.f32 %v1230, %v1231
        %v1233 = vrot.slane %v1232, 2
        %v1234 = vmax.f32 %v1232, %v1233
        %v1235 = vrot.slane %v1234, 1
        %v1236 = vmax.f32 %v1234, %v1235
        %v1237 = vsel %vm636, %v1114, -inf
        %v1238 = vsel %vm636, %v1115, -inf
        %v1239 = vmax.f32 %v1237, %v1238
        %v1240 = vrot.slane %v1239, 4
        %v1241 = vmax.f32 %v1239, %v1240
        %v1242 = vrot.slane %v1241, 2
        %v1243 = vmax.f32 %v1241, %v1242
        %v1244 = vrot.slane %v1243, 1
        %v1245 = vmax.f32 %v1243, %v1244
        %v1246 = vsel %vm636, %v1116, -inf
        %v1247 = vsel %vm636, %v1117, -inf
        %v1248 = vmax.f32 %v1246, %v1247
        %v1249 = vrot.slane %v1248, 4
        %v1250 = vmax.f32 %v1248, %v1249
        %v1251 = vrot.slane %v1250, 2
        %v1252 = vmax.f32 %v1250, %v1251
        %v1253 = vrot.slane %v1252, 1
        %v1254 = vmax.f32 %v1252, %v1253
        %v1255 = vsel %vm636, %v1118, -inf
        %v1256 = vsel %vm636, %v1119, -inf
        %v1257 = vmax.f32 %v1255, %v1256
        %v1258 = vrot.slane %v1257, 4
        %v1259 = vmax.f32 %v1257, %v1258
        %v1260 = vrot.slane %v1259, 2
        %v1261 = vmax.f32 %v1259, %v1260
        %v1262 = vrot.slane %v1261, 1
        %v1263 = vmax.f32 %v1261, %v1262
        %v1264 = vsub.f32 %v1088, %v1128
        %v1265 = vsub.f32 %v1089, %v1128
        %v1266 = vsub.f32 %v1090, %v1137
        %v1267 = vsub.f32 %v1091, %v1137
        %v1268 = vsub.f32 %v1092, %v1146
        %v1269 = vsub.f32 %v1093, %v1146
        %v1270 = vsub.f32 %v1094, %v1155
        %v1271 = vsub.f32 %v1095, %v1155
        %v1272 = vsub.f32 %v1096, %v1164
        %v1273 = vsub.f32 %v1097, %v1164
        %v1274 = vsub.f32 %v1098, %v1173
        %v1275 = vsub.f32 %v1099, %v1173
        %v1276 = vsub.f32 %v1100, %v1182
        %v1277 = vsub.f32 %v1101, %v1182
        %v1278 = vsub.f32 %v1102, %v1191
        %v1279 = vsub.f32 %v1103, %v1191
        %v1280 = vsub.f32 %v1104, %v1200
        %v1281 = vsub.f32 %v1105, %v1200
        %v1282 = vsub.f32 %v1106, %v1209
        %v1283 = vsub.f32 %v1107, %v1209
        %v1284 = vsub.f32 %v1108, %v1218
        %v1285 = vsub.f32 %v1109, %v1218
        %v1286 = vsub.f32 %v1110, %v1227
        %v1287 = vsub.f32 %v1111, %v1227
        %v1288 = vsub.f32 %v1112, %v1236
        %v1289 = vsub.f32 %v1113, %v1236
        %v1290 = vsub.f32 %v1114, %v1245
        %v1291 = vsub.f32 %v1115, %v1245
        %v1292 = vsub.f32 %v1116, %v1254
        %v1293 = vsub.f32 %v1117, %v1254
        %v1294 = vsub.f32 %v1118, %v1263
        %v1295 = vsub.f32 %v1119, %v1263
        %v1296 = vmul.f32 %v1264, 1.442695
        %v1297 = vpow.pop %v1296
        %v1298 = vmul.f32 %v1265, 1.442695
        %v1299 = vpow.pop %v1298
        %v1300 = vmul.f32 %v1266, 1.442695
        %v1301 = vpow.pop %v1300
        %v1302 = vmul.f32 %v1267, 1.442695
        %v1303 = vpow.pop %v1302
        %v1304 = vmul.f32 %v1268, 1.442695
        %v1305 = vpow.pop %v1304
        %v1306 = vmul.f32 %v1269, 1.442695
        %v1307 = vpow.pop %v1306
        %v1308 = vmul.f32 %v1270, 1.442695
        %v1309 = vpow.pop %v1308
        %v1310 = vmul.f32 %v1271, 1.442695
        %v1311 = vpow.pop %v1310
        %v1312 = vmul.f32 %v1272, 1.442695
        %v1313 = vpow.pop %v1312
        %v1314 = vmul.f32 %v1273, 1.442695
        %v1315 = vpow.pop %v1314
        %v1316 = vmul.f32 %v1274, 1.442695
        %v1317 = vpow.pop %v1316
        %v1318 = vmul.f32 %v1275, 1.442695
        %v1319 = vpow.pop %v1318
        %v1320 = vmul.f32 %v1276, 1.442695
        %v1321 = vpow.pop %v1320
        %v1322 = vmul.f32 %v1277, 1.442695
        %v1323 = vpow.pop %v1322
        %v1324 = vmul.f32 %v1278, 1.442695
        %v1325 = vpow.pop %v1324
        %v1326 = vmul.f32 %v1279, 1.442695
        %v1327 = vpow.pop %v1326
        %v1328 = vmul.f32 %v1280, 1.442695
        %v1329 = vpow.pop %v1328
        %v1330 = vmul.f32 %v1281, 1.442695
        %v1331 = vpow.pop %v1330
        %v1332 = vmul.f32 %v1282, 1.442695
        %v1333 = vpow.pop %v1332
        %v1334 = vmul.f32 %v1283, 1.442695
        %v1335 = vpow.pop %v1334
        %v1336 = vmul.f32 %v1284, 1.442695
        %v1337 = vpow.pop %v1336
        %v1338 = vmul.f32 %v1285, 1.442695
        %v1339 = vpow.pop %v1338
        %v1340 = vmul.f32 %v1286, 1.442695
        %v1341 = vpow.pop %v1340
        %v1342 = vmul.f32 %v1287, 1.442695
        %v1343 = vpow.pop %v1342
        %v1344 = vmul.f32 %v1288, 1.442695
        %v1345 = vpow.pop %v1344
        %v1346 = vmul.f32 %v1289, 1.442695
        %v1347 = vpow.pop %v1346
        %v1348 = vmul.f32 %v1290, 1.442695
        %v1349 = vpow.pop %v1348
        %v1350 = vmul.f32 %v1291, 1.442695
        %v1351 = vpow.pop %v1350
        %v1352 = vmul.f32 %v1292, 1.442695
        %v1353 = vpow.pop %v1352
        %v1354 = vmul.f32 %v1293, 1.442695
        %v1355 = vpow.pop %v1354
        %v1356 = vmul.f32 %v1294, 1.442695
        %v1357 = vpow.pop %v1356
        %v1358 = vmul.f32 %v1295, 1.442695
        %v1359 = vpow.pop %v1358
        %v1360 = vsel %vm636, %v1297, 0.0
        %v1361 = vsel %vm636, %v1299, 0.0
        %v1362 = vadd.f32 %v1360, %v1361
        %v1363 = vrot.slane %v1362, 4
        %v1364 = vadd.f32 %v1362, %v1363
        %v1365 = vrot.slane %v1364, 2
        %v1366 = vadd.f32 %v1364, %v1365
        %v1367 = vrot.slane %v1366, 1
        %v1368 = vadd.f32 %v1366, %v1367
        %v1369 = vsel %vm636, %v1301, 0.0
        %v1370 = vsel %vm636, %v1303, 0.0
        %v1371 = vadd.f32 %v1369, %v1370
        %v1372 = vrot.slane %v1371, 4
        %v1373 = vadd.f32 %v1371, %v1372
        %v1374 = vrot.slane %v1373, 2
        %v1375 = vadd.f32 %v1373, %v1374
        %v1376 = vrot.slane %v1375, 1
        %v1377 = vadd.f32 %v1375, %v1376
        %v1378 = vsel %vm636, %v1305, 0.0
        %v1379 = vsel %vm636, %v1307, 0.0
        %v1380 = vadd.f32 %v1378, %v1379
        %v1381 = vrot.slane %v1380, 4
        %v1382 = vadd.f32 %v1380, %v1381
        %v1383 = vrot.slane %v1382, 2
        %v1384 = vadd.f32 %v1382, %v1383
        %v1385 = vrot.slane %v1384, 1
        %v1386 = vadd.f32 %v1384, %v1385
        %v1387 = vsel %vm636, %v1309, 0.0
        %v1388 = vsel %vm636, %v1311, 0.0
        %v1389 = vadd.f32 %v1387, %v1388
        %v1390 = vrot.slane %v1389, 4
        %v1391 = vadd.f32 %v1389, %v1390
        %v1392 = vrot.slane %v1391, 2
        %v1393 = vadd.f32 %v1391, %v1392
        %v1394 = vrot.slane %v1393, 1
        %v1395 = vadd.f32 %v1393, %v1394
        %v1396 = vsel %vm636, %v1313, 0.0
        %v1397 = vsel %vm636, %v1315, 0.0
        %v1398 = vadd.f32 %v1396, %v1397
        %v1399 = vrot.slane %v1398, 4
        %v1400 = vadd.f32 %v1398, %v1399
        %v1401 = vrot.slane %v1400, 2
        %v1402 = vadd.f32 %v1400, %v1401
        %v1403 = vrot.slane %v1402, 1
        %v1404 = vadd.f32 %v1402, %v1403
        %v1405 = vsel %vm636, %v1317, 0.0
        %v1406 = vsel %vm636, %v1319, 0.0
        %v1407 = vadd.f32 %v1405, %v1406
        %v1408 = vrot.slane %v1407, 4
        %v1409 = vadd.f32 %v1407, %v1408
        %v1410 = vrot.slane %v1409, 2
        %v1411 = vadd.f32 %v1409, %v1410
        %v1412 = vrot.slane %v1411, 1
        %v1413 = vadd.f32 %v1411, %v1412
        %v1414 = vsel %vm636, %v1321, 0.0
        %v1415 = vsel %vm636, %v1323, 0.0
        %v1416 = vadd.f32 %v1414, %v1415
        %v1417 = vrot.slane %v1416, 4
        %v1418 = vadd.f32 %v1416, %v1417
        %v1419 = vrot.slane %v1418, 2
        %v1420 = vadd.f32 %v1418, %v1419
        %v1421 = vrot.slane %v1420, 1
        %v1422 = vadd.f32 %v1420, %v1421
        %v1423 = vsel %vm636, %v1325, 0.0
        %v1424 = vsel %vm636, %v1327, 0.0
        %v1425 = vadd.f32 %v1423, %v1424
        %v1426 = vrot.slane %v1425, 4
        %v1427 = vadd.f32 %v1425, %v1426
        %v1428 = vrot.slane %v1427, 2
        %v1429 = vadd.f32 %v1427, %v1428
        %v1430 = vrot.slane %v1429, 1
        %v1431 = vadd.f32 %v1429, %v1430
        %v1432 = vsel %vm636, %v1329, 0.0
        %v1433 = vsel %vm636, %v1331, 0.0
        %v1434 = vadd.f32 %v1432, %v1433
        %v1435 = vrot.slane %v1434, 4
        %v1436 = vadd.f32 %v1434, %v1435
        %v1437 = vrot.slane %v1436, 2
        %v1438 = vadd.f32 %v1436, %v1437
        %v1439 = vrot.slane %v1438, 1
        %v1440 = vadd.f32 %v1438, %v1439
        %v1441 = vsel %vm636, %v1333, 0.0
        %v1442 = vsel %vm636, %v1335, 0.0
        %v1443 = vadd.f32 %v1441, %v1442
        %v1444 = vrot.slane %v1443, 4
        %v1445 = vadd.f32 %v1443, %v1444
        %v1446 = vrot.slane %v1445, 2
        %v1447 = vadd.f32 %v1445, %v1446
        %v1448 = vrot.slane %v1447, 1
        %v1449 = vadd.f32 %v1447, %v1448
        %v1450 = vsel %vm636, %v1337, 0.0
        %v1451 = vsel %vm636, %v1339, 0.0
        %v1452 = vadd.f32 %v1450, %v1451
        %v1453 = vrot.slane %v1452, 4
        %v1454 = vadd.f32 %v1452, %v1453
        %v1455 = vrot.slane %v1454, 2
        %v1456 = vadd.f32 %v1454, %v1455
        %v1457 = vrot.slane %v1456, 1
        %v1458 = vadd.f32 %v1456, %v1457
        %v1459 = vsel %vm636, %v1341, 0.0
        %v1460 = vsel %vm636, %v1343, 0.0
        %v1461 = vadd.f32 %v1459, %v1460
        %v1462 = vrot.slane %v1461, 4
        %v1463 = vadd.f32 %v1461, %v1462
        %v1464 = vrot.slane %v1463, 2
        %v1465 = vadd.f32 %v1463, %v1464
        %v1466 = vrot.slane %v1465, 1
        %v1467 = vadd.f32 %v1465, %v1466
        %v1468 = vsel %vm636, %v1345, 0.0
        %v1469 = vsel %vm636, %v1347, 0.0
        %v1470 = vadd.f32 %v1468, %v1469
        %v1471 = vrot.slane %v1470, 4
        %v1472 = vadd.f32 %v1470, %v1471
        %v1473 = vrot.slane %v1472, 2
        %v1474 = vadd.f32 %v1472, %v1473
        %v1475 = vrot.slane %v1474, 1
        %v1476 = vadd.f32 %v1474, %v1475
        %v1477 = vsel %vm636, %v1349, 0.0
        %v1478 = vsel %vm636, %v1351, 0.0
        %v1479 = vadd.f32 %v1477, %v1478
        %v1480 = vrot.slane %v1479, 4
        %v1481 = vadd.f32 %v1479, %v1480
        %v1482 = vrot.slane %v1481, 2
        %v1483 = vadd.f32 %v1481, %v1482
        %v1484 = vrot.slane %v1483, 1
        %v1485 = vadd.f32 %v1483, %v1484
        %v1486 = vsel %vm636, %v1353, 0.0
        %v1487 = vsel %vm636, %v1355, 0.0
        %v1488 = vadd.f32 %v1486, %v1487
        %v1489 = vrot.slane %v1488, 4
        %v1490 = vadd.f32 %v1488, %v1489
        %v1491 = vrot.slane %v1490, 2
        %v1492 = vadd.f32 %v1490, %v1491
        %v1493 = vrot.slane %v1492, 1
        %v1494 = vadd.f32 %v1492, %v1493
        %v1495 = vsel %vm636, %v1357, 0.0
        %v1496 = vsel %vm636, %v1359, 0.0
        %v1497 = vadd.f32 %v1495, %v1496
        %v1498 = vrot.slane %v1497, 4
        %v1499 = vadd.f32 %v1497, %v1498
        %v1500 = vrot.slane %v1499, 2
        %v1501 = vadd.f32 %v1499, %v1500
        %v1502 = vrot.slane %v1501, 1
        %v1503 = vadd.f32 %v1501, %v1502
        %v1504 = vrcp.pop %v1368
        %v1505 = vrcp.pop %v1377
        %v1506 = vrcp.pop %v1386
        %v1507 = vrcp.pop %v1395
        %v1508 = vrcp.pop %v1404
        %v1509 = vrcp.pop %v1413
        %v1510 = vrcp.pop %v1422
        %v1511 = vrcp.pop %v1431
        %v1512 = vrcp.pop %v1440
        %v1513 = vrcp.pop %v1449
        %v1514 = vrcp.pop %v1458
        %v1515 = vrcp.pop %v1467
        %v1516 = vrcp.pop %v1476
        %v1517 = vrcp.pop %v1485
        %v1518 = vrcp.pop %v1494
        %v1519 = vrcp.pop %v1503
        %v1520 = vmul.f32 %v1368, %v1504
        %v1521 = vmul.f32 %v1377, %v1505
        %v1522 = vmul.f32 %v1386, %v1506
        %v1523 = vmul.f32 %v1395, %v1507
        %v1524 = vmul.f32 %v1404, %v1508
        %v1525 = vmul.f32 %v1413, %v1509
        %v1526 = vmul.f32 %v1422, %v1510
        %v1527 = vmul.f32 %v1431, %v1511
        %v1528 = vmul.f32 %v1440, %v1512
        %v1529 = vmul.f32 %v1449, %v1513
        %v1530 = vmul.f32 %v1458, %v1514
        %v1531 = vmul.f32 %v1467, %v1515
        %v1532 = vmul.f32 %v1476, %v1516
        %v1533 = vmul.f32 %v1485, %v1517
        %v1534 = vmul.f32 %v1494, %v1518
        %v1535 = vmul.f32 %v1503, %v1519
        %v1536 = vsub.f32 2.0, %v1520
        %v1537 = vsub.f32 2.0, %v1521
        %v1538 = vsub.f32 2.0, %v1522
        %v1539 = vsub.f32 2.0, %v1523
        %v1540 = vsub.f32 2.0, %v1524
        %v1541 = vsub.f32 2.0, %v1525
        %v1542 = vsub.f32 2.0, %v1526
        %v1543 = vsub.f32 2.0, %v1527
        %v1544 = vsub.f32 2.0, %v1528
        %v1545 = vsub.f32 2.0, %v1529
        %v1546 = vsub.f32 2.0, %v1530
        %v1547 = vsub.f32 2.0, %v1531
        %v1548 = vsub.f32 2.0, %v1532
        %v1549 = vsub.f32 2.0, %v1533
        %v1550 = vsub.f32 2.0, %v1534
        %v1551 = vsub.f32 2.0, %v1535
        %v1552 = vmul.f32 %v1504, %v1536
        %v1553 = vmul.f32 %v1505, %v1537
        %v1554 = vmul.f32 %v1506, %v1538
        %v1555 = vmul.f32 %v1507, %v1539
        %v1556 = vmul.f32 %v1508, %v1540
        %v1557 = vmul.f32 %v1509, %v1541
        %v1558 = vmul.f32 %v1510, %v1542
        %v1559 = vmul.f32 %v1511, %v1543
        %v1560 = vmul.f32 %v1512, %v1544
        %v1561 = vmul.f32 %v1513, %v1545
        %v1562 = vmul.f32 %v1514, %v1546
        %v1563 = vmul.f32 %v1515, %v1547
        %v1564 = vmul.f32 %v1516, %v1548
        %v1565 = vmul.f32 %v1517, %v1549
        %v1566 = vmul.f32 %v1518, %v1550
        %v1567 = vmul.f32 %v1519, %v1551
        %v1568 = vmul.f32 %v1297, %v1552
        %v1569 = vmul.f32 %v1299, %v1552
        %v1570 = vmul.f32 %v1301, %v1553
        %v1571 = vmul.f32 %v1303, %v1553
        %v1572 = vmul.f32 %v1305, %v1554
        %v1573 = vmul.f32 %v1307, %v1554
        %v1574 = vmul.f32 %v1309, %v1555
        %v1575 = vmul.f32 %v1311, %v1555
        %v1576 = vmul.f32 %v1313, %v1556
        %v1577 = vmul.f32 %v1315, %v1556
        %v1578 = vmul.f32 %v1317, %v1557
        %v1579 = vmul.f32 %v1319, %v1557
        %v1580 = vmul.f32 %v1321, %v1558
        %v1581 = vmul.f32 %v1323, %v1558
        %v1582 = vmul.f32 %v1325, %v1559
        %v1583 = vmul.f32 %v1327, %v1559
        %v1584 = vmul.f32 %v1329, %v1560
        %v1585 = vmul.f32 %v1331, %v1560
        %v1586 = vmul.f32 %v1333, %v1561
        %v1587 = vmul.f32 %v1335, %v1561
        %v1588 = vmul.f32 %v1337, %v1562
        %v1589 = vmul.f32 %v1339, %v1562
        %v1590 = vmul.f32 %v1341, %v1563
        %v1591 = vmul.f32 %v1343, %v1563
        %v1592 = vmul.f32 %v1345, %v1564
        %v1593 = vmul.f32 %v1347, %v1564
        %v1594 = vmul.f32 %v1349, %v1565
        %v1595 = vmul.f32 %v1351, %v1565
        %v1596 = vmul.f32 %v1353, %v1566
        %v1597 = vmul.f32 %v1355, %v1566
        %v1598 = vmul.f32 %v1357, %v1567
        %v1599 = vmul.f32 %v1359, %v1567
        %v1600 = vmul.f32 %v1568, %v767
        %v1601 = vmul.f32 %v1569, %v768
        %v1602 = vmul.f32 %v1570, %v769
        %v1603 = vmul.f32 %v1571, %v770
        %v1604 = vmul.f32 %v1572, %v771
        %v1605 = vmul.f32 %v1573, %v772
        %v1606 = vmul.f32 %v1574, %v773
        %v1607 = vmul.f32 %v1575, %v774
        %v1608 = vmul.f32 %v1576, %v775
        %v1609 = vmul.f32 %v1577, %v776
        %v1610 = vmul.f32 %v1578, %v777
        %v1611 = vmul.f32 %v1579, %v778
        %v1612 = vmul.f32 %v1580, %v779
        %v1613 = vmul.f32 %v1581, %v780
        %v1614 = vmul.f32 %v1582, %v781
        %v1615 = vmul.f32 %v1583, %v782
        %v1616 = vmul.f32 %v1584, %v783
        %v1617 = vmul.f32 %v1585, %v784
        %v1618 = vmul.f32 %v1586, %v785
        %v1619 = vmul.f32 %v1587, %v786
        %v1620 = vmul.f32 %v1588, %v787
        %v1621 = vmul.f32 %v1589, %v788
        %v1622 = vmul.f32 %v1590, %v789
        %v1623 = vmul.f32 %v1591, %v790
        %v1624 = vmul.f32 %v1592, %v791
        %v1625 = vmul.f32 %v1593, %v792
        %v1626 = vmul.f32 %v1594, %v793
        %v1627 = vmul.f32 %v1595, %v794
        %v1628 = vmul.f32 %v1596, %v795
        %v1629 = vmul.f32 %v1597, %v796
        %v1630 = vmul.f32 %v1598, %v797
        %v1631 = vmul.f32 %v1599, %v798
        %v1632 = vsel %vm636, %v1600, 0.0
        %v1633 = vsel %vm636, %v1601, 0.0
        %v1634 = vadd.f32 %v1632, %v1633
        %v1635 = vrot.slane %v1634, 4
        %v1636 = vadd.f32 %v1634, %v1635
        %v1637 = vrot.slane %v1636, 2
        %v1638 = vadd.f32 %v1636, %v1637
        %v1639 = vrot.slane %v1638, 1
        %v1640 = vadd.f32 %v1638, %v1639
        %v1641 = vsel %vm636, %v1602, 0.0
        %v1642 = vsel %vm636, %v1603, 0.0
        %v1643 = vadd.f32 %v1641, %v1642
        %v1644 = vrot.slane %v1643, 4
        %v1645 = vadd.f32 %v1643, %v1644
        %v1646 = vrot.slane %v1645, 2
        %v1647 = vadd.f32 %v1645, %v1646
        %v1648 = vrot.slane %v1647, 1
        %v1649 = vadd.f32 %v1647, %v1648
        %v1650 = vsel %vm636, %v1604, 0.0
        %v1651 = vsel %vm636, %v1605, 0.0
        %v1652 = vadd.f32 %v1650, %v1651
        %v1653 = vrot.slane %v1652, 4
        %v1654 = vadd.f32 %v1652, %v1653
        %v1655 = vrot.slane %v1654, 2
        %v1656 = vadd.f32 %v1654, %v1655
        %v1657 = vrot.slane %v1656, 1
        %v1658 = vadd.f32 %v1656, %v1657
        %v1659 = vsel %vm636, %v1606, 0.0
        %v1660 = vsel %vm636, %v1607, 0.0
        %v1661 = vadd.f32 %v1659, %v1660
        %v1662 = vrot.slane %v1661, 4
        %v1663 = vadd.f32 %v1661, %v1662
        %v1664 = vrot.slane %v1663, 2
        %v1665 = vadd.f32 %v1663, %v1664
        %v1666 = vrot.slane %v1665, 1
        %v1667 = vadd.f32 %v1665, %v1666
        %v1668 = vsel %vm636, %v1608, 0.0
        %v1669 = vsel %vm636, %v1609, 0.0
        %v1670 = vadd.f32 %v1668, %v1669
        %v1671 = vrot.slane %v1670, 4
        %v1672 = vadd.f32 %v1670, %v1671
        %v1673 = vrot.slane %v1672, 2
        %v1674 = vadd.f32 %v1672, %v1673
        %v1675 = vrot.slane %v1674, 1
        %v1676 = vadd.f32 %v1674, %v1675
        %v1677 = vsel %vm636, %v1610, 0.0
        %v1678 = vsel %vm636, %v1611, 0.0
        %v1679 = vadd.f32 %v1677, %v1678
        %v1680 = vrot.slane %v1679, 4
        %v1681 = vadd.f32 %v1679, %v1680
        %v1682 = vrot.slane %v1681, 2
        %v1683 = vadd.f32 %v1681, %v1682
        %v1684 = vrot.slane %v1683, 1
        %v1685 = vadd.f32 %v1683, %v1684
        %v1686 = vsel %vm636, %v1612, 0.0
        %v1687 = vsel %vm636, %v1613, 0.0
        %v1688 = vadd.f32 %v1686, %v1687
        %v1689 = vrot.slane %v1688, 4
        %v1690 = vadd.f32 %v1688, %v1689
        %v1691 = vrot.slane %v1690, 2
        %v1692 = vadd.f32 %v1690, %v1691
        %v1693 = vrot.slane %v1692, 1
        %v1694 = vadd.f32 %v1692, %v1693
        %v1695 = vsel %vm636, %v1614, 0.0
        %v1696 = vsel %vm636, %v1615, 0.0
        %v1697 = vadd.f32 %v1695, %v1696
        %v1698 = vrot.slane %v1697, 4
        %v1699 = vadd.f32 %v1697, %v1698
        %v1700 = vrot.slane %v1699, 2
        %v1701 = vadd.f32 %v1699, %v1700
        %v1702 = vrot.slane %v1701, 1
        %v1703 = vadd.f32 %v1701, %v1702
        %v1704 = vsel %vm636, %v1616, 0.0
        %v1705 = vsel %vm636, %v1617, 0.0
        %v1706 = vadd.f32 %v1704, %v1705
        %v1707 = vrot.slane %v1706, 4
        %v1708 = vadd.f32 %v1706, %v1707
        %v1709 = vrot.slane %v1708, 2
        %v1710 = vadd.f32 %v1708, %v1709
        %v1711 = vrot.slane %v1710, 1
        %v1712 = vadd.f32 %v1710, %v1711
        %v1713 = vsel %vm636, %v1618, 0.0
        %v1714 = vsel %vm636, %v1619, 0.0
        %v1715 = vadd.f32 %v1713, %v1714
        %v1716 = vrot.slane %v1715, 4
        %v1717 = vadd.f32 %v1715, %v1716
        %v1718 = vrot.slane %v1717, 2
        %v1719 = vadd.f32 %v1717, %v1718
        %v1720 = vrot.slane %v1719, 1
        %v1721 = vadd.f32 %v1719, %v1720
        %v1722 = vsel %vm636, %v1620, 0.0
        %v1723 = vsel %vm636, %v1621, 0.0
        %v1724 = vadd.f32 %v1722, %v1723
        %v1725 = vrot.slane %v1724, 4
        %v1726 = vadd.f32 %v1724, %v1725
        %v1727 = vrot.slane %v1726, 2
        %v1728 = vadd.f32 %v1726, %v1727
        %v1729 = vrot.slane %v1728, 1
        %v1730 = vadd.f32 %v1728, %v1729
        %v1731 = vsel %vm636, %v1622, 0.0
        %v1732 = vsel %vm636, %v1623, 0.0
        %v1733 = vadd.f32 %v1731, %v1732
        %v1734 = vrot.slane %v1733, 4
        %v1735 = vadd.f32 %v1733, %v1734
        %v1736 = vrot.slane %v1735, 2
        %v1737 = vadd.f32 %v1735, %v1736
        %v1738 = vrot.slane %v1737, 1
        %v1739 = vadd.f32 %v1737, %v1738
        %v1740 = vsel %vm636, %v1624, 0.0
        %v1741 = vsel %vm636, %v1625, 0.0
        %v1742 = vadd.f32 %v1740, %v1741
        %v1743 = vrot.slane %v1742, 4
        %v1744 = vadd.f32 %v1742, %v1743
        %v1745 = vrot.slane %v1744, 2
        %v1746 = vadd.f32 %v1744, %v1745
        %v1747 = vrot.slane %v1746, 1
        %v1748 = vadd.f32 %v1746, %v1747
        %v1749 = vsel %vm636, %v1626, 0.0
        %v1750 = vsel %vm636, %v1627, 0.0
        %v1751 = vadd.f32 %v1749, %v1750
        %v1752 = vrot.slane %v1751, 4
        %v1753 = vadd.f32 %v1751, %v1752
        %v1754 = vrot.slane %v1753, 2
        %v1755 = vadd.f32 %v1753, %v1754
        %v1756 = vrot.slane %v1755, 1
        %v1757 = vadd.f32 %v1755, %v1756
        %v1758 = vsel %vm636, %v1628, 0.0
        %v1759 = vsel %vm636, %v1629, 0.0
        %v1760 = vadd.f32 %v1758, %v1759
        %v1761 = vrot.slane %v1760, 4
        %v1762 = vadd.f32 %v1760, %v1761
        %v1763 = vrot.slane %v1762, 2
        %v1764 = vadd.f32 %v1762, %v1763
        %v1765 = vrot.slane %v1764, 1
        %v1766 = vadd.f32 %v1764, %v1765
        %v1767 = vsel %vm636, %v1630, 0.0
        %v1768 = vsel %vm636, %v1631, 0.0
        %v1769 = vadd.f32 %v1767, %v1768
        %v1770 = vrot.slane %v1769, 4
        %v1771 = vadd.f32 %v1769, %v1770
        %v1772 = vrot.slane %v1771, 2
        %v1773 = vadd.f32 %v1771, %v1772
        %v1774 = vrot.slane %v1773, 1
        %v1775 = vadd.f32 %v1773, %v1774
        %v1776 = vstv %s298
        %v1777 = vadd.f32 %v1640, %v1776
        %v1778 = vadd.f32 %v1649, %v1776
        %v1779 = vadd.f32 %v1658, %v1776
        %v1780 = vadd.f32 %v1667, %v1776
        %v1781 = vadd.f32 %v1676, %v1776
        %v1782 = vadd.f32 %v1685, %v1776
        %v1783 = vadd.f32 %v1694, %v1776
        %v1784 = vadd.f32 %v1703, %v1776
        %v1785 = vadd.f32 %v1712, %v1776
        %v1786 = vadd.f32 %v1721, %v1776
        %v1787 = vadd.f32 %v1730, %v1776
        %v1788 = vadd.f32 %v1739, %v1776
        %v1789 = vadd.f32 %v1748, %v1776
        %v1790 = vadd.f32 %v1757, %v1776
        %v1791 = vadd.f32 %v1766, %v1776
        %v1792 = vadd.f32 %v1775, %v1776
        %vm1793 = vcmask 122880
        %1794 = vst.msk [vmem:[%s286] sm:$0x1] %vm1793, %v1777
        %1795 = vst.msk [vmem:[%s286 + $0x1] sm:$0x1] %vm1793, %v1778
        %1796 = vst.msk [vmem:[%s286 + $0x2] sm:$0x1] %vm1793, %v1779
        %1797 = vst.msk [vmem:[%s286 + $0x3] sm:$0x1] %vm1793, %v1780
        %1798 = vst.msk [vmem:[%s286 + $0x4] sm:$0x1] %vm1793, %v1781
        %1799 = vst.msk [vmem:[%s286 + $0x5] sm:$0x1] %vm1793, %v1782
        %1800 = vst.msk [vmem:[%s286 + $0x6] sm:$0x1] %vm1793, %v1783
        %1801 = vst.msk [vmem:[%s286 + $0x7] sm:$0x1] %vm1793, %v1784
        %1802 = vst.msk [vmem:[%s286 + $0x8] sm:$0x1] %vm1793, %v1785
        %1803 = vst.msk [vmem:[%s286 + $0x9] sm:$0x1] %vm1793, %v1786
        %1804 = vst.msk [vmem:[%s286 + $0xa] sm:$0x1] %vm1793, %v1787
        %1805 = vst.msk [vmem:[%s286 + $0xb] sm:$0x1] %vm1793, %v1788
        %1806 = vst.msk [vmem:[%s286 + $0xc] sm:$0x1] %vm1793, %v1789
        %1807 = vst.msk [vmem:[%s286 + $0xd] sm:$0x1] %vm1793, %v1790
        %1808 = vst.msk [vmem:[%s286 + $0xe] sm:$0x1] %vm1793, %v1791
        %1809 = vst.msk [vmem:[%s286 + $0xf] sm:$0x1] %vm1793, %v1792
        %v1810 = vld [vmem:[%s274] sm:$0x1]
        %v1811 = vld [vmem:[%s274 + $0x1] sm:$0x1]
        %v1812 = vld [vmem:[%s274 + $0x2] sm:$0x1]
        %v1813 = vld [vmem:[%s274 + $0x3] sm:$0x1]
        %v1814 = vld [vmem:[%s274 + $0x4] sm:$0x1]
        %v1815 = vld [vmem:[%s274 + $0x5] sm:$0x1]
        %v1816 = vld [vmem:[%s274 + $0x6] sm:$0x1]
        %v1817 = vld [vmem:[%s274 + $0x7] sm:$0x1]
        %v1818 = vld [vmem:[%s274 + $0x8] sm:$0x1]
        %v1819 = vld [vmem:[%s274 + $0x9] sm:$0x1]
        %v1820 = vld [vmem:[%s274 + $0xa] sm:$0x1]
        %v1821 = vld [vmem:[%s274 + $0xb] sm:$0x1]
        %v1822 = vld [vmem:[%s274 + $0xc] sm:$0x1]
        %v1823 = vld [vmem:[%s274 + $0xd] sm:$0x1]
        %v1824 = vld [vmem:[%s274 + $0xe] sm:$0x1]
        %v1825 = vld [vmem:[%s274 + $0xf] sm:$0x1]
        %s1826 = sld [smem:[#allocation2 + $0x2]]
        %s1827 = sld [smem:[#allocation2 + $0x3]]
        %v1828 = vstv %s1826
        %v1829 = vmul.f32 %v1828, %v1810
        %v1830 = vmul.f32 %v1828, %v1811
        %v1831 = vmul.f32 %v1828, %v1812
        %v1832 = vmul.f32 %v1828, %v1813
        %v1833 = vmul.f32 %v1828, %v1814
        %v1834 = vmul.f32 %v1828, %v1815
        %v1835 = vmul.f32 %v1828, %v1816
        %v1836 = vmul.f32 %v1828, %v1817
        %v1837 = vmul.f32 %v1828, %v1818
        %v1838 = vmul.f32 %v1828, %v1819
        %v1839 = vmul.f32 %v1828, %v1820
        %v1840 = vmul.f32 %v1828, %v1821
        %v1841 = vmul.f32 %v1828, %v1822
        %v1842 = vmul.f32 %v1828, %v1823
        %v1843 = vmul.f32 %v1828, %v1824
        %v1844 = vmul.f32 %v1828, %v1825
        %v1845 = vstv %s1827
        %v1846 = vadd.f32 %v1829, %v1845
        %v1847 = vadd.f32 %v1830, %v1845
        %v1848 = vadd.f32 %v1831, %v1845
        %v1849 = vadd.f32 %v1832, %v1845
        %v1850 = vadd.f32 %v1833, %v1845
        %v1851 = vadd.f32 %v1834, %v1845
        %v1852 = vadd.f32 %v1835, %v1845
        %v1853 = vadd.f32 %v1836, %v1845
        %v1854 = vadd.f32 %v1837, %v1845
        %v1855 = vadd.f32 %v1838, %v1845
        %v1856 = vadd.f32 %v1839, %v1845
        %v1857 = vadd.f32 %v1840, %v1845
        %v1858 = vadd.f32 %v1841, %v1845
        %v1859 = vadd.f32 %v1842, %v1845
        %v1860 = vadd.f32 %v1843, %v1845
        %v1861 = vadd.f32 %v1844, %v1845
        %v1862 = vmax.f32 %v1846, 0.0
        %v1863 = vmax.f32 %v1847, 0.0
        %v1864 = vmax.f32 %v1848, 0.0
        %v1865 = vmax.f32 %v1849, 0.0
        %v1866 = vmax.f32 %v1850, 0.0
        %v1867 = vmax.f32 %v1851, 0.0
        %v1868 = vmax.f32 %v1852, 0.0
        %v1869 = vmax.f32 %v1853, 0.0
        %v1870 = vmax.f32 %v1854, 0.0
        %v1871 = vmax.f32 %v1855, 0.0
        %v1872 = vmax.f32 %v1856, 0.0
        %v1873 = vmax.f32 %v1857, 0.0
        %v1874 = vmax.f32 %v1858, 0.0
        %v1875 = vmax.f32 %v1859, 0.0
        %v1876 = vmax.f32 %v1860, 0.0
        %v1877 = vmax.f32 %v1861, 0.0
        %v1878 = vmul.f32 %v474, %v1862
        %v1879 = vmul.f32 %v474, %v1863
        %v1880 = vmul.f32 %v474, %v1864
        %v1881 = vmul.f32 %v474, %v1865
        %v1882 = vmul.f32 %v474, %v1866
        %v1883 = vmul.f32 %v474, %v1867
        %v1884 = vmul.f32 %v474, %v1868
        %v1885 = vmul.f32 %v474, %v1869
        %v1886 = vmul.f32 %v474, %v1870
        %v1887 = vmul.f32 %v474, %v1871
        %v1888 = vmul.f32 %v474, %v1872
        %v1889 = vmul.f32 %v474, %v1873
        %v1890 = vmul.f32 %v474, %v1874
        %v1891 = vmul.f32 %v474, %v1875
        %v1892 = vmul.f32 %v474, %v1876
        %v1893 = vmul.f32 %v474, %v1877
        %v1894 = vadd.f32 %v1878, %v491
        %v1895 = vadd.f32 %v1879, %v491
        %v1896 = vadd.f32 %v1880, %v491
        %v1897 = vadd.f32 %v1881, %v491
        %v1898 = vadd.f32 %v1882, %v491
        %v1899 = vadd.f32 %v1883, %v491
        %v1900 = vadd.f32 %v1884, %v491
        %v1901 = vadd.f32 %v1885, %v491
        %v1902 = vadd.f32 %v1886, %v491
        %v1903 = vadd.f32 %v1887, %v491
        %v1904 = vadd.f32 %v1888, %v491
        %v1905 = vadd.f32 %v1889, %v491
        %v1906 = vadd.f32 %v1890, %v491
        %v1907 = vadd.f32 %v1891, %v491
        %v1908 = vadd.f32 %v1892, %v491
        %v1909 = vadd.f32 %v1893, %v491
        %v1926 = vlaneseq
        %v1927 = vshrl.u32 %v1926, 7
        %v1928 = vsub.s32 0, %v1927
        %v1929 = vrot.slane %v1862, %v1928
        %v1930 = vlaneseq
        %v1931 = vshrl.u32 %v1930, 7
        %v1932 = vsub.s32 0, %v1931
        %v1933 = vrot.slane %v1863, %v1932
        %v1934 = vlaneseq
        %v1935 = vshrl.u32 %v1934, 7
        %v1936 = vsub.s32 0, %v1935
        %v1937 = vrot.slane %v1864, %v1936
        %v1938 = vlaneseq
        %v1939 = vshrl.u32 %v1938, 7
        %v1940 = vsub.s32 0, %v1939
        %v1941 = vrot.slane %v1865, %v1940
        %v1942 = vlaneseq
        %v1943 = vshrl.u32 %v1942, 7
        %v1944 = vsub.s32 0, %v1943
        %v1945 = vrot.slane %v1866, %v1944
        %v1946 = vlaneseq
        %v1947 = vshrl.u32 %v1946, 7
        %v1948 = vsub.s32 0, %v1947
        %v1949 = vrot.slane %v1867, %v1948
        %v1950 = vlaneseq
        %v1951 = vshrl.u32 %v1950, 7
        %v1952 = vsub.s32 0, %v1951
        %v1953 = vrot.slane %v1868, %v1952
        %v1954 = vlaneseq
        %v1955 = vshrl.u32 %v1954, 7
        %v1956 = vsub.s32 0, %v1955
        %v1957 = vrot.slane %v1869, %v1956
        %v1958 = vlaneseq
        %v1959 = vshrl.u32 %v1958, 7
        %v1960 = vsub.s32 0, %v1959
        %v1961 = vrot.slane %v1870, %v1960
        %v1962 = vlaneseq
        %v1963 = vshrl.u32 %v1962, 7
        %v1964 = vsub.s32 0, %v1963
        %v1965 = vrot.slane %v1871, %v1964
        %v1966 = vlaneseq
        %v1967 = vshrl.u32 %v1966, 7
        %v1968 = vsub.s32 0, %v1967
        %v1969 = vrot.slane %v1872, %v1968
        %v1970 = vlaneseq
        %v1971 = vshrl.u32 %v1970, 7
        %v1972 = vsub.s32 0, %v1971
        %v1973 = vrot.slane %v1873, %v1972
        %v1974 = vlaneseq
        %v1975 = vshrl.u32 %v1974, 7
        %v1976 = vsub.s32 0, %v1975
        %v1977 = vrot.slane %v1874, %v1976
        %v1978 = vlaneseq
        %v1979 = vshrl.u32 %v1978, 7
        %v1980 = vsub.s32 0, %v1979
        %v1981 = vrot.slane %v1875, %v1980
        %v1982 = vlaneseq
        %v1983 = vshrl.u32 %v1982, 7
        %v1984 = vsub.s32 0, %v1983
        %v1985 = vrot.slane %v1876, %v1984
        %v1986 = vlaneseq
        %v1987 = vshrl.u32 %v1986, 7
        %v1988 = vsub.s32 0, %v1987
        %v1989 = vrot.slane %v1877, %v1988
        %v2006 = vmul.f32 %v1929, %v404
        %v2007 = vmul.f32 %v1929, %v405
        %v2008 = vmul.f32 %v1933, %v404
        %v2009 = vmul.f32 %v1933, %v405
        %v2010 = vmul.f32 %v1937, %v404
        %v2011 = vmul.f32 %v1937, %v405
        %v2012 = vmul.f32 %v1941, %v404
        %v2013 = vmul.f32 %v1941, %v405
        %v2014 = vmul.f32 %v1945, %v404
        %v2015 = vmul.f32 %v1945, %v405
        %v2016 = vmul.f32 %v1949, %v404
        %v2017 = vmul.f32 %v1949, %v405
        %v2018 = vmul.f32 %v1953, %v404
        %v2019 = vmul.f32 %v1953, %v405
        %v2020 = vmul.f32 %v1957, %v404
        %v2021 = vmul.f32 %v1957, %v405
        %v2022 = vmul.f32 %v1961, %v404
        %v2023 = vmul.f32 %v1961, %v405
        %v2024 = vmul.f32 %v1965, %v404
        %v2025 = vmul.f32 %v1965, %v405
        %v2026 = vmul.f32 %v1969, %v404
        %v2027 = vmul.f32 %v1969, %v405
        %v2028 = vmul.f32 %v1973, %v404
        %v2029 = vmul.f32 %v1973, %v405
        %v2030 = vmul.f32 %v1977, %v404
        %v2031 = vmul.f32 %v1977, %v405
        %v2032 = vmul.f32 %v1981, %v404
        %v2033 = vmul.f32 %v1981, %v405
        %v2034 = vmul.f32 %v1985, %v404
        %v2035 = vmul.f32 %v1985, %v405
        %v2036 = vmul.f32 %v1989, %v404
        %v2037 = vmul.f32 %v1989, %v405
        %v2038 = vsel %vm636, %v2006, 0.0
        %2039 = vadd.xlane.f32.xlu0 %v2038
        %v2040 = vpop.xlane.xlu0 %2039
        %v2041 = vsel %vm636, %v2007, 0.0
        %2042 = vadd.xlane.f32.xlu0 %v2041
        %v2043 = vpop.xlane.xlu0 %2042
        %v2044 = vsel %vm636, %v2008, 0.0
        %2045 = vadd.xlane.f32.xlu0 %v2044
        %v2046 = vpop.xlane.xlu0 %2045
        %v2047 = vsel %vm636, %v2009, 0.0
        %2048 = vadd.xlane.f32.xlu0 %v2047
        %v2049 = vpop.xlane.xlu0 %2048
        %v2050 = vsel %vm636, %v2010, 0.0
        %2051 = vadd.xlane.f32.xlu0 %v2050
        %v2052 = vpop.xlane.xlu0 %2051
        %v2053 = vsel %vm636, %v2011, 0.0
        %2054 = vadd.xlane.f32.xlu0 %v2053
        %v2055 = vpop.xlane.xlu0 %2054
        %v2056 = vsel %vm636, %v2012, 0.0
        %2057 = vadd.xlane.f32.xlu0 %v2056
        %v2058 = vpop.xlane.xlu0 %2057
        %v2059 = vsel %vm636, %v2013, 0.0
        %2060 = vadd.xlane.f32.xlu0 %v2059
        %v2061 = vpop.xlane.xlu0 %2060
        %v2062 = vsel %vm636, %v2014, 0.0
        %2063 = vadd.xlane.f32.xlu0 %v2062
        %v2064 = vpop.xlane.xlu0 %2063
        %v2065 = vsel %vm636, %v2015, 0.0
        %2066 = vadd.xlane.f32.xlu0 %v2065
        %v2067 = vpop.xlane.xlu0 %2066
        %v2068 = vsel %vm636, %v2016, 0.0
        %2069 = vadd.xlane.f32.xlu0 %v2068
        %v2070 = vpop.xlane.xlu0 %2069
        %v2071 = vsel %vm636, %v2017, 0.0
        %2072 = vadd.xlane.f32.xlu0 %v2071
        %v2073 = vpop.xlane.xlu0 %2072
        %v2074 = vsel %vm636, %v2018, 0.0
        %2075 = vadd.xlane.f32.xlu0 %v2074
        %v2076 = vpop.xlane.xlu0 %2075
        %v2077 = vsel %vm636, %v2019, 0.0
        %2078 = vadd.xlane.f32.xlu0 %v2077
        %v2079 = vpop.xlane.xlu0 %2078
        %v2080 = vsel %vm636, %v2020, 0.0
        %2081 = vadd.xlane.f32.xlu0 %v2080
        %v2082 = vpop.xlane.xlu0 %2081
        %v2083 = vsel %vm636, %v2021, 0.0
        %2084 = vadd.xlane.f32.xlu0 %v2083
        %v2085 = vpop.xlane.xlu0 %2084
        %v2086 = vsel %vm636, %v2022, 0.0
        %2087 = vadd.xlane.f32.xlu0 %v2086
        %v2088 = vpop.xlane.xlu0 %2087
        %v2089 = vsel %vm636, %v2023, 0.0
        %2090 = vadd.xlane.f32.xlu0 %v2089
        %v2091 = vpop.xlane.xlu0 %2090
        %v2092 = vsel %vm636, %v2024, 0.0
        %2093 = vadd.xlane.f32.xlu0 %v2092
        %v2094 = vpop.xlane.xlu0 %2093
        %v2095 = vsel %vm636, %v2025, 0.0
        %2096 = vadd.xlane.f32.xlu0 %v2095
        %v2097 = vpop.xlane.xlu0 %2096
        %v2098 = vsel %vm636, %v2026, 0.0
        %2099 = vadd.xlane.f32.xlu0 %v2098
        %v2100 = vpop.xlane.xlu0 %2099
        %v2101 = vsel %vm636, %v2027, 0.0
        %2102 = vadd.xlane.f32.xlu0 %v2101
        %v2103 = vpop.xlane.xlu0 %2102
        %v2104 = vsel %vm636, %v2028, 0.0
        %2105 = vadd.xlane.f32.xlu0 %v2104
        %v2106 = vpop.xlane.xlu0 %2105
        %v2107 = vsel %vm636, %v2029, 0.0
        %2108 = vadd.xlane.f32.xlu0 %v2107
        %v2109 = vpop.xlane.xlu0 %2108
        %v2110 = vsel %vm636, %v2030, 0.0
        %2111 = vadd.xlane.f32.xlu0 %v2110
        %v2112 = vpop.xlane.xlu0 %2111
        %v2113 = vsel %vm636, %v2031, 0.0
        %2114 = vadd.xlane.f32.xlu0 %v2113
        %v2115 = vpop.xlane.xlu0 %2114
        %v2116 = vsel %vm636, %v2032, 0.0
        %2117 = vadd.xlane.f32.xlu0 %v2116
        %v2118 = vpop.xlane.xlu0 %2117
        %v2119 = vsel %vm636, %v2033, 0.0
        %2120 = vadd.xlane.f32.xlu0 %v2119
        %v2121 = vpop.xlane.xlu0 %2120
        %v2122 = vsel %vm636, %v2034, 0.0
        %2123 = vadd.xlane.f32.xlu0 %v2122
        %v2124 = vpop.xlane.xlu0 %2123
        %v2125 = vsel %vm636, %v2035, 0.0
        %2126 = vadd.xlane.f32.xlu0 %v2125
        %v2127 = vpop.xlane.xlu0 %2126
        %v2128 = vsel %vm636, %v2036, 0.0
        %2129 = vadd.xlane.f32.xlu0 %v2128
        %v2130 = vpop.xlane.xlu0 %2129
        %v2131 = vsel %vm636, %v2037, 0.0
        %2132 = vadd.xlane.f32.xlu0 %v2131
        %v2133 = vpop.xlane.xlu0 %2132
        %v2134 = vmul.f32 %v733, %v2040
        %v2135 = vmul.f32 %v733, %v2043
        %v2136 = vmul.f32 %v733, %v2046
        %v2137 = vmul.f32 %v733, %v2049
        %v2138 = vmul.f32 %v733, %v2052
        %v2139 = vmul.f32 %v733, %v2055
        %v2140 = vmul.f32 %v733, %v2058
        %v2141 = vmul.f32 %v733, %v2061
        %v2142 = vmul.f32 %v733, %v2064
        %v2143 = vmul.f32 %v733, %v2067
        %v2144 = vmul.f32 %v733, %v2070
        %v2145 = vmul.f32 %v733, %v2073
        %v2146 = vmul.f32 %v733, %v2076
        %v2147 = vmul.f32 %v733, %v2079
        %v2148 = vmul.f32 %v733, %v2082
        %v2149 = vmul.f32 %v733, %v2085
        %v2150 = vmul.f32 %v733, %v2088
        %v2151 = vmul.f32 %v733, %v2091
        %v2152 = vmul.f32 %v733, %v2094
        %v2153 = vmul.f32 %v733, %v2097
        %v2154 = vmul.f32 %v733, %v2100
        %v2155 = vmul.f32 %v733, %v2103
        %v2156 = vmul.f32 %v733, %v2106
        %v2157 = vmul.f32 %v733, %v2109
        %v2158 = vmul.f32 %v733, %v2112
        %v2159 = vmul.f32 %v733, %v2115
        %v2160 = vmul.f32 %v733, %v2118
        %v2161 = vmul.f32 %v733, %v2121
        %v2162 = vmul.f32 %v733, %v2124
        %v2163 = vmul.f32 %v733, %v2127
        %v2164 = vmul.f32 %v733, %v2130
        %v2165 = vmul.f32 %v733, %v2133
        %v2166 = vadd.f32 %v2134, %v766
        %v2167 = vadd.f32 %v2135, %v766
        %v2168 = vadd.f32 %v2136, %v766
        %v2169 = vadd.f32 %v2137, %v766
        %v2170 = vadd.f32 %v2138, %v766
        %v2171 = vadd.f32 %v2139, %v766
        %v2172 = vadd.f32 %v2140, %v766
        %v2173 = vadd.f32 %v2141, %v766
        %v2174 = vadd.f32 %v2142, %v766
        %v2175 = vadd.f32 %v2143, %v766
        %v2176 = vadd.f32 %v2144, %v766
        %v2177 = vadd.f32 %v2145, %v766
        %v2178 = vadd.f32 %v2146, %v766
        %v2179 = vadd.f32 %v2147, %v766
        %v2180 = vadd.f32 %v2148, %v766
        %v2181 = vadd.f32 %v2149, %v766
        %v2182 = vadd.f32 %v2150, %v766
        %v2183 = vadd.f32 %v2151, %v766
        %v2184 = vadd.f32 %v2152, %v766
        %v2185 = vadd.f32 %v2153, %v766
        %v2186 = vadd.f32 %v2154, %v766
        %v2187 = vadd.f32 %v2155, %v766
        %v2188 = vadd.f32 %v2156, %v766
        %v2189 = vadd.f32 %v2157, %v766
        %v2190 = vadd.f32 %v2158, %v766
        %v2191 = vadd.f32 %v2159, %v766
        %v2192 = vadd.f32 %v2160, %v766
        %v2193 = vadd.f32 %v2161, %v766
        %v2194 = vadd.f32 %v2162, %v766
        %v2195 = vadd.f32 %v2163, %v766
        %v2196 = vadd.f32 %v2164, %v766
        %v2197 = vadd.f32 %v2165, %v766
        %v2214 = vlaneseq
        %v2215 = vshrl.u32 %v2214, 7
        %v2216 = vsub.s32 0, %v2215
        %v2217 = vrot.slane %v1894, %v2216
        %v2218 = vlaneseq
        %v2219 = vshrl.u32 %v2218, 7
        %v2220 = vsub.s32 0, %v2219
        %v2221 = vrot.slane %v1895, %v2220
        %v2222 = vlaneseq
        %v2223 = vshrl.u32 %v2222, 7
        %v2224 = vsub.s32 0, %v2223
        %v2225 = vrot.slane %v1896, %v2224
        %v2226 = vlaneseq
        %v2227 = vshrl.u32 %v2226, 7
        %v2228 = vsub.s32 0, %v2227
        %v2229 = vrot.slane %v1897, %v2228
        %v2230 = vlaneseq
        %v2231 = vshrl.u32 %v2230, 7
        %v2232 = vsub.s32 0, %v2231
        %v2233 = vrot.slane %v1898, %v2232
        %v2234 = vlaneseq
        %v2235 = vshrl.u32 %v2234, 7
        %v2236 = vsub.s32 0, %v2235
        %v2237 = vrot.slane %v1899, %v2236
        %v2238 = vlaneseq
        %v2239 = vshrl.u32 %v2238, 7
        %v2240 = vsub.s32 0, %v2239
        %v2241 = vrot.slane %v1900, %v2240
        %v2242 = vlaneseq
        %v2243 = vshrl.u32 %v2242, 7
        %v2244 = vsub.s32 0, %v2243
        %v2245 = vrot.slane %v1901, %v2244
        %v2246 = vlaneseq
        %v2247 = vshrl.u32 %v2246, 7
        %v2248 = vsub.s32 0, %v2247
        %v2249 = vrot.slane %v1902, %v2248
        %v2250 = vlaneseq
        %v2251 = vshrl.u32 %v2250, 7
        %v2252 = vsub.s32 0, %v2251
        %v2253 = vrot.slane %v1903, %v2252
        %v2254 = vlaneseq
        %v2255 = vshrl.u32 %v2254, 7
        %v2256 = vsub.s32 0, %v2255
        %v2257 = vrot.slane %v1904, %v2256
        %v2258 = vlaneseq
        %v2259 = vshrl.u32 %v2258, 7
        %v2260 = vsub.s32 0, %v2259
        %v2261 = vrot.slane %v1905, %v2260
        %v2262 = vlaneseq
        %v2263 = vshrl.u32 %v2262, 7
        %v2264 = vsub.s32 0, %v2263
        %v2265 = vrot.slane %v1906, %v2264
        %v2266 = vlaneseq
        %v2267 = vshrl.u32 %v2266, 7
        %v2268 = vsub.s32 0, %v2267
        %v2269 = vrot.slane %v1907, %v2268
        %v2270 = vlaneseq
        %v2271 = vshrl.u32 %v2270, 7
        %v2272 = vsub.s32 0, %v2271
        %v2273 = vrot.slane %v1908, %v2272
        %v2274 = vlaneseq
        %v2275 = vshrl.u32 %v2274, 7
        %v2276 = vsub.s32 0, %v2275
        %v2277 = vrot.slane %v1909, %v2276
        %v2294 = vadd.f32 %v2166, %v2217
        %v2295 = vadd.f32 %v2167, %v2217
        %v2296 = vadd.f32 %v2168, %v2221
        %v2297 = vadd.f32 %v2169, %v2221
        %v2298 = vadd.f32 %v2170, %v2225
        %v2299 = vadd.f32 %v2171, %v2225
        %v2300 = vadd.f32 %v2172, %v2229
        %v2301 = vadd.f32 %v2173, %v2229
        %v2302 = vadd.f32 %v2174, %v2233
        %v2303 = vadd.f32 %v2175, %v2233
        %v2304 = vadd.f32 %v2176, %v2237
        %v2305 = vadd.f32 %v2177, %v2237
        %v2306 = vadd.f32 %v2178, %v2241
        %v2307 = vadd.f32 %v2179, %v2241
        %v2308 = vadd.f32 %v2180, %v2245
        %v2309 = vadd.f32 %v2181, %v2245
        %v2310 = vadd.f32 %v2182, %v2249
        %v2311 = vadd.f32 %v2183, %v2249
        %v2312 = vadd.f32 %v2184, %v2253
        %v2313 = vadd.f32 %v2185, %v2253
        %v2314 = vadd.f32 %v2186, %v2257
        %v2315 = vadd.f32 %v2187, %v2257
        %v2316 = vadd.f32 %v2188, %v2261
        %v2317 = vadd.f32 %v2189, %v2261
        %v2318 = vadd.f32 %v2190, %v2265
        %v2319 = vadd.f32 %v2191, %v2265
        %v2320 = vadd.f32 %v2192, %v2269
        %v2321 = vadd.f32 %v2193, %v2269
        %v2322 = vadd.f32 %v2194, %v2273
        %v2323 = vadd.f32 %v2195, %v2273
        %v2324 = vadd.f32 %v2196, %v2277
        %v2325 = vadd.f32 %v2197, %v2277
        %vm2326 = vcmp.ge.f32.partialorder %v2294, 0.0
        %vm2327 = vcmp.ge.f32.partialorder %v2295, 0.0
        %vm2328 = vcmp.ge.f32.partialorder %v2296, 0.0
        %vm2329 = vcmp.ge.f32.partialorder %v2297, 0.0
        %vm2330 = vcmp.ge.f32.partialorder %v2298, 0.0
        %vm2331 = vcmp.ge.f32.partialorder %v2299, 0.0
        %vm2332 = vcmp.ge.f32.partialorder %v2300, 0.0
        %vm2333 = vcmp.ge.f32.partialorder %v2301, 0.0
        %vm2334 = vcmp.ge.f32.partialorder %v2302, 0.0
        %vm2335 = vcmp.ge.f32.partialorder %v2303, 0.0
        %vm2336 = vcmp.ge.f32.partialorder %v2304, 0.0
        %vm2337 = vcmp.ge.f32.partialorder %v2305, 0.0
        %vm2338 = vcmp.ge.f32.partialorder %v2306, 0.0
        %vm2339 = vcmp.ge.f32.partialorder %v2307, 0.0
        %vm2340 = vcmp.ge.f32.partialorder %v2308, 0.0
        %vm2341 = vcmp.ge.f32.partialorder %v2309, 0.0
        %vm2342 = vcmp.ge.f32.partialorder %v2310, 0.0
        %vm2343 = vcmp.ge.f32.partialorder %v2311, 0.0
        %vm2344 = vcmp.ge.f32.partialorder %v2312, 0.0
        %vm2345 = vcmp.ge.f32.partialorder %v2313, 0.0
        %vm2346 = vcmp.ge.f32.partialorder %v2314, 0.0
        %vm2347 = vcmp.ge.f32.partialorder %v2315, 0.0
        %vm2348 = vcmp.ge.f32.partialorder %v2316, 0.0
        %vm2349 = vcmp.ge.f32.partialorder %v2317, 0.0
        %vm2350 = vcmp.ge.f32.partialorder %v2318, 0.0
        %vm2351 = vcmp.ge.f32.partialorder %v2319, 0.0
        %vm2352 = vcmp.ge.f32.partialorder %v2320, 0.0
        %vm2353 = vcmp.ge.f32.partialorder %v2321, 0.0
        %vm2354 = vcmp.ge.f32.partialorder %v2322, 0.0
        %vm2355 = vcmp.ge.f32.partialorder %v2323, 0.0
        %vm2356 = vcmp.ge.f32.partialorder %v2324, 0.0
        %vm2357 = vcmp.ge.f32.partialorder %v2325, 0.0
        %v2358 = vmul.f32 %v2294, 0.2
        %v2359 = vmul.f32 %v2295, 0.2
        %v2360 = vmul.f32 %v2296, 0.2
        %v2361 = vmul.f32 %v2297, 0.2
        %v2362 = vmul.f32 %v2298, 0.2
        %v2363 = vmul.f32 %v2299, 0.2
        %v2364 = vmul.f32 %v2300, 0.2
        %v2365 = vmul.f32 %v2301, 0.2
        %v2366 = vmul.f32 %v2302, 0.2
        %v2367 = vmul.f32 %v2303, 0.2
        %v2368 = vmul.f32 %v2304, 0.2
        %v2369 = vmul.f32 %v2305, 0.2
        %v2370 = vmul.f32 %v2306, 0.2
        %v2371 = vmul.f32 %v2307, 0.2
        %v2372 = vmul.f32 %v2308, 0.2
        %v2373 = vmul.f32 %v2309, 0.2
        %v2374 = vmul.f32 %v2310, 0.2
        %v2375 = vmul.f32 %v2311, 0.2
        %v2376 = vmul.f32 %v2312, 0.2
        %v2377 = vmul.f32 %v2313, 0.2
        %v2378 = vmul.f32 %v2314, 0.2
        %v2379 = vmul.f32 %v2315, 0.2
        %v2380 = vmul.f32 %v2316, 0.2
        %v2381 = vmul.f32 %v2317, 0.2
        %v2382 = vmul.f32 %v2318, 0.2
        %v2383 = vmul.f32 %v2319, 0.2
        %v2384 = vmul.f32 %v2320, 0.2
        %v2385 = vmul.f32 %v2321, 0.2
        %v2386 = vmul.f32 %v2322, 0.2
        %v2387 = vmul.f32 %v2323, 0.2
        %v2388 = vmul.f32 %v2324, 0.2
        %v2389 = vmul.f32 %v2325, 0.2
        %v2390 = vsel %vm2326, %v2294, %v2358
        %v2391 = vsel %vm2327, %v2295, %v2359
        %v2392 = vsel %vm2328, %v2296, %v2360
        %v2393 = vsel %vm2329, %v2297, %v2361
        %v2394 = vsel %vm2330, %v2298, %v2362
        %v2395 = vsel %vm2331, %v2299, %v2363
        %v2396 = vsel %vm2332, %v2300, %v2364
        %v2397 = vsel %vm2333, %v2301, %v2365
        %v2398 = vsel %vm2334, %v2302, %v2366
        %v2399 = vsel %vm2335, %v2303, %v2367
        %v2400 = vsel %vm2336, %v2304, %v2368
        %v2401 = vsel %vm2337, %v2305, %v2369
        %v2402 = vsel %vm2338, %v2306, %v2370
        %v2403 = vsel %vm2339, %v2307, %v2371
        %v2404 = vsel %vm2340, %v2308, %v2372
        %v2405 = vsel %vm2341, %v2309, %v2373
        %v2406 = vsel %vm2342, %v2310, %v2374
        %v2407 = vsel %vm2343, %v2311, %v2375
        %v2408 = vsel %vm2344, %v2312, %v2376
        %v2409 = vsel %vm2345, %v2313, %v2377
        %v2410 = vsel %vm2346, %v2314, %v2378
        %v2411 = vsel %vm2347, %v2315, %v2379
        %v2412 = vsel %vm2348, %v2316, %v2380
        %v2413 = vsel %vm2349, %v2317, %v2381
        %v2414 = vsel %vm2350, %v2318, %v2382
        %v2415 = vsel %vm2351, %v2319, %v2383
        %v2416 = vsel %vm2352, %v2320, %v2384
        %v2417 = vsel %vm2353, %v2321, %v2385
        %v2418 = vsel %vm2354, %v2322, %v2386
        %v2419 = vsel %vm2355, %v2323, %v2387
        %v2420 = vsel %vm2356, %v2324, %v2388
        %v2421 = vsel %vm2357, %v2325, %v2389
        %v2422 = vmul.f32 %v1055, %v2390
        %v2423 = vmul.f32 %v1055, %v2391
        %v2424 = vmul.f32 %v1055, %v2392
        %v2425 = vmul.f32 %v1055, %v2393
        %v2426 = vmul.f32 %v1055, %v2394
        %v2427 = vmul.f32 %v1055, %v2395
        %v2428 = vmul.f32 %v1055, %v2396
        %v2429 = vmul.f32 %v1055, %v2397
        %v2430 = vmul.f32 %v1055, %v2398
        %v2431 = vmul.f32 %v1055, %v2399
        %v2432 = vmul.f32 %v1055, %v2400
        %v2433 = vmul.f32 %v1055, %v2401
        %v2434 = vmul.f32 %v1055, %v2402
        %v2435 = vmul.f32 %v1055, %v2403
        %v2436 = vmul.f32 %v1055, %v2404
        %v2437 = vmul.f32 %v1055, %v2405
        %v2438 = vmul.f32 %v1055, %v2406
        %v2439 = vmul.f32 %v1055, %v2407
        %v2440 = vmul.f32 %v1055, %v2408
        %v2441 = vmul.f32 %v1055, %v2409
        %v2442 = vmul.f32 %v1055, %v2410
        %v2443 = vmul.f32 %v1055, %v2411
        %v2444 = vmul.f32 %v1055, %v2412
        %v2445 = vmul.f32 %v1055, %v2413
        %v2446 = vmul.f32 %v1055, %v2414
        %v2447 = vmul.f32 %v1055, %v2415
        %v2448 = vmul.f32 %v1055, %v2416
        %v2449 = vmul.f32 %v1055, %v2417
        %v2450 = vmul.f32 %v1055, %v2418
        %v2451 = vmul.f32 %v1055, %v2419
        %v2452 = vmul.f32 %v1055, %v2420
        %v2453 = vmul.f32 %v1055, %v2421
        %v2454 = vsel %vm1023, %v2422, -1e+30
        %v2455 = vsel %vm1024, %v2423, -1e+30
        %v2456 = vsel %vm1025, %v2424, -1e+30
        %v2457 = vsel %vm1026, %v2425, -1e+30
        %v2458 = vsel %vm1027, %v2426, -1e+30
        %v2459 = vsel %vm1028, %v2427, -1e+30
        %v2460 = vsel %vm1029, %v2428, -1e+30
        %v2461 = vsel %vm1030, %v2429, -1e+30
        %v2462 = vsel %vm1031, %v2430, -1e+30
        %v2463 = vsel %vm1032, %v2431, -1e+30
        %v2464 = vsel %vm1033, %v2432, -1e+30
        %v2465 = vsel %vm1034, %v2433, -1e+30
        %v2466 = vsel %vm1035, %v2434, -1e+30
        %v2467 = vsel %vm1036, %v2435, -1e+30
        %v2468 = vsel %vm1037, %v2436, -1e+30
        %v2469 = vsel %vm1038, %v2437, -1e+30
        %v2470 = vsel %vm1039, %v2438, -1e+30
        %v2471 = vsel %vm1040, %v2439, -1e+30
        %v2472 = vsel %vm1041, %v2440, -1e+30
        %v2473 = vsel %vm1042, %v2441, -1e+30
        %v2474 = vsel %vm1043, %v2442, -1e+30
        %v2475 = vsel %vm1044, %v2443, -1e+30
        %v2476 = vsel %vm1045, %v2444, -1e+30
        %v2477 = vsel %vm1046, %v2445, -1e+30
        %v2478 = vsel %vm1047, %v2446, -1e+30
        %v2479 = vsel %vm1048, %v2447, -1e+30
        %v2480 = vsel %vm1049, %v2448, -1e+30
        %v2481 = vsel %vm1050, %v2449, -1e+30
        %v2482 = vsel %vm1051, %v2450, -1e+30
        %v2483 = vsel %vm1052, %v2451, -1e+30
        %v2484 = vsel %vm1053, %v2452, -1e+30
        %v2485 = vsel %vm1054, %v2453, -1e+30
        %v2486 = vsel %vm636, %v2454, -inf
        %v2487 = vsel %vm636, %v2455, -inf
        %v2488 = vmax.f32 %v2486, %v2487
        %v2489 = vrot.slane %v2488, 4
        %v2490 = vmax.f32 %v2488, %v2489
        %v2491 = vrot.slane %v2490, 2
        %v2492 = vmax.f32 %v2490, %v2491
        %v2493 = vrot.slane %v2492, 1
        %v2494 = vmax.f32 %v2492, %v2493
        %v2495 = vsel %vm636, %v2456, -inf
        %v2496 = vsel %vm636, %v2457, -inf
        %v2497 = vmax.f32 %v2495, %v2496
        %v2498 = vrot.slane %v2497, 4
        %v2499 = vmax.f32 %v2497, %v2498
        %v2500 = vrot.slane %v2499, 2
        %v2501 = vmax.f32 %v2499, %v2500
        %v2502 = vrot.slane %v2501, 1
        %v2503 = vmax.f32 %v2501, %v2502
        %v2504 = vsel %vm636, %v2458, -inf
        %v2505 = vsel %vm636, %v2459, -inf
        %v2506 = vmax.f32 %v2504, %v2505
        %v2507 = vrot.slane %v2506, 4
        %v2508 = vmax.f32 %v2506, %v2507
        %v2509 = vrot.slane %v2508, 2
        %v2510 = vmax.f32 %v2508, %v2509
        %v2511 = vrot.slane %v2510, 1
        %v2512 = vmax.f32 %v2510, %v2511
        %v2513 = vsel %vm636, %v2460, -inf
        %v2514 = vsel %vm636, %v2461, -inf
        %v2515 = vmax.f32 %v2513, %v2514
        %v2516 = vrot.slane %v2515, 4
        %v2517 = vmax.f32 %v2515, %v2516
        %v2518 = vrot.slane %v2517, 2
        %v2519 = vmax.f32 %v2517, %v2518
        %v2520 = vrot.slane %v2519, 1
        %v2521 = vmax.f32 %v2519, %v2520
        %v2522 = vsel %vm636, %v2462, -inf
        %v2523 = vsel %vm636, %v2463, -inf
        %v2524 = vmax.f32 %v2522, %v2523
        %v2525 = vrot.slane %v2524, 4
        %v2526 = vmax.f32 %v2524, %v2525
        %v2527 = vrot.slane %v2526, 2
        %v2528 = vmax.f32 %v2526, %v2527
        %v2529 = vrot.slane %v2528, 1
        %v2530 = vmax.f32 %v2528, %v2529
        %v2531 = vsel %vm636, %v2464, -inf
        %v2532 = vsel %vm636, %v2465, -inf
        %v2533 = vmax.f32 %v2531, %v2532
        %v2534 = vrot.slane %v2533, 4
        %v2535 = vmax.f32 %v2533, %v2534
        %v2536 = vrot.slane %v2535, 2
        %v2537 = vmax.f32 %v2535, %v2536
        %v2538 = vrot.slane %v2537, 1
        %v2539 = vmax.f32 %v2537, %v2538
        %v2540 = vsel %vm636, %v2466, -inf
        %v2541 = vsel %vm636, %v2467, -inf
        %v2542 = vmax.f32 %v2540, %v2541
        %v2543 = vrot.slane %v2542, 4
        %v2544 = vmax.f32 %v2542, %v2543
        %v2545 = vrot.slane %v2544, 2
        %v2546 = vmax.f32 %v2544, %v2545
        %v2547 = vrot.slane %v2546, 1
        %v2548 = vmax.f32 %v2546, %v2547
        %v2549 = vsel %vm636, %v2468, -inf
        %v2550 = vsel %vm636, %v2469, -inf
        %v2551 = vmax.f32 %v2549, %v2550
        %v2552 = vrot.slane %v2551, 4
        %v2553 = vmax.f32 %v2551, %v2552
        %v2554 = vrot.slane %v2553, 2
        %v2555 = vmax.f32 %v2553, %v2554
        %v2556 = vrot.slane %v2555, 1
        %v2557 = vmax.f32 %v2555, %v2556
        %v2558 = vsel %vm636, %v2470, -inf
        %v2559 = vsel %vm636, %v2471, -inf
        %v2560 = vmax.f32 %v2558, %v2559
        %v2561 = vrot.slane %v2560, 4
        %v2562 = vmax.f32 %v2560, %v2561
        %v2563 = vrot.slane %v2562, 2
        %v2564 = vmax.f32 %v2562, %v2563
        %v2565 = vrot.slane %v2564, 1
        %v2566 = vmax.f32 %v2564, %v2565
        %v2567 = vsel %vm636, %v2472, -inf
        %v2568 = vsel %vm636, %v2473, -inf
        %v2569 = vmax.f32 %v2567, %v2568
        %v2570 = vrot.slane %v2569, 4
        %v2571 = vmax.f32 %v2569, %v2570
        %v2572 = vrot.slane %v2571, 2
        %v2573 = vmax.f32 %v2571, %v2572
        %v2574 = vrot.slane %v2573, 1
        %v2575 = vmax.f32 %v2573, %v2574
        %v2576 = vsel %vm636, %v2474, -inf
        %v2577 = vsel %vm636, %v2475, -inf
        %v2578 = vmax.f32 %v2576, %v2577
        %v2579 = vrot.slane %v2578, 4
        %v2580 = vmax.f32 %v2578, %v2579
        %v2581 = vrot.slane %v2580, 2
        %v2582 = vmax.f32 %v2580, %v2581
        %v2583 = vrot.slane %v2582, 1
        %v2584 = vmax.f32 %v2582, %v2583
        %v2585 = vsel %vm636, %v2476, -inf
        %v2586 = vsel %vm636, %v2477, -inf
        %v2587 = vmax.f32 %v2585, %v2586
        %v2588 = vrot.slane %v2587, 4
        %v2589 = vmax.f32 %v2587, %v2588
        %v2590 = vrot.slane %v2589, 2
        %v2591 = vmax.f32 %v2589, %v2590
        %v2592 = vrot.slane %v2591, 1
        %v2593 = vmax.f32 %v2591, %v2592
        %v2594 = vsel %vm636, %v2478, -inf
        %v2595 = vsel %vm636, %v2479, -inf
        %v2596 = vmax.f32 %v2594, %v2595
        %v2597 = vrot.slane %v2596, 4
        %v2598 = vmax.f32 %v2596, %v2597
        %v2599 = vrot.slane %v2598, 2
        %v2600 = vmax.f32 %v2598, %v2599
        %v2601 = vrot.slane %v2600, 1
        %v2602 = vmax.f32 %v2600, %v2601
        %v2603 = vsel %vm636, %v2480, -inf
        %v2604 = vsel %vm636, %v2481, -inf
        %v2605 = vmax.f32 %v2603, %v2604
        %v2606 = vrot.slane %v2605, 4
        %v2607 = vmax.f32 %v2605, %v2606
        %v2608 = vrot.slane %v2607, 2
        %v2609 = vmax.f32 %v2607, %v2608
        %v2610 = vrot.slane %v2609, 1
        %v2611 = vmax.f32 %v2609, %v2610
        %v2612 = vsel %vm636, %v2482, -inf
        %v2613 = vsel %vm636, %v2483, -inf
        %v2614 = vmax.f32 %v2612, %v2613
        %v2615 = vrot.slane %v2614, 4
        %v2616 = vmax.f32 %v2614, %v2615
        %v2617 = vrot.slane %v2616, 2
        %v2618 = vmax.f32 %v2616, %v2617
        %v2619 = vrot.slane %v2618, 1
        %v2620 = vmax.f32 %v2618, %v2619
        %v2621 = vsel %vm636, %v2484, -inf
        %v2622 = vsel %vm636, %v2485, -inf
        %v2623 = vmax.f32 %v2621, %v2622
        %v2624 = vrot.slane %v2623, 4
        %v2625 = vmax.f32 %v2623, %v2624
        %v2626 = vrot.slane %v2625, 2
        %v2627 = vmax.f32 %v2625, %v2626
        %v2628 = vrot.slane %v2627, 1
        %v2629 = vmax.f32 %v2627, %v2628
        %v2630 = vsub.f32 %v2454, %v2494
        %v2631 = vsub.f32 %v2455, %v2494
        %v2632 = vsub.f32 %v2456, %v2503
        %v2633 = vsub.f32 %v2457, %v2503
        %v2634 = vsub.f32 %v2458, %v2512
        %v2635 = vsub.f32 %v2459, %v2512
        %v2636 = vsub.f32 %v2460, %v2521
        %v2637 = vsub.f32 %v2461, %v2521
        %v2638 = vsub.f32 %v2462, %v2530
        %v2639 = vsub.f32 %v2463, %v2530
        %v2640 = vsub.f32 %v2464, %v2539
        %v2641 = vsub.f32 %v2465, %v2539
        %v2642 = vsub.f32 %v2466, %v2548
        %v2643 = vsub.f32 %v2467, %v2548
        %v2644 = vsub.f32 %v2468, %v2557
        %v2645 = vsub.f32 %v2469, %v2557
        %v2646 = vsub.f32 %v2470, %v2566
        %v2647 = vsub.f32 %v2471, %v2566
        %v2648 = vsub.f32 %v2472, %v2575
        %v2649 = vsub.f32 %v2473, %v2575
        %v2650 = vsub.f32 %v2474, %v2584
        %v2651 = vsub.f32 %v2475, %v2584
        %v2652 = vsub.f32 %v2476, %v2593
        %v2653 = vsub.f32 %v2477, %v2593
        %v2654 = vsub.f32 %v2478, %v2602
        %v2655 = vsub.f32 %v2479, %v2602
        %v2656 = vsub.f32 %v2480, %v2611
        %v2657 = vsub.f32 %v2481, %v2611
        %v2658 = vsub.f32 %v2482, %v2620
        %v2659 = vsub.f32 %v2483, %v2620
        %v2660 = vsub.f32 %v2484, %v2629
        %v2661 = vsub.f32 %v2485, %v2629
        %v2662 = vmul.f32 %v2630, 1.442695
        %v2663 = vpow.pop %v2662
        %v2664 = vmul.f32 %v2631, 1.442695
        %v2665 = vpow.pop %v2664
        %v2666 = vmul.f32 %v2632, 1.442695
        %v2667 = vpow.pop %v2666
        %v2668 = vmul.f32 %v2633, 1.442695
        %v2669 = vpow.pop %v2668
        %v2670 = vmul.f32 %v2634, 1.442695
        %v2671 = vpow.pop %v2670
        %v2672 = vmul.f32 %v2635, 1.442695
        %v2673 = vpow.pop %v2672
        %v2674 = vmul.f32 %v2636, 1.442695
        %v2675 = vpow.pop %v2674
        %v2676 = vmul.f32 %v2637, 1.442695
        %v2677 = vpow.pop %v2676
        %v2678 = vmul.f32 %v2638, 1.442695
        %v2679 = vpow.pop %v2678
        %v2680 = vmul.f32 %v2639, 1.442695
        %v2681 = vpow.pop %v2680
        %v2682 = vmul.f32 %v2640, 1.442695
        %v2683 = vpow.pop %v2682
        %v2684 = vmul.f32 %v2641, 1.442695
        %v2685 = vpow.pop %v2684
        %v2686 = vmul.f32 %v2642, 1.442695
        %v2687 = vpow.pop %v2686
        %v2688 = vmul.f32 %v2643, 1.442695
        %v2689 = vpow.pop %v2688
        %v2690 = vmul.f32 %v2644, 1.442695
        %v2691 = vpow.pop %v2690
        %v2692 = vmul.f32 %v2645, 1.442695
        %v2693 = vpow.pop %v2692
        %v2694 = vmul.f32 %v2646, 1.442695
        %v2695 = vpow.pop %v2694
        %v2696 = vmul.f32 %v2647, 1.442695
        %v2697 = vpow.pop %v2696
        %v2698 = vmul.f32 %v2648, 1.442695
        %v2699 = vpow.pop %v2698
        %v2700 = vmul.f32 %v2649, 1.442695
        %v2701 = vpow.pop %v2700
        %v2702 = vmul.f32 %v2650, 1.442695
        %v2703 = vpow.pop %v2702
        %v2704 = vmul.f32 %v2651, 1.442695
        %v2705 = vpow.pop %v2704
        %v2706 = vmul.f32 %v2652, 1.442695
        %v2707 = vpow.pop %v2706
        %v2708 = vmul.f32 %v2653, 1.442695
        %v2709 = vpow.pop %v2708
        %v2710 = vmul.f32 %v2654, 1.442695
        %v2711 = vpow.pop %v2710
        %v2712 = vmul.f32 %v2655, 1.442695
        %v2713 = vpow.pop %v2712
        %v2714 = vmul.f32 %v2656, 1.442695
        %v2715 = vpow.pop %v2714
        %v2716 = vmul.f32 %v2657, 1.442695
        %v2717 = vpow.pop %v2716
        %v2718 = vmul.f32 %v2658, 1.442695
        %v2719 = vpow.pop %v2718
        %v2720 = vmul.f32 %v2659, 1.442695
        %v2721 = vpow.pop %v2720
        %v2722 = vmul.f32 %v2660, 1.442695
        %v2723 = vpow.pop %v2722
        %v2724 = vmul.f32 %v2661, 1.442695
        %v2725 = vpow.pop %v2724
        %v2726 = vsel %vm636, %v2663, 0.0
        %v2727 = vsel %vm636, %v2665, 0.0
        %v2728 = vadd.f32 %v2726, %v2727
        %v2729 = vrot.slane %v2728, 4
        %v2730 = vadd.f32 %v2728, %v2729
        %v2731 = vrot.slane %v2730, 2
        %v2732 = vadd.f32 %v2730, %v2731
        %v2733 = vrot.slane %v2732, 1
        %v2734 = vadd.f32 %v2732, %v2733
        %v2735 = vsel %vm636, %v2667, 0.0
        %v2736 = vsel %vm636, %v2669, 0.0
        %v2737 = vadd.f32 %v2735, %v2736
        %v2738 = vrot.slane %v2737, 4
        %v2739 = vadd.f32 %v2737, %v2738
        %v2740 = vrot.slane %v2739, 2
        %v2741 = vadd.f32 %v2739, %v2740
        %v2742 = vrot.slane %v2741, 1
        %v2743 = vadd.f32 %v2741, %v2742
        %v2744 = vsel %vm636, %v2671, 0.0
        %v2745 = vsel %vm636, %v2673, 0.0
        %v2746 = vadd.f32 %v2744, %v2745
        %v2747 = vrot.slane %v2746, 4
        %v2748 = vadd.f32 %v2746, %v2747
        %v2749 = vrot.slane %v2748, 2
        %v2750 = vadd.f32 %v2748, %v2749
        %v2751 = vrot.slane %v2750, 1
        %v2752 = vadd.f32 %v2750, %v2751
        %v2753 = vsel %vm636, %v2675, 0.0
        %v2754 = vsel %vm636, %v2677, 0.0
        %v2755 = vadd.f32 %v2753, %v2754
        %v2756 = vrot.slane %v2755, 4
        %v2757 = vadd.f32 %v2755, %v2756
        %v2758 = vrot.slane %v2757, 2
        %v2759 = vadd.f32 %v2757, %v2758
        %v2760 = vrot.slane %v2759, 1
        %v2761 = vadd.f32 %v2759, %v2760
        %v2762 = vsel %vm636, %v2679, 0.0
        %v2763 = vsel %vm636, %v2681, 0.0
        %v2764 = vadd.f32 %v2762, %v2763
        %v2765 = vrot.slane %v2764, 4
        %v2766 = vadd.f32 %v2764, %v2765
        %v2767 = vrot.slane %v2766, 2
        %v2768 = vadd.f32 %v2766, %v2767
        %v2769 = vrot.slane %v2768, 1
        %v2770 = vadd.f32 %v2768, %v2769
        %v2771 = vsel %vm636, %v2683, 0.0
        %v2772 = vsel %vm636, %v2685, 0.0
        %v2773 = vadd.f32 %v2771, %v2772
        %v2774 = vrot.slane %v2773, 4
        %v2775 = vadd.f32 %v2773, %v2774
        %v2776 = vrot.slane %v2775, 2
        %v2777 = vadd.f32 %v2775, %v2776
        %v2778 = vrot.slane %v2777, 1
        %v2779 = vadd.f32 %v2777, %v2778
        %v2780 = vsel %vm636, %v2687, 0.0
        %v2781 = vsel %vm636, %v2689, 0.0
        %v2782 = vadd.f32 %v2780, %v2781
        %v2783 = vrot.slane %v2782, 4
        %v2784 = vadd.f32 %v2782, %v2783
        %v2785 = vrot.slane %v2784, 2
        %v2786 = vadd.f32 %v2784, %v2785
        %v2787 = vrot.slane %v2786, 1
        %v2788 = vadd.f32 %v2786, %v2787
        %v2789 = vsel %vm636, %v2691, 0.0
        %v2790 = vsel %vm636, %v2693, 0.0
        %v2791 = vadd.f32 %v2789, %v2790
        %v2792 = vrot.slane %v2791, 4
        %v2793 = vadd.f32 %v2791, %v2792
        %v2794 = vrot.slane %v2793, 2
        %v2795 = vadd.f32 %v2793, %v2794
        %v2796 = vrot.slane %v2795, 1
        %v2797 = vadd.f32 %v2795, %v2796
        %v2798 = vsel %vm636, %v2695, 0.0
        %v2799 = vsel %vm636, %v2697, 0.0
        %v2800 = vadd.f32 %v2798, %v2799
        %v2801 = vrot.slane %v2800, 4
        %v2802 = vadd.f32 %v2800, %v2801
        %v2803 = vrot.slane %v2802, 2
        %v2804 = vadd.f32 %v2802, %v2803
        %v2805 = vrot.slane %v2804, 1
        %v2806 = vadd.f32 %v2804, %v2805
        %v2807 = vsel %vm636, %v2699, 0.0
        %v2808 = vsel %vm636, %v2701, 0.0
        %v2809 = vadd.f32 %v2807, %v2808
        %v2810 = vrot.slane %v2809, 4
        %v2811 = vadd.f32 %v2809, %v2810
        %v2812 = vrot.slane %v2811, 2
        %v2813 = vadd.f32 %v2811, %v2812
        %v2814 = vrot.slane %v2813, 1
        %v2815 = vadd.f32 %v2813, %v2814
        %v2816 = vsel %vm636, %v2703, 0.0
        %v2817 = vsel %vm636, %v2705, 0.0
        %v2818 = vadd.f32 %v2816, %v2817
        %v2819 = vrot.slane %v2818, 4
        %v2820 = vadd.f32 %v2818, %v2819
        %v2821 = vrot.slane %v2820, 2
        %v2822 = vadd.f32 %v2820, %v2821
        %v2823 = vrot.slane %v2822, 1
        %v2824 = vadd.f32 %v2822, %v2823
        %v2825 = vsel %vm636, %v2707, 0.0
        %v2826 = vsel %vm636, %v2709, 0.0
        %v2827 = vadd.f32 %v2825, %v2826
        %v2828 = vrot.slane %v2827, 4
        %v2829 = vadd.f32 %v2827, %v2828
        %v2830 = vrot.slane %v2829, 2
        %v2831 = vadd.f32 %v2829, %v2830
        %v2832 = vrot.slane %v2831, 1
        %v2833 = vadd.f32 %v2831, %v2832
        %v2834 = vsel %vm636, %v2711, 0.0
        %v2835 = vsel %vm636, %v2713, 0.0
        %v2836 = vadd.f32 %v2834, %v2835
        %v2837 = vrot.slane %v2836, 4
        %v2838 = vadd.f32 %v2836, %v2837
        %v2839 = vrot.slane %v2838, 2
        %v2840 = vadd.f32 %v2838, %v2839
        %v2841 = vrot.slane %v2840, 1
        %v2842 = vadd.f32 %v2840, %v2841
        %v2843 = vsel %vm636, %v2715, 0.0
        %v2844 = vsel %vm636, %v2717, 0.0
        %v2845 = vadd.f32 %v2843, %v2844
        %v2846 = vrot.slane %v2845, 4
        %v2847 = vadd.f32 %v2845, %v2846
        %v2848 = vrot.slane %v2847, 2
        %v2849 = vadd.f32 %v2847, %v2848
        %v2850 = vrot.slane %v2849, 1
        %v2851 = vadd.f32 %v2849, %v2850
        %v2852 = vsel %vm636, %v2719, 0.0
        %v2853 = vsel %vm636, %v2721, 0.0
        %v2854 = vadd.f32 %v2852, %v2853
        %v2855 = vrot.slane %v2854, 4
        %v2856 = vadd.f32 %v2854, %v2855
        %v2857 = vrot.slane %v2856, 2
        %v2858 = vadd.f32 %v2856, %v2857
        %v2859 = vrot.slane %v2858, 1
        %v2860 = vadd.f32 %v2858, %v2859
        %v2861 = vsel %vm636, %v2723, 0.0
        %v2862 = vsel %vm636, %v2725, 0.0
        %v2863 = vadd.f32 %v2861, %v2862
        %v2864 = vrot.slane %v2863, 4
        %v2865 = vadd.f32 %v2863, %v2864
        %v2866 = vrot.slane %v2865, 2
        %v2867 = vadd.f32 %v2865, %v2866
        %v2868 = vrot.slane %v2867, 1
        %v2869 = vadd.f32 %v2867, %v2868
        %v2870 = vrcp.pop %v2734
        %v2871 = vrcp.pop %v2743
        %v2872 = vrcp.pop %v2752
        %v2873 = vrcp.pop %v2761
        %v2874 = vrcp.pop %v2770
        %v2875 = vrcp.pop %v2779
        %v2876 = vrcp.pop %v2788
        %v2877 = vrcp.pop %v2797
        %v2878 = vrcp.pop %v2806
        %v2879 = vrcp.pop %v2815
        %v2880 = vrcp.pop %v2824
        %v2881 = vrcp.pop %v2833
        %v2882 = vrcp.pop %v2842
        %v2883 = vrcp.pop %v2851
        %v2884 = vrcp.pop %v2860
        %v2885 = vrcp.pop %v2869
        %v2886 = vmul.f32 %v2734, %v2870
        %v2887 = vmul.f32 %v2743, %v2871
        %v2888 = vmul.f32 %v2752, %v2872
        %v2889 = vmul.f32 %v2761, %v2873
        %v2890 = vmul.f32 %v2770, %v2874
        %v2891 = vmul.f32 %v2779, %v2875
        %v2892 = vmul.f32 %v2788, %v2876
        %v2893 = vmul.f32 %v2797, %v2877
        %v2894 = vmul.f32 %v2806, %v2878
        %v2895 = vmul.f32 %v2815, %v2879
        %v2896 = vmul.f32 %v2824, %v2880
        %v2897 = vmul.f32 %v2833, %v2881
        %v2898 = vmul.f32 %v2842, %v2882
        %v2899 = vmul.f32 %v2851, %v2883
        %v2900 = vmul.f32 %v2860, %v2884
        %v2901 = vmul.f32 %v2869, %v2885
        %v2902 = vsub.f32 2.0, %v2886
        %v2903 = vsub.f32 2.0, %v2887
        %v2904 = vsub.f32 2.0, %v2888
        %v2905 = vsub.f32 2.0, %v2889
        %v2906 = vsub.f32 2.0, %v2890
        %v2907 = vsub.f32 2.0, %v2891
        %v2908 = vsub.f32 2.0, %v2892
        %v2909 = vsub.f32 2.0, %v2893
        %v2910 = vsub.f32 2.0, %v2894
        %v2911 = vsub.f32 2.0, %v2895
        %v2912 = vsub.f32 2.0, %v2896
        %v2913 = vsub.f32 2.0, %v2897
        %v2914 = vsub.f32 2.0, %v2898
        %v2915 = vsub.f32 2.0, %v2899
        %v2916 = vsub.f32 2.0, %v2900
        %v2917 = vsub.f32 2.0, %v2901
        %v2918 = vmul.f32 %v2870, %v2902
        %v2919 = vmul.f32 %v2871, %v2903
        %v2920 = vmul.f32 %v2872, %v2904
        %v2921 = vmul.f32 %v2873, %v2905
        %v2922 = vmul.f32 %v2874, %v2906
        %v2923 = vmul.f32 %v2875, %v2907
        %v2924 = vmul.f32 %v2876, %v2908
        %v2925 = vmul.f32 %v2877, %v2909
        %v2926 = vmul.f32 %v2878, %v2910
        %v2927 = vmul.f32 %v2879, %v2911
        %v2928 = vmul.f32 %v2880, %v2912
        %v2929 = vmul.f32 %v2881, %v2913
        %v2930 = vmul.f32 %v2882, %v2914
        %v2931 = vmul.f32 %v2883, %v2915
        %v2932 = vmul.f32 %v2884, %v2916
        %v2933 = vmul.f32 %v2885, %v2917
        %v2934 = vmul.f32 %v2663, %v2918
        %v2935 = vmul.f32 %v2665, %v2918
        %v2936 = vmul.f32 %v2667, %v2919
        %v2937 = vmul.f32 %v2669, %v2919
        %v2938 = vmul.f32 %v2671, %v2920
        %v2939 = vmul.f32 %v2673, %v2920
        %v2940 = vmul.f32 %v2675, %v2921
        %v2941 = vmul.f32 %v2677, %v2921
        %v2942 = vmul.f32 %v2679, %v2922
        %v2943 = vmul.f32 %v2681, %v2922
        %v2944 = vmul.f32 %v2683, %v2923
        %v2945 = vmul.f32 %v2685, %v2923
        %v2946 = vmul.f32 %v2687, %v2924
        %v2947 = vmul.f32 %v2689, %v2924
        %v2948 = vmul.f32 %v2691, %v2925
        %v2949 = vmul.f32 %v2693, %v2925
        %v2950 = vmul.f32 %v2695, %v2926
        %v2951 = vmul.f32 %v2697, %v2926
        %v2952 = vmul.f32 %v2699, %v2927
        %v2953 = vmul.f32 %v2701, %v2927
        %v2954 = vmul.f32 %v2703, %v2928
        %v2955 = vmul.f32 %v2705, %v2928
        %v2956 = vmul.f32 %v2707, %v2929
        %v2957 = vmul.f32 %v2709, %v2929
        %v2958 = vmul.f32 %v2711, %v2930
        %v2959 = vmul.f32 %v2713, %v2930
        %v2960 = vmul.f32 %v2715, %v2931
        %v2961 = vmul.f32 %v2717, %v2931
        %v2962 = vmul.f32 %v2719, %v2932
        %v2963 = vmul.f32 %v2721, %v2932
        %v2964 = vmul.f32 %v2723, %v2933
        %v2965 = vmul.f32 %v2725, %v2933
        %v2966 = vmul.f32 %v2934, %v2166
        %v2967 = vmul.f32 %v2935, %v2167
        %v2968 = vmul.f32 %v2936, %v2168
        %v2969 = vmul.f32 %v2937, %v2169
        %v2970 = vmul.f32 %v2938, %v2170
        %v2971 = vmul.f32 %v2939, %v2171
        %v2972 = vmul.f32 %v2940, %v2172
        %v2973 = vmul.f32 %v2941, %v2173
        %v2974 = vmul.f32 %v2942, %v2174
        %v2975 = vmul.f32 %v2943, %v2175
        %v2976 = vmul.f32 %v2944, %v2176
        %v2977 = vmul.f32 %v2945, %v2177
        %v2978 = vmul.f32 %v2946, %v2178
        %v2979 = vmul.f32 %v2947, %v2179
        %v2980 = vmul.f32 %v2948, %v2180
        %v2981 = vmul.f32 %v2949, %v2181
        %v2982 = vmul.f32 %v2950, %v2182
        %v2983 = vmul.f32 %v2951, %v2183
        %v2984 = vmul.f32 %v2952, %v2184
        %v2985 = vmul.f32 %v2953, %v2185
        %v2986 = vmul.f32 %v2954, %v2186
        %v2987 = vmul.f32 %v2955, %v2187
        %v2988 = vmul.f32 %v2956, %v2188
        %v2989 = vmul.f32 %v2957, %v2189
        %v2990 = vmul.f32 %v2958, %v2190
        %v2991 = vmul.f32 %v2959, %v2191
        %v2992 = vmul.f32 %v2960, %v2192
        %v2993 = vmul.f32 %v2961, %v2193
        %v2994 = vmul.f32 %v2962, %v2194
        %v2995 = vmul.f32 %v2963, %v2195
        %v2996 = vmul.f32 %v2964, %v2196
        %v2997 = vmul.f32 %v2965, %v2197
        %v2998 = vsel %vm636, %v2966, 0.0
        %v2999 = vsel %vm636, %v2967, 0.0
        %v3000 = vadd.f32 %v2998, %v2999
        %v3001 = vrot.slane %v3000, 4
        %v3002 = vadd.f32 %v3000, %v3001
        %v3003 = vrot.slane %v3002, 2
        %v3004 = vadd.f32 %v3002, %v3003
        %v3005 = vrot.slane %v3004, 1
        %v3006 = vadd.f32 %v3004, %v3005
        %v3007 = vsel %vm636, %v2968, 0.0
        %v3008 = vsel %vm636, %v2969, 0.0
        %v3009 = vadd.f32 %v3007, %v3008
        %v3010 = vrot.slane %v3009, 4
        %v3011 = vadd.f32 %v3009, %v3010
        %v3012 = vrot.slane %v3011, 2
        %v3013 = vadd.f32 %v3011, %v3012
        %v3014 = vrot.slane %v3013, 1
        %v3015 = vadd.f32 %v3013, %v3014
        %v3016 = vsel %vm636, %v2970, 0.0
        %v3017 = vsel %vm636, %v2971, 0.0
        %v3018 = vadd.f32 %v3016, %v3017
        %v3019 = vrot.slane %v3018, 4
        %v3020 = vadd.f32 %v3018, %v3019
        %v3021 = vrot.slane %v3020, 2
        %v3022 = vadd.f32 %v3020, %v3021
        %v3023 = vrot.slane %v3022, 1
        %v3024 = vadd.f32 %v3022, %v3023
        %v3025 = vsel %vm636, %v2972, 0.0
        %v3026 = vsel %vm636, %v2973, 0.0
        %v3027 = vadd.f32 %v3025, %v3026
        %v3028 = vrot.slane %v3027, 4
        %v3029 = vadd.f32 %v3027, %v3028
        %v3030 = vrot.slane %v3029, 2
        %v3031 = vadd.f32 %v3029, %v3030
        %v3032 = vrot.slane %v3031, 1
        %v3033 = vadd.f32 %v3031, %v3032
        %v3034 = vsel %vm636, %v2974, 0.0
        %v3035 = vsel %vm636, %v2975, 0.0
        %v3036 = vadd.f32 %v3034, %v3035
        %v3037 = vrot.slane %v3036, 4
        %v3038 = vadd.f32 %v3036, %v3037
        %v3039 = vrot.slane %v3038, 2
        %v3040 = vadd.f32 %v3038, %v3039
        %v3041 = vrot.slane %v3040, 1
        %v3042 = vadd.f32 %v3040, %v3041
        %v3043 = vsel %vm636, %v2976, 0.0
        %v3044 = vsel %vm636, %v2977, 0.0
        %v3045 = vadd.f32 %v3043, %v3044
        %v3046 = vrot.slane %v3045, 4
        %v3047 = vadd.f32 %v3045, %v3046
        %v3048 = vrot.slane %v3047, 2
        %v3049 = vadd.f32 %v3047, %v3048
        %v3050 = vrot.slane %v3049, 1
        %v3051 = vadd.f32 %v3049, %v3050
        %v3052 = vsel %vm636, %v2978, 0.0
        %v3053 = vsel %vm636, %v2979, 0.0
        %v3054 = vadd.f32 %v3052, %v3053
        %v3055 = vrot.slane %v3054, 4
        %v3056 = vadd.f32 %v3054, %v3055
        %v3057 = vrot.slane %v3056, 2
        %v3058 = vadd.f32 %v3056, %v3057
        %v3059 = vrot.slane %v3058, 1
        %v3060 = vadd.f32 %v3058, %v3059
        %v3061 = vsel %vm636, %v2980, 0.0
        %v3062 = vsel %vm636, %v2981, 0.0
        %v3063 = vadd.f32 %v3061, %v3062
        %v3064 = vrot.slane %v3063, 4
        %v3065 = vadd.f32 %v3063, %v3064
        %v3066 = vrot.slane %v3065, 2
        %v3067 = vadd.f32 %v3065, %v3066
        %v3068 = vrot.slane %v3067, 1
        %v3069 = vadd.f32 %v3067, %v3068
        %v3070 = vsel %vm636, %v2982, 0.0
        %v3071 = vsel %vm636, %v2983, 0.0
        %v3072 = vadd.f32 %v3070, %v3071
        %v3073 = vrot.slane %v3072, 4
        %v3074 = vadd.f32 %v3072, %v3073
        %v3075 = vrot.slane %v3074, 2
        %v3076 = vadd.f32 %v3074, %v3075
        %v3077 = vrot.slane %v3076, 1
        %v3078 = vadd.f32 %v3076, %v3077
        %v3079 = vsel %vm636, %v2984, 0.0
        %v3080 = vsel %vm636, %v2985, 0.0
        %v3081 = vadd.f32 %v3079, %v3080
        %v3082 = vrot.slane %v3081, 4
        %v3083 = vadd.f32 %v3081, %v3082
        %v3084 = vrot.slane %v3083, 2
        %v3085 = vadd.f32 %v3083, %v3084
        %v3086 = vrot.slane %v3085, 1
        %v3087 = vadd.f32 %v3085, %v3086
        %v3088 = vsel %vm636, %v2986, 0.0
        %v3089 = vsel %vm636, %v2987, 0.0
        %v3090 = vadd.f32 %v3088, %v3089
        %v3091 = vrot.slane %v3090, 4
        %v3092 = vadd.f32 %v3090, %v3091
        %v3093 = vrot.slane %v3092, 2
        %v3094 = vadd.f32 %v3092, %v3093
        %v3095 = vrot.slane %v3094, 1
        %v3096 = vadd.f32 %v3094, %v3095
        %v3097 = vsel %vm636, %v2988, 0.0
        %v3098 = vsel %vm636, %v2989, 0.0
        %v3099 = vadd.f32 %v3097, %v3098
        %v3100 = vrot.slane %v3099, 4
        %v3101 = vadd.f32 %v3099, %v3100
        %v3102 = vrot.slane %v3101, 2
        %v3103 = vadd.f32 %v3101, %v3102
        %v3104 = vrot.slane %v3103, 1
        %v3105 = vadd.f32 %v3103, %v3104
        %v3106 = vsel %vm636, %v2990, 0.0
        %v3107 = vsel %vm636, %v2991, 0.0
        %v3108 = vadd.f32 %v3106, %v3107
        %v3109 = vrot.slane %v3108, 4
        %v3110 = vadd.f32 %v3108, %v3109
        %v3111 = vrot.slane %v3110, 2
        %v3112 = vadd.f32 %v3110, %v3111
        %v3113 = vrot.slane %v3112, 1
        %v3114 = vadd.f32 %v3112, %v3113
        %v3115 = vsel %vm636, %v2992, 0.0
        %v3116 = vsel %vm636, %v2993, 0.0
        %v3117 = vadd.f32 %v3115, %v3116
        %v3118 = vrot.slane %v3117, 4
        %v3119 = vadd.f32 %v3117, %v3118
        %v3120 = vrot.slane %v3119, 2
        %v3121 = vadd.f32 %v3119, %v3120
        %v3122 = vrot.slane %v3121, 1
        %v3123 = vadd.f32 %v3121, %v3122
        %v3124 = vsel %vm636, %v2994, 0.0
        %v3125 = vsel %vm636, %v2995, 0.0
        %v3126 = vadd.f32 %v3124, %v3125
        %v3127 = vrot.slane %v3126, 4
        %v3128 = vadd.f32 %v3126, %v3127
        %v3129 = vrot.slane %v3128, 2
        %v3130 = vadd.f32 %v3128, %v3129
        %v3131 = vrot.slane %v3130, 1
        %v3132 = vadd.f32 %v3130, %v3131
        %v3133 = vsel %vm636, %v2996, 0.0
        %v3134 = vsel %vm636, %v2997, 0.0
        %v3135 = vadd.f32 %v3133, %v3134
        %v3136 = vrot.slane %v3135, 4
        %v3137 = vadd.f32 %v3135, %v3136
        %v3138 = vrot.slane %v3137, 2
        %v3139 = vadd.f32 %v3137, %v3138
        %v3140 = vrot.slane %v3139, 1
        %v3141 = vadd.f32 %v3139, %v3140
        %v3142 = vadd.f32 %v3006, %v1776
        %v3143 = vadd.f32 %v3015, %v1776
        %v3144 = vadd.f32 %v3024, %v1776
        %v3145 = vadd.f32 %v3033, %v1776
        %v3146 = vadd.f32 %v3042, %v1776
        %v3147 = vadd.f32 %v3051, %v1776
        %v3148 = vadd.f32 %v3060, %v1776
        %v3149 = vadd.f32 %v3069, %v1776
        %v3150 = vadd.f32 %v3078, %v1776
        %v3151 = vadd.f32 %v3087, %v1776
        %v3152 = vadd.f32 %v3096, %v1776
        %v3153 = vadd.f32 %v3105, %v1776
        %v3154 = vadd.f32 %v3114, %v1776
        %v3155 = vadd.f32 %v3123, %v1776
        %v3156 = vadd.f32 %v3132, %v1776
        %v3157 = vadd.f32 %v3141, %v1776
        %3158 = vst.msk [vmem:[%s291] sm:$0x1] %vm1793, %v3142
        %3159 = vst.msk [vmem:[%s291 + $0x1] sm:$0x1] %vm1793, %v3143
        %3160 = vst.msk [vmem:[%s291 + $0x2] sm:$0x1] %vm1793, %v3144
        %3161 = vst.msk [vmem:[%s291 + $0x3] sm:$0x1] %vm1793, %v3145
        %3162 = vst.msk [vmem:[%s291 + $0x4] sm:$0x1] %vm1793, %v3146
        %3163 = vst.msk [vmem:[%s291 + $0x5] sm:$0x1] %vm1793, %v3147
        %3164 = vst.msk [vmem:[%s291 + $0x6] sm:$0x1] %vm1793, %v3148
        %3165 = vst.msk [vmem:[%s291 + $0x7] sm:$0x1] %vm1793, %v3149
        %3166 = vst.msk [vmem:[%s291 + $0x8] sm:$0x1] %vm1793, %v3150
        %3167 = vst.msk [vmem:[%s291 + $0x9] sm:$0x1] %vm1793, %v3151
        %3168 = vst.msk [vmem:[%s291 + $0xa] sm:$0x1] %vm1793, %v3152
        %3169 = vst.msk [vmem:[%s291 + $0xb] sm:$0x1] %vm1793, %v3153
        %3170 = vst.msk [vmem:[%s291 + $0xc] sm:$0x1] %vm1793, %v3154
        %3171 = vst.msk [vmem:[%s291 + $0xd] sm:$0x1] %vm1793, %v3155
        %3172 = vst.msk [vmem:[%s291 + $0xe] sm:$0x1] %vm1793, %v3156
        %3173 = vst.msk [vmem:[%s291 + $0xf] sm:$0x1] %vm1793, %v3157
        %s3174 = smul.u32 16, %s18
        %p3175 = scmp.lt.s32.totalorder %s3174, 63
        %s3176 = scalar_select %p3175, %s3174, 63
        %s3177 = scalar_lea.vmem %s4, %s3176
        %s3178 = smul.u32 16, %s18
        %p3179 = scmp.lt.s32.totalorder %s3178, 63
        %s3180 = scalar_select %p3179, %s3178, 63
        %s3181 = scalar_lea.vmem %s5, %s3180
        // Predicated region
        $region41: #{encoder_forward.6} parent=35 // pred_check
          %p3182 = pneg %p135
        $region42: #{encoder_forward.6} parent=35 // pred_check_branch
          %3184 = sbr.rel (%p3182) target = $region44
        $region43: #{encoder_forward.6} parent=35 // pred_region
          %s3185 = smul.u32 16, %s18
        $region44: #{encoder_forward.6} parent=35 // pred_fallthru
          _
        // Predicated region
        $region45: #{encoder_forward.6} parent=35 // pred_check
          %p3186 = pneg %p161
        $region46: #{encoder_forward.6} parent=35 // pred_check_branch
          %3188 = sbr.rel (%p3186) target = $region48
        $region47: #{encoder_forward.6} parent=35 // pred_region
          %s3189 = smul.u32 16, %s18
        $region48: #{encoder_forward.6} parent=35 // pred_fallthru
          _
      $region36: #{encoder_forward.6} parent=5 // pred_fallthru
        _
      %p3190 = scmp.le.s32.totalorder 2, %s13
      // Predicated region
      $region49: #{encoder_forward.6} parent=5 // pred_check
        %p3191 = pneg %p3190
      $region50: #{encoder_forward.6} parent=5 // pred_check_branch
        %3193 = sbr.rel (%p3191) target = $region52
      $region51: #{encoder_forward.6} parent=5 // pred_region
        %s3194 = ssub.s32 %s13, 2
        // Predicated region
        $region53: #{encoder_forward.6} parent=51 // pred_check
          %p3195 = pneg %p141
        $region54: #{encoder_forward.6} parent=51 // pred_check_branch
          %3197 = sbr.rel (%p3195) target = $region56
        $region55: #{encoder_forward.6} parent=51 // pred_region
          %s3198 = smul.u32 16, %s19
          %p3199 = scmp.lt.s32.totalorder %s3198, 63
          %s3200 = scalar_select %p3199, %s3198, 63
          %s3201 = scalar_lea.vmem %s4, %s3200
        $region56: #{encoder_forward.6} parent=51 // pred_fallthru
          _
        // Predicated region
        $region57: #{encoder_forward.6} parent=51 // pred_check
          %p3202 = pneg %p167
        $region58: #{encoder_forward.6} parent=51 // pred_check_branch
          %3204 = sbr.rel (%p3202) target = $region60
        $region59: #{encoder_forward.6} parent=51 // pred_region
          %s3205 = smul.u32 16, %s19
          %p3206 = scmp.lt.s32.totalorder %s3205, 63
          %s3207 = scalar_select %p3206, %s3205, 63
          %s3208 = scalar_lea.vmem %s5, %s3207
        $region60: #{encoder_forward.6} parent=51 // pred_fallthru
          _
      $region52: #{encoder_forward.6} parent=5 // pred_fallthru
        _
    $region6: #{encoder_forward.6} parent=1 // loop_footer
      %s17 = sadd.s32 1, %s13
    $region7: #{encoder_forward.6} parent=1 // loop_footer_branch
      %12 = sbr.rel target = $region3
    $region8: #{encoder_forward.6} parent=1 // loop_exit
      _
    %3209 = vsyncpa [#allocation3], 1
    %s3210 = scalar_lea.sflag [#allocation3], 1
    %3211 = vsyncpa %s3210, 1

// kernel: encoder_forward.9
$region0: #{encoder_forward.9}
  #allocation0 [shape = 'u32[]', space=smem, size = 0x4, offset = 0x4, fixed_abs, tag = 'smem constant byte address 0x4 - core index']
  #allocation1 [shape = 'u32[144,128]{1,0:T(1,128)}', space=vmem, size = 0x12000, scoped, tag = 'internal scratch']
  #allocation2 [shape = 'f32[1]{0:T(128)S(6)}', space=smem, size = 0x200, scoped, tag = 'scoped memory for encoder_forward.9']
  %s0 = inlined_call_operand.vmem [shape: f32[64,64], index: 0, kind: input, shape index: {}]
  %s1 = inlined_call_operand.vmem [shape: f32[64,64], index: 1, kind: input, shape index: {}]
  %s2 = inlined_call_operand.vmem [shape: f32[64,16], index: 2, kind: input, shape index: {}, may-alias: {2,3}]
  %s3 = inlined_call_operand.vmem [shape: f32[64,16], index: 3, kind: input, shape index: {}, may-alias: {2,3}]
  %s4 = inlined_call_operand.vmem [shape: f32[64,16], index: 4, kind: input, shape index: {}]
  %s5 = inlined_call_operand.vmem [shape: f32[8,8], index: 5, kind: input, shape index: {}]
  %s6 = inlined_call_operand.<no memory space> [shape: f32[1], index: 6, kind: input, shape index: {}]
  %s7 = inlined_call_operand.vmem [shape: f32[64,16], index: 7, kind: output, shape index: {0}]
  %s8 = inlined_call_operand.vmem [shape: f32[64,4], index: 8, kind: output, shape index: {1}]
  %9 = xla_tuple %s7, %s8
  %s10 = sld [smem:[#allocation0]]
  $region69: #{encoder_forward.9} parent=0
    _
  %s12 = ssub.s32 1, %s10
  %s13 = scalar_select 0, %s12, %s10
  %14 = sst [smem:[#allocation2]] %s6
  loop: start=0, step=1, limit=6
  $region2: #{encoder_forward.9} parent=0 // loop_pre_header
    _
  $region3: #{encoder_forward.9} parent=0 // loop_header
    %s16 = sphi 0, %s20
    %p17 = scmp.ge.s32.totalorder %s16, 6
    %s26 = sphi 0, %s28
    %s29 = sphi 0, %s26
    %s30 = sphi 0, %s29
    %s46 = sphi 0, %s30
    %s52 = sphi 0, %s54
    %s55 = sphi 0, %s52
    %s56 = sphi 0, %s55
    %s72 = sphi 0, %s56
    %s76 = sphi 0, %s76
    %s78 = sphi 0, %s76
    %s79 = sphi 0, %s78
    %s93 = sphi 0, %s79
    %s99 = sphi 0, %s101
    %s102 = sphi 0, %s99
    %s103 = sphi 0, %s102
    %s119 = sphi 0, %s103
    %s123 = sphi 0, %s123
    %s125 = sphi 0, %s123
    %s126 = sphi 0, %s125
    %s140 = sphi 0, %s126
    %s144 = sphi 0, %s144
    %s146 = sphi 0, %s144
    %s147 = sphi 0, %s146
    %s161 = sphi 0, %s147
    %s165 = sphi 0, %s165
    %s167 = sphi 0, %s165
    %s168 = sphi 0, %s167
    %s182 = sphi 0, %s168
    %s188 = sphi 0, %s190
    %s191 = sphi 0, %s188
    %s192 = sphi 0, %s191
    %s208 = sphi 0, %s192
    %s214 = sphi 0, %s216
    %s217 = sphi 0, %s214
    %s218 = sphi 0, %s217
    %s234 = sphi 0, %s218
  $region4: #{encoder_forward.9} parent=0 // loop_header_branch
    %19 = sbr.rel (%p17) target = $region8
  $region5: #{encoder_forward.9} parent=0 // loop_body
    %s21 = ssub.s32 %s16, 1
    %s22 = ssub.s32 %s16, 2
    %s23 = sadd.s32 %s16, 1
    %s24 = ssub.s32 %s16, %s23
    %p25 = scmp.eq.s32.totalorder %s24, 0
    %s27 = sadd.s32 %s26, 1
    %s28 = scalar_select %p25, %s26, %s27
    %p31 = pneg %p25
    %p32 = scmp.eq.s32.totalorder %s16, 3
    %p33 = por %p31, %p32
    %p34 = scmp.ne.s32.totalorder %s26, %s29
    %p35 = scmp.eq.s32.totalorder %s16, 0
    %p36 = por %p34, %p35
    %p37 = scmp.ne.s32.totalorder %s26, %s29
    %p38 = scmp.eq.s32.totalorder %s21, 3
    %p39 = por %p37, %p38
    %p40 = scmp.ne.s32.totalorder %s29, %s30
    %p41 = scmp.eq.s32.totalorder %s21, 0
    %p42 = por %p40, %p41
    %p43 = scmp.ne.s32.totalorder %s29, %s30
    %p44 = scmp.eq.s32.totalorder %s22, 3
    %p45 = por %p43, %p44
    %p47 = scmp.ne.s32.totalorder %s30, %s46
    %p48 = scmp.eq.s32.totalorder %s22, 0
    %p49 = por %p47, %p48
    %s50 = ssub.s32 %s16, %s23
    %p51 = scmp.eq.s32.totalorder %s50, 0
    %s53 = sadd.s32 %s52, 1
    %s54 = scalar_select %p51, %s52, %s53
    %p57 = pneg %p51
    %p58 = scmp.eq.s32.totalorder %s16, 3
    %p59 = por %p57, %p58
    %p60 = scmp.ne.s32.totalorder %s52, %s55
    %p61 = scmp.eq.s32.totalorder %s16, 0
    %p62 = por %p60, %p61
    %p63 = scmp.ne.s32.totalorder %s52, %s55
    %p64 = scmp.eq.s32.totalorder %s21, 3
    %p65 = por %p63, %p64
    %p66 = scmp.ne.s32.totalorder %s55, %s56
    %p67 = scmp.eq.s32.totalorder %s21, 0
    %p68 = por %p66, %p67
    %p69 = scmp.ne.s32.totalorder %s55, %s56
    %p70 = scmp.eq.s32.totalorder %s22, 3
    %p71 = por %p69, %p70
    %p73 = scmp.ne.s32.totalorder %s56, %s72
    %p74 = scmp.eq.s32.totalorder %s22, 0
    %p75 = por %p73, %p74
    %s77 = sadd.s32 %s76, 1
    %p80 = scmp.eq.s32.totalorder %s16, 3
    %p81 = scmp.ne.s32.totalorder %s76, %s78
    %p82 = scmp.eq.s32.totalorder %s16, 0
    %p83 = por %p81, %p82
    %p84 = scmp.ne.s32.totalorder %s76, %s78
    %p85 = scmp.eq.s32.totalorder %s21, 3
    %p86 = por %p84, %p85
    %p87 = scmp.ne.s32.totalorder %s78, %s79
    %p88 = scmp.eq.s32.totalorder %s21, 0
    %p89 = por %p87, %p88
    %p90 = scmp.ne.s32.totalorder %s78, %s79
    %p91 = scmp.eq.s32.totalorder %s22, 3
    %p92 = por %p90, %p91
    %p94 = scmp.ne.s32.totalorder %s79, %s93
    %p95 = scmp.eq.s32.totalorder %s22, 0
    %p96 = por %p94, %p95
    %s97 = ssub.s32 %s16, %s23
    %p98 = scmp.eq.s32.totalorder %s97, 0
    %s100 = sadd.s32 %s99, 1
    %s101 = scalar_select %p98, %s99, %s100
    %p104 = pneg %p98
    %p105 = scmp.eq.s32.totalorder %s16, 3
    %p106 = por %p104, %p105
    %p107 = scmp.ne.s32.totalorder %s99, %s102
    %p108 = scmp.eq.s32.totalorder %s16, 0
    %p109 = por %p107, %p108
    %p110 = scmp.ne.s32.totalorder %s99, %s102
    %p111 = scmp.eq.s32.totalorder %s21, 3
    %p112 = por %p110, %p111
    %p113 = scmp.ne.s32.totalorder %s102, %s103
    %p114 = scmp.eq.s32.totalorder %s21, 0
    %p115 = por %p113, %p114
    %p116 = scmp.ne.s32.totalorder %s102, %s103
    %p117 = scmp.eq.s32.totalorder %s22, 3
    %p118 = por %p116, %p117
    %p120 = scmp.ne.s32.totalorder %s103, %s119
    %p121 = scmp.eq.s32.totalorder %s22, 0
    %p122 = por %p120, %p121
    %s124 = sadd.s32 %s123, 1
    %p127 = scmp.eq.s32.totalorder %s16, 3
    %p128 = scmp.ne.s32.totalorder %s123, %s125
    %p129 = scmp.eq.s32.totalorder %s16, 0
    %p130 = por %p128, %p129
    %p131 = scmp.ne.s32.totalorder %s123, %s125
    %p132 = scmp.eq.s32.totalorder %s21, 3
    %p133 = por %p131, %p132
    %p134 = scmp.ne.s32.totalorder %s125, %s126
    %p135 = scmp.eq.s32.totalorder %s21, 0
    %p136 = por %p134, %p135
    %p137 = scmp.ne.s32.totalorder %s125, %s126
    %p138 = scmp.eq.s32.totalorder %s22, 3
    %p139 = por %p137, %p138
    %p141 = scmp.ne.s32.totalorder %s126, %s140
    %p142 = scmp.eq.s32.totalorder %s22, 0
    %p143 = por %p141, %p142
    %s145 = sadd.s32 %s144, 1
    %p148 = scmp.eq.s32.totalorder %s16, 3
    %p149 = scmp.ne.s32.totalorder %s144, %s146
    %p150 = scmp.eq.s32.totalorder %s16, 0
    %p151 = por %p149, %p150
    %p152 = scmp.ne.s32.totalorder %s144, %s146
    %p153 = scmp.eq.s32.totalorder %s21, 3
    %p154 = por %p152, %p153
    %p155 = scmp.ne.s32.totalorder %s146, %s147
    %p156 = scmp.eq.s32.totalorder %s21, 0
    %p157 = por %p155, %p156
    %p158 = scmp.ne.s32.totalorder %s146, %s147
    %p159 = scmp.eq.s32.totalorder %s22, 3
    %p160 = por %p158, %p159
    %p162 = scmp.ne.s32.totalorder %s147, %s161
    %p163 = scmp.eq.s32.totalorder %s22, 0
    %p164 = por %p162, %p163
    %s166 = sadd.s32 %s165, 1
    %p169 = scmp.eq.s32.totalorder %s16, 3
    %p170 = scmp.ne.s32.totalorder %s165, %s167
    %p171 = scmp.eq.s32.totalorder %s16, 0
    %p172 = por %p170, %p171
    %p173 = scmp.ne.s32.totalorder %s165, %s167
    %p174 = scmp.eq.s32.totalorder %s21, 3
    %p175 = por %p173, %p174
    %p176 = scmp.ne.s32.totalorder %s167, %s168
    %p177 = scmp.eq.s32.totalorder %s21, 0
    %p178 = por %p176, %p177
    %p179 = scmp.ne.s32.totalorder %s167, %s168
    %p180 = scmp.eq.s32.totalorder %s22, 3
    %p181 = por %p179, %p180
    %p183 = scmp.ne.s32.totalorder %s168, %s182
    %p184 = scmp.eq.s32.totalorder %s22, 0
    %p185 = por %p183, %p184
    %s186 = ssub.s32 %s16, %s23
    %p187 = scmp.eq.s32.totalorder %s186, 0
    %s189 = sadd.s32 %s188, 1
    %s190 = scalar_select %p187, %s188, %s189
    %p193 = pneg %p187
    %p194 = scmp.eq.s32.totalorder %s16, 3
    %p195 = por %p193, %p194
    %p196 = scmp.ne.s32.totalorder %s188, %s191
    %p197 = scmp.eq.s32.totalorder %s16, 0
    %p198 = por %p196, %p197
    %p199 = scmp.ne.s32.totalorder %s188, %s191
    %p200 = scmp.eq.s32.totalorder %s21, 3
    %p201 = por %p199, %p200
    %p202 = scmp.ne.s32.totalorder %s191, %s192
    %p203 = scmp.eq.s32.totalorder %s21, 0
    %p204 = por %p202, %p203
    %p205 = scmp.ne.s32.totalorder %s191, %s192
    %p206 = scmp.eq.s32.totalorder %s22, 3
    %p207 = por %p205, %p206
    %p209 = scmp.ne.s32.totalorder %s192, %s208
    %p210 = scmp.eq.s32.totalorder %s22, 0
    %p211 = por %p209, %p210
    %s212 = ssub.s32 %s16, %s23
    %p213 = scmp.eq.s32.totalorder %s212, 0
    %s215 = sadd.s32 %s214, 1
    %s216 = scalar_select %p213, %s214, %s215
    %p219 = pneg %p213
    %p220 = scmp.eq.s32.totalorder %s16, 3
    %p221 = por %p219, %p220
    %p222 = scmp.ne.s32.totalorder %s214, %s217
    %p223 = scmp.eq.s32.totalorder %s16, 0
    %p224 = por %p222, %p223
    %p225 = scmp.ne.s32.totalorder %s214, %s217
    %p226 = scmp.eq.s32.totalorder %s21, 3
    %p227 = por %p225, %p226
    %p228 = scmp.ne.s32.totalorder %s217, %s218
    %p229 = scmp.eq.s32.totalorder %s21, 0
    %p230 = por %p228, %p229
    %p231 = scmp.ne.s32.totalorder %s217, %s218
    %p232 = scmp.eq.s32.totalorder %s22, 3
    %p233 = por %p231, %p232
    %p235 = scmp.ne.s32.totalorder %s218, %s234
    %p236 = scmp.eq.s32.totalorder %s22, 0
    %p237 = por %p235, %p236
    %p238 = scmp.le.s32.totalorder 1, %s16
    %p239 = scmp.lt.s32.totalorder %s16, 5
    %p240 = pnand %p238, %p239
    %p241 = pneg %p240
    // Predicated region
    $region9: #{encoder_forward.9} parent=5 // pred_check
      _
    $region10: #{encoder_forward.9} parent=5 // pred_check_branch
      %243 = sbr.rel (%p240) target = $region12
    $region11: #{encoder_forward.9} parent=5 // pred_region
      %s244 = ssub.s32 %s16, 1
      // Predicated region
      $region13: #{encoder_forward.9} parent=11 // pred_check
        %p245 = pneg %p89
      $region14: #{encoder_forward.9} parent=11 // pred_check_branch
        %247 = sbr.rel (%p245) target = $region16
      $region15: #{encoder_forward.9} parent=11 // pred_region
        _
      $region16: #{encoder_forward.9} parent=11 // pred_fallthru
        _
      // Predicated region
      $region17: #{encoder_forward.9} parent=11 // pred_check
        %p248 = pneg %p136
      $region18: #{encoder_forward.9} parent=11 // pred_check_branch
        %250 = sbr.rel (%p248) target = $region20
      $region19: #{encoder_forward.9} parent=11 // pred_region
        _
      $region20: #{encoder_forward.9} parent=11 // pred_fallthru
        _
      // Predicated region
      $region21: #{encoder_forward.9} parent=11 // pred_check
        %p251 = pneg %p157
      $region22: #{encoder_forward.9} parent=11 // pred_check_branch
        %253 = sbr.rel (%p251) target = $region24
      $region23: #{encoder_forward.9} parent=11 // pred_region
        _
      $region24: #{encoder_forward.9} parent=11 // pred_fallthru
        _
      // Predicated region
      $region25: #{encoder_forward.9} parent=11 // pred_check
        %p254 = pneg %p178
      $region26: #{encoder_forward.9} parent=11 // pred_check_branch
        %256 = sbr.rel (%p254) target = $region28
      $region27: #{encoder_forward.9} parent=11 // pred_region
        _
      $region28: #{encoder_forward.9} parent=11 // pred_fallthru
        _
    $region12: #{encoder_forward.9} parent=5 // pred_fallthru
      _
    %p257 = scmp.lt.s32.totalorder %s16, 4
    // Predicated region
    $region29: #{encoder_forward.9} parent=5 // pred_check
      %p258 = pneg %p257
    $region30: #{encoder_forward.9} parent=5 // pred_check_branch
      %260 = sbr.rel (%p258) target = $region32
    $region31: #{encoder_forward.9} parent=5 // pred_region
      // Predicated region
      $region33: #{encoder_forward.9} parent=31 // pred_check
        %p261 = pneg %p36
      $region34: #{encoder_forward.9} parent=31 // pred_check_branch
        %263 = sbr.rel (%p261) target = $region36
      $region35: #{encoder_forward.9} parent=31 // pred_region
        %s264 = smul.u32 2, %s16
        %p265 = scmp.lt.s32.totalorder %s264, 7
        %s266 = scalar_select %p265, %s264, 7
        %s267 = smul.addr %s266, 8
        %s268 = scalar_lea.vmem %s0, %s267
        %s269 = smul.u32 2, %s16
      $region36: #{encoder_forward.9} parent=31 // pred_fallthru
        _
      // Predicated region
      $region37: #{encoder_forward.9} parent=31 // pred_check
        %p270 = pneg %p62
      $region38: #{encoder_forward.9} parent=31 // pred_check_branch
        %272 = sbr.rel (%p270) target = $region40
      $region39: #{encoder_forward.9} parent=31 // pred_region
        %s273 = smul.u32 2, %s16
        %p274 = scmp.lt.s32.totalorder %s273, 7
        %s275 = scalar_select %p274, %s273, 7
        %s276 = smul.addr %s275, 8
        %s277 = scalar_lea.vmem %s1, %s276
        %s278 = smul.u32 2, %s16
      $region40: #{encoder_forward.9} parent=31 // pred_fallthru
        _
      // Predicated region
      $region41: #{encoder_forward.9} parent=31 // pred_check
        %p279 = pneg %p109
      $region42: #{encoder_forward.9} parent=31 // pred_check_branch
        %281 = sbr.rel (%p279) target = $region44
      $region43: #{encoder_forward.9} parent=31 // pred_region
        %s282 = smul.u32 2, %s16
        %p283 = scmp.lt.s32.totalorder %s282, 7
        %s284 = scalar_select %p283, %s282, 7
        %s285 = smul.addr %s284, 8
        %s286 = scalar_lea.vmem %s3, %s285
        %s287 = smul.u32 2, %s16
      $region44: #{encoder_forward.9} parent=31 // pred_fallthru
        _
    $region32: #{encoder_forward.9} parent=5 // pred_fallthru
      _
    %p288 = scmp.le.s32.totalorder 1, %s16
    %p289 = scmp.lt.s32.totalorder %s16, 5
    %p290 = pnand %p288, %p289
    %p291 = pneg %p290
    // Predicated region
    $region45: #{encoder_forward.9} parent=5 // pred_check
      _
    $region46: #{encoder_forward.9} parent=5 // pred_check_branch
      %293 = sbr.rel (%p290) target = $region48
    $region47: #{encoder_forward.9} parent=5 // pred_region
      %s294 = ssub.s32 %s16, 1
      %s295 = smul.u32 2, %s21
      %p296 = scmp.lt.s32.totalorder %s295, 7
      %s297 = scalar_select %p296, %s295, 7
      %s298 = smul.addr %s297, 8
      %s299 = scalar_lea.vmem %s0, %s298
      %p300 = pneg %p42
      %p301 = pneg %p39
      %s302 = smul.u32 2, %s21
      %p303 = scmp.lt.s32.totalorder %s302, 7
      %s304 = scalar_select %p303, %s302, 7
      %s305 = smul.addr %s304, 8
      %s306 = scalar_lea.vmem %s1, %s305
      %p307 = pneg %p68
      %p308 = pneg %p65
      %p309 = pneg %p89
      %p310 = pneg %p86
      %s311 = smul.u32 2, %s21
      %p312 = scmp.lt.s32.totalorder %s311, 7
      %s313 = scalar_select %p312, %s311, 7
      %s314 = smul.addr %s313, 8
      %s315 = scalar_lea.vmem %s3, %s314
      %p316 = pneg %p115
      %p317 = pneg %p112
      %p318 = pneg %p136
      %p319 = pneg %p133
      %p320 = pneg %p157
      %p321 = pneg %p154
      %p322 = pneg %p178
      %p323 = pneg %p175
      %p324 = pneg %p204
      %p325 = pneg %p201
      %s326 = smul.u32 2, %s21
      %p327 = scmp.lt.s32.totalorder %s326, 7
      %s328 = scalar_select %p327, %s326, 7
      %s329 = smul.addr %s328, 8
      %s330 = scalar_lea.vmem %s7, %s329
      %p331 = pneg %p230
      %p332 = pneg %p227
      %s333 = smul.u32 2, %s21
      %p334 = scmp.lt.s32.totalorder %s333, 7
      %s335 = scalar_select %p334, %s333, 7
      %s336 = smul.addr %s335, 8
      %s337 = scalar_lea.vmem %s8, %s336
      %s338 = smul.u32 2, %s21
      %p339 = scmp.lt.s32.totalorder %s338, 7
      %s340 = scalar_select %p339, %s338, 7
      %s341 = smul.addr %s340, 8
      %s342 = scalar_lea.vmem %s0, %s341
      %s343 = smul.u32 2, %s21
      %s344 = smul.u32 2, %s21
      %p345 = scmp.lt.s32.totalorder %s344, 7
      %s346 = scalar_select %p345, %s344, 7
      %s347 = smul.addr %s346, 8
      %s348 = scalar_lea.vmem %s1, %s347
      %s349 = smul.u32 2, %s21
      %s350 = smul.u32 2, %s21
      %p351 = scmp.lt.s32.totalorder %s350, 7
      %s352 = scalar_select %p351, %s350, 7
      %s353 = smul.addr %s352, 8
      %s354 = scalar_lea.vmem %s3, %s353
      %s355 = smul.u32 2, %s21
      %s356 = smul.u32 2, %s21
      %p357 = scmp.lt.s32.totalorder %s356, 7
      %s358 = scalar_select %p357, %s356, 7
      %s359 = smul.addr %s358, 8
      %s360 = scalar_lea.vmem %s7, %s359
      %s361 = smul.u32 2, %s21
      %s362 = smul.u32 2, %s21
      %p363 = scmp.lt.s32.totalorder %s362, 7
      %s364 = scalar_select %p363, %s362, 7
      %s365 = smul.addr %s364, 8
      %s366 = scalar_lea.vmem %s8, %s365
      %s367 = smul.u32 2, %s21
      %s368 = sld [smem:[#allocation2]]
      %v369 = vld [vmem:[%s342] sm:$0xff]
      %v370 = vld [vmem:[%s342 + $0x8] sm:$0xff]
      %v371 = vld [vmem:[%s348] sm:$0xff]
      %v372 = vld [vmem:[%s348 + $0x8] sm:$0xff]
      %v373 = vld [vmem:[%s4] sm:$0xff]
      %v374 = vld [vmem:[%s4 + $0x8] sm:$0xff]
      %v375 = vld [vmem:[%s4 + $0x10] sm:$0xff]
      %v376 = vld [vmem:[%s4 + $0x18] sm:$0xff]
      %v377 = vld [vmem:[%s4 + $0x20] sm:$0xff]
      %v378 = vld [vmem:[%s4 + $0x28] sm:$0xff]
      %v379 = vld [vmem:[%s4 + $0x30] sm:$0xff]
      %v380 = vld [vmem:[%s4 + $0x38] sm:$0xff]
      %vm381 = vcmask 523264
      %v383 = vsel %vm381, %v369, 0
      %v386 = vsel %vm381, %v370, 0
      %388 = vmatprep.subr.mxu0 0.0
      %389 = vmatpush1.msra.mxu0 %v373
      %390 = vmatprep.subr.mxu0 0.0
      %391 = vmatpush1.msra.mxu0 %v374
      %392 = vmatprep.subr.mxu0 0.0
      %393 = vmatpush1.msra.mxu0 %v375
      %394 = vmatprep.subr.mxu0 0.0
      %395 = vmatpush1.msra.mxu0 %v376
      %396 = vmatprep.subr.mxu0 0.0
      %397 = vmatpush1.msra.mxu0 %v377
      %398 = vmatprep.subr.mxu0 0.0
      %399 = vmatpush1.msra.mxu0 %v378
      %400 = vmatprep.subr.mxu0 0.0
      %401 = vmatpush1.msra.mxu0 %v379
      %402 = vmatprep.subr.mxu0 0.0
      %403 = vmatpush1.msra.mxu0 %v380
      %404 = vmatprep.subr.mxu0 0.0
      %405 = vmatpush1.msra.mxu0 0.0
      %406 = vmatprep.subr.mxu0 0.0
      %407 = vmatpush1.msra.mxu0 0.0
      %408 = vmatprep.subr.mxu0 0.0
      %409 = vmatpush1.msra.mxu0 0.0
      %410 = vmatprep.subr.mxu0 0.0
      %411 = vmatpush1.msra.mxu0 0.0
      %412 = vmatprep.subr.mxu0 0.0
      %413 = vmatpush1.msra.mxu0 0.0
      %414 = vmatprep.subr.mxu0 0.0
      %415 = vmatpush1.msra.mxu0 0.0
      %416 = vmatprep.subr.mxu0 0.0
      %417 = vmatpush1.msra.mxu0 0.0
      %418 = vmatprep.subr.mxu0 0.0
      %419 = vmatpush1.msra.mxu0 0.0
      %420 = vmatprep.subr.mxu0 0.0
      %421 = vmatpush1.msra.mxu0 0.0
      %422 = vmatprep.subr.mxu0 0.0
      %423 = vmatpush1.msra.mxu0 0.0
      %424 = vmatprep.subr.mxu0 0.0
      %425 = vmatpush1.msra.mxu0 0.0
      %426 = vmatprep.subr.mxu0 0.0
      %427 = vmatpush1.msra.mxu0 0.0
      %428 = vmatprep.subr.mxu0 0.0
      %429 = vmatpush1.msra.mxu0 0.0
      %430 = vmatprep.subr.mxu0 0.0
      %431 = vmatpush1.msra.mxu0 0.0
      %432 = vmatprep.subr.mxu0 0.0
      %433 = vmatpush1.msra.mxu0 0.0
      %434 = vmatprep.subr.mxu0 0.0
      %435 = vmatpush1.msra.mxu0 0.0
      %436 = vmatprep.subr.mxu0 0.0
      %437 = vmatpush1.msra.mxu0 0.0
      %438 = vmatprep.subr.mxu0 0.0
      %439 = vmatpush1.msra.mxu0 0.0
      %440 = vmatprep.subr.mxu0 0.0
      %441 = vmatpush1.msra.mxu0 0.0
      %442 = vmatprep.subr.mxu0 0.0
      %443 = vmatpush1.msra.mxu0 0.0
      %444 = vmatprep.subr.mxu0 0.0
      %445 = vmatpush1.msra.mxu0 0.0
      %446 = vmatprep.subr.mxu0 0.0
      %447 = vmatpush1.msra.mxu0 0.0
      %448 = vmatprep.subr.mxu0 0.0
      %449 = vmatpush1.msra.mxu0 0.0
      %450 = vmatprep.subr.mxu0 0.0
      %451 = vmatpush1.msra.mxu0 0.0
      %452 = vmatprep.mubr.f32.mxu0 0.0
      %453 = vmatmul.mubr.f32.gmra.mrb[0].mxu0 %v383
      %v454 = vpop.f32.mrb[0].mxu0
      %v455 = vadd.f32 0.0, %v454
      %v456 = vpop.f32.mrb[0].mxu0
      %457 = vmatprep.mubr.f32.mxu0 0.0
      %458 = vmatmul.mubr.f32.gmra.mrb[0].mxu0 %v386
      %v459 = vpop.f32.mrb[0].mxu0
      %v460 = vadd.f32 0.0, %v459
      %v461 = vpop.f32.mrb[0].mxu0
      %462 = vdwg.mxu0
      %vm463 = vcmask 130048
      %464 = vst.msk [vmem:[%s360] sm:$0xff] %vm463, %v455
      %465 = vst.msk [vmem:[%s360 + $0x8] sm:$0xff] %vm463, %v460
      %v466 = vld [vmem:[%s2] sm:$0xff]
      %v467 = vld [vmem:[%s2 + $0x8] sm:$0xff]
      %v468 = vld [vmem:[%s2 + $0x10] sm:$0xff]
      %v469 = vld [vmem:[%s2 + $0x18] sm:$0xff]
      %v470 = vld [vmem:[%s2 + $0x20] sm:$0xff]
      %v471 = vld [vmem:[%s2 + $0x28] sm:$0xff]
      %v472 = vld [vmem:[%s2 + $0x30] sm:$0xff]
      %v473 = vld [vmem:[%s2 + $0x38] sm:$0xff]
      %v474 = vmax.f32 %v466, 0.0
      %v475 = vmax.f32 %v467, 0.0
      %v476 = vmax.f32 %v468, 0.0
      %v477 = vmax.f32 %v469, 0.0
      %v478 = vmax.f32 %v470, 0.0
      %v479 = vmax.f32 %v471, 0.0
      %v480 = vmax.f32 %v472, 0.0
      %v481 = vmax.f32 %v473, 0.0
      %v483 = vsel %vm381, %v371, 0
      %v486 = vsel %vm381, %v372, 0
      %488 = vmatprep.subr.mxu0 0.0
      %489 = vmatpush1.msra.mxu0 %v474
      %490 = vmatprep.subr.mxu0 0.0
      %491 = vmatpush1.msra.mxu0 %v475
      %492 = vmatprep.subr.mxu0 0.0
      %493 = vmatpush1.msra.mxu0 %v476
      %494 = vmatprep.subr.mxu0 0.0
      %495 = vmatpush1.msra.mxu0 %v477
      %496 = vmatprep.subr.mxu0 0.0
      %497 = vmatpush1.msra.mxu0 %v478
      %498 = vmatprep.subr.mxu0 0.0
      %499 = vmatpush1.msra.mxu0 %v479
      %500 = vmatprep.subr.mxu0 0.0
      %501 = vmatpush1.msra.mxu0 %v480
      %502 = vmatprep.subr.mxu0 0.0
      %503 = vmatpush1.msra.mxu0 %v481
      %504 = vmatprep.subr.mxu0 0.0
      %505 = vmatpush1.msra.mxu0 0.0
      %506 = vmatprep.subr.mxu0 0.0
      %507 = vmatpush1.msra.mxu0 0.0
      %508 = vmatprep.subr.mxu0 0.0
      %509 = vmatpush1.msra.mxu0 0.0
      %510 = vmatprep.subr.mxu0 0.0
      %511 = vmatpush1.msra.mxu0 0.0
      %512 = vmatprep.subr.mxu0 0.0
      %513 = vmatpush1.msra.mxu0 0.0
      %514 = vmatprep.subr.mxu0 0.0
      %515 = vmatpush1.msra.mxu0 0.0
      %516 = vmatprep.subr.mxu0 0.0
      %517 = vmatpush1.msra.mxu0 0.0
      %518 = vmatprep.subr.mxu0 0.0
      %519 = vmatpush1.msra.mxu0 0.0
      %520 = vmatprep.subr.mxu0 0.0
      %521 = vmatpush1.msra.mxu0 0.0
      %522 = vmatprep.subr.mxu0 0.0
      %523 = vmatpush1.msra.mxu0 0.0
      %524 = vmatprep.subr.mxu0 0.0
      %525 = vmatpush1.msra.mxu0 0.0
      %526 = vmatprep.subr.mxu0 0.0
      %527 = vmatpush1.msra.mxu0 0.0
      %528 = vmatprep.subr.mxu0 0.0
      %529 = vmatpush1.msra.mxu0 0.0
      %530 = vmatprep.subr.mxu0 0.0
      %531 = vmatpush1.msra.mxu0 0.0
      %532 = vmatprep.subr.mxu0 0.0
      %533 = vmatpush1.msra.mxu0 0.0
      %534 = vmatprep.subr.mxu0 0.0
      %535 = vmatpush1.msra.mxu0 0.0
      %536 = vmatprep.subr.mxu0 0.0
      %537 = vmatpush1.msra.mxu0 0.0
      %538 = vmatprep.subr.mxu0 0.0
      %539 = vmatpush1.msra.mxu0 0.0
      %540 = vmatprep.subr.mxu0 0.0
      %541 = vmatpush1.msra.mxu0 0.0
      %542 = vmatprep.subr.mxu0 0.0
      %543 = vmatpush1.msra.mxu0 0.0
      %544 = vmatprep.subr.mxu0 0.0
      %545 = vmatpush1.msra.mxu0 0.0
      %546 = vmatprep.subr.mxu0 0.0
      %547 = vmatpush1.msra.mxu0 0.0
      %548 = vmatprep.subr.mxu0 0.0
      %549 = vmatpush1.msra.mxu0 0.0
      %550 = vmatprep.subr.mxu0 0.0
      %551 = vmatpush1.msra.mxu0 0.0
      %552 = vmatprep.mubr.f32.mxu0 0.0
      %553 = vmatmul.mubr.f32.gmra.mrb[0].mxu0 %v483
      %v554 = vpop.f32.mrb[0].mxu0
      %v555 = vadd.f32 0.0, %v554
      %v556 = vpop.f32.mrb[0].mxu0
      %557 = vmatprep.mubr.f32.mxu0 0.0
      %558 = vmatmul.mubr.f32.gmra.mrb[0].mxu0 %v486
      %v559 = vpop.f32.mrb[0].mxu0
      %v560 = vadd.f32 0.0, %v559
      %v561 = vpop.f32.mrb[0].mxu0
      %562 = vdwg.mxu0
      %v563 = vsel %vm381, %v371, 0.0
      %564 = vadd.xlane.f32.xlu0 %v563
      %v565 = vpop.xlane.xlu0 %564
      %v566 = vsel %vm381, %v372, 0.0
      %567 = vadd.xlane.f32.xlu0 %v566
      %v568 = vpop.xlane.xlu0 %567
      %v569 = vrcp.pop %v565
      %v570 = vrcp.pop %v568
      %v571 = vmul.f32 %v565, %v569
      %v572 = vmul.f32 %v568, %v570
      %v573 = vsub.f32 2.0, %v571
      %v574 = vsub.f32 2.0, %v572
      %v575 = vmul.f32 %v569, %v573
      %v576 = vmul.f32 %v570, %v574
      %v577 = vmul.f32 %v555, %v575
      %v578 = vmul.f32 %v560, %v576
      %v579 = vmul.f32 %v577, %v577
      %v580 = vmul.f32 %v578, %v578
      %vm581 = vcmask 64512
      %v582 = vsel %vm581, %v579, 0.0
      %583 = vadd.xlane.f32.xlu0 %v582
      %v584 = vpop.xlane.xlu0 %583
      %v585 = vsel %vm581, %v580, 0.0
      %586 = vadd.xlane.f32.xlu0 %v585
      %v587 = vpop.xlane.xlu0 %586
      %v588 = vmax.f32 %v584, 1e-24
      %v589 = vmax.f32 %v587, 1e-24
      %v590 = vrsqrt.pop %v588
      %v591 = vrsqrt.pop %v589
      %v592 = vmul.f32 %v577, %v590
      %v593 = vmul.f32 %v578, %v591
      %v594 = vsub.f32 0.0, %v592
      %v595 = vsub.f32 0.0, %v593
      %v596 = vmul.f32 %v594, 1.442695
      %v597 = vpow.pop %v596
      %v598 = vmul.f32 %v595, 1.442695
      %v599 = vpow.pop %v598
      %v600 = vadd.f32 %v597, 1.0
      %v601 = vadd.f32 %v599, 1.0
      %v602 = vrcp.pop %v600
      %v603 = vrcp.pop %v601
      %v604 = vmul.f32 %v600, %v602
      %v605 = vmul.f32 %v601, %v603
      %v606 = vsub.f32 2.0, %v604
      %v607 = vsub.f32 2.0, %v605
      %v608 = vmul.f32 %v602, %v606
      %v609 = vmul.f32 %v603, %v607
      %612 = vrot.lane.b32.xlu0 %v579, 120
      %v613 = vpop.permute.xlu0 %612
      %614 = vrot.lane.b32.xlu0 %v580, 120
      %v615 = vpop.permute.xlu0 %614
      %v618 = vsel %vm581, %v613, 0.0
      %619 = vadd.xlane.f32.xlu0 %v618
      %v620 = vpop.xlane.xlu0 %619
      %v621 = vsel %vm581, %v615, 0.0
      %622 = vadd.xlane.f32.xlu0 %v621
      %v623 = vpop.xlane.xlu0 %622
      %v624 = vmax.f32 %v620, 1e-24
      %v625 = vmax.f32 %v623, 1e-24
      %v626 = vrsqrt.pop %v624
      %v627 = vrsqrt.pop %v625
      %v628 = vmul.f32 %v577, %v626
      %v629 = vmul.f32 %v578, %v627
      %v630 = vsub.f32 0.0, %v628
      %v631 = vsub.f32 0.0, %v629
      %v632 = vmul.f32 %v630, 1.442695
      %v633 = vpow.pop %v632
      %v634 = vmul.f32 %v631, 1.442695
      %v635 = vpow.pop %v634
      %v636 = vadd.f32 %v633, 1.0
      %v637 = vadd.f32 %v635, 1.0
      %v638 = vrcp.pop %v636
      %v639 = vrcp.pop %v637
      %v640 = vmul.f32 %v636, %v638
      %v641 = vmul.f32 %v637, %v639
      %v642 = vsub.f32 2.0, %v640
      %v643 = vsub.f32 2.0, %v641
      %v644 = vmul.f32 %v638, %v642
      %v645 = vmul.f32 %v639, %v643
      %v646 = vld [vmem:[%s354] sm:$0xff]
      %v647 = vld [vmem:[%s354 + $0x8] sm:$0xff]
      %v648 = vmax.f32 %v646, 0.0
      %v649 = vmax.f32 %v647, 0.0
      %v650 = vld [vmem:[%s5] sm:$0xff]
      %v652 = vsel %vm581, %v608, 0
      %v655 = vsel %vm581, %v609, 0
      %657 = vmatprep.subr.mxu0 0.0
      %658 = vmatpush1.msra.mxu0 %v650
      %659 = vmatprep.subr.mxu0 0.0
      %660 = vmatpush1.msra.mxu0 0.0
      %661 = vmatprep.subr.mxu0 0.0
      %662 = vmatpush1.msra.mxu0 0.0
      %663 = vmatprep.subr.mxu0 0.0
      %664 = vmatpush1.msra.mxu0 0.0
      %665 = vmatprep.subr.mxu0 0.0
      %666 = vmatpush1.msra.mxu0 0.0
      %667 = vmatprep.subr.mxu0 0.0
      %668 = vmatpush1.msra.mxu0 0.0
      %669 = vmatprep.subr.mxu0 0.0
      %670 = vmatpush1.msra.mxu0 0.0
      %671 = vmatprep.subr.mxu0 0.0
      %672 = vmatpush1.msra.mxu0 0.0
      %673 = vmatprep.subr.mxu0 0.0
      %674 = vmatpush1.msra.mxu0 0.0
      %675 = vmatprep.subr.mxu0 0.0
      %676 = vmatpush1.msra.mxu0 0.0
      %677 = vmatprep.subr.mxu0 0.0
      %678 = vmatpush1.msra.mxu0 0.0
      %679 = vmatprep.subr.mxu0 0.0
      %680 = vmatpush1.msra.mxu0 0.0
      %681 = vmatprep.subr.mxu0 0.0
      %682 = vmatpush1.msra.mxu0 0.0
      %683 = vmatprep.subr.mxu0 0.0
      %684 = vmatpush1.msra.mxu0 0.0
      %685 = vmatprep.subr.mxu0 0.0
      %686 = vmatpush1.msra.mxu0 0.0
      %687 = vmatprep.subr.mxu0 0.0
      %688 = vmatpush1.msra.mxu0 0.0
      %689 = vmatprep.subr.mxu0 0.0
      %690 = vmatpush1.msra.mxu0 0.0
      %691 = vmatprep.subr.mxu0 0.0
      %692 = vmatpush1.msra.mxu0 0.0
      %693 = vmatprep.subr.mxu0 0.0
      %694 = vmatpush1.msra.mxu0 0.0
      %695 = vmatprep.subr.mxu0 0.0
      %696 = vmatpush1.msra.mxu0 0.0
      %697 = vmatprep.subr.mxu0 0.0
      %698 = vmatpush1.msra.mxu0 0.0
      %699 = vmatprep.subr.mxu0 0.0
      %700 = vmatpush1.msra.mxu0 0.0
      %701 = vmatprep.subr.mxu0 0.0
      %702 = vmatpush1.msra.mxu0 0.0
      %703 = vmatprep.subr.mxu0 0.0
      %704 = vmatpush1.msra.mxu0 0.0
      %705 = vmatprep.subr.mxu0 0.0
      %706 = vmatpush1.msra.mxu0 0.0
      %707 = vmatprep.subr.mxu0 0.0
      %708 = vmatpush1.msra.mxu0 0.0
      %709 = vmatprep.subr.mxu0 0.0
      %710 = vmatpush1.msra.mxu0 0.0
      %711 = vmatprep.subr.mxu0 0.0
      %712 = vmatpush1.msra.mxu0 0.0
      %713 = vmatprep.subr.mxu0 0.0
      %714 = vmatpush1.msra.mxu0 0.0
      %715 = vmatprep.subr.mxu0 0.0
      %716 = vmatpush1.msra.mxu0 0.0
      %717 = vmatprep.subr.mxu0 0.0
      %718 = vmatpush1.msra.mxu0 0.0
      %719 = vmatprep.subr.mxu0 0.0
      %720 = vmatpush1.msra.mxu0 0.0
      %721 = vmatprep.mubr.f32.mxu0 0.0
      %722 = vmatmul.mubr.f32.gmra.mrb[0].mxu0 %v652
      %v723 = vpop.f32.mrb[0].mxu0
      %v724 = vadd.f32 0.0, %v723
      %v725 = vpop.f32.mrb[0].mxu0
      %726 = vmatprep.mubr.f32.mxu0 0.0
      %727 = vmatmul.mubr.f32.gmra.mrb[0].mxu0 %v655
      %v728 = vpop.f32.mrb[0].mxu0
      %v729 = vadd.f32 0.0, %v728
      %v730 = vpop.f32.mrb[0].mxu0
      %731 = vdwg.mxu0
      %734 = vrot.lane.b32.xlu0 %v644, 120
      %v735 = vpop.permute.xlu0 %734
      %736 = vrot.lane.b32.xlu0 %v645, 120
      %v737 = vpop.permute.xlu0 %736
      %v738 = vsel %vm581, %v735, 0
      %v740 = vsel %vm581, %v737, 0
      %742 = vmatprep.subr.mxu0 0.0
      %743 = vmatpush1.msra.mxu0 %v650
      %744 = vmatprep.subr.mxu0 0.0
      %745 = vmatpush1.msra.mxu0 0.0
      %746 = vmatprep.subr.mxu0 0.0
      %747 = vmatpush1.msra.mxu0 0.0
      %748 = vmatprep.subr.mxu0 0.0
      %749 = vmatpush1.msra.mxu0 0.0
      %750 = vmatprep.subr.mxu0 0.0
      %751 = vmatpush1.msra.mxu0 0.0
      %752 = vmatprep.subr.mxu0 0.0
      %753 = vmatpush1.msra.mxu0 0.0
      %754 = vmatprep.subr.mxu0 0.0
      %755 = vmatpush1.msra.mxu0 0.0
      %756 = vmatprep.subr.mxu0 0.0
      %757 = vmatpush1.msra.mxu0 0.0
      %758 = vmatprep.subr.mxu0 0.0
      %759 = vmatpush1.msra.mxu0 0.0
      %760 = vmatprep.subr.mxu0 0.0
      %761 = vmatpush1.msra.mxu0 0.0
      %762 = vmatprep.subr.mxu0 0.0
      %763 = vmatpush1.msra.mxu0 0.0
      %764 = vmatprep.subr.mxu0 0.0
      %765 = vmatpush1.msra.mxu0 0.0
      %766 = vmatprep.subr.mxu0 0.0
      %767 = vmatpush1.msra.mxu0 0.0
      %768 = vmatprep.subr.mxu0 0.0
      %769 = vmatpush1.msra.mxu0 0.0
      %770 = vmatprep.subr.mxu0 0.0
      %771 = vmatpush1.msra.mxu0 0.0
      %772 = vmatprep.subr.mxu0 0.0
      %773 = vmatpush1.msra.mxu0 0.0
      %774 = vmatprep.subr.mxu0 0.0
      %775 = vmatpush1.msra.mxu0 0.0
      %776 = vmatprep.subr.mxu0 0.0
      %777 = vmatpush1.msra.mxu0 0.0
      %778 = vmatprep.subr.mxu0 0.0
      %779 = vmatpush1.msra.mxu0 0.0
      %780 = vmatprep.subr.mxu0 0.0
      %781 = vmatpush1.msra.mxu0 0.0
      %782 = vmatprep.subr.mxu0 0.0
      %783 = vmatpush1.msra.mxu0 0.0
      %784 = vmatprep.subr.mxu0 0.0
      %785 = vmatpush1.msra.mxu0 0.0
      %786 = vmatprep.subr.mxu0 0.0
      %787 = vmatpush1.msra.mxu0 0.0
      %788 = vmatprep.subr.mxu0 0.0
      %789 = vmatpush1.msra.mxu0 0.0
      %790 = vmatprep.subr.mxu0 0.0
      %791 = vmatpush1.msra.mxu0 0.0
      %792 = vmatprep.subr.mxu0 0.0
      %793 = vmatpush1.msra.mxu0 0.0
      %794 = vmatprep.subr.mxu0 0.0
      %795 = vmatpush1.msra.mxu0 0.0
      %796 = vmatprep.subr.mxu0 0.0
      %797 = vmatpush1.msra.mxu0 0.0
      %798 = vmatprep.subr.mxu0 0.0
      %799 = vmatpush1.msra.mxu0 0.0
      %800 = vmatprep.subr.mxu0 0.0
      %801 = vmatpush1.msra.mxu0 0.0
      %802 = vmatprep.subr.mxu0 0.0
      %803 = vmatpush1.msra.mxu0 0.0
      %804 = vmatprep.subr.mxu0 0.0
      %805 = vmatpush1.msra.mxu0 0.0
      %806 = vmatprep.mubr.f32.mxu0 0.0
      %807 = vmatmul.mubr.f32.gmra.mrb[0].mxu0 %v738
      %v808 = vpop.f32.mrb[0].mxu0
      %v809 = vadd.f32 0.0, %v808
      %v810 = vpop.f32.mrb[0].mxu0
      %811 = vmatprep.mubr.f32.mxu0 0.0
      %812 = vmatmul.mubr.f32.gmra.mrb[0].mxu0 %v740
      %v813 = vpop.f32.mrb[0].mxu0
      %v814 = vadd.f32 0.0, %v813
      %v815 = vpop.f32.mrb[0].mxu0
      %816 = vdwg.mxu0
      %v817 = vmul.f32 %v648, %v724
      %v818 = vmul.f32 %v649, %v729
      %v819 = vsel %vm581, %v817, 0.0
      %820 = vadd.xlane.f32.xlu0 %v819
      %v821 = vpop.xlane.xlu0 %820
      %v822 = vsel %vm581, %v818, 0.0
      %823 = vadd.xlane.f32.xlu0 %v822
      %v824 = vpop.xlane.xlu0 %823
      %v825 = vstv %s368
      %v826 = vadd.f32 %v821, %v825
      %v827 = vadd.f32 %v824, %v825
      %830 = vrot.lane.b32.xlu0 %v724, 8
      %v831 = vpop.permute.xlu0 %830
      %832 = vrot.lane.b32.xlu0 %v729, 8
      %v833 = vpop.permute.xlu0 %832
      %v836 = vmul.f32 %v648, %v831
      %v837 = vmul.f32 %v649, %v833
      %840 = vrot.lane.b32.xlu0 %v836, 120
      %v841 = vpop.permute.xlu0 %840
      %842 = vrot.lane.b32.xlu0 %v837, 120
      %v843 = vpop.permute.xlu0 %842
      %v846 = vsel %vm581, %v841, 0.0
      %847 = vadd.xlane.f32.xlu0 %v846
      %v848 = vpop.xlane.xlu0 %847
      %v849 = vsel %vm581, %v843, 0.0
      %850 = vadd.xlane.f32.xlu0 %v849
      %v851 = vpop.xlane.xlu0 %850
      %v852 = vadd.f32 %v848, %v825
      %v853 = vadd.f32 %v851, %v825
      %856 = vrot.lane.b32.xlu0 %v809, 8
      %v857 = vpop.permute.xlu0 %856
      %858 = vrot.lane.b32.xlu0 %v814, 8
      %v859 = vpop.permute.xlu0 %858
      %v862 = vmul.f32 %v648, %v857
      %v863 = vmul.f32 %v649, %v859
      %866 = vrot.lane.b32.xlu0 %v862, 120
      %v867 = vpop.permute.xlu0 %866
      %868 = vrot.lane.b32.xlu0 %v863, 120
      %v869 = vpop.permute.xlu0 %868
      %v872 = vsel %vm581, %v867, 0.0
      %873 = vadd.xlane.f32.xlu0 %v872
      %v874 = vpop.xlane.xlu0 %873
      %v875 = vsel %vm581, %v869, 0.0
      %876 = vadd.xlane.f32.xlu0 %v875
      %v877 = vpop.xlane.xlu0 %876
      %v878 = vadd.f32 %v874, %v825
      %v879 = vadd.f32 %v877, %v825
      %v880 = vmul.f32 %v648, %v809
      %v881 = vmul.f32 %v649, %v814
      %v882 = vsel %vm581, %v880, 0.0
      %883 = vadd.xlane.f32.xlu0 %v882
      %v884 = vpop.xlane.xlu0 %883
      %v885 = vsel %vm581, %v881, 0.0
      %886 = vadd.xlane.f32.xlu0 %v885
      %v887 = vpop.xlane.xlu0 %886
      %v888 = vadd.f32 %v884, %v825
      %v889 = vadd.f32 %v887, %v825
      %vm890 = vcmask 7168
      %v891 = vsel %vm890, %v826, %v852
      %v892 = vsel %vm890, %v827, %v853
      %vm893 = vcmask 15360
      %v894 = vsel %vm893, %v891, %v878
      %v895 = vsel %vm893, %v892, %v879
      %vm896 = vcmask 23552
      %v897 = vsel %vm896, %v894, %v888
      %v898 = vsel %vm896, %v895, %v889
      %vm899 = vcmask 31744
      %900 = vst.msk [vmem:[%s366] sm:$0xff] %vm899, %v897
      %901 = vst.msk [vmem:[%s366 + $0x8] sm:$0xff] %vm899, %v898
      %s902 = smul.u32 2, %s21
      %p903 = scmp.lt.s32.totalorder %s902, 7
      %s904 = scalar_select %p903, %s902, 7
      %s905 = smul.addr %s904, 8
      %s906 = scalar_lea.vmem %s7, %s905
      %s907 = smul.u32 2, %s21
      %p908 = scmp.lt.s32.totalorder %s907, 7
      %s909 = scalar_select %p908, %s907, 7
      %s910 = smul.addr %s909, 8
      %s911 = scalar_lea.vmem %s8, %s910
      // Predicated region
      $region49: #{encoder_forward.9} parent=47 // pred_check
        %p912 = pneg %p201
      $region50: #{encoder_forward.9} parent=47 // pred_check_branch
        %914 = sbr.rel (%p912) target = $region52
      $region51: #{encoder_forward.9} parent=47 // pred_region
        %s915 = smul.u32 2, %s21
      $region52: #{encoder_forward.9} parent=47 // pred_fallthru
        _
      // Predicated region
      $region53: #{encoder_forward.9} parent=47 // pred_check
        %p916 = pneg %p227
      $region54: #{encoder_forward.9} parent=47 // pred_check_branch
        %918 = sbr.rel (%p916) target = $region56
      $region55: #{encoder_forward.9} parent=47 // pred_region
        %s919 = smul.u32 2, %s21
      $region56: #{encoder_forward.9} parent=47 // pred_fallthru
        _
    $region48: #{encoder_forward.9} parent=5 // pred_fallthru
      _
    %p920 = scmp.le.s32.totalorder 2, %s16
    // Predicated region
    $region57: #{encoder_forward.9} parent=5 // pred_check
      %p921 = pneg %p920
    $region58: #{encoder_forward.9} parent=5 // pred_check_branch
      %923 = sbr.rel (%p921) target = $region60
    $region59: #{encoder_forward.9} parent=5 // pred_region
      %s924 = ssub.s32 %s16, 2
      // Predicated region
      $region61: #{encoder_forward.9} parent=59 // pred_check
        %p925 = pneg %p207
      $region62: #{encoder_forward.9} parent=59 // pred_check_branch
        %927 = sbr.rel (%p925) target = $region64
      $region63: #{encoder_forward.9} parent=59 // pred_region
        %s928 = smul.u32 2, %s22
        %p929 = scmp.lt.s32.totalorder %s928, 7
        %s930 = scalar_select %p929, %s928, 7
        %s931 = smul.addr %s930, 8
        %s932 = scalar_lea.vmem %s7, %s931
      $region64: #{encoder_forward.9} parent=59 // pred_fallthru
        _
      // Predicated region
      $region65: #{encoder_forward.9} parent=59 // pred_check
        %p933 = pneg %p233
      $region66: #{encoder_forward.9} parent=59 // pred_check_branch
        %935 = sbr.rel (%p933) target = $region68
      $region67: #{encoder_forward.9} parent=59 // pred_region
        %s936 = smul.u32 2, %s22
        %p937 = scmp.lt.s32.totalorder %s936, 7
        %s938 = scalar_select %p937, %s936, 7
        %s939 = smul.addr %s938, 8
        %s940 = scalar_lea.vmem %s8, %s939
      $region68: #{encoder_forward.9} parent=59 // pred_fallthru
        _
    $region60: #{encoder_forward.9} parent=5 // pred_fallthru
      _
  $region6: #{encoder_forward.9} parent=0 // loop_footer
    %s20 = sadd.s32 1, %s16
  $region7: #{encoder_forward.9} parent=0 // loop_footer_branch
    %15 = sbr.rel target = $region3
  $region8: #{encoder_forward.9} parent=0 // loop_exit
    _

</llo_original>
